<compile_context>
chip_gen: v7x
topology: tpu7x:2x2x1
jax: 0.10.0
libtpu: 0.0.40
codegen_flags: <defaults>
</compile_context>

<pallas_src>
import jax
import jax.numpy as jnp
from jax.experimental import pallas as pl
from jax.experimental.pallas import tpu as pltpu


CONV_CFG = ((9, 2, 4), (5, 2, 2), (5, 2, 2), (3, 2, 1))   # (kernel, stride, pad)
POOL_CFG = (8, 2)                                          # MaxPool1d(kernel, stride)
BN_EPS = 1e-6                                              # BatchNorm1d(eps=1e-06)


def _full_spec(shape):
    nd = len(shape)
    return pl.BlockSpec(shape, lambda i, _nd=nd: (0,) * _nd)


def _lstm_cell(gates, c_prev):
    """Standard PyTorch LSTM cell, gate order (i, f, g, o)."""
    hh = gates.shape[-1] // 4
    i = jax.nn.sigmoid(gates[:, 0 * hh:1 * hh])
    f = jax.nn.sigmoid(gates[:, 1 * hh:2 * hh])
    g = jnp.tanh(gates[:, 2 * hh:3 * hh])
    o = jax.nn.sigmoid(gates[:, 3 * hh:4 * hh])
    c_new = f * c_prev + i * g
    h_new = o * jnp.tanh(c_new)
    return h_new, c_new
    # TODO(synk): at full scale (H=200 => 4H=800) pad each gate block to a
    # multiple of 128 lanes so the slices above stay lane-aligned.


def _fold_bn(conv_b, gamma, beta, mean, var, eps=BN_EPS):
    inv_std = 1.0 / jnp.sqrt(var + eps)
    scale = (gamma * inv_std).astype(jnp.float32)
    shift = ((conv_b - mean) * gamma * inv_std + beta).astype(jnp.float32)
    return scale.reshape(1, -1), shift.reshape(1, -1)


# --------------------------------------------------------------------------
# One-time parameter preparation (hoisted OUT of the jitted forward)
# --------------------------------------------------------------------------
def prepare_params(p, T, H):
    q = {}
    for i in range(1, 5):
        q[f'w{i}'] = p[f'conv{i}_w']                        # (k, Cin, Cout)
        q[f's{i}'], q[f't{i}'] = _fold_bn(p[f'conv{i}_b'], p[f'bn{i}_g'],
                                          p[f'bn{i}_b'], p[f'bn{i}_m'],
                                          p[f'bn{i}_v'])
    # LSTM layer-0 input projection, both directions fused -> lane-dense (64, 8H)
    q['wx0'] = jnp.concatenate([p['wih0f'].T, p['wih0r'].T], axis=1)
    q['bx0'] = jnp.concatenate([p['bih0f'] + p['bhh0f'],
                                p['bih0r'] + p['bhh0r']]).reshape(1, -1)
    q['whh0f'] = jnp.transpose(p['whh0f'])                  # (H, 4H)
    q['whh0r'] = jnp.transpose(p['whh0r'])
    # LSTM layer-1 input projection: split by layer-0 direction halves so the
    # kernel never lane-concatenates [h_f, h_r].
    wx1 = jnp.concatenate([p['wih1f'].T, p['wih1r'].T], axis=1)   # (2H, 8H)
    q['wx1f'] = wx1[:H]
    q['wx1r'] = wx1[H:]
    q['bx1'] = jnp.concatenate([p['bih1f'] + p['bhh1f'],
                                p['bih1r'] + p['bhh1r']]).reshape(1, -1)
    q['whh1f'] = jnp.transpose(p['whh1f'])
    q['whh1r'] = jnp.transpose(p['whh1r'])
    # Head: hw1 reshaped so each (time, direction) row chunk is a major-dim read.
    dim_in = p['hw1'].shape[0]
    q['hw1'] = p['hw1'].reshape(2 * T, H, dim_in)
    q['hb1'] = p['hb1'].reshape(1, -1)
    q['hw2'] = p['hw2']
    q['hb2'] = p['hb2'].reshape(1, -1)
    # TODO(synk): at full nina1 scale (dim_in=10000) store hw1/hw2 in bf16 and
    # K-tile the head matmul with per-generation tile sizes (v7x 64 MiB VMEM vs
    # 128 MiB on v5e/v6e) instead of loading it as one const block.
    return {k: jnp.asarray(v, jnp.float32) for k, v in q.items()}


# --------------------------------------------------------------------------
# Fused kernel: conv stack + biLSTM x2 + head + normalize
# --------------------------------------------------------------------------
def build_forward(T, B, C_in, L0, H, feat_dim):
    N = T * B

    # Static conv geometry: the stack must collapse to a single output position
    # so PyTorch's channel-first flatten coincides with our channel-last one.
    l = L0
    k0, s0, p0 = CONV_CFG[0]
    l = (l + 2 * p0 - k0) // s0 + 1
    l = (l - POOL_CFG[0]) // POOL_CFG[1] + 1
    for kk, ss, pp in CONV_CFG[1:]:
        l = (l + 2 * pp - kk) // ss + 1
    assert l == 1, "conv stack must collapse to length 1 (flatten == identity)"
    # TODO(synk): generalise the flatten to channel-major order for configs
    # where the final conv length is > 1 (e.g. nina2 with out_channels=832).

    def kernel(x_ref,
               w1_ref, s1_ref, t1_ref, w2_ref, s2_ref, t2_ref,
               w3_ref, s3_ref, t3_ref, w4_ref, s4_ref, t4_ref,
               wx0_ref, bx0_ref, whh0f_ref, whh0r_ref,
               wx1f_ref, wx1r_ref, bx1_ref, whh1f_ref, whh1r_ref,
               hw1_ref, hb1_ref, hw2_ref, hb2_ref,
               out_ref):
        # ------------------ TimeDistributed(ConvLayer) ------------------
        x = x_ref[...]                               # (N, L0, C_in)
        blocks = [x[:, i, :] for i in range(L0)]     # per-position (N, C_in)

        def conv(blks, w_ref, sc_ref, sh_ref, k, stride, pad, act):
            """Conv1d + folded BN affine + activation.

            Per-tap matmuls with M = l_out * N (positions stacked along the
            sublane axis, 8-row aligned); padding-only taps are skipped.
            """
            l_in = len(blks)
            l_out = (l_in + 2 * pad - k) // stride + 1
            n, c_in = blks[0].shape
            c_out = w_ref.shape[-1]
            zero = jnp.zeros((n, c_in), jnp.float32)
            padded = [zero] * pad + list(blks) + [zero] * pad
            acc = jnp.zeros((l_out * n, c_out), jnp.float32)
            for j in range(k):
                rows = [padded[stride * t + j] for t in range(l_out)]
                if all(r is zero for r in rows):     # tap hits only zero padding
                    continue
                xj = rows[0] if l_out == 1 else jnp.concatenate(rows, axis=0)
                acc = acc + jnp.dot(xj, w_ref[j],
                                    preferred_element_type=jnp.float32)
            y = act(acc * sc_ref[...] + sh_ref[...])
            return [y[t * n:(t + 1) * n] for t in range(l_out)]

        def pool_tanh(blks, k, stride):
            l_out = (len(blks) - k) // stride + 1
            outs = []
            for t in range(l_out):
                m = blks[stride * t]
                for j in range(1, k):
                    m = jnp.maximum(m, blks[stride * t + j])
                outs.append(jnp.tanh(m))
            return outs

        kk, ss, pp = CONV_CFG[0]
        h = conv(blocks, w1_ref, s1_ref, t1_ref, kk, ss, pp, lambda v: v)
        h = pool_tanh(h, *POOL_CFG)
        kk, ss, pp = CONV_CFG[1]
        h = conv(h, w2_ref, s2_ref, t2_ref, kk, ss, pp, jnp.tanh)
        kk, ss, pp = CONV_CFG[2]
        h = conv(h, w3_ref, s3_ref, t3_ref, kk, ss, pp, jnp.tanh)
        kk, ss, pp = CONV_CFG[3]
        h = conv(h, w4_ref, s4_ref, t4_ref, kk, ss, pp,
                 lambda v: jax.nn.relu(jnp.tanh(v)))
        feat = h[0]                                  # (N, 64), rows time-major

        # ------------------ Bidirectional LSTM layer 0 ------------------
        # Lane-dense (N, 8H = 128) input projection for both directions at once
        # (b_ih + b_hh already folded into bx0).
        xg0 = jnp.dot(feat, wx0_ref[...],
                      preferred_element_type=jnp.float32) + bx0_ref[...]
        xg0_t = [xg0[t * B:(t + 1) * B] for t in range(T)]

        def run_direction(pre_t, whh, reverse):
            """Unrolled recurrence over T steps; h/c are SSA values."""
            hcur = jnp.zeros((B, H), jnp.float32)
            ccur = jnp.zeros((B, H), jnp.float32)
            outs = [None] * T
            order = range(T - 1, -1, -1) if reverse else range(T)
            for t in order:
                gates = pre_t[t] + jnp.dot(hcur, whh,
                                           preferred_element_type=jnp.float32)
                hcur, ccur = _lstm_cell(gates, ccur)
                outs[t] = hcur
            return outs

        o0f = run_direction([g[:, :4 * H] for g in xg0_t], whh0f_ref[...], False)
        o0r = run_direction([g[:, 4 * H:] for g in xg0_t], whh0r_ref[...], True)

        # ------------------ Bidirectional LSTM layer 1 ------------------
        # Dropout between LSTM layers is identity in eval mode.
        wx1f = wx1f_ref[...]                         # (H, 8H), multiplies h_fwd
        wx1r = wx1r_ref[...]                         # (H, 8H), multiplies h_rev
        bx1 = bx1_ref[...]
        xg1_t = [jnp.dot(o0f[t], wx1f, preferred_element_type=jnp.float32)
                 + jnp.dot(o0r[t], wx1r, preferred_element_type=jnp.float32)
                 + bx1 for t in range(T)]

        o1f = run_direction([g[:, :4 * H] for g in xg1_t], whh1f_ref[...], False)
        o1r = run_direction([g[:, 4 * H:] for g in xg1_t], whh1r_ref[...], True)

        # ---------- Head: Linear -> ReLU -> Linear -> F.normalize(dim=1) ----
        # PyTorch flatten of the (B, T, 2H) LSTM output: row chunk (2t+d)*H of
        # the first Linear weight multiplies direction d's hidden state at time
        # t; hw1 is pre-reshaped to (2T, H, D) so each chunk is a major-dim read.
        acc = jnp.zeros((B, hw1_ref.shape[-1]), jnp.float32)
        for t in range(T):
            acc = acc + jnp.dot(o1f[t], hw1_ref[2 * t],
                                preferred_element_type=jnp.float32)
            acc = acc + jnp.dot(o1r[t], hw1_ref[2 * t + 1],
                                preferred_element_type=jnp.float32)
        h1 = jax.nn.relu(acc + hb1_ref[...])
        h2 = jnp.dot(h1, hw2_ref[...],
                     preferred_element_type=jnp.float32) + hb2_ref[...]
        nrm = jnp.maximum(jnp.sqrt(jnp.sum(h2 * h2, axis=1, keepdims=True)),
                          1e-12)
        out_ref[...] = h2 / nrm

    param_order = ('w1', 's1', 't1', 'w2', 's2', 't2',
                   'w3', 's3', 't3', 'w4', 's4', 't4',
                   'wx0', 'bx0', 'whh0f', 'whh0r',
                   'wx1f', 'wx1r', 'bx1', 'whh1f', 'whh1r',
                   'hw1', 'hb1', 'hw2', 'hb2')

    def forward(x, q):
        assert x.shape == (B, T, C_in, L0)
        assert q['wx0'].shape[0] == q['w4'].shape[-1]       # conv feat -> LSTM in
        assert q['hw1'].shape == (2 * T, H, T * 2 * H)      # flatten dim check
        # Single relayout at the TimeDistributed boundary:
        # (B, T, C, L) -> (T, B, L, C) -> time-major pseudo-batch (T*B, L, C).
        xk = jnp.transpose(x, (1, 0, 3, 2)).reshape(N, L0, C_in)
        xk = xk.astype(jnp.float32)
        args = [xk] + [q[k] for k in param_order]
        return pl.pallas_call(
            kernel,
            out_shape=jax.ShapeDtypeStruct((B, feat_dim), jnp.float32),
            grid=(1,),
            in_specs=[_full_spec(a.shape) for a in args],
            out_specs=pl.BlockSpec((B, feat_dim), lambda i: (0, 0)),
            compiler_params=pltpu.CompilerParams(
                dimension_semantics=("arbitrary",)),
        )(*args)
        # TODO(synk): at full nina1 scale (SL=25, NL=200), split T across a
        # leading "parallel" grid axis for v7x's two TensorCores and K-tile the
        # head weight instead of fully fusing it.

    return forward


# --------------------------------------------------------------------------
# Deterministic parameter initialisation (synthetic, not a checkpoint)
# --------------------------------------------------------------------------
def init_params(key, c_in, H, dim_in, feat_dim):
    keys = iter(jax.random.split(key, 64))

    def nrm(shape, scale=0.1):
        return scale * jax.random.normal(next(keys), shape, jnp.float32)

    p = {}
    conv_cfg = [(c_in, 64, 9), (64, 64, 5), (64, 64, 5), (64, 64, 3)]
    for i, (ci, co, k) in enumerate(conv_cfg, start=1):
        w_torch = nrm((co, ci, k))                            # PyTorch (Cout, Cin, k)
        p[f'conv{i}_w'] = jnp.transpose(w_torch, (2, 1, 0))   # (k, Cin, Cout)
        p[f'conv{i}_b'] = nrm((co,))
        p[f'bn{i}_g'] = 1.0 + nrm((co,))
        p[f'bn{i}_b'] = nrm((co,))
        p[f'bn{i}_m'] = nrm((co,))
        p[f'bn{i}_v'] = 1.0 + jnp.abs(nrm((co,)))

    lstm_in = [64, 2 * H]
    for layer in range(2):
        for d in ('f', 'r'):
            p[f'wih{layer}{d}'] = nrm((4 * H, lstm_in[layer]))
            p[f'whh{layer}{d}'] = nrm((4 * H, H))
            p[f'bih{layer}{d}'] = nrm((4 * H,))
            p[f'bhh{layer}{d}'] = nrm((4 * H,))

    # head weights stored as (in_features, out_features)
    p['hw1'] = nrm((dim_in, dim_in))
    p['hb1'] = nrm((dim_in,))
    p['hw2'] = nrm((dim_in, feat_dim))
    p['hb2'] = nrm((feat_dim,))
    return p


# --------------------------------------------------------------------------
if __name__ == "__main__":
    key = jax.random.PRNGKey(0)
    kp, kx = jax.random.split(key)

    # small shapes: nina1 in_channels=10; SL=4, NL=16, feat_dim=16, signal L=20
    B, SL_, C_IN, L = 2, 4, 10, 20
    NL_ = 16
    FEAT_DIM = 16
    DIM_IN = SL_ * 2 * NL_                                    # = 128

    params = init_params(kp, C_IN, NL_, DIM_IN, FEAT_DIM)
    prepared = prepare_params(params, SL_, NL_)               # one-time glue, outside jit
    x = jax.random.normal(kx, (B, SL_, C_IN, L), jnp.float32)

    forward = build_forward(SL_, B, C_IN, L, NL_, FEAT_DIM)
    fwd = jax.jit(forward)
    out = jax.block_until_ready(fwd(x, prepared))
    assert out.shape == (B, FEAT_DIM)
    assert bool(jnp.all(jnp.isfinite(out)))
    print("KERNEL_OK")
</pallas_src>

<mosaic_0001>
module attributes {stable_mosaic.version = 11 : i64} {
  func.func @kernel(%arg0: i32, %arg1: memref<8x20x10xf32, #tpu.memory_space<vmem>>, %arg2: memref<9x10x64xf32, #tpu.memory_space<vmem>>, %arg3: memref<1x64xf32, #tpu.memory_space<vmem>>, %arg4: memref<1x64xf32, #tpu.memory_space<vmem>>, %arg5: memref<5x64x64xf32, #tpu.memory_space<vmem>>, %arg6: memref<1x64xf32, #tpu.memory_space<vmem>>, %arg7: memref<1x64xf32, #tpu.memory_space<vmem>>, %arg8: memref<5x64x64xf32, #tpu.memory_space<vmem>>, %arg9: memref<1x64xf32, #tpu.memory_space<vmem>>, %arg10: memref<1x64xf32, #tpu.memory_space<vmem>>, %arg11: memref<3x64x64xf32, #tpu.memory_space<vmem>>, %arg12: memref<1x64xf32, #tpu.memory_space<vmem>>, %arg13: memref<1x64xf32, #tpu.memory_space<vmem>>, %arg14: memref<64x128xf32, #tpu.memory_space<vmem>>, %arg15: memref<1x128xf32, #tpu.memory_space<vmem>>, %arg16: memref<16x64xf32, #tpu.memory_space<vmem>>, %arg17: memref<16x64xf32, #tpu.memory_space<vmem>>, %arg18: memref<16x128xf32, #tpu.memory_space<vmem>>, %arg19: memref<16x128xf32, #tpu.memory_space<vmem>>, %arg20: memref<1x128xf32, #tpu.memory_space<vmem>>, %arg21: memref<16x64xf32, #tpu.memory_space<vmem>>, %arg22: memref<16x64xf32, #tpu.memory_space<vmem>>, %arg23: memref<8x16x128xf32, #tpu.memory_space<vmem>>, %arg24: memref<1x128xf32, #tpu.memory_space<vmem>>, %arg25: memref<128x16xf32, #tpu.memory_space<vmem>>, %arg26: memref<1x16xf32, #tpu.memory_space<vmem>>, %arg27: memref<2x16xf32, #tpu.memory_space<vmem>>) attributes {dimension_semantics = [#tpu.dimension_semantics<arbitrary>], iteration_bounds = array<i64: 1>, scalar_prefetch = 0 : i64, scratch_operands = 0 : i64, tpu.core_type = #tpu.core_type<tc>, window_params = [{pipeline_mode = #tpu.pipeline_mode<synchronous>, transform_indices = @transform_0, window_bounds = array<i64: 8, 20, 10>}, {pipeline_mode = #tpu.pipeline_mode<synchronous>, transform_indices = @transform_1, window_bounds = array<i64: 9, 10, 64>}, {pipeline_mode = #tpu.pipeline_mode<synchronous>, transform_indices = @transform_2, window_bounds = array<i64: 1, 64>}, {pipeline_mode = #tpu.pipeline_mode<synchronous>, transform_indices = @transform_3, window_bounds = array<i64: 1, 64>}, {pipeline_mode = #tpu.pipeline_mode<synchronous>, transform_indices = @transform_4, window_bounds = array<i64: 5, 64, 64>}, {pipeline_mode = #tpu.pipeline_mode<synchronous>, transform_indices = @transform_5, window_bounds = array<i64: 1, 64>}, {pipeline_mode = #tpu.pipeline_mode<synchronous>, transform_indices = @transform_6, window_bounds = array<i64: 1, 64>}, {pipeline_mode = #tpu.pipeline_mode<synchronous>, transform_indices = @transform_7, window_bounds = array<i64: 5, 64, 64>}, {pipeline_mode = #tpu.pipeline_mode<synchronous>, transform_indices = @transform_8, window_bounds = array<i64: 1, 64>}, {pipeline_mode = #tpu.pipeline_mode<synchronous>, transform_indices = @transform_9, window_bounds = array<i64: 1, 64>}, {pipeline_mode = #tpu.pipeline_mode<synchronous>, transform_indices = @transform_10, window_bounds = array<i64: 3, 64, 64>}, {pipeline_mode = #tpu.pipeline_mode<synchronous>, transform_indices = @transform_11, window_bounds = array<i64: 1, 64>}, {pipeline_mode = #tpu.pipeline_mode<synchronous>, transform_indices = @transform_12, window_bounds = array<i64: 1, 64>}, {pipeline_mode = #tpu.pipeline_mode<synchronous>, transform_indices = @transform_13, window_bounds = array<i64: 64, 128>}, {pipeline_mode = #tpu.pipeline_mode<synchronous>, transform_indices = @transform_14, window_bounds = array<i64: 1, 128>}, {pipeline_mode = #tpu.pipeline_mode<synchronous>, transform_indices = @transform_15, window_bounds = array<i64: 16, 64>}, {pipeline_mode = #tpu.pipeline_mode<synchronous>, transform_indices = @transform_16, window_bounds = array<i64: 16, 64>}, {pipeline_mode = #tpu.pipeline_mode<synchronous>, transform_indices = @transform_17, window_bounds = array<i64: 16, 128>}, {pipeline_mode = #tpu.pipeline_mode<synchronous>, transform_indices = @transform_18, window_bounds = array<i64: 16, 128>}, {pipeline_mode = #tpu.pipeline_mode<synchronous>, transform_indices = @transform_19, window_bounds = array<i64: 1, 128>}, {pipeline_mode = #tpu.pipeline_mode<synchronous>, transform_indices = @transform_20, window_bounds = array<i64: 16, 64>}, {pipeline_mode = #tpu.pipeline_mode<synchronous>, transform_indices = @transform_21, window_bounds = array<i64: 16, 64>}, {pipeline_mode = #tpu.pipeline_mode<synchronous>, transform_indices = @transform_22, window_bounds = array<i64: 8, 16, 128>}, {pipeline_mode = #tpu.pipeline_mode<synchronous>, transform_indices = @transform_23, window_bounds = array<i64: 1, 128>}, {pipeline_mode = #tpu.pipeline_mode<synchronous>, transform_indices = @transform_24, window_bounds = array<i64: 128, 16>}, {pipeline_mode = #tpu.pipeline_mode<synchronous>, transform_indices = @transform_25, window_bounds = array<i64: 1, 16>}, {pipeline_mode = #tpu.pipeline_mode<synchronous>, transform_indices = @transform_26, window_bounds = array<i64: 2, 16>}]} {
    %c0 = arith.constant 0 : index
    %c0_0 = arith.constant 0 : index
    %c0_1 = arith.constant 0 : index
    %0 = vector.load %arg1[%c0, %c0_0, %c0_1] : memref<8x20x10xf32, #tpu.memory_space<vmem>>, vector<8x20x10xf32>
    %1 = vector.extract_strided_slice %0 {offsets = [0, 0, 0], sizes = [8, 1, 10], strides = [1, 1, 1]} : vector<8x20x10xf32> to vector<8x1x10xf32>
    %2 = vector.shape_cast %1 : vector<8x1x10xf32> to vector<8x10xf32>
    %3 = vector.extract_strided_slice %0 {offsets = [0, 1, 0], sizes = [8, 1, 10], strides = [1, 1, 1]} : vector<8x20x10xf32> to vector<8x1x10xf32>
    %4 = vector.shape_cast %3 : vector<8x1x10xf32> to vector<8x10xf32>
    %5 = vector.extract_strided_slice %0 {offsets = [0, 2, 0], sizes = [8, 1, 10], strides = [1, 1, 1]} : vector<8x20x10xf32> to vector<8x1x10xf32>
    %6 = vector.shape_cast %5 : vector<8x1x10xf32> to vector<8x10xf32>
    %7 = vector.extract_strided_slice %0 {offsets = [0, 3, 0], sizes = [8, 1, 10], strides = [1, 1, 1]} : vector<8x20x10xf32> to vector<8x1x10xf32>
    %8 = vector.shape_cast %7 : vector<8x1x10xf32> to vector<8x10xf32>
    %9 = vector.extract_strided_slice %0 {offsets = [0, 4, 0], sizes = [8, 1, 10], strides = [1, 1, 1]} : vector<8x20x10xf32> to vector<8x1x10xf32>
    %10 = vector.shape_cast %9 : vector<8x1x10xf32> to vector<8x10xf32>
    %11 = vector.extract_strided_slice %0 {offsets = [0, 5, 0], sizes = [8, 1, 10], strides = [1, 1, 1]} : vector<8x20x10xf32> to vector<8x1x10xf32>
    %12 = vector.shape_cast %11 : vector<8x1x10xf32> to vector<8x10xf32>
    %13 = vector.extract_strided_slice %0 {offsets = [0, 6, 0], sizes = [8, 1, 10], strides = [1, 1, 1]} : vector<8x20x10xf32> to vector<8x1x10xf32>
    %14 = vector.shape_cast %13 : vector<8x1x10xf32> to vector<8x10xf32>
    %15 = vector.extract_strided_slice %0 {offsets = [0, 7, 0], sizes = [8, 1, 10], strides = [1, 1, 1]} : vector<8x20x10xf32> to vector<8x1x10xf32>
    %16 = vector.shape_cast %15 : vector<8x1x10xf32> to vector<8x10xf32>
    %17 = vector.extract_strided_slice %0 {offsets = [0, 8, 0], sizes = [8, 1, 10], strides = [1, 1, 1]} : vector<8x20x10xf32> to vector<8x1x10xf32>
    %18 = vector.shape_cast %17 : vector<8x1x10xf32> to vector<8x10xf32>
    %19 = vector.extract_strided_slice %0 {offsets = [0, 9, 0], sizes = [8, 1, 10], strides = [1, 1, 1]} : vector<8x20x10xf32> to vector<8x1x10xf32>
    %20 = vector.shape_cast %19 : vector<8x1x10xf32> to vector<8x10xf32>
    %21 = vector.extract_strided_slice %0 {offsets = [0, 10, 0], sizes = [8, 1, 10], strides = [1, 1, 1]} : vector<8x20x10xf32> to vector<8x1x10xf32>
    %22 = vector.shape_cast %21 : vector<8x1x10xf32> to vector<8x10xf32>
    %23 = vector.extract_strided_slice %0 {offsets = [0, 11, 0], sizes = [8, 1, 10], strides = [1, 1, 1]} : vector<8x20x10xf32> to vector<8x1x10xf32>
    %24 = vector.shape_cast %23 : vector<8x1x10xf32> to vector<8x10xf32>
    %25 = vector.extract_strided_slice %0 {offsets = [0, 12, 0], sizes = [8, 1, 10], strides = [1, 1, 1]} : vector<8x20x10xf32> to vector<8x1x10xf32>
    %26 = vector.shape_cast %25 : vector<8x1x10xf32> to vector<8x10xf32>
    %27 = vector.extract_strided_slice %0 {offsets = [0, 13, 0], sizes = [8, 1, 10], strides = [1, 1, 1]} : vector<8x20x10xf32> to vector<8x1x10xf32>
    %28 = vector.shape_cast %27 : vector<8x1x10xf32> to vector<8x10xf32>
    %29 = vector.extract_strided_slice %0 {offsets = [0, 14, 0], sizes = [8, 1, 10], strides = [1, 1, 1]} : vector<8x20x10xf32> to vector<8x1x10xf32>
    %30 = vector.shape_cast %29 : vector<8x1x10xf32> to vector<8x10xf32>
    %31 = vector.extract_strided_slice %0 {offsets = [0, 15, 0], sizes = [8, 1, 10], strides = [1, 1, 1]} : vector<8x20x10xf32> to vector<8x1x10xf32>
    %32 = vector.shape_cast %31 : vector<8x1x10xf32> to vector<8x10xf32>
    %33 = vector.extract_strided_slice %0 {offsets = [0, 16, 0], sizes = [8, 1, 10], strides = [1, 1, 1]} : vector<8x20x10xf32> to vector<8x1x10xf32>
    %34 = vector.shape_cast %33 : vector<8x1x10xf32> to vector<8x10xf32>
    %35 = vector.extract_strided_slice %0 {offsets = [0, 17, 0], sizes = [8, 1, 10], strides = [1, 1, 1]} : vector<8x20x10xf32> to vector<8x1x10xf32>
    %36 = vector.shape_cast %35 : vector<8x1x10xf32> to vector<8x10xf32>
    %37 = vector.extract_strided_slice %0 {offsets = [0, 18, 0], sizes = [8, 1, 10], strides = [1, 1, 1]} : vector<8x20x10xf32> to vector<8x1x10xf32>
    %38 = vector.shape_cast %37 : vector<8x1x10xf32> to vector<8x10xf32>
    %39 = vector.extract_strided_slice %0 {offsets = [0, 19, 0], sizes = [8, 1, 10], strides = [1, 1, 1]} : vector<8x20x10xf32> to vector<8x1x10xf32>
    %40 = vector.shape_cast %39 : vector<8x1x10xf32> to vector<8x10xf32>
    %cst = arith.constant 0.000000e+00 : f32
    %41 = vector.broadcast %cst : f32 to vector<8x10xf32>
    %cst_2 = arith.constant 0.000000e+00 : f32
    %42 = vector.broadcast %cst_2 : f32 to vector<80x64xf32>
    %43 = tpu.concatenate %41, %41, %2, %6, %10, %14, %18, %22, %26, %30 in 0 : vector<8x10xf32>, vector<8x10xf32>, vector<8x10xf32>, vector<8x10xf32>, vector<8x10xf32>, vector<8x10xf32>, vector<8x10xf32>, vector<8x10xf32>, vector<8x10xf32>, vector<8x10xf32> -> vector<80x10xf32>
    %c0_3 = arith.constant 0 : index
    %c0_4 = arith.constant 0 : index
    %c0_5 = arith.constant 0 : index
    %44 = vector.load %arg2[%c0_3, %c0_4, %c0_5] : memref<9x10x64xf32, #tpu.memory_space<vmem>>, vector<1x10x64xf32>
    %45 = vector.shape_cast %44 : vector<1x10x64xf32> to vector<10x64xf32>
    %cst_6 = arith.constant dense<0.000000e+00> : vector<80x64xf32>
    %46 = tpu.matmul %43, %45, %cst_6 {dimension_numbers = #tpu.dot_dimension_numbers<[1], [0], [0], [1], [0, 0, 1, 1], [], []>} : vector<80x10xf32>, vector<10x64xf32>, vector<80x64xf32> -> vector<80x64xf32>
    %47 = arith.addf %42, %46 : vector<80x64xf32>
    %48 = tpu.concatenate %41, %41, %4, %8, %12, %16, %20, %24, %28, %32 in 0 : vector<8x10xf32>, vector<8x10xf32>, vector<8x10xf32>, vector<8x10xf32>, vector<8x10xf32>, vector<8x10xf32>, vector<8x10xf32>, vector<8x10xf32>, vector<8x10xf32>, vector<8x10xf32> -> vector<80x10xf32>
    %c1 = arith.constant 1 : index
    %c0_7 = arith.constant 0 : index
    %c0_8 = arith.constant 0 : index
    %49 = vector.load %arg2[%c1, %c0_7, %c0_8] : memref<9x10x64xf32, #tpu.memory_space<vmem>>, vector<1x10x64xf32>
    %50 = vector.shape_cast %49 : vector<1x10x64xf32> to vector<10x64xf32>
    %cst_9 = arith.constant dense<0.000000e+00> : vector<80x64xf32>
    %51 = tpu.matmul %48, %50, %cst_9 {dimension_numbers = #tpu.dot_dimension_numbers<[1], [0], [0], [1], [0, 0, 1, 1], [], []>} : vector<80x10xf32>, vector<10x64xf32>, vector<80x64xf32> -> vector<80x64xf32>
    %52 = arith.addf %47, %51 : vector<80x64xf32>
    %53 = tpu.concatenate %41, %2, %6, %10, %14, %18, %22, %26, %30, %34 in 0 : vector<8x10xf32>, vector<8x10xf32>, vector<8x10xf32>, vector<8x10xf32>, vector<8x10xf32>, vector<8x10xf32>, vector<8x10xf32>, vector<8x10xf32>, vector<8x10xf32>, vector<8x10xf32> -> vector<80x10xf32>
    %c2 = arith.constant 2 : index
    %c0_10 = arith.constant 0 : index
    %c0_11 = arith.constant 0 : index
    %54 = vector.load %arg2[%c2, %c0_10, %c0_11] : memref<9x10x64xf32, #tpu.memory_space<vmem>>, vector<1x10x64xf32>
    %55 = vector.shape_cast %54 : vector<1x10x64xf32> to vector<10x64xf32>
    %cst_12 = arith.constant dense<0.000000e+00> : vector<80x64xf32>
    %56 = tpu.matmul %53, %55, %cst_12 {dimension_numbers = #tpu.dot_dimension_numbers<[1], [0], [0], [1], [0, 0, 1, 1], [], []>} : vector<80x10xf32>, vector<10x64xf32>, vector<80x64xf32> -> vector<80x64xf32>
    %57 = arith.addf %52, %56 : vector<80x64xf32>
    %58 = tpu.concatenate %41, %4, %8, %12, %16, %20, %24, %28, %32, %36 in 0 : vector<8x10xf32>, vector<8x10xf32>, vector<8x10xf32>, vector<8x10xf32>, vector<8x10xf32>, vector<8x10xf32>, vector<8x10xf32>, vector<8x10xf32>, vector<8x10xf32>, vector<8x10xf32> -> vector<80x10xf32>
    %c3 = arith.constant 3 : index
    %c0_13 = arith.constant 0 : index
    %c0_14 = arith.constant 0 : index
    %59 = vector.load %arg2[%c3, %c0_13, %c0_14] : memref<9x10x64xf32, #tpu.memory_space<vmem>>, vector<1x10x64xf32>
    %60 = vector.shape_cast %59 : vector<1x10x64xf32> to vector<10x64xf32>
    %cst_15 = arith.constant dense<0.000000e+00> : vector<80x64xf32>
    %61 = tpu.matmul %58, %60, %cst_15 {dimension_numbers = #tpu.dot_dimension_numbers<[1], [0], [0], [1], [0, 0, 1, 1], [], []>} : vector<80x10xf32>, vector<10x64xf32>, vector<80x64xf32> -> vector<80x64xf32>
    %62 = arith.addf %57, %61 : vector<80x64xf32>
    %63 = tpu.concatenate %2, %6, %10, %14, %18, %22, %26, %30, %34, %38 in 0 : vector<8x10xf32>, vector<8x10xf32>, vector<8x10xf32>, vector<8x10xf32>, vector<8x10xf32>, vector<8x10xf32>, vector<8x10xf32>, vector<8x10xf32>, vector<8x10xf32>, vector<8x10xf32> -> vector<80x10xf32>
    %c4 = arith.constant 4 : index
    %c0_16 = arith.constant 0 : index
    %c0_17 = arith.constant 0 : index
    %64 = vector.load %arg2[%c4, %c0_16, %c0_17] : memref<9x10x64xf32, #tpu.memory_space<vmem>>, vector<1x10x64xf32>
    %65 = vector.shape_cast %64 : vector<1x10x64xf32> to vector<10x64xf32>
    %cst_18 = arith.constant dense<0.000000e+00> : vector<80x64xf32>
    %66 = tpu.matmul %63, %65, %cst_18 {dimension_numbers = #tpu.dot_dimension_numbers<[1], [0], [0], [1], [0, 0, 1, 1], [], []>} : vector<80x10xf32>, vector<10x64xf32>, vector<80x64xf32> -> vector<80x64xf32>
    %67 = arith.addf %62, %66 : vector<80x64xf32>
    %68 = tpu.concatenate %4, %8, %12, %16, %20, %24, %28, %32, %36, %40 in 0 : vector<8x10xf32>, vector<8x10xf32>, vector<8x10xf32>, vector<8x10xf32>, vector<8x10xf32>, vector<8x10xf32>, vector<8x10xf32>, vector<8x10xf32>, vector<8x10xf32>, vector<8x10xf32> -> vector<80x10xf32>
    %c5 = arith.constant 5 : index
    %c0_19 = arith.constant 0 : index
    %c0_20 = arith.constant 0 : index
    %69 = vector.load %arg2[%c5, %c0_19, %c0_20] : memref<9x10x64xf32, #tpu.memory_space<vmem>>, vector<1x10x64xf32>
    %70 = vector.shape_cast %69 : vector<1x10x64xf32> to vector<10x64xf32>
    %cst_21 = arith.constant dense<0.000000e+00> : vector<80x64xf32>
    %71 = tpu.matmul %68, %70, %cst_21 {dimension_numbers = #tpu.dot_dimension_numbers<[1], [0], [0], [1], [0, 0, 1, 1], [], []>} : vector<80x10xf32>, vector<10x64xf32>, vector<80x64xf32> -> vector<80x64xf32>
    %72 = arith.addf %67, %71 : vector<80x64xf32>
    %73 = tpu.concatenate %6, %10, %14, %18, %22, %26, %30, %34, %38, %41 in 0 : vector<8x10xf32>, vector<8x10xf32>, vector<8x10xf32>, vector<8x10xf32>, vector<8x10xf32>, vector<8x10xf32>, vector<8x10xf32>, vector<8x10xf32>, vector<8x10xf32>, vector<8x10xf32> -> vector<80x10xf32>
    %c6 = arith.constant 6 : index
    %c0_22 = arith.constant 0 : index
    %c0_23 = arith.constant 0 : index
    %74 = vector.load %arg2[%c6, %c0_22, %c0_23] : memref<9x10x64xf32, #tpu.memory_space<vmem>>, vector<1x10x64xf32>
    %75 = vector.shape_cast %74 : vector<1x10x64xf32> to vector<10x64xf32>
    %cst_24 = arith.constant dense<0.000000e+00> : vector<80x64xf32>
    %76 = tpu.matmul %73, %75, %cst_24 {dimension_numbers = #tpu.dot_dimension_numbers<[1], [0], [0], [1], [0, 0, 1, 1], [], []>} : vector<80x10xf32>, vector<10x64xf32>, vector<80x64xf32> -> vector<80x64xf32>
    %77 = arith.addf %72, %76 : vector<80x64xf32>
    %78 = tpu.concatenate %8, %12, %16, %20, %24, %28, %32, %36, %40, %41 in 0 : vector<8x10xf32>, vector<8x10xf32>, vector<8x10xf32>, vector<8x10xf32>, vector<8x10xf32>, vector<8x10xf32>, vector<8x10xf32>, vector<8x10xf32>, vector<8x10xf32>, vector<8x10xf32> -> vector<80x10xf32>
    %c7 = arith.constant 7 : index
    %c0_25 = arith.constant 0 : index
    %c0_26 = arith.constant 0 : index
    %79 = vector.load %arg2[%c7, %c0_25, %c0_26] : memref<9x10x64xf32, #tpu.memory_space<vmem>>, vector<1x10x64xf32>
    %80 = vector.shape_cast %79 : vector<1x10x64xf32> to vector<10x64xf32>
    %cst_27 = arith.constant dense<0.000000e+00> : vector<80x64xf32>
    %81 = tpu.matmul %78, %80, %cst_27 {dimension_numbers = #tpu.dot_dimension_numbers<[1], [0], [0], [1], [0, 0, 1, 1], [], []>} : vector<80x10xf32>, vector<10x64xf32>, vector<80x64xf32> -> vector<80x64xf32>
    %82 = arith.addf %77, %81 : vector<80x64xf32>
    %83 = tpu.concatenate %10, %14, %18, %22, %26, %30, %34, %38, %41, %41 in 0 : vector<8x10xf32>, vector<8x10xf32>, vector<8x10xf32>, vector<8x10xf32>, vector<8x10xf32>, vector<8x10xf32>, vector<8x10xf32>, vector<8x10xf32>, vector<8x10xf32>, vector<8x10xf32> -> vector<80x10xf32>
    %c8 = arith.constant 8 : index
    %c0_28 = arith.constant 0 : index
    %c0_29 = arith.constant 0 : index
    %84 = vector.load %arg2[%c8, %c0_28, %c0_29] : memref<9x10x64xf32, #tpu.memory_space<vmem>>, vector<1x10x64xf32>
    %85 = vector.shape_cast %84 : vector<1x10x64xf32> to vector<10x64xf32>
    %cst_30 = arith.constant dense<0.000000e+00> : vector<80x64xf32>
    %86 = tpu.matmul %83, %85, %cst_30 {dimension_numbers = #tpu.dot_dimension_numbers<[1], [0], [0], [1], [0, 0, 1, 1], [], []>} : vector<80x10xf32>, vector<10x64xf32>, vector<80x64xf32> -> vector<80x64xf32>
    %87 = arith.addf %82, %86 : vector<80x64xf32>
    %c0_31 = arith.constant 0 : index
    %c0_32 = arith.constant 0 : index
    %88 = vector.load %arg3[%c0_31, %c0_32] : memref<1x64xf32, #tpu.memory_space<vmem>>, vector<1x64xf32>
    %89 = vector.broadcast %88 : vector<1x64xf32> to vector<80x64xf32>
    %90 = arith.mulf %87, %89 : vector<80x64xf32>
    %c0_33 = arith.constant 0 : index
    %c0_34 = arith.constant 0 : index
    %91 = vector.load %arg4[%c0_33, %c0_34] : memref<1x64xf32, #tpu.memory_space<vmem>>, vector<1x64xf32>
    %92 = vector.broadcast %91 : vector<1x64xf32> to vector<80x64xf32>
    %93 = arith.addf %90, %92 : vector<80x64xf32>
    %94 = vector.extract_strided_slice %93 {offsets = [0, 0], sizes = [8, 64], strides = [1, 1]} : vector<80x64xf32> to vector<8x64xf32>
    %95 = vector.extract_strided_slice %93 {offsets = [8, 0], sizes = [8, 64], strides = [1, 1]} : vector<80x64xf32> to vector<8x64xf32>
    %96 = vector.extract_strided_slice %93 {offsets = [16, 0], sizes = [8, 64], strides = [1, 1]} : vector<80x64xf32> to vector<8x64xf32>
    %97 = vector.extract_strided_slice %93 {offsets = [24, 0], sizes = [8, 64], strides = [1, 1]} : vector<80x64xf32> to vector<8x64xf32>
    %98 = vector.extract_strided_slice %93 {offsets = [32, 0], sizes = [8, 64], strides = [1, 1]} : vector<80x64xf32> to vector<8x64xf32>
    %99 = vector.extract_strided_slice %93 {offsets = [40, 0], sizes = [8, 64], strides = [1, 1]} : vector<80x64xf32> to vector<8x64xf32>
    %100 = vector.extract_strided_slice %93 {offsets = [48, 0], sizes = [8, 64], strides = [1, 1]} : vector<80x64xf32> to vector<8x64xf32>
    %101 = vector.extract_strided_slice %93 {offsets = [56, 0], sizes = [8, 64], strides = [1, 1]} : vector<80x64xf32> to vector<8x64xf32>
    %102 = vector.extract_strided_slice %93 {offsets = [64, 0], sizes = [8, 64], strides = [1, 1]} : vector<80x64xf32> to vector<8x64xf32>
    %103 = vector.extract_strided_slice %93 {offsets = [72, 0], sizes = [8, 64], strides = [1, 1]} : vector<80x64xf32> to vector<8x64xf32>
    %104 = arith.maximumf %94, %95 : vector<8x64xf32>
    %105 = arith.maximumf %104, %96 : vector<8x64xf32>
    %106 = arith.maximumf %105, %97 : vector<8x64xf32>
    %107 = arith.maximumf %106, %98 : vector<8x64xf32>
    %108 = arith.maximumf %107, %99 : vector<8x64xf32>
    %109 = arith.maximumf %108, %100 : vector<8x64xf32>
    %110 = arith.maximumf %109, %101 : vector<8x64xf32>
    %111 = math.tanh %110 : vector<8x64xf32>
    %112 = arith.maximumf %96, %97 : vector<8x64xf32>
    %113 = arith.maximumf %112, %98 : vector<8x64xf32>
    %114 = arith.maximumf %113, %99 : vector<8x64xf32>
    %115 = arith.maximumf %114, %100 : vector<8x64xf32>
    %116 = arith.maximumf %115, %101 : vector<8x64xf32>
    %117 = arith.maximumf %116, %102 : vector<8x64xf32>
    %118 = arith.maximumf %117, %103 : vector<8x64xf32>
    %119 = math.tanh %118 : vector<8x64xf32>
    %cst_35 = arith.constant 0.000000e+00 : f32
    %120 = vector.broadcast %cst_35 : f32 to vector<8x64xf32>
    %c2_36 = arith.constant 2 : index
    %c0_37 = arith.constant 0 : index
    %c0_38 = arith.constant 0 : index
    %121 = vector.load %arg5[%c2_36, %c0_37, %c0_38] : memref<5x64x64xf32, #tpu.memory_space<vmem>>, vector<1x64x64xf32>
    %122 = vector.shape_cast %121 : vector<1x64x64xf32> to vector<64x64xf32>
    %cst_39 = arith.constant dense<0.000000e+00> : vector<8x64xf32>
    %123 = tpu.matmul %111, %122, %cst_39 {dimension_numbers = #tpu.dot_dimension_numbers<[1], [0], [0], [1], [0, 0, 1, 1], [], []>} : vector<8x64xf32>, vector<64x64xf32>, vector<8x64xf32> -> vector<8x64xf32>
    %124 = arith.addf %120, %123 : vector<8x64xf32>
    %c3_40 = arith.constant 3 : index
    %c0_41 = arith.constant 0 : index
    %c0_42 = arith.constant 0 : index
    %125 = vector.load %arg5[%c3_40, %c0_41, %c0_42] : memref<5x64x64xf32, #tpu.memory_space<vmem>>, vector<1x64x64xf32>
    %126 = vector.shape_cast %125 : vector<1x64x64xf32> to vector<64x64xf32>
    %cst_43 = arith.constant dense<0.000000e+00> : vector<8x64xf32>
    %127 = tpu.matmul %119, %126, %cst_43 {dimension_numbers = #tpu.dot_dimension_numbers<[1], [0], [0], [1], [0, 0, 1, 1], [], []>} : vector<8x64xf32>, vector<64x64xf32>, vector<8x64xf32> -> vector<8x64xf32>
    %128 = arith.addf %124, %127 : vector<8x64xf32>
    %c0_44 = arith.constant 0 : index
    %c0_45 = arith.constant 0 : index
    %129 = vector.load %arg6[%c0_44, %c0_45] : memref<1x64xf32, #tpu.memory_space<vmem>>, vector<1x64xf32>
    %130 = vector.broadcast %129 : vector<1x64xf32> to vector<8x64xf32>
    %131 = arith.mulf %128, %130 : vector<8x64xf32>
    %c0_46 = arith.constant 0 : index
    %c0_47 = arith.constant 0 : index
    %132 = vector.load %arg7[%c0_46, %c0_47] : memref<1x64xf32, #tpu.memory_space<vmem>>, vector<1x64xf32>
    %133 = vector.broadcast %132 : vector<1x64xf32> to vector<8x64xf32>
    %134 = arith.addf %131, %133 : vector<8x64xf32>
    %135 = math.tanh %134 : vector<8x64xf32>
    %cst_48 = arith.constant 0.000000e+00 : f32
    %136 = vector.broadcast %cst_48 : f32 to vector<8x64xf32>
    %c2_49 = arith.constant 2 : index
    %c0_50 = arith.constant 0 : index
    %c0_51 = arith.constant 0 : index
    %137 = vector.load %arg8[%c2_49, %c0_50, %c0_51] : memref<5x64x64xf32, #tpu.memory_space<vmem>>, vector<1x64x64xf32>
    %138 = vector.shape_cast %137 : vector<1x64x64xf32> to vector<64x64xf32>
    %cst_52 = arith.constant dense<0.000000e+00> : vector<8x64xf32>
    %139 = tpu.matmul %135, %138, %cst_52 {dimension_numbers = #tpu.dot_dimension_numbers<[1], [0], [0], [1], [0, 0, 1, 1], [], []>} : vector<8x64xf32>, vector<64x64xf32>, vector<8x64xf32> -> vector<8x64xf32>
    %140 = arith.addf %136, %139 : vector<8x64xf32>
    %c0_53 = arith.constant 0 : index
    %c0_54 = arith.constant 0 : index
    %141 = vector.load %arg9[%c0_53, %c0_54] : memref<1x64xf32, #tpu.memory_space<vmem>>, vector<1x64xf32>
    %142 = vector.broadcast %141 : vector<1x64xf32> to vector<8x64xf32>
    %143 = arith.mulf %140, %142 : vector<8x64xf32>
    %c0_55 = arith.constant 0 : index
    %c0_56 = arith.constant 0 : index
    %144 = vector.load %arg10[%c0_55, %c0_56] : memref<1x64xf32, #tpu.memory_space<vmem>>, vector<1x64xf32>
    %145 = vector.broadcast %144 : vector<1x64xf32> to vector<8x64xf32>
    %146 = arith.addf %143, %145 : vector<8x64xf32>
    %147 = math.tanh %146 : vector<8x64xf32>
    %cst_57 = arith.constant 0.000000e+00 : f32
    %148 = vector.broadcast %cst_57 : f32 to vector<8x64xf32>
    %c1_58 = arith.constant 1 : index
    %c0_59 = arith.constant 0 : index
    %c0_60 = arith.constant 0 : index
    %149 = vector.load %arg11[%c1_58, %c0_59, %c0_60] : memref<3x64x64xf32, #tpu.memory_space<vmem>>, vector<1x64x64xf32>
    %150 = vector.shape_cast %149 : vector<1x64x64xf32> to vector<64x64xf32>
    %cst_61 = arith.constant dense<0.000000e+00> : vector<8x64xf32>
    %151 = tpu.matmul %147, %150, %cst_61 {dimension_numbers = #tpu.dot_dimension_numbers<[1], [0], [0], [1], [0, 0, 1, 1], [], []>} : vector<8x64xf32>, vector<64x64xf32>, vector<8x64xf32> -> vector<8x64xf32>
    %152 = arith.addf %148, %151 : vector<8x64xf32>
    %c0_62 = arith.constant 0 : index
    %c0_63 = arith.constant 0 : index
    %153 = vector.load %arg12[%c0_62, %c0_63] : memref<1x64xf32, #tpu.memory_space<vmem>>, vector<1x64xf32>
    %154 = vector.broadcast %153 : vector<1x64xf32> to vector<8x64xf32>
    %155 = arith.mulf %152, %154 : vector<8x64xf32>
    %c0_64 = arith.constant 0 : index
    %c0_65 = arith.constant 0 : index
    %156 = vector.load %arg13[%c0_64, %c0_65] : memref<1x64xf32, #tpu.memory_space<vmem>>, vector<1x64xf32>
    %157 = vector.broadcast %156 : vector<1x64xf32> to vector<8x64xf32>
    %158 = arith.addf %155, %157 : vector<8x64xf32>
    %159 = math.tanh %158 : vector<8x64xf32>
    %cst_66 = arith.constant 0.000000e+00 : f32
    %160 = vector.broadcast %cst_66 : f32 to vector<8x64xf32>
    %161 = arith.maximumf %159, %160 : vector<8x64xf32>
    %c0_67 = arith.constant 0 : index
    %c0_68 = arith.constant 0 : index
    %162 = vector.load %arg14[%c0_67, %c0_68] : memref<64x128xf32, #tpu.memory_space<vmem>>, vector<64x128xf32>
    %cst_69 = arith.constant dense<0.000000e+00> : vector<8x128xf32>
    %163 = tpu.matmul %161, %162, %cst_69 {dimension_numbers = #tpu.dot_dimension_numbers<[1], [0], [0], [1], [0, 0, 1, 1], [], []>} : vector<8x64xf32>, vector<64x128xf32>, vector<8x128xf32> -> vector<8x128xf32>
    %c0_70 = arith.constant 0 : index
    %c0_71 = arith.constant 0 : index
    %164 = vector.load %arg15[%c0_70, %c0_71] : memref<1x128xf32, #tpu.memory_space<vmem>>, vector<1x128xf32>
    %165 = vector.broadcast %164 : vector<1x128xf32> to vector<8x128xf32>
    %166 = arith.addf %163, %165 : vector<8x128xf32>
    %167 = vector.extract_strided_slice %166 {offsets = [0, 0], sizes = [2, 128], strides = [1, 1]} : vector<8x128xf32> to vector<2x128xf32>
    %168 = vector.extract_strided_slice %166 {offsets = [2, 0], sizes = [2, 128], strides = [1, 1]} : vector<8x128xf32> to vector<2x128xf32>
    %169 = vector.extract_strided_slice %166 {offsets = [4, 0], sizes = [2, 128], strides = [1, 1]} : vector<8x128xf32> to vector<2x128xf32>
    %170 = vector.extract_strided_slice %166 {offsets = [6, 0], sizes = [2, 128], strides = [1, 1]} : vector<8x128xf32> to vector<2x128xf32>
    %171 = vector.extract_strided_slice %167 {offsets = [0, 0], sizes = [2, 64], strides = [1, 1]} : vector<2x128xf32> to vector<2x64xf32>
    %172 = vector.extract_strided_slice %168 {offsets = [0, 0], sizes = [2, 64], strides = [1, 1]} : vector<2x128xf32> to vector<2x64xf32>
    %173 = vector.extract_strided_slice %169 {offsets = [0, 0], sizes = [2, 64], strides = [1, 1]} : vector<2x128xf32> to vector<2x64xf32>
    %174 = vector.extract_strided_slice %170 {offsets = [0, 0], sizes = [2, 64], strides = [1, 1]} : vector<2x128xf32> to vector<2x64xf32>
    %c0_72 = arith.constant 0 : index
    %c0_73 = arith.constant 0 : index
    %175 = vector.load %arg16[%c0_72, %c0_73] : memref<16x64xf32, #tpu.memory_space<vmem>>, vector<16x64xf32>
    %cst_74 = arith.constant 0.000000e+00 : f32
    %176 = vector.broadcast %cst_74 : f32 to vector<2x16xf32>
    %cst_75 = arith.constant 0.000000e+00 : f32
    %177 = vector.broadcast %cst_75 : f32 to vector<2x16xf32>
    %cst_76 = arith.constant dense<0.000000e+00> : vector<2x64xf32>
    %178 = tpu.matmul %176, %175, %cst_76 {dimension_numbers = #tpu.dot_dimension_numbers<[1], [0], [0], [1], [0, 0, 1, 1], [], []>} : vector<2x16xf32>, vector<16x64xf32>, vector<2x64xf32> -> vector<2x64xf32>
    %179 = arith.addf %171, %178 : vector<2x64xf32>
    %180 = vector.extract_strided_slice %179 {offsets = [0, 0], sizes = [2, 16], strides = [1, 1]} : vector<2x64xf32> to vector<2x16xf32>
    %181 = arith.negf %180 : vector<2x16xf32>
    %182 = math.exp %181 : vector<2x16xf32>
    %cst_77 = arith.constant 1.000000e+00 : f32
    %183 = vector.broadcast %cst_77 : f32 to vector<2x16xf32>
    %184 = arith.addf %183, %182 : vector<2x16xf32>
    %185 = arith.divf %183, %184 : vector<2x16xf32>
    %186 = vector.extract_strided_slice %179 {offsets = [0, 16], sizes = [2, 16], strides = [1, 1]} : vector<2x64xf32> to vector<2x16xf32>
    %187 = arith.negf %186 : vector<2x16xf32>
    %188 = math.exp %187 : vector<2x16xf32>
    %cst_78 = arith.constant 1.000000e+00 : f32
    %189 = vector.broadcast %cst_78 : f32 to vector<2x16xf32>
    %190 = arith.addf %189, %188 : vector<2x16xf32>
    %191 = arith.divf %189, %190 : vector<2x16xf32>
    %192 = vector.extract_strided_slice %179 {offsets = [0, 32], sizes = [2, 16], strides = [1, 1]} : vector<2x64xf32> to vector<2x16xf32>
    %193 = math.tanh %192 : vector<2x16xf32>
    %194 = vector.extract_strided_slice %179 {offsets = [0, 48], sizes = [2, 16], strides = [1, 1]} : vector<2x64xf32> to vector<2x16xf32>
    %195 = arith.negf %194 : vector<2x16xf32>
    %196 = math.exp %195 : vector<2x16xf32>
    %cst_79 = arith.constant 1.000000e+00 : f32
    %197 = vector.broadcast %cst_79 : f32 to vector<2x16xf32>
    %198 = arith.addf %197, %196 : vector<2x16xf32>
    %199 = arith.divf %197, %198 : vector<2x16xf32>
    %200 = arith.mulf %191, %177 : vector<2x16xf32>
    %201 = arith.mulf %185, %193 : vector<2x16xf32>
    %202 = arith.addf %200, %201 : vector<2x16xf32>
    %203 = math.tanh %202 : vector<2x16xf32>
    %204 = arith.mulf %199, %203 : vector<2x16xf32>
    %cst_80 = arith.constant dense<0.000000e+00> : vector<2x64xf32>
    %205 = tpu.matmul %204, %175, %cst_80 {dimension_numbers = #tpu.dot_dimension_numbers<[1], [0], [0], [1], [0, 0, 1, 1], [], []>} : vector<2x16xf32>, vector<16x64xf32>, vector<2x64xf32> -> vector<2x64xf32>
    %206 = arith.addf %172, %205 : vector<2x64xf32>
    %207 = vector.extract_strided_slice %206 {offsets = [0, 0], sizes = [2, 16], strides = [1, 1]} : vector<2x64xf32> to vector<2x16xf32>
    %208 = arith.negf %207 : vector<2x16xf32>
    %209 = math.exp %208 : vector<2x16xf32>
    %cst_81 = arith.constant 1.000000e+00 : f32
    %210 = vector.broadcast %cst_81 : f32 to vector<2x16xf32>
    %211 = arith.addf %210, %209 : vector<2x16xf32>
    %212 = arith.divf %210, %211 : vector<2x16xf32>
    %213 = vector.extract_strided_slice %206 {offsets = [0, 16], sizes = [2, 16], strides = [1, 1]} : vector<2x64xf32> to vector<2x16xf32>
    %214 = arith.negf %213 : vector<2x16xf32>
    %215 = math.exp %214 : vector<2x16xf32>
    %cst_82 = arith.constant 1.000000e+00 : f32
    %216 = vector.broadcast %cst_82 : f32 to vector<2x16xf32>
    %217 = arith.addf %216, %215 : vector<2x16xf32>
    %218 = arith.divf %216, %217 : vector<2x16xf32>
    %219 = vector.extract_strided_slice %206 {offsets = [0, 32], sizes = [2, 16], strides = [1, 1]} : vector<2x64xf32> to vector<2x16xf32>
    %220 = math.tanh %219 : vector<2x16xf32>
    %221 = vector.extract_strided_slice %206 {offsets = [0, 48], sizes = [2, 16], strides = [1, 1]} : vector<2x64xf32> to vector<2x16xf32>
    %222 = arith.negf %221 : vector<2x16xf32>
    %223 = math.exp %222 : vector<2x16xf32>
    %cst_83 = arith.constant 1.000000e+00 : f32
    %224 = vector.broadcast %cst_83 : f32 to vector<2x16xf32>
    %225 = arith.addf %224, %223 : vector<2x16xf32>
    %226 = arith.divf %224, %225 : vector<2x16xf32>
    %227 = arith.mulf %218, %202 : vector<2x16xf32>
    %228 = arith.mulf %212, %220 : vector<2x16xf32>
    %229 = arith.addf %227, %228 : vector<2x16xf32>
    %230 = math.tanh %229 : vector<2x16xf32>
    %231 = arith.mulf %226, %230 : vector<2x16xf32>
    %cst_84 = arith.constant dense<0.000000e+00> : vector<2x64xf32>
    %232 = tpu.matmul %231, %175, %cst_84 {dimension_numbers = #tpu.dot_dimension_numbers<[1], [0], [0], [1], [0, 0, 1, 1], [], []>} : vector<2x16xf32>, vector<16x64xf32>, vector<2x64xf32> -> vector<2x64xf32>
    %233 = arith.addf %173, %232 : vector<2x64xf32>
    %234 = vector.extract_strided_slice %233 {offsets = [0, 0], sizes = [2, 16], strides = [1, 1]} : vector<2x64xf32> to vector<2x16xf32>
    %235 = arith.negf %234 : vector<2x16xf32>
    %236 = math.exp %235 : vector<2x16xf32>
    %cst_85 = arith.constant 1.000000e+00 : f32
    %237 = vector.broadcast %cst_85 : f32 to vector<2x16xf32>
    %238 = arith.addf %237, %236 : vector<2x16xf32>
    %239 = arith.divf %237, %238 : vector<2x16xf32>
    %240 = vector.extract_strided_slice %233 {offsets = [0, 16], sizes = [2, 16], strides = [1, 1]} : vector<2x64xf32> to vector<2x16xf32>
    %241 = arith.negf %240 : vector<2x16xf32>
    %242 = math.exp %241 : vector<2x16xf32>
    %cst_86 = arith.constant 1.000000e+00 : f32
    %243 = vector.broadcast %cst_86 : f32 to vector<2x16xf32>
    %244 = arith.addf %243, %242 : vector<2x16xf32>
    %245 = arith.divf %243, %244 : vector<2x16xf32>
    %246 = vector.extract_strided_slice %233 {offsets = [0, 32], sizes = [2, 16], strides = [1, 1]} : vector<2x64xf32> to vector<2x16xf32>
    %247 = math.tanh %246 : vector<2x16xf32>
    %248 = vector.extract_strided_slice %233 {offsets = [0, 48], sizes = [2, 16], strides = [1, 1]} : vector<2x64xf32> to vector<2x16xf32>
    %249 = arith.negf %248 : vector<2x16xf32>
    %250 = math.exp %249 : vector<2x16xf32>
    %cst_87 = arith.constant 1.000000e+00 : f32
    %251 = vector.broadcast %cst_87 : f32 to vector<2x16xf32>
    %252 = arith.addf %251, %250 : vector<2x16xf32>
    %253 = arith.divf %251, %252 : vector<2x16xf32>
    %254 = arith.mulf %245, %229 : vector<2x16xf32>
    %255 = arith.mulf %239, %247 : vector<2x16xf32>
    %256 = arith.addf %254, %255 : vector<2x16xf32>
    %257 = math.tanh %256 : vector<2x16xf32>
    %258 = arith.mulf %253, %257 : vector<2x16xf32>
    %cst_88 = arith.constant dense<0.000000e+00> : vector<2x64xf32>
    %259 = tpu.matmul %258, %175, %cst_88 {dimension_numbers = #tpu.dot_dimension_numbers<[1], [0], [0], [1], [0, 0, 1, 1], [], []>} : vector<2x16xf32>, vector<16x64xf32>, vector<2x64xf32> -> vector<2x64xf32>
    %260 = arith.addf %174, %259 : vector<2x64xf32>
    %261 = vector.extract_strided_slice %260 {offsets = [0, 0], sizes = [2, 16], strides = [1, 1]} : vector<2x64xf32> to vector<2x16xf32>
    %262 = arith.negf %261 : vector<2x16xf32>
    %263 = math.exp %262 : vector<2x16xf32>
    %cst_89 = arith.constant 1.000000e+00 : f32
    %264 = vector.broadcast %cst_89 : f32 to vector<2x16xf32>
    %265 = arith.addf %264, %263 : vector<2x16xf32>
    %266 = arith.divf %264, %265 : vector<2x16xf32>
    %267 = vector.extract_strided_slice %260 {offsets = [0, 16], sizes = [2, 16], strides = [1, 1]} : vector<2x64xf32> to vector<2x16xf32>
    %268 = arith.negf %267 : vector<2x16xf32>
    %269 = math.exp %268 : vector<2x16xf32>
    %cst_90 = arith.constant 1.000000e+00 : f32
    %270 = vector.broadcast %cst_90 : f32 to vector<2x16xf32>
    %271 = arith.addf %270, %269 : vector<2x16xf32>
    %272 = arith.divf %270, %271 : vector<2x16xf32>
    %273 = vector.extract_strided_slice %260 {offsets = [0, 32], sizes = [2, 16], strides = [1, 1]} : vector<2x64xf32> to vector<2x16xf32>
    %274 = math.tanh %273 : vector<2x16xf32>
    %275 = vector.extract_strided_slice %260 {offsets = [0, 48], sizes = [2, 16], strides = [1, 1]} : vector<2x64xf32> to vector<2x16xf32>
    %276 = arith.negf %275 : vector<2x16xf32>
    %277 = math.exp %276 : vector<2x16xf32>
    %cst_91 = arith.constant 1.000000e+00 : f32
    %278 = vector.broadcast %cst_91 : f32 to vector<2x16xf32>
    %279 = arith.addf %278, %277 : vector<2x16xf32>
    %280 = arith.divf %278, %279 : vector<2x16xf32>
    %281 = arith.mulf %272, %256 : vector<2x16xf32>
    %282 = arith.mulf %266, %274 : vector<2x16xf32>
    %283 = arith.addf %281, %282 : vector<2x16xf32>
    %284 = math.tanh %283 : vector<2x16xf32>
    %285 = arith.mulf %280, %284 : vector<2x16xf32>
    %286 = vector.extract_strided_slice %167 {offsets = [0, 64], sizes = [2, 64], strides = [1, 1]} : vector<2x128xf32> to vector<2x64xf32>
    %287 = vector.extract_strided_slice %168 {offsets = [0, 64], sizes = [2, 64], strides = [1, 1]} : vector<2x128xf32> to vector<2x64xf32>
    %288 = vector.extract_strided_slice %169 {offsets = [0, 64], sizes = [2, 64], strides = [1, 1]} : vector<2x128xf32> to vector<2x64xf32>
    %289 = vector.extract_strided_slice %170 {offsets = [0, 64], sizes = [2, 64], strides = [1, 1]} : vector<2x128xf32> to vector<2x64xf32>
    %c0_92 = arith.constant 0 : index
    %c0_93 = arith.constant 0 : index
    %290 = vector.load %arg17[%c0_92, %c0_93] : memref<16x64xf32, #tpu.memory_space<vmem>>, vector<16x64xf32>
    %cst_94 = arith.constant 0.000000e+00 : f32
    %291 = vector.broadcast %cst_94 : f32 to vector<2x16xf32>
    %cst_95 = arith.constant 0.000000e+00 : f32
    %292 = vector.broadcast %cst_95 : f32 to vector<2x16xf32>
    %cst_96 = arith.constant dense<0.000000e+00> : vector<2x64xf32>
    %293 = tpu.matmul %291, %290, %cst_96 {dimension_numbers = #tpu.dot_dimension_numbers<[1], [0], [0], [1], [0, 0, 1, 1], [], []>} : vector<2x16xf32>, vector<16x64xf32>, vector<2x64xf32> -> vector<2x64xf32>
    %294 = arith.addf %289, %293 : vector<2x64xf32>
    %295 = vector.extract_strided_slice %294 {offsets = [0, 0], sizes = [2, 16], strides = [1, 1]} : vector<2x64xf32> to vector<2x16xf32>
    %296 = arith.negf %295 : vector<2x16xf32>
    %297 = math.exp %296 : vector<2x16xf32>
    %cst_97 = arith.constant 1.000000e+00 : f32
    %298 = vector.broadcast %cst_97 : f32 to vector<2x16xf32>
    %299 = arith.addf %298, %297 : vector<2x16xf32>
    %300 = arith.divf %298, %299 : vector<2x16xf32>
    %301 = vector.extract_strided_slice %294 {offsets = [0, 16], sizes = [2, 16], strides = [1, 1]} : vector<2x64xf32> to vector<2x16xf32>
    %302 = arith.negf %301 : vector<2x16xf32>
    %303 = math.exp %302 : vector<2x16xf32>
    %cst_98 = arith.constant 1.000000e+00 : f32
    %304 = vector.broadcast %cst_98 : f32 to vector<2x16xf32>
    %305 = arith.addf %304, %303 : vector<2x16xf32>
    %306 = arith.divf %304, %305 : vector<2x16xf32>
    %307 = vector.extract_strided_slice %294 {offsets = [0, 32], sizes = [2, 16], strides = [1, 1]} : vector<2x64xf32> to vector<2x16xf32>
    %308 = math.tanh %307 : vector<2x16xf32>
    %309 = vector.extract_strided_slice %294 {offsets = [0, 48], sizes = [2, 16], strides = [1, 1]} : vector<2x64xf32> to vector<2x16xf32>
    %310 = arith.negf %309 : vector<2x16xf32>
    %311 = math.exp %310 : vector<2x16xf32>
    %cst_99 = arith.constant 1.000000e+00 : f32
    %312 = vector.broadcast %cst_99 : f32 to vector<2x16xf32>
    %313 = arith.addf %312, %311 : vector<2x16xf32>
    %314 = arith.divf %312, %313 : vector<2x16xf32>
    %315 = arith.mulf %306, %292 : vector<2x16xf32>
    %316 = arith.mulf %300, %308 : vector<2x16xf32>
    %317 = arith.addf %315, %316 : vector<2x16xf32>
    %318 = math.tanh %317 : vector<2x16xf32>
    %319 = arith.mulf %314, %318 : vector<2x16xf32>
    %cst_100 = arith.constant dense<0.000000e+00> : vector<2x64xf32>
    %320 = tpu.matmul %319, %290, %cst_100 {dimension_numbers = #tpu.dot_dimension_numbers<[1], [0], [0], [1], [0, 0, 1, 1], [], []>} : vector<2x16xf32>, vector<16x64xf32>, vector<2x64xf32> -> vector<2x64xf32>
    %321 = arith.addf %288, %320 : vector<2x64xf32>
    %322 = vector.extract_strided_slice %321 {offsets = [0, 0], sizes = [2, 16], strides = [1, 1]} : vector<2x64xf32> to vector<2x16xf32>
    %323 = arith.negf %322 : vector<2x16xf32>
    %324 = math.exp %323 : vector<2x16xf32>
    %cst_101 = arith.constant 1.000000e+00 : f32
    %325 = vector.broadcast %cst_101 : f32 to vector<2x16xf32>
    %326 = arith.addf %325, %324 : vector<2x16xf32>
    %327 = arith.divf %325, %326 : vector<2x16xf32>
    %328 = vector.extract_strided_slice %321 {offsets = [0, 16], sizes = [2, 16], strides = [1, 1]} : vector<2x64xf32> to vector<2x16xf32>
    %329 = arith.negf %328 : vector<2x16xf32>
    %330 = math.exp %329 : vector<2x16xf32>
    %cst_102 = arith.constant 1.000000e+00 : f32
    %331 = vector.broadcast %cst_102 : f32 to vector<2x16xf32>
    %332 = arith.addf %331, %330 : vector<2x16xf32>
    %333 = arith.divf %331, %332 : vector<2x16xf32>
    %334 = vector.extract_strided_slice %321 {offsets = [0, 32], sizes = [2, 16], strides = [1, 1]} : vector<2x64xf32> to vector<2x16xf32>
    %335 = math.tanh %334 : vector<2x16xf32>
    %336 = vector.extract_strided_slice %321 {offsets = [0, 48], sizes = [2, 16], strides = [1, 1]} : vector<2x64xf32> to vector<2x16xf32>
    %337 = arith.negf %336 : vector<2x16xf32>
    %338 = math.exp %337 : vector<2x16xf32>
    %cst_103 = arith.constant 1.000000e+00 : f32
    %339 = vector.broadcast %cst_103 : f32 to vector<2x16xf32>
    %340 = arith.addf %339, %338 : vector<2x16xf32>
    %341 = arith.divf %339, %340 : vector<2x16xf32>
    %342 = arith.mulf %333, %317 : vector<2x16xf32>
    %343 = arith.mulf %327, %335 : vector<2x16xf32>
    %344 = arith.addf %342, %343 : vector<2x16xf32>
    %345 = math.tanh %344 : vector<2x16xf32>
    %346 = arith.mulf %341, %345 : vector<2x16xf32>
    %cst_104 = arith.constant dense<0.000000e+00> : vector<2x64xf32>
    %347 = tpu.matmul %346, %290, %cst_104 {dimension_numbers = #tpu.dot_dimension_numbers<[1], [0], [0], [1], [0, 0, 1, 1], [], []>} : vector<2x16xf32>, vector<16x64xf32>, vector<2x64xf32> -> vector<2x64xf32>
    %348 = arith.addf %287, %347 : vector<2x64xf32>
    %349 = vector.extract_strided_slice %348 {offsets = [0, 0], sizes = [2, 16], strides = [1, 1]} : vector<2x64xf32> to vector<2x16xf32>
    %350 = arith.negf %349 : vector<2x16xf32>
    %351 = math.exp %350 : vector<2x16xf32>
    %cst_105 = arith.constant 1.000000e+00 : f32
    %352 = vector.broadcast %cst_105 : f32 to vector<2x16xf32>
    %353 = arith.addf %352, %351 : vector<2x16xf32>
    %354 = arith.divf %352, %353 : vector<2x16xf32>
    %355 = vector.extract_strided_slice %348 {offsets = [0, 16], sizes = [2, 16], strides = [1, 1]} : vector<2x64xf32> to vector<2x16xf32>
    %356 = arith.negf %355 : vector<2x16xf32>
    %357 = math.exp %356 : vector<2x16xf32>
    %cst_106 = arith.constant 1.000000e+00 : f32
    %358 = vector.broadcast %cst_106 : f32 to vector<2x16xf32>
    %359 = arith.addf %358, %357 : vector<2x16xf32>
    %360 = arith.divf %358, %359 : vector<2x16xf32>
    %361 = vector.extract_strided_slice %348 {offsets = [0, 32], sizes = [2, 16], strides = [1, 1]} : vector<2x64xf32> to vector<2x16xf32>
    %362 = math.tanh %361 : vector<2x16xf32>
    %363 = vector.extract_strided_slice %348 {offsets = [0, 48], sizes = [2, 16], strides = [1, 1]} : vector<2x64xf32> to vector<2x16xf32>
    %364 = arith.negf %363 : vector<2x16xf32>
    %365 = math.exp %364 : vector<2x16xf32>
    %cst_107 = arith.constant 1.000000e+00 : f32
    %366 = vector.broadcast %cst_107 : f32 to vector<2x16xf32>
    %367 = arith.addf %366, %365 : vector<2x16xf32>
    %368 = arith.divf %366, %367 : vector<2x16xf32>
    %369 = arith.mulf %360, %344 : vector<2x16xf32>
    %370 = arith.mulf %354, %362 : vector<2x16xf32>
    %371 = arith.addf %369, %370 : vector<2x16xf32>
    %372 = math.tanh %371 : vector<2x16xf32>
    %373 = arith.mulf %368, %372 : vector<2x16xf32>
    %cst_108 = arith.constant dense<0.000000e+00> : vector<2x64xf32>
    %374 = tpu.matmul %373, %290, %cst_108 {dimension_numbers = #tpu.dot_dimension_numbers<[1], [0], [0], [1], [0, 0, 1, 1], [], []>} : vector<2x16xf32>, vector<16x64xf32>, vector<2x64xf32> -> vector<2x64xf32>
    %375 = arith.addf %286, %374 : vector<2x64xf32>
    %376 = vector.extract_strided_slice %375 {offsets = [0, 0], sizes = [2, 16], strides = [1, 1]} : vector<2x64xf32> to vector<2x16xf32>
    %377 = arith.negf %376 : vector<2x16xf32>
    %378 = math.exp %377 : vector<2x16xf32>
    %cst_109 = arith.constant 1.000000e+00 : f32
    %379 = vector.broadcast %cst_109 : f32 to vector<2x16xf32>
    %380 = arith.addf %379, %378 : vector<2x16xf32>
    %381 = arith.divf %379, %380 : vector<2x16xf32>
    %382 = vector.extract_strided_slice %375 {offsets = [0, 16], sizes = [2, 16], strides = [1, 1]} : vector<2x64xf32> to vector<2x16xf32>
    %383 = arith.negf %382 : vector<2x16xf32>
    %384 = math.exp %383 : vector<2x16xf32>
    %cst_110 = arith.constant 1.000000e+00 : f32
    %385 = vector.broadcast %cst_110 : f32 to vector<2x16xf32>
    %386 = arith.addf %385, %384 : vector<2x16xf32>
    %387 = arith.divf %385, %386 : vector<2x16xf32>
    %388 = vector.extract_strided_slice %375 {offsets = [0, 32], sizes = [2, 16], strides = [1, 1]} : vector<2x64xf32> to vector<2x16xf32>
    %389 = math.tanh %388 : vector<2x16xf32>
    %390 = vector.extract_strided_slice %375 {offsets = [0, 48], sizes = [2, 16], strides = [1, 1]} : vector<2x64xf32> to vector<2x16xf32>
    %391 = arith.negf %390 : vector<2x16xf32>
    %392 = math.exp %391 : vector<2x16xf32>
    %cst_111 = arith.constant 1.000000e+00 : f32
    %393 = vector.broadcast %cst_111 : f32 to vector<2x16xf32>
    %394 = arith.addf %393, %392 : vector<2x16xf32>
    %395 = arith.divf %393, %394 : vector<2x16xf32>
    %396 = arith.mulf %387, %371 : vector<2x16xf32>
    %397 = arith.mulf %381, %389 : vector<2x16xf32>
    %398 = arith.addf %396, %397 : vector<2x16xf32>
    %399 = math.tanh %398 : vector<2x16xf32>
    %400 = arith.mulf %395, %399 : vector<2x16xf32>
    %c0_112 = arith.constant 0 : index
    %c0_113 = arith.constant 0 : index
    %401 = vector.load %arg18[%c0_112, %c0_113] : memref<16x128xf32, #tpu.memory_space<vmem>>, vector<16x128xf32>
    %c0_114 = arith.constant 0 : index
    %c0_115 = arith.constant 0 : index
    %402 = vector.load %arg19[%c0_114, %c0_115] : memref<16x128xf32, #tpu.memory_space<vmem>>, vector<16x128xf32>
    %c0_116 = arith.constant 0 : index
    %c0_117 = arith.constant 0 : index
    %403 = vector.load %arg20[%c0_116, %c0_117] : memref<1x128xf32, #tpu.memory_space<vmem>>, vector<1x128xf32>
    %cst_118 = arith.constant dense<0.000000e+00> : vector<2x128xf32>
    %404 = tpu.matmul %204, %401, %cst_118 {dimension_numbers = #tpu.dot_dimension_numbers<[1], [0], [0], [1], [0, 0, 1, 1], [], []>} : vector<2x16xf32>, vector<16x128xf32>, vector<2x128xf32> -> vector<2x128xf32>
    %cst_119 = arith.constant dense<0.000000e+00> : vector<2x128xf32>
    %405 = tpu.matmul %400, %402, %cst_119 {dimension_numbers = #tpu.dot_dimension_numbers<[1], [0], [0], [1], [0, 0, 1, 1], [], []>} : vector<2x16xf32>, vector<16x128xf32>, vector<2x128xf32> -> vector<2x128xf32>
    %406 = arith.addf %404, %405 : vector<2x128xf32>
    %407 = vector.broadcast %403 : vector<1x128xf32> to vector<2x128xf32>
    %408 = arith.addf %406, %407 : vector<2x128xf32>
    %cst_120 = arith.constant dense<0.000000e+00> : vector<2x128xf32>
    %409 = tpu.matmul %231, %401, %cst_120 {dimension_numbers = #tpu.dot_dimension_numbers<[1], [0], [0], [1], [0, 0, 1, 1], [], []>} : vector<2x16xf32>, vector<16x128xf32>, vector<2x128xf32> -> vector<2x128xf32>
    %cst_121 = arith.constant dense<0.000000e+00> : vector<2x128xf32>
    %410 = tpu.matmul %373, %402, %cst_121 {dimension_numbers = #tpu.dot_dimension_numbers<[1], [0], [0], [1], [0, 0, 1, 1], [], []>} : vector<2x16xf32>, vector<16x128xf32>, vector<2x128xf32> -> vector<2x128xf32>
    %411 = arith.addf %409, %410 : vector<2x128xf32>
    %412 = vector.broadcast %403 : vector<1x128xf32> to vector<2x128xf32>
    %413 = arith.addf %411, %412 : vector<2x128xf32>
    %cst_122 = arith.constant dense<0.000000e+00> : vector<2x128xf32>
    %414 = tpu.matmul %258, %401, %cst_122 {dimension_numbers = #tpu.dot_dimension_numbers<[1], [0], [0], [1], [0, 0, 1, 1], [], []>} : vector<2x16xf32>, vector<16x128xf32>, vector<2x128xf32> -> vector<2x128xf32>
    %cst_123 = arith.constant dense<0.000000e+00> : vector<2x128xf32>
    %415 = tpu.matmul %346, %402, %cst_123 {dimension_numbers = #tpu.dot_dimension_numbers<[1], [0], [0], [1], [0, 0, 1, 1], [], []>} : vector<2x16xf32>, vector<16x128xf32>, vector<2x128xf32> -> vector<2x128xf32>
    %416 = arith.addf %414, %415 : vector<2x128xf32>
    %417 = vector.broadcast %403 : vector<1x128xf32> to vector<2x128xf32>
    %418 = arith.addf %416, %417 : vector<2x128xf32>
    %cst_124 = arith.constant dense<0.000000e+00> : vector<2x128xf32>
    %419 = tpu.matmul %285, %401, %cst_124 {dimension_numbers = #tpu.dot_dimension_numbers<[1], [0], [0], [1], [0, 0, 1, 1], [], []>} : vector<2x16xf32>, vector<16x128xf32>, vector<2x128xf32> -> vector<2x128xf32>
    %cst_125 = arith.constant dense<0.000000e+00> : vector<2x128xf32>
    %420 = tpu.matmul %319, %402, %cst_125 {dimension_numbers = #tpu.dot_dimension_numbers<[1], [0], [0], [1], [0, 0, 1, 1], [], []>} : vector<2x16xf32>, vector<16x128xf32>, vector<2x128xf32> -> vector<2x128xf32>
    %421 = arith.addf %419, %420 : vector<2x128xf32>
    %422 = vector.broadcast %403 : vector<1x128xf32> to vector<2x128xf32>
    %423 = arith.addf %421, %422 : vector<2x128xf32>
    %424 = vector.extract_strided_slice %408 {offsets = [0, 0], sizes = [2, 64], strides = [1, 1]} : vector<2x128xf32> to vector<2x64xf32>
    %425 = vector.extract_strided_slice %413 {offsets = [0, 0], sizes = [2, 64], strides = [1, 1]} : vector<2x128xf32> to vector<2x64xf32>
    %426 = vector.extract_strided_slice %418 {offsets = [0, 0], sizes = [2, 64], strides = [1, 1]} : vector<2x128xf32> to vector<2x64xf32>
    %427 = vector.extract_strided_slice %423 {offsets = [0, 0], sizes = [2, 64], strides = [1, 1]} : vector<2x128xf32> to vector<2x64xf32>
    %c0_126 = arith.constant 0 : index
    %c0_127 = arith.constant 0 : index
    %428 = vector.load %arg21[%c0_126, %c0_127] : memref<16x64xf32, #tpu.memory_space<vmem>>, vector<16x64xf32>
    %cst_128 = arith.constant 0.000000e+00 : f32
    %429 = vector.broadcast %cst_128 : f32 to vector<2x16xf32>
    %cst_129 = arith.constant 0.000000e+00 : f32
    %430 = vector.broadcast %cst_129 : f32 to vector<2x16xf32>
    %cst_130 = arith.constant dense<0.000000e+00> : vector<2x64xf32>
    %431 = tpu.matmul %429, %428, %cst_130 {dimension_numbers = #tpu.dot_dimension_numbers<[1], [0], [0], [1], [0, 0, 1, 1], [], []>} : vector<2x16xf32>, vector<16x64xf32>, vector<2x64xf32> -> vector<2x64xf32>
    %432 = arith.addf %424, %431 : vector<2x64xf32>
    %433 = vector.extract_strided_slice %432 {offsets = [0, 0], sizes = [2, 16], strides = [1, 1]} : vector<2x64xf32> to vector<2x16xf32>
    %434 = arith.negf %433 : vector<2x16xf32>
    %435 = math.exp %434 : vector<2x16xf32>
    %cst_131 = arith.constant 1.000000e+00 : f32
    %436 = vector.broadcast %cst_131 : f32 to vector<2x16xf32>
    %437 = arith.addf %436, %435 : vector<2x16xf32>
    %438 = arith.divf %436, %437 : vector<2x16xf32>
    %439 = vector.extract_strided_slice %432 {offsets = [0, 16], sizes = [2, 16], strides = [1, 1]} : vector<2x64xf32> to vector<2x16xf32>
    %440 = arith.negf %439 : vector<2x16xf32>
    %441 = math.exp %440 : vector<2x16xf32>
    %cst_132 = arith.constant 1.000000e+00 : f32
    %442 = vector.broadcast %cst_132 : f32 to vector<2x16xf32>
    %443 = arith.addf %442, %441 : vector<2x16xf32>
    %444 = arith.divf %442, %443 : vector<2x16xf32>
    %445 = vector.extract_strided_slice %432 {offsets = [0, 32], sizes = [2, 16], strides = [1, 1]} : vector<2x64xf32> to vector<2x16xf32>
    %446 = math.tanh %445 : vector<2x16xf32>
    %447 = vector.extract_strided_slice %432 {offsets = [0, 48], sizes = [2, 16], strides = [1, 1]} : vector<2x64xf32> to vector<2x16xf32>
    %448 = arith.negf %447 : vector<2x16xf32>
    %449 = math.exp %448 : vector<2x16xf32>
    %cst_133 = arith.constant 1.000000e+00 : f32
    %450 = vector.broadcast %cst_133 : f32 to vector<2x16xf32>
    %451 = arith.addf %450, %449 : vector<2x16xf32>
    %452 = arith.divf %450, %451 : vector<2x16xf32>
    %453 = arith.mulf %444, %430 : vector<2x16xf32>
    %454 = arith.mulf %438, %446 : vector<2x16xf32>
    %455 = arith.addf %453, %454 : vector<2x16xf32>
    %456 = math.tanh %455 : vector<2x16xf32>
    %457 = arith.mulf %452, %456 : vector<2x16xf32>
    %cst_134 = arith.constant dense<0.000000e+00> : vector<2x64xf32>
    %458 = tpu.matmul %457, %428, %cst_134 {dimension_numbers = #tpu.dot_dimension_numbers<[1], [0], [0], [1], [0, 0, 1, 1], [], []>} : vector<2x16xf32>, vector<16x64xf32>, vector<2x64xf32> -> vector<2x64xf32>
    %459 = arith.addf %425, %458 : vector<2x64xf32>
    %460 = vector.extract_strided_slice %459 {offsets = [0, 0], sizes = [2, 16], strides = [1, 1]} : vector<2x64xf32> to vector<2x16xf32>
    %461 = arith.negf %460 : vector<2x16xf32>
    %462 = math.exp %461 : vector<2x16xf32>
    %cst_135 = arith.constant 1.000000e+00 : f32
    %463 = vector.broadcast %cst_135 : f32 to vector<2x16xf32>
    %464 = arith.addf %463, %462 : vector<2x16xf32>
    %465 = arith.divf %463, %464 : vector<2x16xf32>
    %466 = vector.extract_strided_slice %459 {offsets = [0, 16], sizes = [2, 16], strides = [1, 1]} : vector<2x64xf32> to vector<2x16xf32>
    %467 = arith.negf %466 : vector<2x16xf32>
    %468 = math.exp %467 : vector<2x16xf32>
    %cst_136 = arith.constant 1.000000e+00 : f32
    %469 = vector.broadcast %cst_136 : f32 to vector<2x16xf32>
    %470 = arith.addf %469, %468 : vector<2x16xf32>
    %471 = arith.divf %469, %470 : vector<2x16xf32>
    %472 = vector.extract_strided_slice %459 {offsets = [0, 32], sizes = [2, 16], strides = [1, 1]} : vector<2x64xf32> to vector<2x16xf32>
    %473 = math.tanh %472 : vector<2x16xf32>
    %474 = vector.extract_strided_slice %459 {offsets = [0, 48], sizes = [2, 16], strides = [1, 1]} : vector<2x64xf32> to vector<2x16xf32>
    %475 = arith.negf %474 : vector<2x16xf32>
    %476 = math.exp %475 : vector<2x16xf32>
    %cst_137 = arith.constant 1.000000e+00 : f32
    %477 = vector.broadcast %cst_137 : f32 to vector<2x16xf32>
    %478 = arith.addf %477, %476 : vector<2x16xf32>
    %479 = arith.divf %477, %478 : vector<2x16xf32>
    %480 = arith.mulf %471, %455 : vector<2x16xf32>
    %481 = arith.mulf %465, %473 : vector<2x16xf32>
    %482 = arith.addf %480, %481 : vector<2x16xf32>
    %483 = math.tanh %482 : vector<2x16xf32>
    %484 = arith.mulf %479, %483 : vector<2x16xf32>
    %cst_138 = arith.constant dense<0.000000e+00> : vector<2x64xf32>
    %485 = tpu.matmul %484, %428, %cst_138 {dimension_numbers = #tpu.dot_dimension_numbers<[1], [0], [0], [1], [0, 0, 1, 1], [], []>} : vector<2x16xf32>, vector<16x64xf32>, vector<2x64xf32> -> vector<2x64xf32>
    %486 = arith.addf %426, %485 : vector<2x64xf32>
    %487 = vector.extract_strided_slice %486 {offsets = [0, 0], sizes = [2, 16], strides = [1, 1]} : vector<2x64xf32> to vector<2x16xf32>
    %488 = arith.negf %487 : vector<2x16xf32>
    %489 = math.exp %488 : vector<2x16xf32>
    %cst_139 = arith.constant 1.000000e+00 : f32
    %490 = vector.broadcast %cst_139 : f32 to vector<2x16xf32>
    %491 = arith.addf %490, %489 : vector<2x16xf32>
    %492 = arith.divf %490, %491 : vector<2x16xf32>
    %493 = vector.extract_strided_slice %486 {offsets = [0, 16], sizes = [2, 16], strides = [1, 1]} : vector<2x64xf32> to vector<2x16xf32>
    %494 = arith.negf %493 : vector<2x16xf32>
    %495 = math.exp %494 : vector<2x16xf32>
    %cst_140 = arith.constant 1.000000e+00 : f32
    %496 = vector.broadcast %cst_140 : f32 to vector<2x16xf32>
    %497 = arith.addf %496, %495 : vector<2x16xf32>
    %498 = arith.divf %496, %497 : vector<2x16xf32>
    %499 = vector.extract_strided_slice %486 {offsets = [0, 32], sizes = [2, 16], strides = [1, 1]} : vector<2x64xf32> to vector<2x16xf32>
    %500 = math.tanh %499 : vector<2x16xf32>
    %501 = vector.extract_strided_slice %486 {offsets = [0, 48], sizes = [2, 16], strides = [1, 1]} : vector<2x64xf32> to vector<2x16xf32>
    %502 = arith.negf %501 : vector<2x16xf32>
    %503 = math.exp %502 : vector<2x16xf32>
    %cst_141 = arith.constant 1.000000e+00 : f32
    %504 = vector.broadcast %cst_141 : f32 to vector<2x16xf32>
    %505 = arith.addf %504, %503 : vector<2x16xf32>
    %506 = arith.divf %504, %505 : vector<2x16xf32>
    %507 = arith.mulf %498, %482 : vector<2x16xf32>
    %508 = arith.mulf %492, %500 : vector<2x16xf32>
    %509 = arith.addf %507, %508 : vector<2x16xf32>
    %510 = math.tanh %509 : vector<2x16xf32>
    %511 = arith.mulf %506, %510 : vector<2x16xf32>
    %cst_142 = arith.constant dense<0.000000e+00> : vector<2x64xf32>
    %512 = tpu.matmul %511, %428, %cst_142 {dimension_numbers = #tpu.dot_dimension_numbers<[1], [0], [0], [1], [0, 0, 1, 1], [], []>} : vector<2x16xf32>, vector<16x64xf32>, vector<2x64xf32> -> vector<2x64xf32>
    %513 = arith.addf %427, %512 : vector<2x64xf32>
    %514 = vector.extract_strided_slice %513 {offsets = [0, 0], sizes = [2, 16], strides = [1, 1]} : vector<2x64xf32> to vector<2x16xf32>
    %515 = arith.negf %514 : vector<2x16xf32>
    %516 = math.exp %515 : vector<2x16xf32>
    %cst_143 = arith.constant 1.000000e+00 : f32
    %517 = vector.broadcast %cst_143 : f32 to vector<2x16xf32>
    %518 = arith.addf %517, %516 : vector<2x16xf32>
    %519 = arith.divf %517, %518 : vector<2x16xf32>
    %520 = vector.extract_strided_slice %513 {offsets = [0, 16], sizes = [2, 16], strides = [1, 1]} : vector<2x64xf32> to vector<2x16xf32>
    %521 = arith.negf %520 : vector<2x16xf32>
    %522 = math.exp %521 : vector<2x16xf32>
    %cst_144 = arith.constant 1.000000e+00 : f32
    %523 = vector.broadcast %cst_144 : f32 to vector<2x16xf32>
    %524 = arith.addf %523, %522 : vector<2x16xf32>
    %525 = arith.divf %523, %524 : vector<2x16xf32>
    %526 = vector.extract_strided_slice %513 {offsets = [0, 32], sizes = [2, 16], strides = [1, 1]} : vector<2x64xf32> to vector<2x16xf32>
    %527 = math.tanh %526 : vector<2x16xf32>
    %528 = vector.extract_strided_slice %513 {offsets = [0, 48], sizes = [2, 16], strides = [1, 1]} : vector<2x64xf32> to vector<2x16xf32>
    %529 = arith.negf %528 : vector<2x16xf32>
    %530 = math.exp %529 : vector<2x16xf32>
    %cst_145 = arith.constant 1.000000e+00 : f32
    %531 = vector.broadcast %cst_145 : f32 to vector<2x16xf32>
    %532 = arith.addf %531, %530 : vector<2x16xf32>
    %533 = arith.divf %531, %532 : vector<2x16xf32>
    %534 = arith.mulf %525, %509 : vector<2x16xf32>
    %535 = arith.mulf %519, %527 : vector<2x16xf32>
    %536 = arith.addf %534, %535 : vector<2x16xf32>
    %537 = math.tanh %536 : vector<2x16xf32>
    %538 = arith.mulf %533, %537 : vector<2x16xf32>
    %539 = vector.extract_strided_slice %408 {offsets = [0, 64], sizes = [2, 64], strides = [1, 1]} : vector<2x128xf32> to vector<2x64xf32>
    %540 = vector.extract_strided_slice %413 {offsets = [0, 64], sizes = [2, 64], strides = [1, 1]} : vector<2x128xf32> to vector<2x64xf32>
    %541 = vector.extract_strided_slice %418 {offsets = [0, 64], sizes = [2, 64], strides = [1, 1]} : vector<2x128xf32> to vector<2x64xf32>
    %542 = vector.extract_strided_slice %423 {offsets = [0, 64], sizes = [2, 64], strides = [1, 1]} : vector<2x128xf32> to vector<2x64xf32>
    %c0_146 = arith.constant 0 : index
    %c0_147 = arith.constant 0 : index
    %543 = vector.load %arg22[%c0_146, %c0_147] : memref<16x64xf32, #tpu.memory_space<vmem>>, vector<16x64xf32>
    %cst_148 = arith.constant 0.000000e+00 : f32
    %544 = vector.broadcast %cst_148 : f32 to vector<2x16xf32>
    %cst_149 = arith.constant 0.000000e+00 : f32
    %545 = vector.broadcast %cst_149 : f32 to vector<2x16xf32>
    %cst_150 = arith.constant dense<0.000000e+00> : vector<2x64xf32>
    %546 = tpu.matmul %544, %543, %cst_150 {dimension_numbers = #tpu.dot_dimension_numbers<[1], [0], [0], [1], [0, 0, 1, 1], [], []>} : vector<2x16xf32>, vector<16x64xf32>, vector<2x64xf32> -> vector<2x64xf32>
    %547 = arith.addf %542, %546 : vector<2x64xf32>
    %548 = vector.extract_strided_slice %547 {offsets = [0, 0], sizes = [2, 16], strides = [1, 1]} : vector<2x64xf32> to vector<2x16xf32>
    %549 = arith.negf %548 : vector<2x16xf32>
    %550 = math.exp %549 : vector<2x16xf32>
    %cst_151 = arith.constant 1.000000e+00 : f32
    %551 = vector.broadcast %cst_151 : f32 to vector<2x16xf32>
    %552 = arith.addf %551, %550 : vector<2x16xf32>
    %553 = arith.divf %551, %552 : vector<2x16xf32>
    %554 = vector.extract_strided_slice %547 {offsets = [0, 16], sizes = [2, 16], strides = [1, 1]} : vector<2x64xf32> to vector<2x16xf32>
    %555 = arith.negf %554 : vector<2x16xf32>
    %556 = math.exp %555 : vector<2x16xf32>
    %cst_152 = arith.constant 1.000000e+00 : f32
    %557 = vector.broadcast %cst_152 : f32 to vector<2x16xf32>
    %558 = arith.addf %557, %556 : vector<2x16xf32>
    %559 = arith.divf %557, %558 : vector<2x16xf32>
    %560 = vector.extract_strided_slice %547 {offsets = [0, 32], sizes = [2, 16], strides = [1, 1]} : vector<2x64xf32> to vector<2x16xf32>
    %561 = math.tanh %560 : vector<2x16xf32>
    %562 = vector.extract_strided_slice %547 {offsets = [0, 48], sizes = [2, 16], strides = [1, 1]} : vector<2x64xf32> to vector<2x16xf32>
    %563 = arith.negf %562 : vector<2x16xf32>
    %564 = math.exp %563 : vector<2x16xf32>
    %cst_153 = arith.constant 1.000000e+00 : f32
    %565 = vector.broadcast %cst_153 : f32 to vector<2x16xf32>
    %566 = arith.addf %565, %564 : vector<2x16xf32>
    %567 = arith.divf %565, %566 : vector<2x16xf32>
    %568 = arith.mulf %559, %545 : vector<2x16xf32>
    %569 = arith.mulf %553, %561 : vector<2x16xf32>
    %570 = arith.addf %568, %569 : vector<2x16xf32>
    %571 = math.tanh %570 : vector<2x16xf32>
    %572 = arith.mulf %567, %571 : vector<2x16xf32>
    %cst_154 = arith.constant dense<0.000000e+00> : vector<2x64xf32>
    %573 = tpu.matmul %572, %543, %cst_154 {dimension_numbers = #tpu.dot_dimension_numbers<[1], [0], [0], [1], [0, 0, 1, 1], [], []>} : vector<2x16xf32>, vector<16x64xf32>, vector<2x64xf32> -> vector<2x64xf32>
    %574 = arith.addf %541, %573 : vector<2x64xf32>
    %575 = vector.extract_strided_slice %574 {offsets = [0, 0], sizes = [2, 16], strides = [1, 1]} : vector<2x64xf32> to vector<2x16xf32>
    %576 = arith.negf %575 : vector<2x16xf32>
    %577 = math.exp %576 : vector<2x16xf32>
    %cst_155 = arith.constant 1.000000e+00 : f32
    %578 = vector.broadcast %cst_155 : f32 to vector<2x16xf32>
    %579 = arith.addf %578, %577 : vector<2x16xf32>
    %580 = arith.divf %578, %579 : vector<2x16xf32>
    %581 = vector.extract_strided_slice %574 {offsets = [0, 16], sizes = [2, 16], strides = [1, 1]} : vector<2x64xf32> to vector<2x16xf32>
    %582 = arith.negf %581 : vector<2x16xf32>
    %583 = math.exp %582 : vector<2x16xf32>
    %cst_156 = arith.constant 1.000000e+00 : f32
    %584 = vector.broadcast %cst_156 : f32 to vector<2x16xf32>
    %585 = arith.addf %584, %583 : vector<2x16xf32>
    %586 = arith.divf %584, %585 : vector<2x16xf32>
    %587 = vector.extract_strided_slice %574 {offsets = [0, 32], sizes = [2, 16], strides = [1, 1]} : vector<2x64xf32> to vector<2x16xf32>
    %588 = math.tanh %587 : vector<2x16xf32>
    %589 = vector.extract_strided_slice %574 {offsets = [0, 48], sizes = [2, 16], strides = [1, 1]} : vector<2x64xf32> to vector<2x16xf32>
    %590 = arith.negf %589 : vector<2x16xf32>
    %591 = math.exp %590 : vector<2x16xf32>
    %cst_157 = arith.constant 1.000000e+00 : f32
    %592 = vector.broadcast %cst_157 : f32 to vector<2x16xf32>
    %593 = arith.addf %592, %591 : vector<2x16xf32>
    %594 = arith.divf %592, %593 : vector<2x16xf32>
    %595 = arith.mulf %586, %570 : vector<2x16xf32>
    %596 = arith.mulf %580, %588 : vector<2x16xf32>
    %597 = arith.addf %595, %596 : vector<2x16xf32>
    %598 = math.tanh %597 : vector<2x16xf32>
    %599 = arith.mulf %594, %598 : vector<2x16xf32>
    %cst_158 = arith.constant dense<0.000000e+00> : vector<2x64xf32>
    %600 = tpu.matmul %599, %543, %cst_158 {dimension_numbers = #tpu.dot_dimension_numbers<[1], [0], [0], [1], [0, 0, 1, 1], [], []>} : vector<2x16xf32>, vector<16x64xf32>, vector<2x64xf32> -> vector<2x64xf32>
    %601 = arith.addf %540, %600 : vector<2x64xf32>
    %602 = vector.extract_strided_slice %601 {offsets = [0, 0], sizes = [2, 16], strides = [1, 1]} : vector<2x64xf32> to vector<2x16xf32>
    %603 = arith.negf %602 : vector<2x16xf32>
    %604 = math.exp %603 : vector<2x16xf32>
    %cst_159 = arith.constant 1.000000e+00 : f32
    %605 = vector.broadcast %cst_159 : f32 to vector<2x16xf32>
    %606 = arith.addf %605, %604 : vector<2x16xf32>
    %607 = arith.divf %605, %606 : vector<2x16xf32>
    %608 = vector.extract_strided_slice %601 {offsets = [0, 16], sizes = [2, 16], strides = [1, 1]} : vector<2x64xf32> to vector<2x16xf32>
    %609 = arith.negf %608 : vector<2x16xf32>
    %610 = math.exp %609 : vector<2x16xf32>
    %cst_160 = arith.constant 1.000000e+00 : f32
    %611 = vector.broadcast %cst_160 : f32 to vector<2x16xf32>
    %612 = arith.addf %611, %610 : vector<2x16xf32>
    %613 = arith.divf %611, %612 : vector<2x16xf32>
    %614 = vector.extract_strided_slice %601 {offsets = [0, 32], sizes = [2, 16], strides = [1, 1]} : vector<2x64xf32> to vector<2x16xf32>
    %615 = math.tanh %614 : vector<2x16xf32>
    %616 = vector.extract_strided_slice %601 {offsets = [0, 48], sizes = [2, 16], strides = [1, 1]} : vector<2x64xf32> to vector<2x16xf32>
    %617 = arith.negf %616 : vector<2x16xf32>
    %618 = math.exp %617 : vector<2x16xf32>
    %cst_161 = arith.constant 1.000000e+00 : f32
    %619 = vector.broadcast %cst_161 : f32 to vector<2x16xf32>
    %620 = arith.addf %619, %618 : vector<2x16xf32>
    %621 = arith.divf %619, %620 : vector<2x16xf32>
    %622 = arith.mulf %613, %597 : vector<2x16xf32>
    %623 = arith.mulf %607, %615 : vector<2x16xf32>
    %624 = arith.addf %622, %623 : vector<2x16xf32>
    %625 = math.tanh %624 : vector<2x16xf32>
    %626 = arith.mulf %621, %625 : vector<2x16xf32>
    %cst_162 = arith.constant dense<0.000000e+00> : vector<2x64xf32>
    %627 = tpu.matmul %626, %543, %cst_162 {dimension_numbers = #tpu.dot_dimension_numbers<[1], [0], [0], [1], [0, 0, 1, 1], [], []>} : vector<2x16xf32>, vector<16x64xf32>, vector<2x64xf32> -> vector<2x64xf32>
    %628 = arith.addf %539, %627 : vector<2x64xf32>
    %629 = vector.extract_strided_slice %628 {offsets = [0, 0], sizes = [2, 16], strides = [1, 1]} : vector<2x64xf32> to vector<2x16xf32>
    %630 = arith.negf %629 : vector<2x16xf32>
    %631 = math.exp %630 : vector<2x16xf32>
    %cst_163 = arith.constant 1.000000e+00 : f32
    %632 = vector.broadcast %cst_163 : f32 to vector<2x16xf32>
    %633 = arith.addf %632, %631 : vector<2x16xf32>
    %634 = arith.divf %632, %633 : vector<2x16xf32>
    %635 = vector.extract_strided_slice %628 {offsets = [0, 16], sizes = [2, 16], strides = [1, 1]} : vector<2x64xf32> to vector<2x16xf32>
    %636 = arith.negf %635 : vector<2x16xf32>
    %637 = math.exp %636 : vector<2x16xf32>
    %cst_164 = arith.constant 1.000000e+00 : f32
    %638 = vector.broadcast %cst_164 : f32 to vector<2x16xf32>
    %639 = arith.addf %638, %637 : vector<2x16xf32>
    %640 = arith.divf %638, %639 : vector<2x16xf32>
    %641 = vector.extract_strided_slice %628 {offsets = [0, 32], sizes = [2, 16], strides = [1, 1]} : vector<2x64xf32> to vector<2x16xf32>
    %642 = math.tanh %641 : vector<2x16xf32>
    %643 = vector.extract_strided_slice %628 {offsets = [0, 48], sizes = [2, 16], strides = [1, 1]} : vector<2x64xf32> to vector<2x16xf32>
    %644 = arith.negf %643 : vector<2x16xf32>
    %645 = math.exp %644 : vector<2x16xf32>
    %cst_165 = arith.constant 1.000000e+00 : f32
    %646 = vector.broadcast %cst_165 : f32 to vector<2x16xf32>
    %647 = arith.addf %646, %645 : vector<2x16xf32>
    %648 = arith.divf %646, %647 : vector<2x16xf32>
    %649 = arith.mulf %640, %624 : vector<2x16xf32>
    %650 = arith.mulf %634, %642 : vector<2x16xf32>
    %651 = arith.addf %649, %650 : vector<2x16xf32>
    %652 = math.tanh %651 : vector<2x16xf32>
    %653 = arith.mulf %648, %652 : vector<2x16xf32>
    %cst_166 = arith.constant 0.000000e+00 : f32
    %654 = vector.broadcast %cst_166 : f32 to vector<2x128xf32>
    %c0_167 = arith.constant 0 : index
    %c0_168 = arith.constant 0 : index
    %c0_169 = arith.constant 0 : index
    %655 = vector.load %arg23[%c0_167, %c0_168, %c0_169] : memref<8x16x128xf32, #tpu.memory_space<vmem>>, vector<1x16x128xf32>
    %656 = vector.shape_cast %655 : vector<1x16x128xf32> to vector<16x128xf32>
    %cst_170 = arith.constant dense<0.000000e+00> : vector<2x128xf32>
    %657 = tpu.matmul %457, %656, %cst_170 {dimension_numbers = #tpu.dot_dimension_numbers<[1], [0], [0], [1], [0, 0, 1, 1], [], []>} : vector<2x16xf32>, vector<16x128xf32>, vector<2x128xf32> -> vector<2x128xf32>
    %658 = arith.addf %654, %657 : vector<2x128xf32>
    %c1_171 = arith.constant 1 : index
    %c0_172 = arith.constant 0 : index
    %c0_173 = arith.constant 0 : index
    %659 = vector.load %arg23[%c1_171, %c0_172, %c0_173] : memref<8x16x128xf32, #tpu.memory_space<vmem>>, vector<1x16x128xf32>
    %660 = vector.shape_cast %659 : vector<1x16x128xf32> to vector<16x128xf32>
    %cst_174 = arith.constant dense<0.000000e+00> : vector<2x128xf32>
    %661 = tpu.matmul %653, %660, %cst_174 {dimension_numbers = #tpu.dot_dimension_numbers<[1], [0], [0], [1], [0, 0, 1, 1], [], []>} : vector<2x16xf32>, vector<16x128xf32>, vector<2x128xf32> -> vector<2x128xf32>
    %662 = arith.addf %658, %661 : vector<2x128xf32>
    %c2_175 = arith.constant 2 : index
    %c0_176 = arith.constant 0 : index
    %c0_177 = arith.constant 0 : index
    %663 = vector.load %arg23[%c2_175, %c0_176, %c0_177] : memref<8x16x128xf32, #tpu.memory_space<vmem>>, vector<1x16x128xf32>
    %664 = vector.shape_cast %663 : vector<1x16x128xf32> to vector<16x128xf32>
    %cst_178 = arith.constant dense<0.000000e+00> : vector<2x128xf32>
    %665 = tpu.matmul %484, %664, %cst_178 {dimension_numbers = #tpu.dot_dimension_numbers<[1], [0], [0], [1], [0, 0, 1, 1], [], []>} : vector<2x16xf32>, vector<16x128xf32>, vector<2x128xf32> -> vector<2x128xf32>
    %666 = arith.addf %662, %665 : vector<2x128xf32>
    %c3_179 = arith.constant 3 : index
    %c0_180 = arith.constant 0 : index
    %c0_181 = arith.constant 0 : index
    %667 = vector.load %arg23[%c3_179, %c0_180, %c0_181] : memref<8x16x128xf32, #tpu.memory_space<vmem>>, vector<1x16x128xf32>
    %668 = vector.shape_cast %667 : vector<1x16x128xf32> to vector<16x128xf32>
    %cst_182 = arith.constant dense<0.000000e+00> : vector<2x128xf32>
    %669 = tpu.matmul %626, %668, %cst_182 {dimension_numbers = #tpu.dot_dimension_numbers<[1], [0], [0], [1], [0, 0, 1, 1], [], []>} : vector<2x16xf32>, vector<16x128xf32>, vector<2x128xf32> -> vector<2x128xf32>
    %670 = arith.addf %666, %669 : vector<2x128xf32>
    %c4_183 = arith.constant 4 : index
    %c0_184 = arith.constant 0 : index
    %c0_185 = arith.constant 0 : index
    %671 = vector.load %arg23[%c4_183, %c0_184, %c0_185] : memref<8x16x128xf32, #tpu.memory_space<vmem>>, vector<1x16x128xf32>
    %672 = vector.shape_cast %671 : vector<1x16x128xf32> to vector<16x128xf32>
    %cst_186 = arith.constant dense<0.000000e+00> : vector<2x128xf32>
    %673 = tpu.matmul %511, %672, %cst_186 {dimension_numbers = #tpu.dot_dimension_numbers<[1], [0], [0], [1], [0, 0, 1, 1], [], []>} : vector<2x16xf32>, vector<16x128xf32>, vector<2x128xf32> -> vector<2x128xf32>
    %674 = arith.addf %670, %673 : vector<2x128xf32>
    %c5_187 = arith.constant 5 : index
    %c0_188 = arith.constant 0 : index
    %c0_189 = arith.constant 0 : index
    %675 = vector.load %arg23[%c5_187, %c0_188, %c0_189] : memref<8x16x128xf32, #tpu.memory_space<vmem>>, vector<1x16x128xf32>
    %676 = vector.shape_cast %675 : vector<1x16x128xf32> to vector<16x128xf32>
    %cst_190 = arith.constant dense<0.000000e+00> : vector<2x128xf32>
    %677 = tpu.matmul %599, %676, %cst_190 {dimension_numbers = #tpu.dot_dimension_numbers<[1], [0], [0], [1], [0, 0, 1, 1], [], []>} : vector<2x16xf32>, vector<16x128xf32>, vector<2x128xf32> -> vector<2x128xf32>
    %678 = arith.addf %674, %677 : vector<2x128xf32>
    %c6_191 = arith.constant 6 : index
    %c0_192 = arith.constant 0 : index
    %c0_193 = arith.constant 0 : index
    %679 = vector.load %arg23[%c6_191, %c0_192, %c0_193] : memref<8x16x128xf32, #tpu.memory_space<vmem>>, vector<1x16x128xf32>
    %680 = vector.shape_cast %679 : vector<1x16x128xf32> to vector<16x128xf32>
    %cst_194 = arith.constant dense<0.000000e+00> : vector<2x128xf32>
    %681 = tpu.matmul %538, %680, %cst_194 {dimension_numbers = #tpu.dot_dimension_numbers<[1], [0], [0], [1], [0, 0, 1, 1], [], []>} : vector<2x16xf32>, vector<16x128xf32>, vector<2x128xf32> -> vector<2x128xf32>
    %682 = arith.addf %678, %681 : vector<2x128xf32>
    %c7_195 = arith.constant 7 : index
    %c0_196 = arith.constant 0 : index
    %c0_197 = arith.constant 0 : index
    %683 = vector.load %arg23[%c7_195, %c0_196, %c0_197] : memref<8x16x128xf32, #tpu.memory_space<vmem>>, vector<1x16x128xf32>
    %684 = vector.shape_cast %683 : vector<1x16x128xf32> to vector<16x128xf32>
    %cst_198 = arith.constant dense<0.000000e+00> : vector<2x128xf32>
    %685 = tpu.matmul %572, %684, %cst_198 {dimension_numbers = #tpu.dot_dimension_numbers<[1], [0], [0], [1], [0, 0, 1, 1], [], []>} : vector<2x16xf32>, vector<16x128xf32>, vector<2x128xf32> -> vector<2x128xf32>
    %686 = arith.addf %682, %685 : vector<2x128xf32>
    %c0_199 = arith.constant 0 : index
    %c0_200 = arith.constant 0 : index
    %687 = vector.load %arg24[%c0_199, %c0_200] : memref<1x128xf32, #tpu.memory_space<vmem>>, vector<1x128xf32>
    %688 = vector.broadcast %687 : vector<1x128xf32> to vector<2x128xf32>
    %689 = arith.addf %686, %688 : vector<2x128xf32>
    %cst_201 = arith.constant 0.000000e+00 : f32
    %690 = vector.broadcast %cst_201 : f32 to vector<2x128xf32>
    %691 = arith.maximumf %689, %690 : vector<2x128xf32>
    %c0_202 = arith.constant 0 : index
    %c0_203 = arith.constant 0 : index
    %692 = vector.load %arg25[%c0_202, %c0_203] : memref<128x16xf32, #tpu.memory_space<vmem>>, vector<128x16xf32>
    %cst_204 = arith.constant dense<0.000000e+00> : vector<2x16xf32>
    %693 = tpu.matmul %691, %692, %cst_204 {dimension_numbers = #tpu.dot_dimension_numbers<[1], [0], [0], [1], [0, 0, 1, 1], [], []>} : vector<2x128xf32>, vector<128x16xf32>, vector<2x16xf32> -> vector<2x16xf32>
    %c0_205 = arith.constant 0 : index
    %c0_206 = arith.constant 0 : index
    %694 = vector.load %arg26[%c0_205, %c0_206] : memref<1x16xf32, #tpu.memory_space<vmem>>, vector<1x16xf32>
    %695 = vector.broadcast %694 : vector<1x16xf32> to vector<2x16xf32>
    %696 = arith.addf %693, %695 : vector<2x16xf32>
    %697 = arith.mulf %696, %696 : vector<2x16xf32>
    %cst_207 = arith.constant dense<0.000000e+00> : vector<2xf32>
    %698 = vector.multi_reduction <add>, %697, %cst_207 [1] : vector<2x16xf32> to vector<2xf32>
    %699 = vector.shape_cast %698 : vector<2xf32> to vector<2x1xf32>
    %700 = math.sqrt %699 : vector<2x1xf32>
    %cst_208 = arith.constant 9.99999996E-13 : f32
    %701 = vector.broadcast %cst_208 : f32 to vector<2x1xf32>
    %702 = arith.maximumf %700, %701 : vector<2x1xf32>
    %703 = vector.broadcast %702 : vector<2x1xf32> to vector<2x16xf32>
    %704 = arith.divf %696, %703 : vector<2x16xf32>
    %c0_209 = arith.constant 0 : index
    %c0_210 = arith.constant 0 : index
    %705 = vector.load %arg27[%c0_209, %c0_210] : memref<2x16xf32, #tpu.memory_space<vmem>>, vector<2x16xf32>
    tpu.vector_store %arg27[%c0_209, %c0_210], %704 {strides = array<i32>} : memref<2x16xf32, #tpu.memory_space<vmem>>, vector<2x16xf32>,
    return
  }
  func.func @transform_0(%arg0: i32) -> (i32, i32, i32) {
    %c0_i32 = arith.constant 0 : i32
    %c0_i32_0 = arith.constant 0 : i32
    %c0_i32_1 = arith.constant 0 : i32
    %c0_i32_2 = arith.constant 0 : i32
    return %c0_i32, %c0_i32_0, %c0_i32_1 : i32, i32, i32
  }
  func.func @transform_1(%arg0: i32) -> (i32, i32, i32) {
    %c0_i32 = arith.constant 0 : i32
    %c0_i32_0 = arith.constant 0 : i32
    %c0_i32_1 = arith.constant 0 : i32
    %c0_i32_2 = arith.constant 0 : i32
    return %c0_i32, %c0_i32_0, %c0_i32_1 : i32, i32, i32
  }
  func.func @transform_2(%arg0: i32) -> (i32, i32) {
    %c0_i32 = arith.constant 0 : i32
    %c0_i32_0 = arith.constant 0 : i32
    %c0_i32_1 = arith.constant 0 : i32
    return %c0_i32, %c0_i32_0 : i32, i32
  }
  func.func @transform_3(%arg0: i32) -> (i32, i32) {
    %c0_i32 = arith.constant 0 : i32
    %c0_i32_0 = arith.constant 0 : i32
    %c0_i32_1 = arith.constant 0 : i32
    return %c0_i32, %c0_i32_0 : i32, i32
  }
  func.func @transform_4(%arg0: i32) -> (i32, i32, i32) {
    %c0_i32 = arith.constant 0 : i32
    %c0_i32_0 = arith.constant 0 : i32
    %c0_i32_1 = arith.constant 0 : i32
    %c0_i32_2 = arith.constant 0 : i32
    return %c0_i32, %c0_i32_0, %c0_i32_1 : i32, i32, i32
  }
  func.func @transform_5(%arg0: i32) -> (i32, i32) {
    %c0_i32 = arith.constant 0 : i32
    %c0_i32_0 = arith.constant 0 : i32
    %c0_i32_1 = arith.constant 0 : i32
    return %c0_i32, %c0_i32_0 : i32, i32
  }
  func.func @transform_6(%arg0: i32) -> (i32, i32) {
    %c0_i32 = arith.constant 0 : i32
    %c0_i32_0 = arith.constant 0 : i32
    %c0_i32_1 = arith.constant 0 : i32
    return %c0_i32, %c0_i32_0 : i32, i32
  }
  func.func @transform_7(%arg0: i32) -> (i32, i32, i32) {
    %c0_i32 = arith.constant 0 : i32
    %c0_i32_0 = arith.constant 0 : i32
    %c0_i32_1 = arith.constant 0 : i32
    %c0_i32_2 = arith.constant 0 : i32
    return %c0_i32, %c0_i32_0, %c0_i32_1 : i32, i32, i32
  }
  func.func @transform_8(%arg0: i32) -> (i32, i32) {
    %c0_i32 = arith.constant 0 : i32
    %c0_i32_0 = arith.constant 0 : i32
    %c0_i32_1 = arith.constant 0 : i32
    return %c0_i32, %c0_i32_0 : i32, i32
  }
  func.func @transform_9(%arg0: i32) -> (i32, i32) {
    %c0_i32 = arith.constant 0 : i32
    %c0_i32_0 = arith.constant 0 : i32
    %c0_i32_1 = arith.constant 0 : i32
    return %c0_i32, %c0_i32_0 : i32, i32
  }
  func.func @transform_10(%arg0: i32) -> (i32, i32, i32) {
    %c0_i32 = arith.constant 0 : i32
    %c0_i32_0 = arith.constant 0 : i32
    %c0_i32_1 = arith.constant 0 : i32
    %c0_i32_2 = arith.constant 0 : i32
    return %c0_i32, %c0_i32_0, %c0_i32_1 : i32, i32, i32
  }
  func.func @transform_11(%arg0: i32) -> (i32, i32) {
    %c0_i32 = arith.constant 0 : i32
    %c0_i32_0 = arith.constant 0 : i32
    %c0_i32_1 = arith.constant 0 : i32
    return %c0_i32, %c0_i32_0 : i32, i32
  }
  func.func @transform_12(%arg0: i32) -> (i32, i32) {
    %c0_i32 = arith.constant 0 : i32
    %c0_i32_0 = arith.constant 0 : i32
    %c0_i32_1 = arith.constant 0 : i32
    return %c0_i32, %c0_i32_0 : i32, i32
  }
  func.func @transform_13(%arg0: i32) -> (i32, i32) {
    %c0_i32 = arith.constant 0 : i32
    %c0_i32_0 = arith.constant 0 : i32
    %c0_i32_1 = arith.constant 0 : i32
    return %c0_i32, %c0_i32_0 : i32, i32
  }
  func.func @transform_14(%arg0: i32) -> (i32, i32) {
    %c0_i32 = arith.constant 0 : i32
    %c0_i32_0 = arith.constant 0 : i32
    %c0_i32_1 = arith.constant 0 : i32
    return %c0_i32, %c0_i32_0 : i32, i32
  }
  func.func @transform_15(%arg0: i32) -> (i32, i32) {
    %c0_i32 = arith.constant 0 : i32
    %c0_i32_0 = arith.constant 0 : i32
    %c0_i32_1 = arith.constant 0 : i32
    return %c0_i32, %c0_i32_0 : i32, i32
  }
  func.func @transform_16(%arg0: i32) -> (i32, i32) {
    %c0_i32 = arith.constant 0 : i32
    %c0_i32_0 = arith.constant 0 : i32
    %c0_i32_1 = arith.constant 0 : i32
    return %c0_i32, %c0_i32_0 : i32, i32
  }
  func.func @transform_17(%arg0: i32) -> (i32, i32) {
    %c0_i32 = arith.constant 0 : i32
    %c0_i32_0 = arith.constant 0 : i32
    %c0_i32_1 = arith.constant 0 : i32
    return %c0_i32, %c0_i32_0 : i32, i32
  }
  func.func @transform_18(%arg0: i32) -> (i32, i32) {
    %c0_i32 = arith.constant 0 : i32
    %c0_i32_0 = arith.constant 0 : i32
    %c0_i32_1 = arith.constant 0 : i32
    return %c0_i32, %c0_i32_0 : i32, i32
  }
  func.func @transform_19(%arg0: i32) -> (i32, i32) {
    %c0_i32 = arith.constant 0 : i32
    %c0_i32_0 = arith.constant 0 : i32
    %c0_i32_1 = arith.constant 0 : i32
    return %c0_i32, %c0_i32_0 : i32, i32
  }
  func.func @transform_20(%arg0: i32) -> (i32, i32) {
    %c0_i32 = arith.constant 0 : i32
    %c0_i32_0 = arith.constant 0 : i32
    %c0_i32_1 = arith.constant 0 : i32
    return %c0_i32, %c0_i32_0 : i32, i32
  }
  func.func @transform_21(%arg0: i32) -> (i32, i32) {
    %c0_i32 = arith.constant 0 : i32
    %c0_i32_0 = arith.constant 0 : i32
    %c0_i32_1 = arith.constant 0 : i32
    return %c0_i32, %c0_i32_0 : i32, i32
  }
  func.func @transform_22(%arg0: i32) -> (i32, i32, i32) {
    %c0_i32 = arith.constant 0 : i32
    %c0_i32_0 = arith.constant 0 : i32
    %c0_i32_1 = arith.constant 0 : i32
    %c0_i32_2 = arith.constant 0 : i32
    return %c0_i32, %c0_i32_0, %c0_i32_1 : i32, i32, i32
  }
  func.func @transform_23(%arg0: i32) -> (i32, i32) {
    %c0_i32 = arith.constant 0 : i32
    %c0_i32_0 = arith.constant 0 : i32
    %c0_i32_1 = arith.constant 0 : i32
    return %c0_i32, %c0_i32_0 : i32, i32
  }
  func.func @transform_24(%arg0: i32) -> (i32, i32) {
    %c0_i32 = arith.constant 0 : i32
    %c0_i32_0 = arith.constant 0 : i32
    %c0_i32_1 = arith.constant 0 : i32
    return %c0_i32, %c0_i32_0 : i32, i32
  }
  func.func @transform_25(%arg0: i32) -> (i32, i32) {
    %c0_i32 = arith.constant 0 : i32
    %c0_i32_0 = arith.constant 0 : i32
    %c0_i32_1 = arith.constant 0 : i32
    return %c0_i32, %c0_i32_0 : i32, i32
  }
  func.func @transform_26(%arg0: i32) -> (i32, i32) {
    %c0_i32 = arith.constant 0 : i32
    %c0_i32_0 = arith.constant 0 : i32
    %c0_i32_1 = arith.constant 0 : i32
    return %c0_i32, %c0_i32_0 : i32, i32
  }
}

</mosaic_0001>

<llo_original>
// kernel: forward.1
$region0: #{forward.1}
  #allocation0 [shape = 'u32[]', space=smem, size = 0x4, offset = 0x4, fixed_abs, tag = 'smem constant byte address 0x4 - core index']
  #allocation1 [shape = 'u32[144,128]{1,0:T(1,128)}', space=vmem, size = 0x12000, scoped, tag = 'internal scratch']
  %s0 = inlined_call_operand.vmem [shape: f32[8,20,10], index: 0, kind: input, shape index: {}]
  %s1 = inlined_call_operand.vmem [shape: f32[9,10,64], index: 1, kind: input, shape index: {}]
  %s2 = inlined_call_operand.vmem [shape: f32[1,64], index: 2, kind: input, shape index: {}]
  %s3 = inlined_call_operand.vmem [shape: f32[1,64], index: 3, kind: input, shape index: {}]
  %s4 = inlined_call_operand.vmem [shape: f32[5,64,64], index: 4, kind: input, shape index: {}]
  %s5 = inlined_call_operand.vmem [shape: f32[1,64], index: 5, kind: input, shape index: {}]
  %s6 = inlined_call_operand.vmem [shape: f32[1,64], index: 6, kind: input, shape index: {}]
  %s7 = inlined_call_operand.hbm [shape: f32[5,64,64], index: 7, kind: input, shape index: {}]
  %s8 = inlined_call_operand.hbm [shape: f32[1,64], index: 8, kind: input, shape index: {}]
  %s9 = inlined_call_operand.hbm [shape: f32[1,64], index: 9, kind: input, shape index: {}]
  %s10 = inlined_call_operand.hbm [shape: f32[3,64,64], index: 10, kind: input, shape index: {}]
  %s11 = inlined_call_operand.hbm [shape: f32[1,64], index: 11, kind: input, shape index: {}]
  %s12 = inlined_call_operand.hbm [shape: f32[1,64], index: 12, kind: input, shape index: {}]
  %s13 = inlined_call_operand.hbm [shape: f32[64,128], index: 13, kind: input, shape index: {}]
  %s14 = inlined_call_operand.hbm [shape: f32[1,128], index: 14, kind: input, shape index: {}]
  %s15 = inlined_call_operand.vmem [shape: f32[16,64], index: 15, kind: input, shape index: {}]
  %s16 = inlined_call_operand.hbm [shape: f32[16,64], index: 16, kind: input, shape index: {}]
  %s17 = inlined_call_operand.vmem [shape: f32[16,128], index: 17, kind: input, shape index: {}]
  %s18 = inlined_call_operand.vmem [shape: f32[16,128], index: 18, kind: input, shape index: {}]
  %s19 = inlined_call_operand.hbm [shape: f32[1,128], index: 19, kind: input, shape index: {}]
  %s20 = inlined_call_operand.hbm [shape: f32[16,64], index: 20, kind: input, shape index: {}]
  %s21 = inlined_call_operand.hbm [shape: f32[16,64], index: 21, kind: input, shape index: {}]
  %s22 = inlined_call_operand.hbm [shape: f32[8,16,128], index: 22, kind: input, shape index: {}]
  %s23 = inlined_call_operand.hbm [shape: f32[1,128], index: 23, kind: input, shape index: {}]
  %s24 = inlined_call_operand.vmem [shape: f32[128,16], index: 24, kind: input, shape index: {}]
  %s25 = inlined_call_operand.hbm [shape: f32[1,16], index: 25, kind: input, shape index: {}]
  %s26 = inlined_call_operand.hbm [shape: f32[2,16], index: 26, kind: output, shape index: {}]
  %s27 = sld [smem:[#allocation0]]
  $region174: #{forward.1} parent=0
    _
  %s29 = ssub.s32 1, %s27
  %s30 = scalar_select 0, %s29, %s27
  $region1: #{forward.1} parent=0
    #allocation2 [shape = 'u8[163840]{0}', space=vmem, size = 0x28000, scoped, tag = 'input window, operand 7, single buffered']
    #allocation3 [shape = 's32[1]{0}', space=sflag, size = 0x4, scoped, tag = 'scoped memory for forward.1']
    #allocation4 [shape = 's32[1]{0}', space=sflag, size = 0x4, scoped, tag = 'scoped memory for forward.1']
    #allocation5 [shape = 'u8[512]{0}', space=vmem, size = 0x400, scoped, tag = 'input window, operand 8, single buffered']
    #allocation6 [shape = 's32[1]{0}', space=sflag, size = 0x4, scoped, tag = 'scoped memory for forward.1']
    #allocation7 [shape = 'u8[512]{0}', space=vmem, size = 0x400, scoped, tag = 'input window, operand 9, single buffered']
    #allocation8 [shape = 'u8[98304]{0}', space=vmem, size = 0x18000, scoped, tag = 'input window, operand 10, single buffered']
    #allocation9 [shape = 's32[1]{0}', space=sflag, size = 0x4, scoped, tag = 'scoped memory for forward.1']
    #allocation10 [shape = 'u8[512]{0}', space=vmem, size = 0x400, scoped, tag = 'input window, operand 11, single buffered']
    #allocation11 [shape = 'u8[512]{0}', space=vmem, size = 0x400, scoped, tag = 'input window, operand 12, single buffered']
    #allocation12 [shape = 's32[1]{0}', space=sflag, size = 0x4, scoped, tag = 'scoped memory for forward.1']
    #allocation13 [shape = 'u8[32768]{0}', space=vmem, size = 0x8000, scoped, tag = 'input window, operand 13, single buffered']
    #allocation14 [shape = 'u8[512]{0}', space=vmem, size = 0x400, scoped, tag = 'input window, operand 14, single buffered']
    #allocation15 [shape = 's32[1]{0}', space=sflag, size = 0x4, scoped, tag = 'scoped memory for forward.1']
    #allocation16 [shape = 'u8[8192]{0}', space=vmem, size = 0x2000, scoped, tag = 'input window, operand 16, single buffered']
    #allocation17 [shape = 'u8[512]{0}', space=vmem, size = 0x400, scoped, tag = 'input window, operand 19, single buffered']
    #allocation18 [shape = 's32[1]{0}', space=sflag, size = 0x4, scoped, tag = 'scoped memory for forward.1']
    #allocation19 [shape = 'u8[8192]{0}', space=vmem, size = 0x2000, scoped, tag = 'input window, operand 20, single buffered']
    #allocation20 [shape = 'u8[8192]{0}', space=vmem, size = 0x2000, scoped, tag = 'input window, operand 21, single buffered']
    #allocation21 [shape = 's32[1]{0}', space=sflag, size = 0x4, scoped, tag = 'scoped memory for forward.1']
    #allocation22 [shape = 'u8[65536]{0}', space=vmem, size = 0x10000, scoped, tag = 'input window, operand 22, single buffered']
    #allocation23 [shape = 'u8[512]{0}', space=vmem, size = 0x400, scoped, tag = 'input window, operand 23, single buffered']
    #allocation24 [shape = 's32[1]{0}', space=sflag, size = 0x4, scoped, tag = 'scoped memory for forward.1']
    #allocation25 [shape = 'u8[512]{0}', space=vmem, size = 0x400, scoped, tag = 'input window, operand 25, single buffered']
    #allocation26 [shape = 'u8[1024]{0}', space=vmem, size = 0x400, scoped, tag = 'output window, operand 0, single buffered']
    %31 = vsyncpa [#allocation3], 0
    %32 = vsyncpa [#allocation6], 0
    %33 = vsyncpa [#allocation9], 0
    %34 = vsyncpa [#allocation12], 0
    %35 = vsyncpa [#allocation15], 0
    %36 = vsyncpa [#allocation18], 0
    %37 = vsyncpa [#allocation21], 0
    %38 = vsyncpa [#allocation24], 0
    %39 = vsyncpa [#allocation4], 0
    // Predicated region
    $region2: #{forward.1} parent=1 // pred_check
      _
    $region3: #{forward.1} parent=1 // pred_check_branch
      %41 = sbr.rel (0) target = $region5
    $region4: #{forward.1} parent=1 // pred_region
      _
    $region5: #{forward.1} parent=1 // pred_fallthru
      _
    // Predicated region
    $region6: #{forward.1} parent=1 // pred_check
      _
    $region7: #{forward.1} parent=1 // pred_check_branch
      %43 = sbr.rel (0) target = $region9
    $region8: #{forward.1} parent=1 // pred_region
      _
    $region9: #{forward.1} parent=1 // pred_fallthru
      _
    // Predicated region
    $region10: #{forward.1} parent=1 // pred_check
      _
    $region11: #{forward.1} parent=1 // pred_check_branch
      %45 = sbr.rel (0) target = $region13
    $region12: #{forward.1} parent=1 // pred_region
      _
    $region13: #{forward.1} parent=1 // pred_fallthru
      _
    // Predicated region
    $region14: #{forward.1} parent=1 // pred_check
      _
    $region15: #{forward.1} parent=1 // pred_check_branch
      %47 = sbr.rel (0) target = $region17
    $region16: #{forward.1} parent=1 // pred_region
      _
    $region17: #{forward.1} parent=1 // pred_fallthru
      _
    // Predicated region
    $region18: #{forward.1} parent=1 // pred_check
      _
    $region19: #{forward.1} parent=1 // pred_check_branch
      %49 = sbr.rel (0) target = $region21
    $region20: #{forward.1} parent=1 // pred_region
      _
    $region21: #{forward.1} parent=1 // pred_fallthru
      _
    // Predicated region
    $region22: #{forward.1} parent=1 // pred_check
      _
    $region23: #{forward.1} parent=1 // pred_check_branch
      %51 = sbr.rel (0) target = $region25
    $region24: #{forward.1} parent=1 // pred_region
      _
    $region25: #{forward.1} parent=1 // pred_fallthru
      _
    // Predicated region
    $region26: #{forward.1} parent=1 // pred_check
      _
    $region27: #{forward.1} parent=1 // pred_check_branch
      %53 = sbr.rel (0) target = $region29
    $region28: #{forward.1} parent=1 // pred_region
      _
    $region29: #{forward.1} parent=1 // pred_fallthru
      _
    // Predicated region
    $region30: #{forward.1} parent=1 // pred_check
      _
    $region31: #{forward.1} parent=1 // pred_check_branch
      %55 = sbr.rel (0) target = $region33
    $region32: #{forward.1} parent=1 // pred_region
      %s57 = ssub.s32 5120, 5120
      %58 = vsyncadd [#allocation3], %s57
      %s59 = sshll.u32 [#allocation2], 4
      %s60 = int_to_ptr.vmem [resolvable:$true] %s59
      %65 = dma.hbm_to_vmem [thread:$0]  %s7, 5120, %s60, [#allocation3], 128, 128, 8
    $region33: #{forward.1} parent=1 // pred_fallthru
      _
    // Predicated region
    $region34: #{forward.1} parent=1 // pred_check
      _
    $region35: #{forward.1} parent=1 // pred_check_branch
      %67 = sbr.rel (0) target = $region37
    $region36: #{forward.1} parent=1 // pred_region
      %s69 = ssub.s32 16, 16
      %70 = vsyncadd [#allocation6], %s69
      %s72 = sshll.u32 [#allocation5], 4
      %s73 = int_to_ptr.vmem [resolvable:$true] %s72
      %75 = dma.hbm_to_vmem [thread:$0]  %s8, 16, %s73, [#allocation6]
    $region37: #{forward.1} parent=1 // pred_fallthru
      _
    // Predicated region
    $region38: #{forward.1} parent=1 // pred_check
      _
    $region39: #{forward.1} parent=1 // pred_check_branch
      %77 = sbr.rel (0) target = $region41
    $region40: #{forward.1} parent=1 // pred_region
      %s79 = ssub.s32 16, 16
      %80 = vsyncadd [#allocation6], %s79
      %s82 = sshll.u32 [#allocation7], 4
      %s83 = int_to_ptr.vmem [resolvable:$true] %s82
      %85 = dma.hbm_to_vmem [thread:$0]  %s9, 16, %s83, [#allocation6]
    $region41: #{forward.1} parent=1 // pred_fallthru
      _
    // Predicated region
    $region42: #{forward.1} parent=1 // pred_check
      _
    $region43: #{forward.1} parent=1 // pred_check_branch
      %87 = sbr.rel (0) target = $region45
    $region44: #{forward.1} parent=1 // pred_region
      %s89 = ssub.s32 3072, 3072
      %90 = vsyncadd [#allocation9], %s89
      %s91 = sshll.u32 [#allocation8], 4
      %s92 = int_to_ptr.vmem [resolvable:$true] %s91
      %97 = dma.hbm_to_vmem [thread:$0]  %s10, 3072, %s92, [#allocation9], 128, 128, 8
    $region45: #{forward.1} parent=1 // pred_fallthru
      _
    // Predicated region
    $region46: #{forward.1} parent=1 // pred_check
      _
    $region47: #{forward.1} parent=1 // pred_check_branch
      %99 = sbr.rel (0) target = $region49
    $region48: #{forward.1} parent=1 // pred_region
      %s101 = ssub.s32 16, 16
      %102 = vsyncadd [#allocation9], %s101
      %s104 = sshll.u32 [#allocation10], 4
      %s105 = int_to_ptr.vmem [resolvable:$true] %s104
      %107 = dma.hbm_to_vmem [thread:$0]  %s11, 16, %s105, [#allocation9]
    $region49: #{forward.1} parent=1 // pred_fallthru
      _
    // Predicated region
    $region50: #{forward.1} parent=1 // pred_check
      _
    $region51: #{forward.1} parent=1 // pred_check_branch
      %109 = sbr.rel (0) target = $region53
    $region52: #{forward.1} parent=1 // pred_region
      %s111 = ssub.s32 16, 16
      %112 = vsyncadd [#allocation12], %s111
      %s114 = sshll.u32 [#allocation11], 4
      %s115 = int_to_ptr.vmem [resolvable:$true] %s114
      %117 = dma.hbm_to_vmem [thread:$0]  %s12, 16, %s115, [#allocation12]
    $region53: #{forward.1} parent=1 // pred_fallthru
      _
    // Predicated region
    $region54: #{forward.1} parent=1 // pred_check
      _
    $region55: #{forward.1} parent=1 // pred_check_branch
      %119 = sbr.rel (0) target = $region57
    $region56: #{forward.1} parent=1 // pred_region
      %s121 = ssub.s32 1024, 1024
      %122 = vsyncadd [#allocation12], %s121
      %s123 = sshll.u32 [#allocation13], 4
      %s124 = int_to_ptr.vmem [resolvable:$true] %s123
      %129 = dma.hbm_to_vmem [thread:$0]  %s13, 1024, %s124, [#allocation12], 128, 128, 8
    $region57: #{forward.1} parent=1 // pred_fallthru
      _
    // Predicated region
    $region58: #{forward.1} parent=1 // pred_check
      _
    $region59: #{forward.1} parent=1 // pred_check_branch
      %131 = sbr.rel (0) target = $region61
    $region60: #{forward.1} parent=1 // pred_region
      %s133 = ssub.s32 16, 16
      %134 = vsyncadd [#allocation15], %s133
      %s136 = sshll.u32 [#allocation14], 4
      %s137 = int_to_ptr.vmem [resolvable:$true] %s136
      %139 = dma.hbm_to_vmem [thread:$0]  %s14, 16, %s137, [#allocation15]
    $region61: #{forward.1} parent=1 // pred_fallthru
      _
    // Predicated region
    $region62: #{forward.1} parent=1 // pred_check
      _
    $region63: #{forward.1} parent=1 // pred_check_branch
      %141 = sbr.rel (0) target = $region65
    $region64: #{forward.1} parent=1 // pred_region
      _
    $region65: #{forward.1} parent=1 // pred_fallthru
      _
    // Predicated region
    $region66: #{forward.1} parent=1 // pred_check
      _
    $region67: #{forward.1} parent=1 // pred_check_branch
      %143 = sbr.rel (0) target = $region69
    $region68: #{forward.1} parent=1 // pred_region
      %s145 = ssub.s32 256, 256
      %146 = vsyncadd [#allocation15], %s145
      %s147 = sshll.u32 [#allocation16], 4
      %s148 = int_to_ptr.vmem [resolvable:$true] %s147
      %153 = dma.hbm_to_vmem [thread:$0]  %s16, 256, %s148, [#allocation15], 128, 128, 8
    $region69: #{forward.1} parent=1 // pred_fallthru
      _
    // Predicated region
    $region70: #{forward.1} parent=1 // pred_check
      _
    $region71: #{forward.1} parent=1 // pred_check_branch
      %155 = sbr.rel (0) target = $region73
    $region72: #{forward.1} parent=1 // pred_region
      _
    $region73: #{forward.1} parent=1 // pred_fallthru
      _
    // Predicated region
    $region74: #{forward.1} parent=1 // pred_check
      _
    $region75: #{forward.1} parent=1 // pred_check_branch
      %157 = sbr.rel (0) target = $region77
    $region76: #{forward.1} parent=1 // pred_region
      _
    $region77: #{forward.1} parent=1 // pred_fallthru
      _
    // Predicated region
    $region78: #{forward.1} parent=1 // pred_check
      _
    $region79: #{forward.1} parent=1 // pred_check_branch
      %159 = sbr.rel (0) target = $region81
    $region80: #{forward.1} parent=1 // pred_region
      %s161 = ssub.s32 16, 16
      %162 = vsyncadd [#allocation18], %s161
      %s164 = sshll.u32 [#allocation17], 4
      %s165 = int_to_ptr.vmem [resolvable:$true] %s164
      %167 = dma.hbm_to_vmem [thread:$0]  %s19, 16, %s165, [#allocation18]
    $region81: #{forward.1} parent=1 // pred_fallthru
      _
    // Predicated region
    $region82: #{forward.1} parent=1 // pred_check
      _
    $region83: #{forward.1} parent=1 // pred_check_branch
      %169 = sbr.rel (0) target = $region85
    $region84: #{forward.1} parent=1 // pred_region
      %s171 = ssub.s32 256, 256
      %172 = vsyncadd [#allocation18], %s171
      %s173 = sshll.u32 [#allocation19], 4
      %s174 = int_to_ptr.vmem [resolvable:$true] %s173
      %179 = dma.hbm_to_vmem [thread:$0]  %s20, 256, %s174, [#allocation18], 128, 128, 8
    $region85: #{forward.1} parent=1 // pred_fallthru
      _
    // Predicated region
    $region86: #{forward.1} parent=1 // pred_check
      _
    $region87: #{forward.1} parent=1 // pred_check_branch
      %181 = sbr.rel (0) target = $region89
    $region88: #{forward.1} parent=1 // pred_region
      %s183 = ssub.s32 256, 256
      %184 = vsyncadd [#allocation21], %s183
      %s185 = sshll.u32 [#allocation20], 4
      %s186 = int_to_ptr.vmem [resolvable:$true] %s185
      %191 = dma.hbm_to_vmem [thread:$0]  %s21, 256, %s186, [#allocation21], 128, 128, 8
    $region89: #{forward.1} parent=1 // pred_fallthru
      _
    // Predicated region
    $region90: #{forward.1} parent=1 // pred_check
      _
    $region91: #{forward.1} parent=1 // pred_check_branch
      %193 = sbr.rel (0) target = $region93
    $region92: #{forward.1} parent=1 // pred_region
      %s195 = ssub.s32 2048, 2048
      %196 = vsyncadd [#allocation21], %s195
      %s197 = sshll.u32 [#allocation22], 4
      %s198 = int_to_ptr.vmem [resolvable:$true] %s197
      %203 = dma.hbm_to_vmem [thread:$0]  %s22, 2048, %s198, [#allocation21], 128, 128, 8
    $region93: #{forward.1} parent=1 // pred_fallthru
      _
    // Predicated region
    $region94: #{forward.1} parent=1 // pred_check
      _
    $region95: #{forward.1} parent=1 // pred_check_branch
      %205 = sbr.rel (0) target = $region97
    $region96: #{forward.1} parent=1 // pred_region
      %s207 = ssub.s32 16, 16
      %208 = vsyncadd [#allocation24], %s207
      %s210 = sshll.u32 [#allocation23], 4
      %s211 = int_to_ptr.vmem [resolvable:$true] %s210
      %213 = dma.hbm_to_vmem [thread:$0]  %s23, 16, %s211, [#allocation24]
    $region97: #{forward.1} parent=1 // pred_fallthru
      _
    // Predicated region
    $region98: #{forward.1} parent=1 // pred_check
      _
    $region99: #{forward.1} parent=1 // pred_check_branch
      %215 = sbr.rel (0) target = $region101
    $region100: #{forward.1} parent=1 // pred_region
      _
    $region101: #{forward.1} parent=1 // pred_fallthru
      _
    // Predicated region
    $region102: #{forward.1} parent=1 // pred_check
      _
    $region103: #{forward.1} parent=1 // pred_check_branch
      %217 = sbr.rel (0) target = $region105
    $region104: #{forward.1} parent=1 // pred_region
      %s219 = ssub.s32 16, 16
      %220 = vsyncadd [#allocation24], %s219
      %s222 = sshll.u32 [#allocation25], 4
      %s223 = int_to_ptr.vmem [resolvable:$true] %s222
      %225 = dma.hbm_to_vmem [thread:$0]  %s25, 16, %s223, [#allocation24]
    $region105: #{forward.1} parent=1 // pred_fallthru
      _
    // Predicated region
    $region106: #{forward.1} parent=1 // pred_check
      _
    $region107: #{forward.1} parent=1 // pred_check_branch
      %227 = sbr.rel (0) target = $region109
    $region108: #{forward.1} parent=1 // pred_region
      %228 = dma.done [#allocation3], 5120
    $region109: #{forward.1} parent=1 // pred_fallthru
      _
    // Predicated region
    $region110: #{forward.1} parent=1 // pred_check
      _
    $region111: #{forward.1} parent=1 // pred_check_branch
      %230 = sbr.rel (0) target = $region113
    $region112: #{forward.1} parent=1 // pred_region
      %231 = dma.done [#allocation6], 16
    $region113: #{forward.1} parent=1 // pred_fallthru
      _
    // Predicated region
    $region114: #{forward.1} parent=1 // pred_check
      _
    $region115: #{forward.1} parent=1 // pred_check_branch
      %233 = sbr.rel (0) target = $region117
    $region116: #{forward.1} parent=1 // pred_region
      %234 = dma.done [#allocation6], 16
    $region117: #{forward.1} parent=1 // pred_fallthru
      _
    // Predicated region
    $region118: #{forward.1} parent=1 // pred_check
      _
    $region119: #{forward.1} parent=1 // pred_check_branch
      %236 = sbr.rel (0) target = $region121
    $region120: #{forward.1} parent=1 // pred_region
      %237 = dma.done [#allocation9], 3072
    $region121: #{forward.1} parent=1 // pred_fallthru
      _
    // Predicated region
    $region122: #{forward.1} parent=1 // pred_check
      _
    $region123: #{forward.1} parent=1 // pred_check_branch
      %239 = sbr.rel (0) target = $region125
    $region124: #{forward.1} parent=1 // pred_region
      %240 = dma.done [#allocation9], 16
    $region125: #{forward.1} parent=1 // pred_fallthru
      _
    // Predicated region
    $region126: #{forward.1} parent=1 // pred_check
      _
    $region127: #{forward.1} parent=1 // pred_check_branch
      %242 = sbr.rel (0) target = $region129
    $region128: #{forward.1} parent=1 // pred_region
      %243 = dma.done [#allocation12], 16
    $region129: #{forward.1} parent=1 // pred_fallthru
      _
    // Predicated region
    $region130: #{forward.1} parent=1 // pred_check
      _
    $region131: #{forward.1} parent=1 // pred_check_branch
      %245 = sbr.rel (0) target = $region133
    $region132: #{forward.1} parent=1 // pred_region
      %246 = dma.done [#allocation12], 1024
    $region133: #{forward.1} parent=1 // pred_fallthru
      _
    // Predicated region
    $region134: #{forward.1} parent=1 // pred_check
      _
    $region135: #{forward.1} parent=1 // pred_check_branch
      %248 = sbr.rel (0) target = $region137
    $region136: #{forward.1} parent=1 // pred_region
      %249 = dma.done [#allocation15], 16
    $region137: #{forward.1} parent=1 // pred_fallthru
      _
    // Predicated region
    $region138: #{forward.1} parent=1 // pred_check
      _
    $region139: #{forward.1} parent=1 // pred_check_branch
      %251 = sbr.rel (0) target = $region141
    $region140: #{forward.1} parent=1 // pred_region
      %252 = dma.done [#allocation15], 256
    $region141: #{forward.1} parent=1 // pred_fallthru
      _
    // Predicated region
    $region142: #{forward.1} parent=1 // pred_check
      _
    $region143: #{forward.1} parent=1 // pred_check_branch
      %254 = sbr.rel (0) target = $region145
    $region144: #{forward.1} parent=1 // pred_region
      %255 = dma.done [#allocation18], 16
    $region145: #{forward.1} parent=1 // pred_fallthru
      _
    // Predicated region
    $region146: #{forward.1} parent=1 // pred_check
      _
    $region147: #{forward.1} parent=1 // pred_check_branch
      %257 = sbr.rel (0) target = $region149
    $region148: #{forward.1} parent=1 // pred_region
      %258 = dma.done [#allocation18], 256
    $region149: #{forward.1} parent=1 // pred_fallthru
      _
    // Predicated region
    $region150: #{forward.1} parent=1 // pred_check
      _
    $region151: #{forward.1} parent=1 // pred_check_branch
      %260 = sbr.rel (0) target = $region153
    $region152: #{forward.1} parent=1 // pred_region
      %261 = dma.done [#allocation21], 256
    $region153: #{forward.1} parent=1 // pred_fallthru
      _
    // Predicated region
    $region154: #{forward.1} parent=1 // pred_check
      _
    $region155: #{forward.1} parent=1 // pred_check_branch
      %263 = sbr.rel (0) target = $region157
    $region156: #{forward.1} parent=1 // pred_region
      %264 = dma.done [#allocation21], 2048
    $region157: #{forward.1} parent=1 // pred_fallthru
      _
    // Predicated region
    $region158: #{forward.1} parent=1 // pred_check
      _
    $region159: #{forward.1} parent=1 // pred_check_branch
      %266 = sbr.rel (0) target = $region161
    $region160: #{forward.1} parent=1 // pred_region
      %267 = dma.done [#allocation24], 16
    $region161: #{forward.1} parent=1 // pred_fallthru
      _
    // Predicated region
    $region162: #{forward.1} parent=1 // pred_check
      _
    $region163: #{forward.1} parent=1 // pred_check_branch
      %269 = sbr.rel (0) target = $region165
    $region164: #{forward.1} parent=1 // pred_region
      %270 = dma.done [#allocation24], 16
    $region165: #{forward.1} parent=1 // pred_fallthru
      _
    %v271 = vld [vmem:[%s0] sm:$0xff]
    %v272 = vld [vmem:[%s0 + $0x8] sm:$0xff]
    %v273 = vld [vmem:[%s0 + $0x10] sm:$0xf]
    %v274 = vld [vmem:[%s0 + $0x18] sm:$0xff]
    %v275 = vld [vmem:[%s0 + $0x20] sm:$0xff]
    %v276 = vld [vmem:[%s0 + $0x28] sm:$0xf]
    %v277 = vld [vmem:[%s0 + $0x30] sm:$0xff]
    %v278 = vld [vmem:[%s0 + $0x38] sm:$0xff]
    %v279 = vld [vmem:[%s0 + $0x40] sm:$0xf]
    %v280 = vld [vmem:[%s0 + $0x48] sm:$0xff]
    %v281 = vld [vmem:[%s0 + $0x50] sm:$0xff]
    %v282 = vld [vmem:[%s0 + $0x58] sm:$0xf]
    %v283 = vld [vmem:[%s0 + $0x60] sm:$0xff]
    %v284 = vld [vmem:[%s0 + $0x68] sm:$0xff]
    %v285 = vld [vmem:[%s0 + $0x70] sm:$0xf]
    %v286 = vld [vmem:[%s0 + $0x78] sm:$0xff]
    %v287 = vld [vmem:[%s0 + $0x80] sm:$0xff]
    %v288 = vld [vmem:[%s0 + $0x88] sm:$0xf]
    %v289 = vld [vmem:[%s0 + $0x90] sm:$0xff]
    %v290 = vld [vmem:[%s0 + $0x98] sm:$0xff]
    %v291 = vld [vmem:[%s0 + $0xa0] sm:$0xf]
    %v292 = vld [vmem:[%s0 + $0xa8] sm:$0xff]
    %v293 = vld [vmem:[%s0 + $0xb0] sm:$0xff]
    %v294 = vld [vmem:[%s0 + $0xb8] sm:$0xf]
    %v303 = vrot.slane %v274, 7
    %vm304 = vcmask 1041409
    %v305 = vsel %vm304, %v303, %v271
    %v306 = vrot.slane %v277, 6
    %vm307 = vcmask 1042434
    %v308 = vsel %vm307, %v306, %v305
    %v309 = vrot.slane %v280, 5
    %vm310 = vcmask 1043459
    %v311 = vsel %vm310, %v309, %v308
    %v312 = vrot.slane %v283, 4
    %vm313 = vcmask 1044484
    %v314 = vsel %vm313, %v312, %v311
    %v315 = vrot.slane %v286, 3
    %vm316 = vcmask 1045509
    %v317 = vsel %vm316, %v315, %v314
    %v318 = vrot.slane %v289, 2
    %vm319 = vcmask 1046534
    %v320 = vsel %vm319, %v318, %v317
    %v321 = vrot.slane %v292, 1
    %vm322 = vcmask 1047559
    %v323 = vsel %vm322, %v321, %v320
    %v324 = vrot.slane %v271, 2
    %v325 = vrot.slane %v274, 1
    %v326 = vsel %vm304, %v325, %v324
    %v327 = vsel %vm307, %v277, %v326
    %v328 = vrot.slane %v280, 7
    %v329 = vsel %vm310, %v328, %v327
    %v330 = vrot.slane %v283, 6
    %v331 = vsel %vm313, %v330, %v329
    %v332 = vrot.slane %v286, 5
    %v333 = vsel %vm316, %v332, %v331
    %v334 = vrot.slane %v289, 4
    %v335 = vsel %vm319, %v334, %v333
    %v336 = vrot.slane %v292, 3
    %v337 = vsel %vm322, %v336, %v335
    %v338 = vrot.slane %v271, 4
    %v339 = vrot.slane %v274, 3
    %v340 = vsel %vm304, %v339, %v338
    %v341 = vrot.slane %v277, 2
    %v342 = vsel %vm307, %v341, %v340
    %v343 = vrot.slane %v280, 1
    %v344 = vsel %vm310, %v343, %v342
    %v345 = vsel %vm313, %v283, %v344
    %v346 = vrot.slane %v286, 7
    %v347 = vsel %vm316, %v346, %v345
    %v348 = vrot.slane %v289, 6
    %v349 = vsel %vm319, %v348, %v347
    %v350 = vrot.slane %v292, 5
    %v351 = vsel %vm322, %v350, %v349
    %v352 = vrot.slane %v271, 6
    %v353 = vrot.slane %v274, 5
    %v354 = vsel %vm304, %v353, %v352
    %v355 = vrot.slane %v277, 4
    %v356 = vsel %vm307, %v355, %v354
    %v357 = vrot.slane %v280, 3
    %v358 = vsel %vm310, %v357, %v356
    %v359 = vrot.slane %v283, 2
    %v360 = vsel %vm313, %v359, %v358
    %v361 = vrot.slane %v286, 1
    %v362 = vsel %vm316, %v361, %v360
    %v363 = vsel %vm319, %v289, %v362
    %v364 = vrot.slane %v292, 7
    %v365 = vsel %vm322, %v364, %v363
    %v374 = vrot.slane %v275, 7
    %v375 = vsel %vm304, %v374, %v272
    %v376 = vrot.slane %v278, 6
    %v377 = vsel %vm307, %v376, %v375
    %v378 = vrot.slane %v281, 5
    %v379 = vsel %vm310, %v378, %v377
    %v380 = vrot.slane %v284, 4
    %v381 = vsel %vm313, %v380, %v379
    %v382 = vrot.slane %v287, 3
    %v383 = vsel %vm316, %v382, %v381
    %v384 = vrot.slane %v290, 2
    %v385 = vsel %vm319, %v384, %v383
    %v386 = vrot.slane %v293, 1
    %v387 = vsel %vm322, %v386, %v385
    %v388 = vrot.slane %v272, 2
    %v389 = vrot.slane %v275, 1
    %v390 = vsel %vm304, %v389, %v388
    %v391 = vsel %vm307, %v278, %v390
    %v392 = vrot.slane %v281, 7
    %v393 = vsel %vm310, %v392, %v391
    %v394 = vrot.slane %v284, 6
    %v395 = vsel %vm313, %v394, %v393
    %v396 = vrot.slane %v287, 5
    %v397 = vsel %vm316, %v396, %v395
    %v398 = vrot.slane %v290, 4
    %v399 = vsel %vm319, %v398, %v397
    %v400 = vrot.slane %v293, 3
    %v401 = vsel %vm322, %v400, %v399
    %v402 = vrot.slane %v272, 4
    %v403 = vrot.slane %v275, 3
    %v404 = vsel %vm304, %v403, %v402
    %v405 = vrot.slane %v278, 2
    %v406 = vsel %vm307, %v405, %v404
    %v407 = vrot.slane %v281, 1
    %v408 = vsel %vm310, %v407, %v406
    %v409 = vsel %vm313, %v284, %v408
    %v410 = vrot.slane %v287, 7
    %v411 = vsel %vm316, %v410, %v409
    %v412 = vrot.slane %v290, 6
    %v413 = vsel %vm319, %v412, %v411
    %v414 = vrot.slane %v293, 5
    %v415 = vsel %vm322, %v414, %v413
    %v416 = vrot.slane %v272, 6
    %v417 = vrot.slane %v275, 5
    %v418 = vsel %vm304, %v417, %v416
    %v419 = vrot.slane %v278, 4
    %v420 = vsel %vm307, %v419, %v418
    %v421 = vrot.slane %v281, 3
    %v422 = vsel %vm310, %v421, %v420
    %v423 = vrot.slane %v284, 2
    %v424 = vsel %vm313, %v423, %v422
    %v425 = vrot.slane %v287, 1
    %v426 = vsel %vm316, %v425, %v424
    %v427 = vsel %vm319, %v290, %v426
    %v428 = vrot.slane %v293, 7
    %v429 = vsel %vm322, %v428, %v427
    %v430 = vld [vmem:[%s1] sm:$0xff]
    %v431 = vld [vmem:[%s1 + $0x8] sm:$0x3]
    %v432 = vrot.slane %v271, 1
    %v433 = vsel %vm304, %v274, %v432
    %v434 = vrot.slane %v277, 7
    %v435 = vsel %vm307, %v434, %v433
    %v436 = vrot.slane %v280, 6
    %v437 = vsel %vm310, %v436, %v435
    %v438 = vrot.slane %v283, 5
    %v439 = vsel %vm313, %v438, %v437
    %v440 = vrot.slane %v286, 4
    %v441 = vsel %vm316, %v440, %v439
    %v442 = vrot.slane %v289, 3
    %v443 = vsel %vm319, %v442, %v441
    %v444 = vrot.slane %v292, 2
    %v445 = vsel %vm322, %v444, %v443
    %v446 = vrot.slane %v271, 3
    %v447 = vrot.slane %v274, 2
    %v448 = vsel %vm304, %v447, %v446
    %v449 = vrot.slane %v277, 1
    %v450 = vsel %vm307, %v449, %v448
    %v451 = vsel %vm310, %v280, %v450
    %v452 = vrot.slane %v283, 7
    %v453 = vsel %vm313, %v452, %v451
    %v454 = vrot.slane %v286, 6
    %v455 = vsel %vm316, %v454, %v453
    %v456 = vrot.slane %v289, 5
    %v457 = vsel %vm319, %v456, %v455
    %v458 = vrot.slane %v292, 4
    %v459 = vsel %vm322, %v458, %v457
    %v460 = vrot.slane %v271, 5
    %v461 = vrot.slane %v274, 4
    %v462 = vsel %vm304, %v461, %v460
    %v463 = vrot.slane %v277, 3
    %v464 = vsel %vm307, %v463, %v462
    %v465 = vrot.slane %v280, 2
    %v466 = vsel %vm310, %v465, %v464
    %v467 = vrot.slane %v283, 1
    %v468 = vsel %vm313, %v467, %v466
    %v469 = vsel %vm316, %v286, %v468
    %v470 = vrot.slane %v289, 7
    %v471 = vsel %vm319, %v470, %v469
    %v472 = vrot.slane %v292, 6
    %v473 = vsel %vm322, %v472, %v471
    %v474 = vrot.slane %v271, 7
    %v475 = vrot.slane %v274, 6
    %v476 = vsel %vm304, %v475, %v474
    %v477 = vrot.slane %v277, 5
    %v478 = vsel %vm307, %v477, %v476
    %v479 = vrot.slane %v280, 4
    %v480 = vsel %vm310, %v479, %v478
    %v481 = vrot.slane %v283, 3
    %v482 = vsel %vm313, %v481, %v480
    %v483 = vrot.slane %v286, 2
    %v484 = vsel %vm316, %v483, %v482
    %v485 = vrot.slane %v289, 1
    %v486 = vsel %vm319, %v485, %v484
    %v487 = vsel %vm322, %v292, %v486
    %v488 = vrot.slane %v272, 1
    %v489 = vsel %vm304, %v275, %v488
    %v490 = vrot.slane %v278, 7
    %v491 = vsel %vm307, %v490, %v489
    %v492 = vrot.slane %v281, 6
    %v493 = vsel %vm310, %v492, %v491
    %v494 = vrot.slane %v284, 5
    %v495 = vsel %vm313, %v494, %v493
    %v496 = vrot.slane %v287, 4
    %v497 = vsel %vm316, %v496, %v495
    %v498 = vrot.slane %v290, 3
    %v499 = vsel %vm319, %v498, %v497
    %v500 = vrot.slane %v293, 2
    %v501 = vsel %vm322, %v500, %v499
    %v502 = vrot.slane %v272, 3
    %v503 = vrot.slane %v275, 2
    %v504 = vsel %vm304, %v503, %v502
    %v505 = vrot.slane %v278, 1
    %v506 = vsel %vm307, %v505, %v504
    %v507 = vsel %vm310, %v281, %v506
    %v508 = vrot.slane %v284, 7
    %v509 = vsel %vm313, %v508, %v507
    %v510 = vrot.slane %v287, 6
    %v511 = vsel %vm316, %v510, %v509
    %v512 = vrot.slane %v290, 5
    %v513 = vsel %vm319, %v512, %v511
    %v514 = vrot.slane %v293, 4
    %v515 = vsel %vm322, %v514, %v513
    %v516 = vrot.slane %v272, 5
    %v517 = vrot.slane %v275, 4
    %v518 = vsel %vm304, %v517, %v516
    %v519 = vrot.slane %v278, 3
    %v520 = vsel %vm307, %v519, %v518
    %v521 = vrot.slane %v281, 2
    %v522 = vsel %vm310, %v521, %v520
    %v523 = vrot.slane %v284, 1
    %v524 = vsel %vm313, %v523, %v522
    %v525 = vsel %vm316, %v287, %v524
    %v526 = vrot.slane %v290, 7
    %v527 = vsel %vm319, %v526, %v525
    %v528 = vrot.slane %v293, 6
    %v529 = vsel %vm322, %v528, %v527
    %v530 = vrot.slane %v272, 7
    %v531 = vrot.slane %v275, 6
    %v532 = vsel %vm304, %v531, %v530
    %v533 = vrot.slane %v278, 5
    %v534 = vsel %vm307, %v533, %v532
    %v535 = vrot.slane %v281, 4
    %v536 = vsel %vm310, %v535, %v534
    %v537 = vrot.slane %v284, 3
    %v538 = vsel %vm313, %v537, %v536
    %v539 = vrot.slane %v287, 2
    %v540 = vsel %vm316, %v539, %v538
    %v541 = vrot.slane %v290, 1
    %v542 = vsel %vm319, %v541, %v540
    %v543 = vsel %vm322, %v293, %v542
    %s544 = scalar_lea.vmem %s1, 16
    %v545 = vld [vmem:[%s544] sm:$0xff]
    %v546 = vld [vmem:[%s544 + $0x8] sm:$0x3]
    %vm547 = vcmask 80896
    %v549 = vsel %vm547, 0.0, 0
    %v551 = vsel %vm547, %v445, 0
    %v553 = vsel %vm547, %v459, 0
    %v555 = vsel %vm547, %v473, 0
    %v557 = vsel %vm547, %v487, 0
    %v559 = vsel %vm547, %v501, 0
    %v561 = vsel %vm547, %v515, 0
    %v563 = vsel %vm547, %v529, 0
    %v565 = vsel %vm547, %v543, 0
    %vm567 = vcmask 1041408
    %v569 = vsel %vm567, %v546, 0
    %571 = vmatprep.subr.mxu0 0.0
    %572 = vmatpush1.msra.mxu0 %v545
    %573 = vmatprep.subr.mxu0 0.0
    %574 = vmatpush1.msra.mxu0 %v569
    %575 = vmatprep.subr.mxu0 0.0
    %576 = vmatpush1.msra.mxu0 0.0
    %577 = vmatprep.subr.mxu0 0.0
    %578 = vmatpush1.msra.mxu0 0.0
    %579 = vmatprep.subr.mxu0 0.0
    %580 = vmatpush1.msra.mxu0 0.0
    %581 = vmatprep.subr.mxu0 0.0
    %582 = vmatpush1.msra.mxu0 0.0
    %583 = vmatprep.subr.mxu0 0.0
    %584 = vmatpush1.msra.mxu0 0.0
    %585 = vmatprep.subr.mxu0 0.0
    %586 = vmatpush1.msra.mxu0 0.0
    %587 = vmatprep.subr.mxu0 0.0
    %588 = vmatpush1.msra.mxu0 0.0
    %589 = vmatprep.subr.mxu0 0.0
    %590 = vmatpush1.msra.mxu0 0.0
    %591 = vmatprep.subr.mxu0 0.0
    %592 = vmatpush1.msra.mxu0 0.0
    %593 = vmatprep.subr.mxu0 0.0
    %594 = vmatpush1.msra.mxu0 0.0
    %595 = vmatprep.subr.mxu0 0.0
    %596 = vmatpush1.msra.mxu0 0.0
    %597 = vmatprep.subr.mxu0 0.0
    %598 = vmatpush1.msra.mxu0 0.0
    %599 = vmatprep.subr.mxu0 0.0
    %600 = vmatpush1.msra.mxu0 0.0
    %601 = vmatprep.subr.mxu0 0.0
    %602 = vmatpush1.msra.mxu0 0.0
    %603 = vmatprep.subr.mxu0 0.0
    %604 = vmatpush1.msra.mxu0 0.0
    %605 = vmatprep.subr.mxu0 0.0
    %606 = vmatpush1.msra.mxu0 0.0
    %607 = vmatprep.subr.mxu0 0.0
    %608 = vmatpush1.msra.mxu0 0.0
    %609 = vmatprep.subr.mxu0 0.0
    %610 = vmatpush1.msra.mxu0 0.0
    %611 = vmatprep.subr.mxu0 0.0
    %612 = vmatpush1.msra.mxu0 0.0
    %613 = vmatprep.subr.mxu0 0.0
    %614 = vmatpush1.msra.mxu0 0.0
    %615 = vmatprep.subr.mxu0 0.0
    %616 = vmatpush1.msra.mxu0 0.0
    %617 = vmatprep.subr.mxu0 0.0
    %618 = vmatpush1.msra.mxu0 0.0
    %619 = vmatprep.subr.mxu0 0.0
    %620 = vmatpush1.msra.mxu0 0.0
    %621 = vmatprep.subr.mxu0 0.0
    %622 = vmatpush1.msra.mxu0 0.0
    %623 = vmatprep.subr.mxu0 0.0
    %624 = vmatpush1.msra.mxu0 0.0
    %625 = vmatprep.subr.mxu0 0.0
    %626 = vmatpush1.msra.mxu0 0.0
    %627 = vmatprep.subr.mxu0 0.0
    %628 = vmatpush1.msra.mxu0 0.0
    %629 = vmatprep.subr.mxu0 0.0
    %630 = vmatpush1.msra.mxu0 0.0
    %631 = vmatprep.subr.mxu0 0.0
    %632 = vmatpush1.msra.mxu0 0.0
    %633 = vmatprep.subr.mxu0 0.0
    %634 = vmatpush1.msra.mxu0 0.0
    %635 = vmatprep.mubr.f32.mxu0 0.0
    %636 = vmatmul.mubr.f32.gmra.mrb[0].mxu0 %v549
    %v637 = vpop.f32.mrb[0].mxu0
    %v638 = vadd.f32 0.0, %v637
    %v639 = vpop.f32.mrb[0].mxu0
    %640 = vmatprep.mubr.f32.mxu0 0.0
    %641 = vmatmul.mubr.f32.gmra.mrb[0].mxu0 %v549
    %v642 = vpop.f32.mrb[0].mxu0
    %v643 = vadd.f32 0.0, %v642
    %v644 = vpop.f32.mrb[0].mxu0
    %645 = vmatprep.mubr.f32.mxu0 0.0
    %646 = vmatmul.mubr.f32.gmra.mrb[0].mxu0 %v551
    %v647 = vpop.f32.mrb[0].mxu0
    %v648 = vadd.f32 0.0, %v647
    %v649 = vpop.f32.mrb[0].mxu0
    %650 = vmatprep.mubr.f32.mxu0 0.0
    %651 = vmatmul.mubr.f32.gmra.mrb[0].mxu0 %v553
    %v652 = vpop.f32.mrb[0].mxu0
    %v653 = vadd.f32 0.0, %v652
    %v654 = vpop.f32.mrb[0].mxu0
    %655 = vmatprep.mubr.f32.mxu0 0.0
    %656 = vmatmul.mubr.f32.gmra.mrb[0].mxu0 %v555
    %v657 = vpop.f32.mrb[0].mxu0
    %v658 = vadd.f32 0.0, %v657
    %v659 = vpop.f32.mrb[0].mxu0
    %660 = vmatprep.mubr.f32.mxu0 0.0
    %661 = vmatmul.mubr.f32.gmra.mrb[0].mxu0 %v557
    %v662 = vpop.f32.mrb[0].mxu0
    %v663 = vadd.f32 0.0, %v662
    %v664 = vpop.f32.mrb[0].mxu0
    %665 = vmatprep.mubr.f32.mxu0 0.0
    %666 = vmatmul.mubr.f32.gmra.mrb[0].mxu0 %v559
    %v667 = vpop.f32.mrb[0].mxu0
    %v668 = vadd.f32 0.0, %v667
    %v669 = vpop.f32.mrb[0].mxu0
    %670 = vmatprep.mubr.f32.mxu0 0.0
    %671 = vmatmul.mubr.f32.gmra.mrb[0].mxu0 %v561
    %v672 = vpop.f32.mrb[0].mxu0
    %v673 = vadd.f32 0.0, %v672
    %v674 = vpop.f32.mrb[0].mxu0
    %675 = vmatprep.mubr.f32.mxu0 0.0
    %676 = vmatmul.mubr.f32.gmra.mrb[0].mxu0 %v563
    %v677 = vpop.f32.mrb[0].mxu0
    %v678 = vadd.f32 0.0, %v677
    %v679 = vpop.f32.mrb[0].mxu0
    %680 = vmatprep.mubr.f32.mxu0 0.0
    %681 = vmatmul.mubr.f32.gmra.mrb[0].mxu0 %v565
    %v682 = vpop.f32.mrb[0].mxu0
    %v683 = vadd.f32 0.0, %v682
    %v684 = vpop.f32.mrb[0].mxu0
    %685 = vdwg.mxu0
    %v686 = vsel %vm547, %v323, 0
    %v688 = vsel %vm547, %v337, 0
    %v690 = vsel %vm547, %v351, 0
    %v692 = vsel %vm547, %v365, 0
    %v694 = vsel %vm547, %v387, 0
    %v696 = vsel %vm547, %v401, 0
    %v698 = vsel %vm547, %v415, 0
    %v700 = vsel %vm547, %v429, 0
    %v703 = vsel %vm567, %v431, 0
    %705 = vmatprep.subr.mxu0 0.0
    %706 = vmatpush1.msra.mxu0 %v430
    %707 = vmatprep.subr.mxu0 0.0
    %708 = vmatpush1.msra.mxu0 %v703
    %709 = vmatprep.subr.mxu0 0.0
    %710 = vmatpush1.msra.mxu0 0.0
    %711 = vmatprep.subr.mxu0 0.0
    %712 = vmatpush1.msra.mxu0 0.0
    %713 = vmatprep.subr.mxu0 0.0
    %714 = vmatpush1.msra.mxu0 0.0
    %715 = vmatprep.subr.mxu0 0.0
    %716 = vmatpush1.msra.mxu0 0.0
    %717 = vmatprep.subr.mxu0 0.0
    %718 = vmatpush1.msra.mxu0 0.0
    %719 = vmatprep.subr.mxu0 0.0
    %720 = vmatpush1.msra.mxu0 0.0
    %721 = vmatprep.subr.mxu0 0.0
    %722 = vmatpush1.msra.mxu0 0.0
    %723 = vmatprep.subr.mxu0 0.0
    %724 = vmatpush1.msra.mxu0 0.0
    %725 = vmatprep.subr.mxu0 0.0
    %726 = vmatpush1.msra.mxu0 0.0
    %727 = vmatprep.subr.mxu0 0.0
    %728 = vmatpush1.msra.mxu0 0.0
    %729 = vmatprep.subr.mxu0 0.0
    %730 = vmatpush1.msra.mxu0 0.0
    %731 = vmatprep.subr.mxu0 0.0
    %732 = vmatpush1.msra.mxu0 0.0
    %733 = vmatprep.subr.mxu0 0.0
    %734 = vmatpush1.msra.mxu0 0.0
    %735 = vmatprep.subr.mxu0 0.0
    %736 = vmatpush1.msra.mxu0 0.0
    %737 = vmatprep.subr.mxu0 0.0
    %738 = vmatpush1.msra.mxu0 0.0
    %739 = vmatprep.subr.mxu0 0.0
    %740 = vmatpush1.msra.mxu0 0.0
    %741 = vmatprep.subr.mxu0 0.0
    %742 = vmatpush1.msra.mxu0 0.0
    %743 = vmatprep.subr.mxu0 0.0
    %744 = vmatpush1.msra.mxu0 0.0
    %745 = vmatprep.subr.mxu0 0.0
    %746 = vmatpush1.msra.mxu0 0.0
    %747 = vmatprep.subr.mxu0 0.0
    %748 = vmatpush1.msra.mxu0 0.0
    %749 = vmatprep.subr.mxu0 0.0
    %750 = vmatpush1.msra.mxu0 0.0
    %751 = vmatprep.subr.mxu0 0.0
    %752 = vmatpush1.msra.mxu0 0.0
    %753 = vmatprep.subr.mxu0 0.0
    %754 = vmatpush1.msra.mxu0 0.0
    %755 = vmatprep.subr.mxu0 0.0
    %756 = vmatpush1.msra.mxu0 0.0
    %757 = vmatprep.subr.mxu0 0.0
    %758 = vmatpush1.msra.mxu0 0.0
    %759 = vmatprep.subr.mxu0 0.0
    %760 = vmatpush1.msra.mxu0 0.0
    %761 = vmatprep.subr.mxu0 0.0
    %762 = vmatpush1.msra.mxu0 0.0
    %763 = vmatprep.subr.mxu0 0.0
    %764 = vmatpush1.msra.mxu0 0.0
    %765 = vmatprep.subr.mxu0 0.0
    %766 = vmatpush1.msra.mxu0 0.0
    %767 = vmatprep.subr.mxu0 0.0
    %768 = vmatpush1.msra.mxu0 0.0
    %769 = vmatprep.mubr.f32.mxu0 0.0
    %770 = vmatmul.mubr.f32.gmra.mrb[0].mxu0 %v549
    %v771 = vpop.f32.mrb[0].mxu0
    %v772 = vadd.f32 %v638, %v771
    %v773 = vpop.f32.mrb[0].mxu0
    %774 = vmatprep.mubr.f32.mxu0 0.0
    %775 = vmatmul.mubr.f32.gmra.mrb[0].mxu0 %v549
    %v776 = vpop.f32.mrb[0].mxu0
    %v777 = vadd.f32 %v643, %v776
    %v778 = vpop.f32.mrb[0].mxu0
    %779 = vmatprep.mubr.f32.mxu0 0.0
    %780 = vmatmul.mubr.f32.gmra.mrb[0].mxu0 %v686
    %v781 = vpop.f32.mrb[0].mxu0
    %v782 = vadd.f32 %v648, %v781
    %v783 = vpop.f32.mrb[0].mxu0
    %784 = vmatprep.mubr.f32.mxu0 0.0
    %785 = vmatmul.mubr.f32.gmra.mrb[0].mxu0 %v688
    %v786 = vpop.f32.mrb[0].mxu0
    %v787 = vadd.f32 %v653, %v786
    %v788 = vpop.f32.mrb[0].mxu0
    %789 = vmatprep.mubr.f32.mxu0 0.0
    %790 = vmatmul.mubr.f32.gmra.mrb[0].mxu0 %v690
    %v791 = vpop.f32.mrb[0].mxu0
    %v792 = vadd.f32 %v658, %v791
    %v793 = vpop.f32.mrb[0].mxu0
    %794 = vmatprep.mubr.f32.mxu0 0.0
    %795 = vmatmul.mubr.f32.gmra.mrb[0].mxu0 %v692
    %v796 = vpop.f32.mrb[0].mxu0
    %v797 = vadd.f32 %v663, %v796
    %v798 = vpop.f32.mrb[0].mxu0
    %799 = vmatprep.mubr.f32.mxu0 0.0
    %800 = vmatmul.mubr.f32.gmra.mrb[0].mxu0 %v694
    %v801 = vpop.f32.mrb[0].mxu0
    %v802 = vadd.f32 %v668, %v801
    %v803 = vpop.f32.mrb[0].mxu0
    %804 = vmatprep.mubr.f32.mxu0 0.0
    %805 = vmatmul.mubr.f32.gmra.mrb[0].mxu0 %v696
    %v806 = vpop.f32.mrb[0].mxu0
    %v807 = vadd.f32 %v673, %v806
    %v808 = vpop.f32.mrb[0].mxu0
    %809 = vmatprep.mubr.f32.mxu0 0.0
    %810 = vmatmul.mubr.f32.gmra.mrb[0].mxu0 %v698
    %v811 = vpop.f32.mrb[0].mxu0
    %v812 = vadd.f32 %v678, %v811
    %v813 = vpop.f32.mrb[0].mxu0
    %814 = vmatprep.mubr.f32.mxu0 0.0
    %815 = vmatmul.mubr.f32.gmra.mrb[0].mxu0 %v700
    %v816 = vpop.f32.mrb[0].mxu0
    %v817 = vadd.f32 %v683, %v816
    %v818 = vpop.f32.mrb[0].mxu0
    %819 = vdwg.mxu0
    %v828 = vrot.slane %v276, 7
    %v829 = vsel %vm304, %v828, %v273
    %v830 = vrot.slane %v279, 6
    %v831 = vsel %vm307, %v830, %v829
    %v832 = vrot.slane %v282, 5
    %v833 = vsel %vm310, %v832, %v831
    %v834 = vrot.slane %v285, 4
    %v835 = vsel %vm313, %v834, %v833
    %v836 = vrot.slane %v288, 3
    %v837 = vsel %vm316, %v836, %v835
    %v838 = vrot.slane %v291, 2
    %v839 = vsel %vm319, %v838, %v837
    %v840 = vrot.slane %v294, 1
    %v841 = vsel %vm322, %v840, %v839
    %s842 = scalar_lea.vmem %s1, 32
    %v843 = vld [vmem:[%s842] sm:$0xff]
    %v844 = vld [vmem:[%s842 + $0x8] sm:$0x3]
    %v845 = vsel %vm547, %v841, 0
    %v848 = vsel %vm567, %v844, 0
    %850 = vmatprep.subr.mxu0 0.0
    %851 = vmatpush1.msra.mxu0 %v843
    %852 = vmatprep.subr.mxu0 0.0
    %853 = vmatpush1.msra.mxu0 %v848
    %854 = vmatprep.subr.mxu0 0.0
    %855 = vmatpush1.msra.mxu0 0.0
    %856 = vmatprep.subr.mxu0 0.0
    %857 = vmatpush1.msra.mxu0 0.0
    %858 = vmatprep.subr.mxu0 0.0
    %859 = vmatpush1.msra.mxu0 0.0
    %860 = vmatprep.subr.mxu0 0.0
    %861 = vmatpush1.msra.mxu0 0.0
    %862 = vmatprep.subr.mxu0 0.0
    %863 = vmatpush1.msra.mxu0 0.0
    %864 = vmatprep.subr.mxu0 0.0
    %865 = vmatpush1.msra.mxu0 0.0
    %866 = vmatprep.subr.mxu0 0.0
    %867 = vmatpush1.msra.mxu0 0.0
    %868 = vmatprep.subr.mxu0 0.0
    %869 = vmatpush1.msra.mxu0 0.0
    %870 = vmatprep.subr.mxu0 0.0
    %871 = vmatpush1.msra.mxu0 0.0
    %872 = vmatprep.subr.mxu0 0.0
    %873 = vmatpush1.msra.mxu0 0.0
    %874 = vmatprep.subr.mxu0 0.0
    %875 = vmatpush1.msra.mxu0 0.0
    %876 = vmatprep.subr.mxu0 0.0
    %877 = vmatpush1.msra.mxu0 0.0
    %878 = vmatprep.subr.mxu0 0.0
    %879 = vmatpush1.msra.mxu0 0.0
    %880 = vmatprep.subr.mxu0 0.0
    %881 = vmatpush1.msra.mxu0 0.0
    %882 = vmatprep.subr.mxu0 0.0
    %883 = vmatpush1.msra.mxu0 0.0
    %884 = vmatprep.subr.mxu0 0.0
    %885 = vmatpush1.msra.mxu0 0.0
    %886 = vmatprep.subr.mxu0 0.0
    %887 = vmatpush1.msra.mxu0 0.0
    %888 = vmatprep.subr.mxu0 0.0
    %889 = vmatpush1.msra.mxu0 0.0
    %890 = vmatprep.subr.mxu0 0.0
    %891 = vmatpush1.msra.mxu0 0.0
    %892 = vmatprep.subr.mxu0 0.0
    %893 = vmatpush1.msra.mxu0 0.0
    %894 = vmatprep.subr.mxu0 0.0
    %895 = vmatpush1.msra.mxu0 0.0
    %896 = vmatprep.subr.mxu0 0.0
    %897 = vmatpush1.msra.mxu0 0.0
    %898 = vmatprep.subr.mxu0 0.0
    %899 = vmatpush1.msra.mxu0 0.0
    %900 = vmatprep.subr.mxu0 0.0
    %901 = vmatpush1.msra.mxu0 0.0
    %902 = vmatprep.subr.mxu0 0.0
    %903 = vmatpush1.msra.mxu0 0.0
    %904 = vmatprep.subr.mxu0 0.0
    %905 = vmatpush1.msra.mxu0 0.0
    %906 = vmatprep.subr.mxu0 0.0
    %907 = vmatpush1.msra.mxu0 0.0
    %908 = vmatprep.subr.mxu0 0.0
    %909 = vmatpush1.msra.mxu0 0.0
    %910 = vmatprep.subr.mxu0 0.0
    %911 = vmatpush1.msra.mxu0 0.0
    %912 = vmatprep.subr.mxu0 0.0
    %913 = vmatpush1.msra.mxu0 0.0
    %914 = vmatprep.mubr.f32.mxu0 0.0
    %915 = vmatmul.mubr.f32.gmra.mrb[0].mxu0 %v549
    %v916 = vpop.f32.mrb[0].mxu0
    %v917 = vadd.f32 0.0, %v916
    %v918 = vpop.f32.mrb[0].mxu0
    %919 = vmatprep.mubr.f32.mxu0 0.0
    %920 = vmatmul.mubr.f32.gmra.mrb[0].mxu0 %v686
    %v921 = vpop.f32.mrb[0].mxu0
    %v922 = vadd.f32 0.0, %v921
    %v923 = vpop.f32.mrb[0].mxu0
    %924 = vmatprep.mubr.f32.mxu0 0.0
    %925 = vmatmul.mubr.f32.gmra.mrb[0].mxu0 %v688
    %v926 = vpop.f32.mrb[0].mxu0
    %v927 = vadd.f32 0.0, %v926
    %v928 = vpop.f32.mrb[0].mxu0
    %929 = vmatprep.mubr.f32.mxu0 0.0
    %930 = vmatmul.mubr.f32.gmra.mrb[0].mxu0 %v690
    %v931 = vpop.f32.mrb[0].mxu0
    %v932 = vadd.f32 0.0, %v931
    %v933 = vpop.f32.mrb[0].mxu0
    %934 = vmatprep.mubr.f32.mxu0 0.0
    %935 = vmatmul.mubr.f32.gmra.mrb[0].mxu0 %v692
    %v936 = vpop.f32.mrb[0].mxu0
    %v937 = vadd.f32 0.0, %v936
    %v938 = vpop.f32.mrb[0].mxu0
    %939 = vmatprep.mubr.f32.mxu0 0.0
    %940 = vmatmul.mubr.f32.gmra.mrb[0].mxu0 %v694
    %v941 = vpop.f32.mrb[0].mxu0
    %v942 = vadd.f32 0.0, %v941
    %v943 = vpop.f32.mrb[0].mxu0
    %944 = vmatprep.mubr.f32.mxu0 0.0
    %945 = vmatmul.mubr.f32.gmra.mrb[0].mxu0 %v696
    %v946 = vpop.f32.mrb[0].mxu0
    %v947 = vadd.f32 0.0, %v946
    %v948 = vpop.f32.mrb[0].mxu0
    %949 = vmatprep.mubr.f32.mxu0 0.0
    %950 = vmatmul.mubr.f32.gmra.mrb[0].mxu0 %v698
    %v951 = vpop.f32.mrb[0].mxu0
    %v952 = vadd.f32 0.0, %v951
    %v953 = vpop.f32.mrb[0].mxu0
    %954 = vmatprep.mubr.f32.mxu0 0.0
    %955 = vmatmul.mubr.f32.gmra.mrb[0].mxu0 %v700
    %v956 = vpop.f32.mrb[0].mxu0
    %v957 = vadd.f32 0.0, %v956
    %v958 = vpop.f32.mrb[0].mxu0
    %959 = vmatprep.mubr.f32.mxu0 0.0
    %960 = vmatmul.mubr.f32.gmra.mrb[0].mxu0 %v845
    %v961 = vpop.f32.mrb[0].mxu0
    %v962 = vadd.f32 0.0, %v961
    %v963 = vpop.f32.mrb[0].mxu0
    %964 = vdwg.mxu0
    %v965 = vadd.f32 %v772, %v917
    %v966 = vadd.f32 %v777, %v922
    %v967 = vadd.f32 %v782, %v927
    %v968 = vadd.f32 %v787, %v932
    %v969 = vadd.f32 %v792, %v937
    %v970 = vadd.f32 %v797, %v942
    %v971 = vadd.f32 %v802, %v947
    %v972 = vadd.f32 %v807, %v952
    %v973 = vadd.f32 %v812, %v957
    %v974 = vadd.f32 %v817, %v962
    %v975 = vrot.slane %v273, 1
    %v976 = vsel %vm304, %v276, %v975
    %v977 = vrot.slane %v279, 7
    %v978 = vsel %vm307, %v977, %v976
    %v979 = vrot.slane %v282, 6
    %v980 = vsel %vm310, %v979, %v978
    %v981 = vrot.slane %v285, 5
    %v982 = vsel %vm313, %v981, %v980
    %v983 = vrot.slane %v288, 4
    %v984 = vsel %vm316, %v983, %v982
    %v985 = vrot.slane %v291, 3
    %v986 = vsel %vm319, %v985, %v984
    %v987 = vrot.slane %v294, 2
    %v988 = vsel %vm322, %v987, %v986
    %s989 = scalar_lea.vmem %s1, 48
    %v990 = vld [vmem:[%s989] sm:$0xff]
    %v991 = vld [vmem:[%s989 + $0x8] sm:$0x3]
    %v992 = vsel %vm547, %v988, 0
    %v995 = vsel %vm567, %v991, 0
    %997 = vmatprep.subr.mxu0 0.0
    %998 = vmatpush1.msra.mxu0 %v990
    %999 = vmatprep.subr.mxu0 0.0
    %1000 = vmatpush1.msra.mxu0 %v995
    %1001 = vmatprep.subr.mxu0 0.0
    %1002 = vmatpush1.msra.mxu0 0.0
    %1003 = vmatprep.subr.mxu0 0.0
    %1004 = vmatpush1.msra.mxu0 0.0
    %1005 = vmatprep.subr.mxu0 0.0
    %1006 = vmatpush1.msra.mxu0 0.0
    %1007 = vmatprep.subr.mxu0 0.0
    %1008 = vmatpush1.msra.mxu0 0.0
    %1009 = vmatprep.subr.mxu0 0.0
    %1010 = vmatpush1.msra.mxu0 0.0
    %1011 = vmatprep.subr.mxu0 0.0
    %1012 = vmatpush1.msra.mxu0 0.0
    %1013 = vmatprep.subr.mxu0 0.0
    %1014 = vmatpush1.msra.mxu0 0.0
    %1015 = vmatprep.subr.mxu0 0.0
    %1016 = vmatpush1.msra.mxu0 0.0
    %1017 = vmatprep.subr.mxu0 0.0
    %1018 = vmatpush1.msra.mxu0 0.0
    %1019 = vmatprep.subr.mxu0 0.0
    %1020 = vmatpush1.msra.mxu0 0.0
    %1021 = vmatprep.subr.mxu0 0.0
    %1022 = vmatpush1.msra.mxu0 0.0
    %1023 = vmatprep.subr.mxu0 0.0
    %1024 = vmatpush1.msra.mxu0 0.0
    %1025 = vmatprep.subr.mxu0 0.0
    %1026 = vmatpush1.msra.mxu0 0.0
    %1027 = vmatprep.subr.mxu0 0.0
    %1028 = vmatpush1.msra.mxu0 0.0
    %1029 = vmatprep.subr.mxu0 0.0
    %1030 = vmatpush1.msra.mxu0 0.0
    %1031 = vmatprep.subr.mxu0 0.0
    %1032 = vmatpush1.msra.mxu0 0.0
    %1033 = vmatprep.subr.mxu0 0.0
    %1034 = vmatpush1.msra.mxu0 0.0
    %1035 = vmatprep.subr.mxu0 0.0
    %1036 = vmatpush1.msra.mxu0 0.0
    %1037 = vmatprep.subr.mxu0 0.0
    %1038 = vmatpush1.msra.mxu0 0.0
    %1039 = vmatprep.subr.mxu0 0.0
    %1040 = vmatpush1.msra.mxu0 0.0
    %1041 = vmatprep.subr.mxu0 0.0
    %1042 = vmatpush1.msra.mxu0 0.0
    %1043 = vmatprep.subr.mxu0 0.0
    %1044 = vmatpush1.msra.mxu0 0.0
    %1045 = vmatprep.subr.mxu0 0.0
    %1046 = vmatpush1.msra.mxu0 0.0
    %1047 = vmatprep.subr.mxu0 0.0
    %1048 = vmatpush1.msra.mxu0 0.0
    %1049 = vmatprep.subr.mxu0 0.0
    %1050 = vmatpush1.msra.mxu0 0.0
    %1051 = vmatprep.subr.mxu0 0.0
    %1052 = vmatpush1.msra.mxu0 0.0
    %1053 = vmatprep.subr.mxu0 0.0
    %1054 = vmatpush1.msra.mxu0 0.0
    %1055 = vmatprep.subr.mxu0 0.0
    %1056 = vmatpush1.msra.mxu0 0.0
    %1057 = vmatprep.subr.mxu0 0.0
    %1058 = vmatpush1.msra.mxu0 0.0
    %1059 = vmatprep.subr.mxu0 0.0
    %1060 = vmatpush1.msra.mxu0 0.0
    %1061 = vmatprep.mubr.f32.mxu0 0.0
    %1062 = vmatmul.mubr.f32.gmra.mrb[0].mxu0 %v549
    %v1063 = vpop.f32.mrb[0].mxu0
    %v1064 = vadd.f32 0.0, %v1063
    %v1065 = vpop.f32.mrb[0].mxu0
    %1066 = vmatprep.mubr.f32.mxu0 0.0
    %1067 = vmatmul.mubr.f32.gmra.mrb[0].mxu0 %v551
    %v1068 = vpop.f32.mrb[0].mxu0
    %v1069 = vadd.f32 0.0, %v1068
    %v1070 = vpop.f32.mrb[0].mxu0
    %1071 = vmatprep.mubr.f32.mxu0 0.0
    %1072 = vmatmul.mubr.f32.gmra.mrb[0].mxu0 %v553
    %v1073 = vpop.f32.mrb[0].mxu0
    %v1074 = vadd.f32 0.0, %v1073
    %v1075 = vpop.f32.mrb[0].mxu0
    %1076 = vmatprep.mubr.f32.mxu0 0.0
    %1077 = vmatmul.mubr.f32.gmra.mrb[0].mxu0 %v555
    %v1078 = vpop.f32.mrb[0].mxu0
    %v1079 = vadd.f32 0.0, %v1078
    %v1080 = vpop.f32.mrb[0].mxu0
    %1081 = vmatprep.mubr.f32.mxu0 0.0
    %1082 = vmatmul.mubr.f32.gmra.mrb[0].mxu0 %v557
    %v1083 = vpop.f32.mrb[0].mxu0
    %v1084 = vadd.f32 0.0, %v1083
    %v1085 = vpop.f32.mrb[0].mxu0
    %1086 = vmatprep.mubr.f32.mxu0 0.0
    %1087 = vmatmul.mubr.f32.gmra.mrb[0].mxu0 %v559
    %v1088 = vpop.f32.mrb[0].mxu0
    %v1089 = vadd.f32 0.0, %v1088
    %v1090 = vpop.f32.mrb[0].mxu0
    %1091 = vmatprep.mubr.f32.mxu0 0.0
    %1092 = vmatmul.mubr.f32.gmra.mrb[0].mxu0 %v561
    %v1093 = vpop.f32.mrb[0].mxu0
    %v1094 = vadd.f32 0.0, %v1093
    %v1095 = vpop.f32.mrb[0].mxu0
    %1096 = vmatprep.mubr.f32.mxu0 0.0
    %1097 = vmatmul.mubr.f32.gmra.mrb[0].mxu0 %v563
    %v1098 = vpop.f32.mrb[0].mxu0
    %v1099 = vadd.f32 0.0, %v1098
    %v1100 = vpop.f32.mrb[0].mxu0
    %1101 = vmatprep.mubr.f32.mxu0 0.0
    %1102 = vmatmul.mubr.f32.gmra.mrb[0].mxu0 %v565
    %v1103 = vpop.f32.mrb[0].mxu0
    %v1104 = vadd.f32 0.0, %v1103
    %v1105 = vpop.f32.mrb[0].mxu0
    %1106 = vmatprep.mubr.f32.mxu0 0.0
    %1107 = vmatmul.mubr.f32.gmra.mrb[0].mxu0 %v992
    %v1108 = vpop.f32.mrb[0].mxu0
    %v1109 = vadd.f32 0.0, %v1108
    %v1110 = vpop.f32.mrb[0].mxu0
    %1111 = vdwg.mxu0
    %v1112 = vadd.f32 %v965, %v1064
    %v1113 = vadd.f32 %v966, %v1069
    %v1114 = vadd.f32 %v967, %v1074
    %v1115 = vadd.f32 %v968, %v1079
    %v1116 = vadd.f32 %v969, %v1084
    %v1117 = vadd.f32 %v970, %v1089
    %v1118 = vadd.f32 %v971, %v1094
    %v1119 = vadd.f32 %v972, %v1099
    %v1120 = vadd.f32 %v973, %v1104
    %v1121 = vadd.f32 %v974, %v1109
    %v1122 = vrot.slane %v273, 2
    %v1123 = vrot.slane %v276, 1
    %v1124 = vsel %vm304, %v1123, %v1122
    %v1125 = vsel %vm307, %v279, %v1124
    %v1126 = vrot.slane %v282, 7
    %v1127 = vsel %vm310, %v1126, %v1125
    %v1128 = vrot.slane %v285, 6
    %v1129 = vsel %vm313, %v1128, %v1127
    %v1130 = vrot.slane %v288, 5
    %v1131 = vsel %vm316, %v1130, %v1129
    %v1132 = vrot.slane %v291, 4
    %v1133 = vsel %vm319, %v1132, %v1131
    %v1134 = vrot.slane %v294, 3
    %v1135 = vsel %vm322, %v1134, %v1133
    %s1136 = scalar_lea.vmem %s1, 64
    %v1137 = vld [vmem:[%s1136] sm:$0xff]
    %v1138 = vld [vmem:[%s1136 + $0x8] sm:$0x3]
    %v1139 = vsel %vm547, %v1135, 0
    %v1142 = vsel %vm567, %v1138, 0
    %1144 = vmatprep.subr.mxu0 0.0
    %1145 = vmatpush1.msra.mxu0 %v1137
    %1146 = vmatprep.subr.mxu0 0.0
    %1147 = vmatpush1.msra.mxu0 %v1142
    %1148 = vmatprep.subr.mxu0 0.0
    %1149 = vmatpush1.msra.mxu0 0.0
    %1150 = vmatprep.subr.mxu0 0.0
    %1151 = vmatpush1.msra.mxu0 0.0
    %1152 = vmatprep.subr.mxu0 0.0
    %1153 = vmatpush1.msra.mxu0 0.0
    %1154 = vmatprep.subr.mxu0 0.0
    %1155 = vmatpush1.msra.mxu0 0.0
    %1156 = vmatprep.subr.mxu0 0.0
    %1157 = vmatpush1.msra.mxu0 0.0
    %1158 = vmatprep.subr.mxu0 0.0
    %1159 = vmatpush1.msra.mxu0 0.0
    %1160 = vmatprep.subr.mxu0 0.0
    %1161 = vmatpush1.msra.mxu0 0.0
    %1162 = vmatprep.subr.mxu0 0.0
    %1163 = vmatpush1.msra.mxu0 0.0
    %1164 = vmatprep.subr.mxu0 0.0
    %1165 = vmatpush1.msra.mxu0 0.0
    %1166 = vmatprep.subr.mxu0 0.0
    %1167 = vmatpush1.msra.mxu0 0.0
    %1168 = vmatprep.subr.mxu0 0.0
    %1169 = vmatpush1.msra.mxu0 0.0
    %1170 = vmatprep.subr.mxu0 0.0
    %1171 = vmatpush1.msra.mxu0 0.0
    %1172 = vmatprep.subr.mxu0 0.0
    %1173 = vmatpush1.msra.mxu0 0.0
    %1174 = vmatprep.subr.mxu0 0.0
    %1175 = vmatpush1.msra.mxu0 0.0
    %1176 = vmatprep.subr.mxu0 0.0
    %1177 = vmatpush1.msra.mxu0 0.0
    %1178 = vmatprep.subr.mxu0 0.0
    %1179 = vmatpush1.msra.mxu0 0.0
    %1180 = vmatprep.subr.mxu0 0.0
    %1181 = vmatpush1.msra.mxu0 0.0
    %1182 = vmatprep.subr.mxu0 0.0
    %1183 = vmatpush1.msra.mxu0 0.0
    %1184 = vmatprep.subr.mxu0 0.0
    %1185 = vmatpush1.msra.mxu0 0.0
    %1186 = vmatprep.subr.mxu0 0.0
    %1187 = vmatpush1.msra.mxu0 0.0
    %1188 = vmatprep.subr.mxu0 0.0
    %1189 = vmatpush1.msra.mxu0 0.0
    %1190 = vmatprep.subr.mxu0 0.0
    %1191 = vmatpush1.msra.mxu0 0.0
    %1192 = vmatprep.subr.mxu0 0.0
    %1193 = vmatpush1.msra.mxu0 0.0
    %1194 = vmatprep.subr.mxu0 0.0
    %1195 = vmatpush1.msra.mxu0 0.0
    %1196 = vmatprep.subr.mxu0 0.0
    %1197 = vmatpush1.msra.mxu0 0.0
    %1198 = vmatprep.subr.mxu0 0.0
    %1199 = vmatpush1.msra.mxu0 0.0
    %1200 = vmatprep.subr.mxu0 0.0
    %1201 = vmatpush1.msra.mxu0 0.0
    %1202 = vmatprep.subr.mxu0 0.0
    %1203 = vmatpush1.msra.mxu0 0.0
    %1204 = vmatprep.subr.mxu0 0.0
    %1205 = vmatpush1.msra.mxu0 0.0
    %1206 = vmatprep.subr.mxu0 0.0
    %1207 = vmatpush1.msra.mxu0 0.0
    %1208 = vmatprep.mubr.f32.mxu0 0.0
    %1209 = vmatmul.mubr.f32.gmra.mrb[0].mxu0 %v686
    %v1210 = vpop.f32.mrb[0].mxu0
    %v1211 = vadd.f32 0.0, %v1210
    %v1212 = vpop.f32.mrb[0].mxu0
    %1213 = vmatprep.mubr.f32.mxu0 0.0
    %1214 = vmatmul.mubr.f32.gmra.mrb[0].mxu0 %v688
    %v1215 = vpop.f32.mrb[0].mxu0
    %v1216 = vadd.f32 0.0, %v1215
    %v1217 = vpop.f32.mrb[0].mxu0
    %1218 = vmatprep.mubr.f32.mxu0 0.0
    %1219 = vmatmul.mubr.f32.gmra.mrb[0].mxu0 %v690
    %v1220 = vpop.f32.mrb[0].mxu0
    %v1221 = vadd.f32 0.0, %v1220
    %v1222 = vpop.f32.mrb[0].mxu0
    %1223 = vmatprep.mubr.f32.mxu0 0.0
    %1224 = vmatmul.mubr.f32.gmra.mrb[0].mxu0 %v692
    %v1225 = vpop.f32.mrb[0].mxu0
    %v1226 = vadd.f32 0.0, %v1225
    %v1227 = vpop.f32.mrb[0].mxu0
    %1228 = vmatprep.mubr.f32.mxu0 0.0
    %1229 = vmatmul.mubr.f32.gmra.mrb[0].mxu0 %v694
    %v1230 = vpop.f32.mrb[0].mxu0
    %v1231 = vadd.f32 0.0, %v1230
    %v1232 = vpop.f32.mrb[0].mxu0
    %1233 = vmatprep.mubr.f32.mxu0 0.0
    %1234 = vmatmul.mubr.f32.gmra.mrb[0].mxu0 %v696
    %v1235 = vpop.f32.mrb[0].mxu0
    %v1236 = vadd.f32 0.0, %v1235
    %v1237 = vpop.f32.mrb[0].mxu0
    %1238 = vmatprep.mubr.f32.mxu0 0.0
    %1239 = vmatmul.mubr.f32.gmra.mrb[0].mxu0 %v698
    %v1240 = vpop.f32.mrb[0].mxu0
    %v1241 = vadd.f32 0.0, %v1240
    %v1242 = vpop.f32.mrb[0].mxu0
    %1243 = vmatprep.mubr.f32.mxu0 0.0
    %1244 = vmatmul.mubr.f32.gmra.mrb[0].mxu0 %v700
    %v1245 = vpop.f32.mrb[0].mxu0
    %v1246 = vadd.f32 0.0, %v1245
    %v1247 = vpop.f32.mrb[0].mxu0
    %1248 = vmatprep.mubr.f32.mxu0 0.0
    %1249 = vmatmul.mubr.f32.gmra.mrb[0].mxu0 %v845
    %v1250 = vpop.f32.mrb[0].mxu0
    %v1251 = vadd.f32 0.0, %v1250
    %v1252 = vpop.f32.mrb[0].mxu0
    %1253 = vmatprep.mubr.f32.mxu0 0.0
    %1254 = vmatmul.mubr.f32.gmra.mrb[0].mxu0 %v1139
    %v1255 = vpop.f32.mrb[0].mxu0
    %v1256 = vadd.f32 0.0, %v1255
    %v1257 = vpop.f32.mrb[0].mxu0
    %1258 = vdwg.mxu0
    %v1259 = vadd.f32 %v1112, %v1211
    %v1260 = vadd.f32 %v1113, %v1216
    %v1261 = vadd.f32 %v1114, %v1221
    %v1262 = vadd.f32 %v1115, %v1226
    %v1263 = vadd.f32 %v1116, %v1231
    %v1264 = vadd.f32 %v1117, %v1236
    %v1265 = vadd.f32 %v1118, %v1241
    %v1266 = vadd.f32 %v1119, %v1246
    %v1267 = vadd.f32 %v1120, %v1251
    %v1268 = vadd.f32 %v1121, %v1256
    %v1269 = vrot.slane %v273, 3
    %v1270 = vrot.slane %v276, 2
    %v1271 = vsel %vm304, %v1270, %v1269
    %v1272 = vrot.slane %v279, 1
    %v1273 = vsel %vm307, %v1272, %v1271
    %v1274 = vsel %vm310, %v282, %v1273
    %v1275 = vrot.slane %v285, 7
    %v1276 = vsel %vm313, %v1275, %v1274
    %v1277 = vrot.slane %v288, 6
    %v1278 = vsel %vm316, %v1277, %v1276
    %v1279 = vrot.slane %v291, 5
    %v1280 = vsel %vm319, %v1279, %v1278
    %v1281 = vrot.slane %v294, 4
    %v1282 = vsel %vm322, %v1281, %v1280
    %s1283 = scalar_lea.vmem %s1, 80
    %v1284 = vld [vmem:[%s1283] sm:$0xff]
    %v1285 = vld [vmem:[%s1283 + $0x8] sm:$0x3]
    %v1286 = vsel %vm547, %v1282, 0
    %v1289 = vsel %vm567, %v1285, 0
    %1291 = vmatprep.subr.mxu0 0.0
    %1292 = vmatpush1.msra.mxu0 %v1284
    %1293 = vmatprep.subr.mxu0 0.0
    %1294 = vmatpush1.msra.mxu0 %v1289
    %1295 = vmatprep.subr.mxu0 0.0
    %1296 = vmatpush1.msra.mxu0 0.0
    %1297 = vmatprep.subr.mxu0 0.0
    %1298 = vmatpush1.msra.mxu0 0.0
    %1299 = vmatprep.subr.mxu0 0.0
    %1300 = vmatpush1.msra.mxu0 0.0
    %1301 = vmatprep.subr.mxu0 0.0
    %1302 = vmatpush1.msra.mxu0 0.0
    %1303 = vmatprep.subr.mxu0 0.0
    %1304 = vmatpush1.msra.mxu0 0.0
    %1305 = vmatprep.subr.mxu0 0.0
    %1306 = vmatpush1.msra.mxu0 0.0
    %1307 = vmatprep.subr.mxu0 0.0
    %1308 = vmatpush1.msra.mxu0 0.0
    %1309 = vmatprep.subr.mxu0 0.0
    %1310 = vmatpush1.msra.mxu0 0.0
    %1311 = vmatprep.subr.mxu0 0.0
    %1312 = vmatpush1.msra.mxu0 0.0
    %1313 = vmatprep.subr.mxu0 0.0
    %1314 = vmatpush1.msra.mxu0 0.0
    %1315 = vmatprep.subr.mxu0 0.0
    %1316 = vmatpush1.msra.mxu0 0.0
    %1317 = vmatprep.subr.mxu0 0.0
    %1318 = vmatpush1.msra.mxu0 0.0
    %1319 = vmatprep.subr.mxu0 0.0
    %1320 = vmatpush1.msra.mxu0 0.0
    %1321 = vmatprep.subr.mxu0 0.0
    %1322 = vmatpush1.msra.mxu0 0.0
    %1323 = vmatprep.subr.mxu0 0.0
    %1324 = vmatpush1.msra.mxu0 0.0
    %1325 = vmatprep.subr.mxu0 0.0
    %1326 = vmatpush1.msra.mxu0 0.0
    %1327 = vmatprep.subr.mxu0 0.0
    %1328 = vmatpush1.msra.mxu0 0.0
    %1329 = vmatprep.subr.mxu0 0.0
    %1330 = vmatpush1.msra.mxu0 0.0
    %1331 = vmatprep.subr.mxu0 0.0
    %1332 = vmatpush1.msra.mxu0 0.0
    %1333 = vmatprep.subr.mxu0 0.0
    %1334 = vmatpush1.msra.mxu0 0.0
    %1335 = vmatprep.subr.mxu0 0.0
    %1336 = vmatpush1.msra.mxu0 0.0
    %1337 = vmatprep.subr.mxu0 0.0
    %1338 = vmatpush1.msra.mxu0 0.0
    %1339 = vmatprep.subr.mxu0 0.0
    %1340 = vmatpush1.msra.mxu0 0.0
    %1341 = vmatprep.subr.mxu0 0.0
    %1342 = vmatpush1.msra.mxu0 0.0
    %1343 = vmatprep.subr.mxu0 0.0
    %1344 = vmatpush1.msra.mxu0 0.0
    %1345 = vmatprep.subr.mxu0 0.0
    %1346 = vmatpush1.msra.mxu0 0.0
    %1347 = vmatprep.subr.mxu0 0.0
    %1348 = vmatpush1.msra.mxu0 0.0
    %1349 = vmatprep.subr.mxu0 0.0
    %1350 = vmatpush1.msra.mxu0 0.0
    %1351 = vmatprep.subr.mxu0 0.0
    %1352 = vmatpush1.msra.mxu0 0.0
    %1353 = vmatprep.subr.mxu0 0.0
    %1354 = vmatpush1.msra.mxu0 0.0
    %1355 = vmatprep.mubr.f32.mxu0 0.0
    %1356 = vmatmul.mubr.f32.gmra.mrb[0].mxu0 %v551
    %v1357 = vpop.f32.mrb[0].mxu0
    %v1358 = vadd.f32 0.0, %v1357
    %v1359 = vpop.f32.mrb[0].mxu0
    %1360 = vmatprep.mubr.f32.mxu0 0.0
    %1361 = vmatmul.mubr.f32.gmra.mrb[0].mxu0 %v553
    %v1362 = vpop.f32.mrb[0].mxu0
    %v1363 = vadd.f32 0.0, %v1362
    %v1364 = vpop.f32.mrb[0].mxu0
    %1365 = vmatprep.mubr.f32.mxu0 0.0
    %1366 = vmatmul.mubr.f32.gmra.mrb[0].mxu0 %v555
    %v1367 = vpop.f32.mrb[0].mxu0
    %v1368 = vadd.f32 0.0, %v1367
    %v1369 = vpop.f32.mrb[0].mxu0
    %1370 = vmatprep.mubr.f32.mxu0 0.0
    %1371 = vmatmul.mubr.f32.gmra.mrb[0].mxu0 %v557
    %v1372 = vpop.f32.mrb[0].mxu0
    %v1373 = vadd.f32 0.0, %v1372
    %v1374 = vpop.f32.mrb[0].mxu0
    %1375 = vmatprep.mubr.f32.mxu0 0.0
    %1376 = vmatmul.mubr.f32.gmra.mrb[0].mxu0 %v559
    %v1377 = vpop.f32.mrb[0].mxu0
    %v1378 = vadd.f32 0.0, %v1377
    %v1379 = vpop.f32.mrb[0].mxu0
    %1380 = vmatprep.mubr.f32.mxu0 0.0
    %1381 = vmatmul.mubr.f32.gmra.mrb[0].mxu0 %v561
    %v1382 = vpop.f32.mrb[0].mxu0
    %v1383 = vadd.f32 0.0, %v1382
    %v1384 = vpop.f32.mrb[0].mxu0
    %1385 = vmatprep.mubr.f32.mxu0 0.0
    %1386 = vmatmul.mubr.f32.gmra.mrb[0].mxu0 %v563
    %v1387 = vpop.f32.mrb[0].mxu0
    %v1388 = vadd.f32 0.0, %v1387
    %v1389 = vpop.f32.mrb[0].mxu0
    %1390 = vmatprep.mubr.f32.mxu0 0.0
    %1391 = vmatmul.mubr.f32.gmra.mrb[0].mxu0 %v565
    %v1392 = vpop.f32.mrb[0].mxu0
    %v1393 = vadd.f32 0.0, %v1392
    %v1394 = vpop.f32.mrb[0].mxu0
    %1395 = vmatprep.mubr.f32.mxu0 0.0
    %1396 = vmatmul.mubr.f32.gmra.mrb[0].mxu0 %v992
    %v1397 = vpop.f32.mrb[0].mxu0
    %v1398 = vadd.f32 0.0, %v1397
    %v1399 = vpop.f32.mrb[0].mxu0
    %1400 = vmatprep.mubr.f32.mxu0 0.0
    %1401 = vmatmul.mubr.f32.gmra.mrb[0].mxu0 %v1286
    %v1402 = vpop.f32.mrb[0].mxu0
    %v1403 = vadd.f32 0.0, %v1402
    %v1404 = vpop.f32.mrb[0].mxu0
    %1405 = vdwg.mxu0
    %v1406 = vadd.f32 %v1259, %v1358
    %v1407 = vadd.f32 %v1260, %v1363
    %v1408 = vadd.f32 %v1261, %v1368
    %v1409 = vadd.f32 %v1262, %v1373
    %v1410 = vadd.f32 %v1263, %v1378
    %v1411 = vadd.f32 %v1264, %v1383
    %v1412 = vadd.f32 %v1265, %v1388
    %v1413 = vadd.f32 %v1266, %v1393
    %v1414 = vadd.f32 %v1267, %v1398
    %v1415 = vadd.f32 %v1268, %v1403
    %s1416 = scalar_lea.vmem %s1, 96
    %v1417 = vld [vmem:[%s1416] sm:$0xff]
    %v1418 = vld [vmem:[%s1416 + $0x8] sm:$0x3]
    %v1420 = vsel %vm567, %v1418, 0
    %1422 = vmatprep.subr.mxu0 0.0
    %1423 = vmatpush1.msra.mxu0 %v1417
    %1424 = vmatprep.subr.mxu0 0.0
    %1425 = vmatpush1.msra.mxu0 %v1420
    %1426 = vmatprep.subr.mxu0 0.0
    %1427 = vmatpush1.msra.mxu0 0.0
    %1428 = vmatprep.subr.mxu0 0.0
    %1429 = vmatpush1.msra.mxu0 0.0
    %1430 = vmatprep.subr.mxu0 0.0
    %1431 = vmatpush1.msra.mxu0 0.0
    %1432 = vmatprep.subr.mxu0 0.0
    %1433 = vmatpush1.msra.mxu0 0.0
    %1434 = vmatprep.subr.mxu0 0.0
    %1435 = vmatpush1.msra.mxu0 0.0
    %1436 = vmatprep.subr.mxu0 0.0
    %1437 = vmatpush1.msra.mxu0 0.0
    %1438 = vmatprep.subr.mxu0 0.0
    %1439 = vmatpush1.msra.mxu0 0.0
    %1440 = vmatprep.subr.mxu0 0.0
    %1441 = vmatpush1.msra.mxu0 0.0
    %1442 = vmatprep.subr.mxu0 0.0
    %1443 = vmatpush1.msra.mxu0 0.0
    %1444 = vmatprep.subr.mxu0 0.0
    %1445 = vmatpush1.msra.mxu0 0.0
    %1446 = vmatprep.subr.mxu0 0.0
    %1447 = vmatpush1.msra.mxu0 0.0
    %1448 = vmatprep.subr.mxu0 0.0
    %1449 = vmatpush1.msra.mxu0 0.0
    %1450 = vmatprep.subr.mxu0 0.0
    %1451 = vmatpush1.msra.mxu0 0.0
    %1452 = vmatprep.subr.mxu0 0.0
    %1453 = vmatpush1.msra.mxu0 0.0
    %1454 = vmatprep.subr.mxu0 0.0
    %1455 = vmatpush1.msra.mxu0 0.0
    %1456 = vmatprep.subr.mxu0 0.0
    %1457 = vmatpush1.msra.mxu0 0.0
    %1458 = vmatprep.subr.mxu0 0.0
    %1459 = vmatpush1.msra.mxu0 0.0
    %1460 = vmatprep.subr.mxu0 0.0
    %1461 = vmatpush1.msra.mxu0 0.0
    %1462 = vmatprep.subr.mxu0 0.0
    %1463 = vmatpush1.msra.mxu0 0.0
    %1464 = vmatprep.subr.mxu0 0.0
    %1465 = vmatpush1.msra.mxu0 0.0
    %1466 = vmatprep.subr.mxu0 0.0
    %1467 = vmatpush1.msra.mxu0 0.0
    %1468 = vmatprep.subr.mxu0 0.0
    %1469 = vmatpush1.msra.mxu0 0.0
    %1470 = vmatprep.subr.mxu0 0.0
    %1471 = vmatpush1.msra.mxu0 0.0
    %1472 = vmatprep.subr.mxu0 0.0
    %1473 = vmatpush1.msra.mxu0 0.0
    %1474 = vmatprep.subr.mxu0 0.0
    %1475 = vmatpush1.msra.mxu0 0.0
    %1476 = vmatprep.subr.mxu0 0.0
    %1477 = vmatpush1.msra.mxu0 0.0
    %1478 = vmatprep.subr.mxu0 0.0
    %1479 = vmatpush1.msra.mxu0 0.0
    %1480 = vmatprep.subr.mxu0 0.0
    %1481 = vmatpush1.msra.mxu0 0.0
    %1482 = vmatprep.subr.mxu0 0.0
    %1483 = vmatpush1.msra.mxu0 0.0
    %1484 = vmatprep.subr.mxu0 0.0
    %1485 = vmatpush1.msra.mxu0 0.0
    %1486 = vmatprep.mubr.f32.mxu0 0.0
    %1487 = vmatmul.mubr.f32.gmra.mrb[0].mxu0 %v688
    %v1488 = vpop.f32.mrb[0].mxu0
    %v1489 = vadd.f32 0.0, %v1488
    %v1490 = vpop.f32.mrb[0].mxu0
    %1491 = vmatprep.mubr.f32.mxu0 0.0
    %1492 = vmatmul.mubr.f32.gmra.mrb[0].mxu0 %v690
    %v1493 = vpop.f32.mrb[0].mxu0
    %v1494 = vadd.f32 0.0, %v1493
    %v1495 = vpop.f32.mrb[0].mxu0
    %1496 = vmatprep.mubr.f32.mxu0 0.0
    %1497 = vmatmul.mubr.f32.gmra.mrb[0].mxu0 %v692
    %v1498 = vpop.f32.mrb[0].mxu0
    %v1499 = vadd.f32 0.0, %v1498
    %v1500 = vpop.f32.mrb[0].mxu0
    %1501 = vmatprep.mubr.f32.mxu0 0.0
    %1502 = vmatmul.mubr.f32.gmra.mrb[0].mxu0 %v694
    %v1503 = vpop.f32.mrb[0].mxu0
    %v1504 = vadd.f32 0.0, %v1503
    %v1505 = vpop.f32.mrb[0].mxu0
    %1506 = vmatprep.mubr.f32.mxu0 0.0
    %1507 = vmatmul.mubr.f32.gmra.mrb[0].mxu0 %v696
    %v1508 = vpop.f32.mrb[0].mxu0
    %v1509 = vadd.f32 0.0, %v1508
    %v1510 = vpop.f32.mrb[0].mxu0
    %1511 = vmatprep.mubr.f32.mxu0 0.0
    %1512 = vmatmul.mubr.f32.gmra.mrb[0].mxu0 %v698
    %v1513 = vpop.f32.mrb[0].mxu0
    %v1514 = vadd.f32 0.0, %v1513
    %v1515 = vpop.f32.mrb[0].mxu0
    %1516 = vmatprep.mubr.f32.mxu0 0.0
    %1517 = vmatmul.mubr.f32.gmra.mrb[0].mxu0 %v700
    %v1518 = vpop.f32.mrb[0].mxu0
    %v1519 = vadd.f32 0.0, %v1518
    %v1520 = vpop.f32.mrb[0].mxu0
    %1521 = vmatprep.mubr.f32.mxu0 0.0
    %1522 = vmatmul.mubr.f32.gmra.mrb[0].mxu0 %v845
    %v1523 = vpop.f32.mrb[0].mxu0
    %v1524 = vadd.f32 0.0, %v1523
    %v1525 = vpop.f32.mrb[0].mxu0
    %1526 = vmatprep.mubr.f32.mxu0 0.0
    %1527 = vmatmul.mubr.f32.gmra.mrb[0].mxu0 %v1139
    %v1528 = vpop.f32.mrb[0].mxu0
    %v1529 = vadd.f32 0.0, %v1528
    %v1530 = vpop.f32.mrb[0].mxu0
    %1531 = vmatprep.mubr.f32.mxu0 0.0
    %1532 = vmatmul.mubr.f32.gmra.mrb[0].mxu0 %v549
    %v1533 = vpop.f32.mrb[0].mxu0
    %v1534 = vadd.f32 0.0, %v1533
    %v1535 = vpop.f32.mrb[0].mxu0
    %1536 = vdwg.mxu0
    %v1537 = vadd.f32 %v1406, %v1489
    %v1538 = vadd.f32 %v1407, %v1494
    %v1539 = vadd.f32 %v1408, %v1499
    %v1540 = vadd.f32 %v1409, %v1504
    %v1541 = vadd.f32 %v1410, %v1509
    %v1542 = vadd.f32 %v1411, %v1514
    %v1543 = vadd.f32 %v1412, %v1519
    %v1544 = vadd.f32 %v1413, %v1524
    %v1545 = vadd.f32 %v1414, %v1529
    %v1546 = vadd.f32 %v1415, %v1534
    %s1547 = scalar_lea.vmem %s1, 112
    %v1548 = vld [vmem:[%s1547] sm:$0xff]
    %v1549 = vld [vmem:[%s1547 + $0x8] sm:$0x3]
    %v1551 = vsel %vm567, %v1549, 0
    %1553 = vmatprep.subr.mxu0 0.0
    %1554 = vmatpush1.msra.mxu0 %v1548
    %1555 = vmatprep.subr.mxu0 0.0
    %1556 = vmatpush1.msra.mxu0 %v1551
    %1557 = vmatprep.subr.mxu0 0.0
    %1558 = vmatpush1.msra.mxu0 0.0
    %1559 = vmatprep.subr.mxu0 0.0
    %1560 = vmatpush1.msra.mxu0 0.0
    %1561 = vmatprep.subr.mxu0 0.0
    %1562 = vmatpush1.msra.mxu0 0.0
    %1563 = vmatprep.subr.mxu0 0.0
    %1564 = vmatpush1.msra.mxu0 0.0
    %1565 = vmatprep.subr.mxu0 0.0
    %1566 = vmatpush1.msra.mxu0 0.0
    %1567 = vmatprep.subr.mxu0 0.0
    %1568 = vmatpush1.msra.mxu0 0.0
    %1569 = vmatprep.subr.mxu0 0.0
    %1570 = vmatpush1.msra.mxu0 0.0
    %1571 = vmatprep.subr.mxu0 0.0
    %1572 = vmatpush1.msra.mxu0 0.0
    %1573 = vmatprep.subr.mxu0 0.0
    %1574 = vmatpush1.msra.mxu0 0.0
    %1575 = vmatprep.subr.mxu0 0.0
    %1576 = vmatpush1.msra.mxu0 0.0
    %1577 = vmatprep.subr.mxu0 0.0
    %1578 = vmatpush1.msra.mxu0 0.0
    %1579 = vmatprep.subr.mxu0 0.0
    %1580 = vmatpush1.msra.mxu0 0.0
    %1581 = vmatprep.subr.mxu0 0.0
    %1582 = vmatpush1.msra.mxu0 0.0
    %1583 = vmatprep.subr.mxu0 0.0
    %1584 = vmatpush1.msra.mxu0 0.0
    %1585 = vmatprep.subr.mxu0 0.0
    %1586 = vmatpush1.msra.mxu0 0.0
    %1587 = vmatprep.subr.mxu0 0.0
    %1588 = vmatpush1.msra.mxu0 0.0
    %1589 = vmatprep.subr.mxu0 0.0
    %1590 = vmatpush1.msra.mxu0 0.0
    %1591 = vmatprep.subr.mxu0 0.0
    %1592 = vmatpush1.msra.mxu0 0.0
    %1593 = vmatprep.subr.mxu0 0.0
    %1594 = vmatpush1.msra.mxu0 0.0
    %1595 = vmatprep.subr.mxu0 0.0
    %1596 = vmatpush1.msra.mxu0 0.0
    %1597 = vmatprep.subr.mxu0 0.0
    %1598 = vmatpush1.msra.mxu0 0.0
    %1599 = vmatprep.subr.mxu0 0.0
    %1600 = vmatpush1.msra.mxu0 0.0
    %1601 = vmatprep.subr.mxu0 0.0
    %1602 = vmatpush1.msra.mxu0 0.0
    %1603 = vmatprep.subr.mxu0 0.0
    %1604 = vmatpush1.msra.mxu0 0.0
    %1605 = vmatprep.subr.mxu0 0.0
    %1606 = vmatpush1.msra.mxu0 0.0
    %1607 = vmatprep.subr.mxu0 0.0
    %1608 = vmatpush1.msra.mxu0 0.0
    %1609 = vmatprep.subr.mxu0 0.0
    %1610 = vmatpush1.msra.mxu0 0.0
    %1611 = vmatprep.subr.mxu0 0.0
    %1612 = vmatpush1.msra.mxu0 0.0
    %1613 = vmatprep.subr.mxu0 0.0
    %1614 = vmatpush1.msra.mxu0 0.0
    %1615 = vmatprep.subr.mxu0 0.0
    %1616 = vmatpush1.msra.mxu0 0.0
    %1617 = vmatprep.mubr.f32.mxu0 0.0
    %1618 = vmatmul.mubr.f32.gmra.mrb[0].mxu0 %v553
    %v1619 = vpop.f32.mrb[0].mxu0
    %v1620 = vadd.f32 0.0, %v1619
    %v1621 = vpop.f32.mrb[0].mxu0
    %1622 = vmatprep.mubr.f32.mxu0 0.0
    %1623 = vmatmul.mubr.f32.gmra.mrb[0].mxu0 %v555
    %v1624 = vpop.f32.mrb[0].mxu0
    %v1625 = vadd.f32 0.0, %v1624
    %v1626 = vpop.f32.mrb[0].mxu0
    %1627 = vmatprep.mubr.f32.mxu0 0.0
    %1628 = vmatmul.mubr.f32.gmra.mrb[0].mxu0 %v557
    %v1629 = vpop.f32.mrb[0].mxu0
    %v1630 = vadd.f32 0.0, %v1629
    %v1631 = vpop.f32.mrb[0].mxu0
    %1632 = vmatprep.mubr.f32.mxu0 0.0
    %1633 = vmatmul.mubr.f32.gmra.mrb[0].mxu0 %v559
    %v1634 = vpop.f32.mrb[0].mxu0
    %v1635 = vadd.f32 0.0, %v1634
    %v1636 = vpop.f32.mrb[0].mxu0
    %1637 = vmatprep.mubr.f32.mxu0 0.0
    %1638 = vmatmul.mubr.f32.gmra.mrb[0].mxu0 %v561
    %v1639 = vpop.f32.mrb[0].mxu0
    %v1640 = vadd.f32 0.0, %v1639
    %v1641 = vpop.f32.mrb[0].mxu0
    %1642 = vmatprep.mubr.f32.mxu0 0.0
    %1643 = vmatmul.mubr.f32.gmra.mrb[0].mxu0 %v563
    %v1644 = vpop.f32.mrb[0].mxu0
    %v1645 = vadd.f32 0.0, %v1644
    %v1646 = vpop.f32.mrb[0].mxu0
    %1647 = vmatprep.mubr.f32.mxu0 0.0
    %1648 = vmatmul.mubr.f32.gmra.mrb[0].mxu0 %v565
    %v1649 = vpop.f32.mrb[0].mxu0
    %v1650 = vadd.f32 0.0, %v1649
    %v1651 = vpop.f32.mrb[0].mxu0
    %1652 = vmatprep.mubr.f32.mxu0 0.0
    %1653 = vmatmul.mubr.f32.gmra.mrb[0].mxu0 %v992
    %v1654 = vpop.f32.mrb[0].mxu0
    %v1655 = vadd.f32 0.0, %v1654
    %v1656 = vpop.f32.mrb[0].mxu0
    %1657 = vmatprep.mubr.f32.mxu0 0.0
    %1658 = vmatmul.mubr.f32.gmra.mrb[0].mxu0 %v1286
    %v1659 = vpop.f32.mrb[0].mxu0
    %v1660 = vadd.f32 0.0, %v1659
    %v1661 = vpop.f32.mrb[0].mxu0
    %1662 = vmatprep.mubr.f32.mxu0 0.0
    %1663 = vmatmul.mubr.f32.gmra.mrb[0].mxu0 %v549
    %v1664 = vpop.f32.mrb[0].mxu0
    %v1665 = vadd.f32 0.0, %v1664
    %v1666 = vpop.f32.mrb[0].mxu0
    %1667 = vdwg.mxu0
    %v1668 = vadd.f32 %v1537, %v1620
    %v1669 = vadd.f32 %v1538, %v1625
    %v1670 = vadd.f32 %v1539, %v1630
    %v1671 = vadd.f32 %v1540, %v1635
    %v1672 = vadd.f32 %v1541, %v1640
    %v1673 = vadd.f32 %v1542, %v1645
    %v1674 = vadd.f32 %v1543, %v1650
    %v1675 = vadd.f32 %v1544, %v1655
    %v1676 = vadd.f32 %v1545, %v1660
    %v1677 = vadd.f32 %v1546, %v1665
    %s1678 = scalar_lea.vmem %s1, 128
    %v1679 = vld [vmem:[%s1678] sm:$0xff]
    %v1680 = vld [vmem:[%s1678 + $0x8] sm:$0x3]
    %v1682 = vsel %vm567, %v1680, 0
    %1684 = vmatprep.subr.mxu0 0.0
    %1685 = vmatpush1.msra.mxu0 %v1679
    %1686 = vmatprep.subr.mxu0 0.0
    %1687 = vmatpush1.msra.mxu0 %v1682
    %1688 = vmatprep.subr.mxu0 0.0
    %1689 = vmatpush1.msra.mxu0 0.0
    %1690 = vmatprep.subr.mxu0 0.0
    %1691 = vmatpush1.msra.mxu0 0.0
    %1692 = vmatprep.subr.mxu0 0.0
    %1693 = vmatpush1.msra.mxu0 0.0
    %1694 = vmatprep.subr.mxu0 0.0
    %1695 = vmatpush1.msra.mxu0 0.0
    %1696 = vmatprep.subr.mxu0 0.0
    %1697 = vmatpush1.msra.mxu0 0.0
    %1698 = vmatprep.subr.mxu0 0.0
    %1699 = vmatpush1.msra.mxu0 0.0
    %1700 = vmatprep.subr.mxu0 0.0
    %1701 = vmatpush1.msra.mxu0 0.0
    %1702 = vmatprep.subr.mxu0 0.0
    %1703 = vmatpush1.msra.mxu0 0.0
    %1704 = vmatprep.subr.mxu0 0.0
    %1705 = vmatpush1.msra.mxu0 0.0
    %1706 = vmatprep.subr.mxu0 0.0
    %1707 = vmatpush1.msra.mxu0 0.0
    %1708 = vmatprep.subr.mxu0 0.0
    %1709 = vmatpush1.msra.mxu0 0.0
    %1710 = vmatprep.subr.mxu0 0.0
    %1711 = vmatpush1.msra.mxu0 0.0
    %1712 = vmatprep.subr.mxu0 0.0
    %1713 = vmatpush1.msra.mxu0 0.0
    %1714 = vmatprep.subr.mxu0 0.0
    %1715 = vmatpush1.msra.mxu0 0.0
    %1716 = vmatprep.subr.mxu0 0.0
    %1717 = vmatpush1.msra.mxu0 0.0
    %1718 = vmatprep.subr.mxu0 0.0
    %1719 = vmatpush1.msra.mxu0 0.0
    %1720 = vmatprep.subr.mxu0 0.0
    %1721 = vmatpush1.msra.mxu0 0.0
    %1722 = vmatprep.subr.mxu0 0.0
    %1723 = vmatpush1.msra.mxu0 0.0
    %1724 = vmatprep.subr.mxu0 0.0
    %1725 = vmatpush1.msra.mxu0 0.0
    %1726 = vmatprep.subr.mxu0 0.0
    %1727 = vmatpush1.msra.mxu0 0.0
    %1728 = vmatprep.subr.mxu0 0.0
    %1729 = vmatpush1.msra.mxu0 0.0
    %1730 = vmatprep.subr.mxu0 0.0
    %1731 = vmatpush1.msra.mxu0 0.0
    %1732 = vmatprep.subr.mxu0 0.0
    %1733 = vmatpush1.msra.mxu0 0.0
    %1734 = vmatprep.subr.mxu0 0.0
    %1735 = vmatpush1.msra.mxu0 0.0
    %1736 = vmatprep.subr.mxu0 0.0
    %1737 = vmatpush1.msra.mxu0 0.0
    %1738 = vmatprep.subr.mxu0 0.0
    %1739 = vmatpush1.msra.mxu0 0.0
    %1740 = vmatprep.subr.mxu0 0.0
    %1741 = vmatpush1.msra.mxu0 0.0
    %1742 = vmatprep.subr.mxu0 0.0
    %1743 = vmatpush1.msra.mxu0 0.0
    %1744 = vmatprep.subr.mxu0 0.0
    %1745 = vmatpush1.msra.mxu0 0.0
    %1746 = vmatprep.subr.mxu0 0.0
    %1747 = vmatpush1.msra.mxu0 0.0
    %1748 = vmatprep.mubr.f32.mxu0 0.0
    %1749 = vmatmul.mubr.f32.gmra.mrb[0].mxu0 %v690
    %v1750 = vpop.f32.mrb[0].mxu0
    %v1751 = vadd.f32 0.0, %v1750
    %v1752 = vpop.f32.mrb[0].mxu0
    %1753 = vmatprep.mubr.f32.mxu0 0.0
    %1754 = vmatmul.mubr.f32.gmra.mrb[0].mxu0 %v692
    %v1755 = vpop.f32.mrb[0].mxu0
    %v1756 = vadd.f32 0.0, %v1755
    %v1757 = vpop.f32.mrb[0].mxu0
    %1758 = vmatprep.mubr.f32.mxu0 0.0
    %1759 = vmatmul.mubr.f32.gmra.mrb[0].mxu0 %v694
    %v1760 = vpop.f32.mrb[0].mxu0
    %v1761 = vadd.f32 0.0, %v1760
    %v1762 = vpop.f32.mrb[0].mxu0
    %1763 = vmatprep.mubr.f32.mxu0 0.0
    %1764 = vmatmul.mubr.f32.gmra.mrb[0].mxu0 %v696
    %v1765 = vpop.f32.mrb[0].mxu0
    %v1766 = vadd.f32 0.0, %v1765
    %v1767 = vpop.f32.mrb[0].mxu0
    %1768 = vmatprep.mubr.f32.mxu0 0.0
    %1769 = vmatmul.mubr.f32.gmra.mrb[0].mxu0 %v698
    %v1770 = vpop.f32.mrb[0].mxu0
    %v1771 = vadd.f32 0.0, %v1770
    %v1772 = vpop.f32.mrb[0].mxu0
    %1773 = vmatprep.mubr.f32.mxu0 0.0
    %1774 = vmatmul.mubr.f32.gmra.mrb[0].mxu0 %v700
    %v1775 = vpop.f32.mrb[0].mxu0
    %v1776 = vadd.f32 0.0, %v1775
    %v1777 = vpop.f32.mrb[0].mxu0
    %1778 = vmatprep.mubr.f32.mxu0 0.0
    %1779 = vmatmul.mubr.f32.gmra.mrb[0].mxu0 %v845
    %v1780 = vpop.f32.mrb[0].mxu0
    %v1781 = vadd.f32 0.0, %v1780
    %v1782 = vpop.f32.mrb[0].mxu0
    %1783 = vmatprep.mubr.f32.mxu0 0.0
    %1784 = vmatmul.mubr.f32.gmra.mrb[0].mxu0 %v1139
    %v1785 = vpop.f32.mrb[0].mxu0
    %v1786 = vadd.f32 0.0, %v1785
    %v1787 = vpop.f32.mrb[0].mxu0
    %1788 = vmatprep.mubr.f32.mxu0 0.0
    %1789 = vmatmul.mubr.f32.gmra.mrb[0].mxu0 %v549
    %v1790 = vpop.f32.mrb[0].mxu0
    %v1791 = vadd.f32 0.0, %v1790
    %v1792 = vpop.f32.mrb[0].mxu0
    %1793 = vmatprep.mubr.f32.mxu0 0.0
    %1794 = vmatmul.mubr.f32.gmra.mrb[0].mxu0 %v549
    %v1795 = vpop.f32.mrb[0].mxu0
    %v1796 = vadd.f32 0.0, %v1795
    %v1797 = vpop.f32.mrb[0].mxu0
    %1798 = vdwg.mxu0
    %v1799 = vadd.f32 %v1668, %v1751
    %v1800 = vadd.f32 %v1669, %v1756
    %v1801 = vadd.f32 %v1670, %v1761
    %v1802 = vadd.f32 %v1671, %v1766
    %v1803 = vadd.f32 %v1672, %v1771
    %v1804 = vadd.f32 %v1673, %v1776
    %v1805 = vadd.f32 %v1674, %v1781
    %v1806 = vadd.f32 %v1675, %v1786
    %v1807 = vadd.f32 %v1676, %v1791
    %v1808 = vadd.f32 %v1677, %v1796
    %v1809 = vld [vmem:[%s2] sm:$0x1]
    %v1811 = vlaneseq
    %v1812 = vshrl.u32 %v1811, 7
    %v1813 = vsub.s32 0, %v1812
    %v1814 = vrot.slane %v1809, %v1813
    %v1816 = vmul.f32 %v1799, %v1814
    %v1817 = vmul.f32 %v1800, %v1814
    %v1818 = vmul.f32 %v1801, %v1814
    %v1819 = vmul.f32 %v1802, %v1814
    %v1820 = vmul.f32 %v1803, %v1814
    %v1821 = vmul.f32 %v1804, %v1814
    %v1822 = vmul.f32 %v1805, %v1814
    %v1823 = vmul.f32 %v1806, %v1814
    %v1824 = vmul.f32 %v1807, %v1814
    %v1825 = vmul.f32 %v1808, %v1814
    %v1826 = vld [vmem:[%s3] sm:$0x1]
    %v1828 = vlaneseq
    %v1829 = vshrl.u32 %v1828, 7
    %v1830 = vsub.s32 0, %v1829
    %v1831 = vrot.slane %v1826, %v1830
    %v1833 = vadd.f32 %v1816, %v1831
    %v1834 = vadd.f32 %v1817, %v1831
    %v1835 = vadd.f32 %v1818, %v1831
    %v1836 = vadd.f32 %v1819, %v1831
    %v1837 = vadd.f32 %v1820, %v1831
    %v1838 = vadd.f32 %v1821, %v1831
    %v1839 = vadd.f32 %v1822, %v1831
    %v1840 = vadd.f32 %v1823, %v1831
    %v1841 = vadd.f32 %v1824, %v1831
    %v1842 = vadd.f32 %v1825, %v1831
    %v1843 = vmax.f32 %v1833, %v1834
    %v1844 = vmax.f32 %v1843, %v1835
    %v1845 = vmax.f32 %v1844, %v1836
    %v1846 = vmax.f32 %v1845, %v1837
    %v1847 = vmax.f32 %v1846, %v1838
    %v1848 = vmax.f32 %v1847, %v1839
    %v1849 = vmax.f32 %v1848, %v1840
    %v1850 = vtanh.pop %v1849
    %v1851 = vmax.f32 %v1835, %v1836
    %v1852 = vmax.f32 %v1851, %v1837
    %v1853 = vmax.f32 %v1852, %v1838
    %v1854 = vmax.f32 %v1853, %v1839
    %v1855 = vmax.f32 %v1854, %v1840
    %v1856 = vmax.f32 %v1855, %v1841
    %v1857 = vmax.f32 %v1856, %v1842
    %v1858 = vtanh.pop %v1857
    %s1859 = scalar_lea.vmem %s4, 128
    %v1860 = vld [vmem:[%s1859] sm:$0xff]
    %v1861 = vld [vmem:[%s1859 + $0x8] sm:$0xff]
    %v1862 = vld [vmem:[%s1859 + $0x10] sm:$0xff]
    %v1863 = vld [vmem:[%s1859 + $0x18] sm:$0xff]
    %v1864 = vld [vmem:[%s1859 + $0x20] sm:$0xff]
    %v1865 = vld [vmem:[%s1859 + $0x28] sm:$0xff]
    %v1866 = vld [vmem:[%s1859 + $0x30] sm:$0xff]
    %v1867 = vld [vmem:[%s1859 + $0x38] sm:$0xff]
    %s1868 = scalar_lea.vmem %s4, 192
    %v1869 = vld [vmem:[%s1868] sm:$0xff]
    %v1870 = vld [vmem:[%s1868 + $0x8] sm:$0xff]
    %v1871 = vld [vmem:[%s1868 + $0x10] sm:$0xff]
    %v1872 = vld [vmem:[%s1868 + $0x18] sm:$0xff]
    %v1873 = vld [vmem:[%s1868 + $0x20] sm:$0xff]
    %v1874 = vld [vmem:[%s1868 + $0x28] sm:$0xff]
    %v1875 = vld [vmem:[%s1868 + $0x30] sm:$0xff]
    %v1876 = vld [vmem:[%s1868 + $0x38] sm:$0xff]
    %vm1877 = vcmask 523264
    %v1879 = vsel %vm1877, %v1858, 0
    %1881 = vmatprep.subr.mxu0 0.0
    %1882 = vmatpush1.msra.mxu0 %v1869
    %1883 = vmatprep.subr.mxu0 0.0
    %1884 = vmatpush1.msra.mxu0 %v1870
    %1885 = vmatprep.subr.mxu0 0.0
    %1886 = vmatpush1.msra.mxu0 %v1871
    %1887 = vmatprep.subr.mxu0 0.0
    %1888 = vmatpush1.msra.mxu0 %v1872
    %1889 = vmatprep.subr.mxu0 0.0
    %1890 = vmatpush1.msra.mxu0 %v1873
    %1891 = vmatprep.subr.mxu0 0.0
    %1892 = vmatpush1.msra.mxu0 %v1874
    %1893 = vmatprep.subr.mxu0 0.0
    %1894 = vmatpush1.msra.mxu0 %v1875
    %1895 = vmatprep.subr.mxu0 0.0
    %1896 = vmatpush1.msra.mxu0 %v1876
    %1897 = vmatprep.subr.mxu0 0.0
    %1898 = vmatpush1.msra.mxu0 0.0
    %1899 = vmatprep.subr.mxu0 0.0
    %1900 = vmatpush1.msra.mxu0 0.0
    %1901 = vmatprep.subr.mxu0 0.0
    %1902 = vmatpush1.msra.mxu0 0.0
    %1903 = vmatprep.subr.mxu0 0.0
    %1904 = vmatpush1.msra.mxu0 0.0
    %1905 = vmatprep.subr.mxu0 0.0
    %1906 = vmatpush1.msra.mxu0 0.0
    %1907 = vmatprep.subr.mxu0 0.0
    %1908 = vmatpush1.msra.mxu0 0.0
    %1909 = vmatprep.subr.mxu0 0.0
    %1910 = vmatpush1.msra.mxu0 0.0
    %1911 = vmatprep.subr.mxu0 0.0
    %1912 = vmatpush1.msra.mxu0 0.0
    %1913 = vmatprep.subr.mxu0 0.0
    %1914 = vmatpush1.msra.mxu0 0.0
    %1915 = vmatprep.subr.mxu0 0.0
    %1916 = vmatpush1.msra.mxu0 0.0
    %1917 = vmatprep.subr.mxu0 0.0
    %1918 = vmatpush1.msra.mxu0 0.0
    %1919 = vmatprep.subr.mxu0 0.0
    %1920 = vmatpush1.msra.mxu0 0.0
    %1921 = vmatprep.subr.mxu0 0.0
    %1922 = vmatpush1.msra.mxu0 0.0
    %1923 = vmatprep.subr.mxu0 0.0
    %1924 = vmatpush1.msra.mxu0 0.0
    %1925 = vmatprep.subr.mxu0 0.0
    %1926 = vmatpush1.msra.mxu0 0.0
    %1927 = vmatprep.subr.mxu0 0.0
    %1928 = vmatpush1.msra.mxu0 0.0
    %1929 = vmatprep.subr.mxu0 0.0
    %1930 = vmatpush1.msra.mxu0 0.0
    %1931 = vmatprep.subr.mxu0 0.0
    %1932 = vmatpush1.msra.mxu0 0.0
    %1933 = vmatprep.subr.mxu0 0.0
    %1934 = vmatpush1.msra.mxu0 0.0
    %1935 = vmatprep.subr.mxu0 0.0
    %1936 = vmatpush1.msra.mxu0 0.0
    %1937 = vmatprep.subr.mxu0 0.0
    %1938 = vmatpush1.msra.mxu0 0.0
    %1939 = vmatprep.subr.mxu0 0.0
    %1940 = vmatpush1.msra.mxu0 0.0
    %1941 = vmatprep.subr.mxu0 0.0
    %1942 = vmatpush1.msra.mxu0 0.0
    %1943 = vmatprep.subr.mxu0 0.0
    %1944 = vmatpush1.msra.mxu0 0.0
    %1945 = vmatprep.mubr.f32.mxu0 0.0
    %1946 = vmatmul.mubr.f32.gmra.mrb[0].mxu0 %v1879
    %v1947 = vpop.f32.mrb[0].mxu0
    %v1948 = vadd.f32 0.0, %v1947
    %v1949 = vpop.f32.mrb[0].mxu0
    %1950 = vdwg.mxu0
    %v1952 = vsel %vm1877, %v1850, 0
    %1954 = vmatprep.subr.mxu0 0.0
    %1955 = vmatpush1.msra.mxu0 %v1860
    %1956 = vmatprep.subr.mxu0 0.0
    %1957 = vmatpush1.msra.mxu0 %v1861
    %1958 = vmatprep.subr.mxu0 0.0
    %1959 = vmatpush1.msra.mxu0 %v1862
    %1960 = vmatprep.subr.mxu0 0.0
    %1961 = vmatpush1.msra.mxu0 %v1863
    %1962 = vmatprep.subr.mxu0 0.0
    %1963 = vmatpush1.msra.mxu0 %v1864
    %1964 = vmatprep.subr.mxu0 0.0
    %1965 = vmatpush1.msra.mxu0 %v1865
    %1966 = vmatprep.subr.mxu0 0.0
    %1967 = vmatpush1.msra.mxu0 %v1866
    %1968 = vmatprep.subr.mxu0 0.0
    %1969 = vmatpush1.msra.mxu0 %v1867
    %1970 = vmatprep.subr.mxu0 0.0
    %1971 = vmatpush1.msra.mxu0 0.0
    %1972 = vmatprep.subr.mxu0 0.0
    %1973 = vmatpush1.msra.mxu0 0.0
    %1974 = vmatprep.subr.mxu0 0.0
    %1975 = vmatpush1.msra.mxu0 0.0
    %1976 = vmatprep.subr.mxu0 0.0
    %1977 = vmatpush1.msra.mxu0 0.0
    %1978 = vmatprep.subr.mxu0 0.0
    %1979 = vmatpush1.msra.mxu0 0.0
    %1980 = vmatprep.subr.mxu0 0.0
    %1981 = vmatpush1.msra.mxu0 0.0
    %1982 = vmatprep.subr.mxu0 0.0
    %1983 = vmatpush1.msra.mxu0 0.0
    %1984 = vmatprep.subr.mxu0 0.0
    %1985 = vmatpush1.msra.mxu0 0.0
    %1986 = vmatprep.subr.mxu0 0.0
    %1987 = vmatpush1.msra.mxu0 0.0
    %1988 = vmatprep.subr.mxu0 0.0
    %1989 = vmatpush1.msra.mxu0 0.0
    %1990 = vmatprep.subr.mxu0 0.0
    %1991 = vmatpush1.msra.mxu0 0.0
    %1992 = vmatprep.subr.mxu0 0.0
    %1993 = vmatpush1.msra.mxu0 0.0
    %1994 = vmatprep.subr.mxu0 0.0
    %1995 = vmatpush1.msra.mxu0 0.0
    %1996 = vmatprep.subr.mxu0 0.0
    %1997 = vmatpush1.msra.mxu0 0.0
    %1998 = vmatprep.subr.mxu0 0.0
    %1999 = vmatpush1.msra.mxu0 0.0
    %2000 = vmatprep.subr.mxu0 0.0
    %2001 = vmatpush1.msra.mxu0 0.0
    %2002 = vmatprep.subr.mxu0 0.0
    %2003 = vmatpush1.msra.mxu0 0.0
    %2004 = vmatprep.subr.mxu0 0.0
    %2005 = vmatpush1.msra.mxu0 0.0
    %2006 = vmatprep.subr.mxu0 0.0
    %2007 = vmatpush1.msra.mxu0 0.0
    %2008 = vmatprep.subr.mxu0 0.0
    %2009 = vmatpush1.msra.mxu0 0.0
    %2010 = vmatprep.subr.mxu0 0.0
    %2011 = vmatpush1.msra.mxu0 0.0
    %2012 = vmatprep.subr.mxu0 0.0
    %2013 = vmatpush1.msra.mxu0 0.0
    %2014 = vmatprep.subr.mxu0 0.0
    %2015 = vmatpush1.msra.mxu0 0.0
    %2016 = vmatprep.subr.mxu0 0.0
    %2017 = vmatpush1.msra.mxu0 0.0
    %2018 = vmatprep.mubr.f32.mxu0 0.0
    %2019 = vmatmul.mubr.f32.gmra.mrb[0].mxu0 %v1952
    %v2020 = vpop.f32.mrb[0].mxu0
    %v2021 = vadd.f32 %v1948, %v2020
    %v2022 = vpop.f32.mrb[0].mxu0
    %2023 = vdwg.mxu0
    %v2024 = vld [vmem:[%s5] sm:$0x1]
    %v2026 = vlaneseq
    %v2027 = vshrl.u32 %v2026, 7
    %v2028 = vsub.s32 0, %v2027
    %v2029 = vrot.slane %v2024, %v2028
    %v2031 = vmul.f32 %v2021, %v2029
    %v2032 = vld [vmem:[%s6] sm:$0x1]
    %v2034 = vlaneseq
    %v2035 = vshrl.u32 %v2034, 7
    %v2036 = vsub.s32 0, %v2035
    %v2037 = vrot.slane %v2032, %v2036
    %v2039 = vadd.f32 %v2031, %v2037
    %v2040 = vtanh.pop %v2039
    %s2041 = scalar_lea.vmem [#allocation2], 128
    %v2042 = vld [vmem:[%s2041] sm:$0xff]
    %v2043 = vld [vmem:[%s2041 + $0x8] sm:$0xff]
    %v2044 = vld [vmem:[%s2041 + $0x10] sm:$0xff]
    %v2045 = vld [vmem:[%s2041 + $0x18] sm:$0xff]
    %v2046 = vld [vmem:[%s2041 + $0x20] sm:$0xff]
    %v2047 = vld [vmem:[%s2041 + $0x28] sm:$0xff]
    %v2048 = vld [vmem:[%s2041 + $0x30] sm:$0xff]
    %v2049 = vld [vmem:[%s2041 + $0x38] sm:$0xff]
    %v2051 = vsel %vm1877, %v2040, 0
    %2053 = vmatprep.subr.mxu0 0.0
    %2054 = vmatpush1.msra.mxu0 %v2042
    %2055 = vmatprep.subr.mxu0 0.0
    %2056 = vmatpush1.msra.mxu0 %v2043
    %2057 = vmatprep.subr.mxu0 0.0
    %2058 = vmatpush1.msra.mxu0 %v2044
    %2059 = vmatprep.subr.mxu0 0.0
    %2060 = vmatpush1.msra.mxu0 %v2045
    %2061 = vmatprep.subr.mxu0 0.0
    %2062 = vmatpush1.msra.mxu0 %v2046
    %2063 = vmatprep.subr.mxu0 0.0
    %2064 = vmatpush1.msra.mxu0 %v2047
    %2065 = vmatprep.subr.mxu0 0.0
    %2066 = vmatpush1.msra.mxu0 %v2048
    %2067 = vmatprep.subr.mxu0 0.0
    %2068 = vmatpush1.msra.mxu0 %v2049
    %2069 = vmatprep.subr.mxu0 0.0
    %2070 = vmatpush1.msra.mxu0 0.0
    %2071 = vmatprep.subr.mxu0 0.0
    %2072 = vmatpush1.msra.mxu0 0.0
    %2073 = vmatprep.subr.mxu0 0.0
    %2074 = vmatpush1.msra.mxu0 0.0
    %2075 = vmatprep.subr.mxu0 0.0
    %2076 = vmatpush1.msra.mxu0 0.0
    %2077 = vmatprep.subr.mxu0 0.0
    %2078 = vmatpush1.msra.mxu0 0.0
    %2079 = vmatprep.subr.mxu0 0.0
    %2080 = vmatpush1.msra.mxu0 0.0
    %2081 = vmatprep.subr.mxu0 0.0
    %2082 = vmatpush1.msra.mxu0 0.0
    %2083 = vmatprep.subr.mxu0 0.0
    %2084 = vmatpush1.msra.mxu0 0.0
    %2085 = vmatprep.subr.mxu0 0.0
    %2086 = vmatpush1.msra.mxu0 0.0
    %2087 = vmatprep.subr.mxu0 0.0
    %2088 = vmatpush1.msra.mxu0 0.0
    %2089 = vmatprep.subr.mxu0 0.0
    %2090 = vmatpush1.msra.mxu0 0.0
    %2091 = vmatprep.subr.mxu0 0.0
    %2092 = vmatpush1.msra.mxu0 0.0
    %2093 = vmatprep.subr.mxu0 0.0
    %2094 = vmatpush1.msra.mxu0 0.0
    %2095 = vmatprep.subr.mxu0 0.0
    %2096 = vmatpush1.msra.mxu0 0.0
    %2097 = vmatprep.subr.mxu0 0.0
    %2098 = vmatpush1.msra.mxu0 0.0
    %2099 = vmatprep.subr.mxu0 0.0
    %2100 = vmatpush1.msra.mxu0 0.0
    %2101 = vmatprep.subr.mxu0 0.0
    %2102 = vmatpush1.msra.mxu0 0.0
    %2103 = vmatprep.subr.mxu0 0.0
    %2104 = vmatpush1.msra.mxu0 0.0
    %2105 = vmatprep.subr.mxu0 0.0
    %2106 = vmatpush1.msra.mxu0 0.0
    %2107 = vmatprep.subr.mxu0 0.0
    %2108 = vmatpush1.msra.mxu0 0.0
    %2109 = vmatprep.subr.mxu0 0.0
    %2110 = vmatpush1.msra.mxu0 0.0
    %2111 = vmatprep.subr.mxu0 0.0
    %2112 = vmatpush1.msra.mxu0 0.0
    %2113 = vmatprep.subr.mxu0 0.0
    %2114 = vmatpush1.msra.mxu0 0.0
    %2115 = vmatprep.subr.mxu0 0.0
    %2116 = vmatpush1.msra.mxu0 0.0
    %2117 = vmatprep.mubr.f32.mxu0 0.0
    %2118 = vmatmul.mubr.f32.gmra.mrb[0].mxu0 %v2051
    %v2119 = vpop.f32.mrb[0].mxu0
    %v2120 = vadd.f32 0.0, %v2119
    %v2121 = vpop.f32.mrb[0].mxu0
    %2122 = vdwg.mxu0
    %v2123 = vld [vmem:[#allocation5] sm:$0x1]
    %v2125 = vlaneseq
    %v2126 = vshrl.u32 %v2125, 7
    %v2127 = vsub.s32 0, %v2126
    %v2128 = vrot.slane %v2123, %v2127
    %v2130 = vmul.f32 %v2120, %v2128
    %v2131 = vld [vmem:[#allocation7] sm:$0x1]
    %v2133 = vlaneseq
    %v2134 = vshrl.u32 %v2133, 7
    %v2135 = vsub.s32 0, %v2134
    %v2136 = vrot.slane %v2131, %v2135
    %v2138 = vadd.f32 %v2130, %v2136
    %v2139 = vtanh.pop %v2138
    %s2140 = scalar_lea.vmem [#allocation8], 64
    %v2141 = vld [vmem:[%s2140] sm:$0xff]
    %v2142 = vld [vmem:[%s2140 + $0x8] sm:$0xff]
    %v2143 = vld [vmem:[%s2140 + $0x10] sm:$0xff]
    %v2144 = vld [vmem:[%s2140 + $0x18] sm:$0xff]
    %v2145 = vld [vmem:[%s2140 + $0x20] sm:$0xff]
    %v2146 = vld [vmem:[%s2140 + $0x28] sm:$0xff]
    %v2147 = vld [vmem:[%s2140 + $0x30] sm:$0xff]
    %v2148 = vld [vmem:[%s2140 + $0x38] sm:$0xff]
    %v2150 = vsel %vm1877, %v2139, 0
    %2152 = vmatprep.subr.mxu0 0.0
    %2153 = vmatpush1.msra.mxu0 %v2141
    %2154 = vmatprep.subr.mxu0 0.0
    %2155 = vmatpush1.msra.mxu0 %v2142
    %2156 = vmatprep.subr.mxu0 0.0
    %2157 = vmatpush1.msra.mxu0 %v2143
    %2158 = vmatprep.subr.mxu0 0.0
    %2159 = vmatpush1.msra.mxu0 %v2144
    %2160 = vmatprep.subr.mxu0 0.0
    %2161 = vmatpush1.msra.mxu0 %v2145
    %2162 = vmatprep.subr.mxu0 0.0
    %2163 = vmatpush1.msra.mxu0 %v2146
    %2164 = vmatprep.subr.mxu0 0.0
    %2165 = vmatpush1.msra.mxu0 %v2147
    %2166 = vmatprep.subr.mxu0 0.0
    %2167 = vmatpush1.msra.mxu0 %v2148
    %2168 = vmatprep.subr.mxu0 0.0
    %2169 = vmatpush1.msra.mxu0 0.0
    %2170 = vmatprep.subr.mxu0 0.0
    %2171 = vmatpush1.msra.mxu0 0.0
    %2172 = vmatprep.subr.mxu0 0.0
    %2173 = vmatpush1.msra.mxu0 0.0
    %2174 = vmatprep.subr.mxu0 0.0
    %2175 = vmatpush1.msra.mxu0 0.0
    %2176 = vmatprep.subr.mxu0 0.0
    %2177 = vmatpush1.msra.mxu0 0.0
    %2178 = vmatprep.subr.mxu0 0.0
    %2179 = vmatpush1.msra.mxu0 0.0
    %2180 = vmatprep.subr.mxu0 0.0
    %2181 = vmatpush1.msra.mxu0 0.0
    %2182 = vmatprep.subr.mxu0 0.0
    %2183 = vmatpush1.msra.mxu0 0.0
    %2184 = vmatprep.subr.mxu0 0.0
    %2185 = vmatpush1.msra.mxu0 0.0
    %2186 = vmatprep.subr.mxu0 0.0
    %2187 = vmatpush1.msra.mxu0 0.0
    %2188 = vmatprep.subr.mxu0 0.0
    %2189 = vmatpush1.msra.mxu0 0.0
    %2190 = vmatprep.subr.mxu0 0.0
    %2191 = vmatpush1.msra.mxu0 0.0
    %2192 = vmatprep.subr.mxu0 0.0
    %2193 = vmatpush1.msra.mxu0 0.0
    %2194 = vmatprep.subr.mxu0 0.0
    %2195 = vmatpush1.msra.mxu0 0.0
    %2196 = vmatprep.subr.mxu0 0.0
    %2197 = vmatpush1.msra.mxu0 0.0
    %2198 = vmatprep.subr.mxu0 0.0
    %2199 = vmatpush1.msra.mxu0 0.0
    %2200 = vmatprep.subr.mxu0 0.0
    %2201 = vmatpush1.msra.mxu0 0.0
    %2202 = vmatprep.subr.mxu0 0.0
    %2203 = vmatpush1.msra.mxu0 0.0
    %2204 = vmatprep.subr.mxu0 0.0
    %2205 = vmatpush1.msra.mxu0 0.0
    %2206 = vmatprep.subr.mxu0 0.0
    %2207 = vmatpush1.msra.mxu0 0.0
    %2208 = vmatprep.subr.mxu0 0.0
    %2209 = vmatpush1.msra.mxu0 0.0
    %2210 = vmatprep.subr.mxu0 0.0
    %2211 = vmatpush1.msra.mxu0 0.0
    %2212 = vmatprep.subr.mxu0 0.0
    %2213 = vmatpush1.msra.mxu0 0.0
    %2214 = vmatprep.subr.mxu0 0.0
    %2215 = vmatpush1.msra.mxu0 0.0
    %2216 = vmatprep.mubr.f32.mxu0 0.0
    %2217 = vmatmul.mubr.f32.gmra.mrb[0].mxu0 %v2150
    %v2218 = vpop.f32.mrb[0].mxu0
    %v2219 = vadd.f32 0.0, %v2218
    %v2220 = vpop.f32.mrb[0].mxu0
    %2221 = vdwg.mxu0
    %v2222 = vld [vmem:[#allocation10] sm:$0x1]
    %v2224 = vlaneseq
    %v2225 = vshrl.u32 %v2224, 7
    %v2226 = vsub.s32 0, %v2225
    %v2227 = vrot.slane %v2222, %v2226
    %v2229 = vmul.f32 %v2219, %v2227
    %v2230 = vld [vmem:[#allocation11] sm:$0x1]
    %v2232 = vlaneseq
    %v2233 = vshrl.u32 %v2232, 7
    %v2234 = vsub.s32 0, %v2233
    %v2235 = vrot.slane %v2230, %v2234
    %v2237 = vadd.f32 %v2229, %v2235
    %v2238 = vtanh.pop %v2237
    %v2239 = vmax.f32 %v2238, 0.0
    %v2240 = vld [vmem:[#allocation13] sm:$0xff]
    %v2241 = vld [vmem:[#allocation13 + $0x8] sm:$0xff]
    %v2242 = vld [vmem:[#allocation13 + $0x10] sm:$0xff]
    %v2243 = vld [vmem:[#allocation13 + $0x18] sm:$0xff]
    %v2244 = vld [vmem:[#allocation13 + $0x20] sm:$0xff]
    %v2245 = vld [vmem:[#allocation13 + $0x28] sm:$0xff]
    %v2246 = vld [vmem:[#allocation13 + $0x30] sm:$0xff]
    %v2247 = vld [vmem:[#allocation13 + $0x38] sm:$0xff]
    %v2248 = vld [vmem:[#allocation14] sm:$0x1]
    %v2250 = vlaneseq
    %v2251 = vshrl.u32 %v2250, 7
    %v2252 = vsub.s32 0, %v2251
    %v2253 = vrot.slane %v2248, %v2252
    %v2256 = vsel %vm1877, %v2239, 0
    %2258 = vmatprep.subr.mxu0 0.0
    %2259 = vmatpush1.msra.mxu0 %v2240
    %2260 = vmatprep.subr.mxu0 0.0
    %2261 = vmatpush1.msra.mxu0 %v2241
    %2262 = vmatprep.subr.mxu0 0.0
    %2263 = vmatpush1.msra.mxu0 %v2242
    %2264 = vmatprep.subr.mxu0 0.0
    %2265 = vmatpush1.msra.mxu0 %v2243
    %2266 = vmatprep.subr.mxu0 0.0
    %2267 = vmatpush1.msra.mxu0 %v2244
    %2268 = vmatprep.subr.mxu0 0.0
    %2269 = vmatpush1.msra.mxu0 %v2245
    %2270 = vmatprep.subr.mxu0 0.0
    %2271 = vmatpush1.msra.mxu0 %v2246
    %2272 = vmatprep.subr.mxu0 0.0
    %2273 = vmatpush1.msra.mxu0 %v2247
    %2274 = vmatprep.subr.mxu0 0.0
    %2275 = vmatpush1.msra.mxu0 0.0
    %2276 = vmatprep.subr.mxu0 0.0
    %2277 = vmatpush1.msra.mxu0 0.0
    %2278 = vmatprep.subr.mxu0 0.0
    %2279 = vmatpush1.msra.mxu0 0.0
    %2280 = vmatprep.subr.mxu0 0.0
    %2281 = vmatpush1.msra.mxu0 0.0
    %2282 = vmatprep.subr.mxu0 0.0
    %2283 = vmatpush1.msra.mxu0 0.0
    %2284 = vmatprep.subr.mxu0 0.0
    %2285 = vmatpush1.msra.mxu0 0.0
    %2286 = vmatprep.subr.mxu0 0.0
    %2287 = vmatpush1.msra.mxu0 0.0
    %2288 = vmatprep.subr.mxu0 0.0
    %2289 = vmatpush1.msra.mxu0 0.0
    %2290 = vmatprep.subr.mxu0 0.0
    %2291 = vmatpush1.msra.mxu0 0.0
    %2292 = vmatprep.subr.mxu0 0.0
    %2293 = vmatpush1.msra.mxu0 0.0
    %2294 = vmatprep.subr.mxu0 0.0
    %2295 = vmatpush1.msra.mxu0 0.0
    %2296 = vmatprep.subr.mxu0 0.0
    %2297 = vmatpush1.msra.mxu0 0.0
    %2298 = vmatprep.subr.mxu0 0.0
    %2299 = vmatpush1.msra.mxu0 0.0
    %2300 = vmatprep.subr.mxu0 0.0
    %2301 = vmatpush1.msra.mxu0 0.0
    %2302 = vmatprep.subr.mxu0 0.0
    %2303 = vmatpush1.msra.mxu0 0.0
    %2304 = vmatprep.subr.mxu0 0.0
    %2305 = vmatpush1.msra.mxu0 0.0
    %2306 = vmatprep.subr.mxu0 0.0
    %2307 = vmatpush1.msra.mxu0 0.0
    %2308 = vmatprep.subr.mxu0 0.0
    %2309 = vmatpush1.msra.mxu0 0.0
    %2310 = vmatprep.subr.mxu0 0.0
    %2311 = vmatpush1.msra.mxu0 0.0
    %2312 = vmatprep.subr.mxu0 0.0
    %2313 = vmatpush1.msra.mxu0 0.0
    %2314 = vmatprep.subr.mxu0 0.0
    %2315 = vmatpush1.msra.mxu0 0.0
    %2316 = vmatprep.subr.mxu0 0.0
    %2317 = vmatpush1.msra.mxu0 0.0
    %2318 = vmatprep.subr.mxu0 0.0
    %2319 = vmatpush1.msra.mxu0 0.0
    %2320 = vmatprep.subr.mxu0 0.0
    %2321 = vmatpush1.msra.mxu0 0.0
    %2322 = vmatprep.mubr.f32.mxu0 0.0
    %2323 = vmatmul.mubr.f32.gmra.mrb[0].mxu0 %v2256
    %v2324 = vpop.f32.mrb[0].mxu0
    %v2325 = vadd.f32 %v2253, %v2324
    %v2326 = vpop.f32.mrb[0].mxu0
    %2327 = vdwg.mxu0
    %v2328 = vld [vmem:[%s15] sm:$0xff]
    %v2329 = vld [vmem:[%s15 + $0x8] sm:$0xff]
    %vm2330 = vcmask 130048
    %v2331 = vsel %vm2330, 0.0, 0
    %2333 = vmatprep.subr.mxu0 0.0
    %2334 = vmatpush1.msra.mxu0 %v2328
    %2335 = vmatprep.subr.mxu0 0.0
    %2336 = vmatpush1.msra.mxu0 %v2329
    %2337 = vmatprep.subr.mxu0 0.0
    %2338 = vmatpush1.msra.mxu0 0.0
    %2339 = vmatprep.subr.mxu0 0.0
    %2340 = vmatpush1.msra.mxu0 0.0
    %2341 = vmatprep.subr.mxu0 0.0
    %2342 = vmatpush1.msra.mxu0 0.0
    %2343 = vmatprep.subr.mxu0 0.0
    %2344 = vmatpush1.msra.mxu0 0.0
    %2345 = vmatprep.subr.mxu0 0.0
    %2346 = vmatpush1.msra.mxu0 0.0
    %2347 = vmatprep.subr.mxu0 0.0
    %2348 = vmatpush1.msra.mxu0 0.0
    %2349 = vmatprep.subr.mxu0 0.0
    %2350 = vmatpush1.msra.mxu0 0.0
    %2351 = vmatprep.subr.mxu0 0.0
    %2352 = vmatpush1.msra.mxu0 0.0
    %2353 = vmatprep.subr.mxu0 0.0
    %2354 = vmatpush1.msra.mxu0 0.0
    %2355 = vmatprep.subr.mxu0 0.0
    %2356 = vmatpush1.msra.mxu0 0.0
    %2357 = vmatprep.subr.mxu0 0.0
    %2358 = vmatpush1.msra.mxu0 0.0
    %2359 = vmatprep.subr.mxu0 0.0
    %2360 = vmatpush1.msra.mxu0 0.0
    %2361 = vmatprep.subr.mxu0 0.0
    %2362 = vmatpush1.msra.mxu0 0.0
    %2363 = vmatprep.subr.mxu0 0.0
    %2364 = vmatpush1.msra.mxu0 0.0
    %2365 = vmatprep.subr.mxu0 0.0
    %2366 = vmatpush1.msra.mxu0 0.0
    %2367 = vmatprep.subr.mxu0 0.0
    %2368 = vmatpush1.msra.mxu0 0.0
    %2369 = vmatprep.subr.mxu0 0.0
    %2370 = vmatpush1.msra.mxu0 0.0
    %2371 = vmatprep.subr.mxu0 0.0
    %2372 = vmatpush1.msra.mxu0 0.0
    %2373 = vmatprep.subr.mxu0 0.0
    %2374 = vmatpush1.msra.mxu0 0.0
    %2375 = vmatprep.subr.mxu0 0.0
    %2376 = vmatpush1.msra.mxu0 0.0
    %2377 = vmatprep.subr.mxu0 0.0
    %2378 = vmatpush1.msra.mxu0 0.0
    %2379 = vmatprep.subr.mxu0 0.0
    %2380 = vmatpush1.msra.mxu0 0.0
    %2381 = vmatprep.subr.mxu0 0.0
    %2382 = vmatpush1.msra.mxu0 0.0
    %2383 = vmatprep.subr.mxu0 0.0
    %2384 = vmatpush1.msra.mxu0 0.0
    %2385 = vmatprep.subr.mxu0 0.0
    %2386 = vmatpush1.msra.mxu0 0.0
    %2387 = vmatprep.subr.mxu0 0.0
    %2388 = vmatpush1.msra.mxu0 0.0
    %2389 = vmatprep.subr.mxu0 0.0
    %2390 = vmatpush1.msra.mxu0 0.0
    %2391 = vmatprep.subr.mxu0 0.0
    %2392 = vmatpush1.msra.mxu0 0.0
    %2393 = vmatprep.subr.mxu0 0.0
    %2394 = vmatpush1.msra.mxu0 0.0
    %2395 = vmatprep.subr.mxu0 0.0
    %2396 = vmatpush1.msra.mxu0 0.0
    %2397 = vmatprep.mubr.f32.mxu0 0.0
    %2398 = vmatmul.mubr.f32.gmra.mrb[0].mxu0 %v2331
    %v2399 = vpop.f32.mrb[0].mxu0
    %v2400 = vadd.f32 0.0, %v2399
    %v2401 = vpop.f32.mrb[0].mxu0
    %2402 = vdwg.mxu0
    %v2403 = vadd.f32 %v2325, %v2400
    %v2404 = vxor.u32 %v2403, 2147483648
    %v2405 = vmul.f32 %v2404, 1.442695
    %v2406 = vpow.pop %v2405
    %v2407 = vadd.f32 %v2406, 1.0
    %v2408 = vrcp.pop %v2407
    %v2409 = vmul.f32 1.0, %v2408
    %v2410 = vtanh.pop %v2403
    %v2411 = vmul.f32 %v2409, 0.0
    %2413 = vrot.lane.b32.xlu0 %v2410, 96
    %v2414 = vpop.permute.xlu0 %2413
    %v2416 = vmul.f32 %v2409, %v2414
    %2418 = vrot.lane.b32.xlu0 %v2416, 16
    %v2419 = vpop.permute.xlu0 %2418
    %v2421 = vadd.f32 %v2411, %v2419
    %v2422 = vtanh.pop %v2421
    %2424 = vrot.lane.b32.xlu0 %v2422, 32
    %v2425 = vpop.permute.xlu0 %2424
    %v2427 = vmul.f32 %v2409, %v2425
    %2429 = vrot.lane.b32.xlu0 %v2427, 80
    %v2430 = vpop.permute.xlu0 %2429
    %v2431 = vsel %vm2330, %v2430, 0
    %2433 = vmatprep.subr.mxu0 0.0
    %2434 = vmatpush1.msra.mxu0 %v2328
    %2435 = vmatprep.subr.mxu0 0.0
    %2436 = vmatpush1.msra.mxu0 %v2329
    %2437 = vmatprep.subr.mxu0 0.0
    %2438 = vmatpush1.msra.mxu0 0.0
    %2439 = vmatprep.subr.mxu0 0.0
    %2440 = vmatpush1.msra.mxu0 0.0
    %2441 = vmatprep.subr.mxu0 0.0
    %2442 = vmatpush1.msra.mxu0 0.0
    %2443 = vmatprep.subr.mxu0 0.0
    %2444 = vmatpush1.msra.mxu0 0.0
    %2445 = vmatprep.subr.mxu0 0.0
    %2446 = vmatpush1.msra.mxu0 0.0
    %2447 = vmatprep.subr.mxu0 0.0
    %2448 = vmatpush1.msra.mxu0 0.0
    %2449 = vmatprep.subr.mxu0 0.0
    %2450 = vmatpush1.msra.mxu0 0.0
    %2451 = vmatprep.subr.mxu0 0.0
    %2452 = vmatpush1.msra.mxu0 0.0
    %2453 = vmatprep.subr.mxu0 0.0
    %2454 = vmatpush1.msra.mxu0 0.0
    %2455 = vmatprep.subr.mxu0 0.0
    %2456 = vmatpush1.msra.mxu0 0.0
    %2457 = vmatprep.subr.mxu0 0.0
    %2458 = vmatpush1.msra.mxu0 0.0
    %2459 = vmatprep.subr.mxu0 0.0
    %2460 = vmatpush1.msra.mxu0 0.0
    %2461 = vmatprep.subr.mxu0 0.0
    %2462 = vmatpush1.msra.mxu0 0.0
    %2463 = vmatprep.subr.mxu0 0.0
    %2464 = vmatpush1.msra.mxu0 0.0
    %2465 = vmatprep.subr.mxu0 0.0
    %2466 = vmatpush1.msra.mxu0 0.0
    %2467 = vmatprep.subr.mxu0 0.0
    %2468 = vmatpush1.msra.mxu0 0.0
    %2469 = vmatprep.subr.mxu0 0.0
    %2470 = vmatpush1.msra.mxu0 0.0
    %2471 = vmatprep.subr.mxu0 0.0
    %2472 = vmatpush1.msra.mxu0 0.0
    %2473 = vmatprep.subr.mxu0 0.0
    %2474 = vmatpush1.msra.mxu0 0.0
    %2475 = vmatprep.subr.mxu0 0.0
    %2476 = vmatpush1.msra.mxu0 0.0
    %2477 = vmatprep.subr.mxu0 0.0
    %2478 = vmatpush1.msra.mxu0 0.0
    %2479 = vmatprep.subr.mxu0 0.0
    %2480 = vmatpush1.msra.mxu0 0.0
    %2481 = vmatprep.subr.mxu0 0.0
    %2482 = vmatpush1.msra.mxu0 0.0
    %2483 = vmatprep.subr.mxu0 0.0
    %2484 = vmatpush1.msra.mxu0 0.0
    %2485 = vmatprep.subr.mxu0 0.0
    %2486 = vmatpush1.msra.mxu0 0.0
    %2487 = vmatprep.subr.mxu0 0.0
    %2488 = vmatpush1.msra.mxu0 0.0
    %2489 = vmatprep.subr.mxu0 0.0
    %2490 = vmatpush1.msra.mxu0 0.0
    %2491 = vmatprep.subr.mxu0 0.0
    %2492 = vmatpush1.msra.mxu0 0.0
    %2493 = vmatprep.subr.mxu0 0.0
    %2494 = vmatpush1.msra.mxu0 0.0
    %2495 = vmatprep.subr.mxu0 0.0
    %2496 = vmatpush1.msra.mxu0 0.0
    %2497 = vmatprep.mubr.f32.mxu0 0.0
    %2498 = vmatmul.mubr.f32.gmra.mrb[0].mxu0 %v2431
    %v2499 = vpop.f32.mrb[0].mxu0
    %v2500 = vadd.f32 0.0, %v2499
    %v2501 = vpop.f32.mrb[0].mxu0
    %2502 = vdwg.mxu0
    %v2504 = vrot.slane %v2500, 6
    %v2506 = vadd.f32 %v2325, %v2504
    %v2507 = vxor.u32 %v2506, 2147483648
    %v2508 = vmul.f32 %v2507, 1.442695
    %v2509 = vpow.pop %v2508
    %v2510 = vadd.f32 %v2509, 1.0
    %v2511 = vrcp.pop %v2510
    %v2512 = vmul.f32 1.0, %v2511
    %v2513 = vtanh.pop %v2506
    %v2515 = vrot.slane %v2421, 6
    %v2517 = vmul.f32 %v2512, %v2515
    %2519 = vrot.lane.b32.xlu0 %v2513, 96
    %v2520 = vpop.permute.xlu0 %2519
    %v2522 = vmul.f32 %v2512, %v2520
    %2524 = vrot.lane.b32.xlu0 %v2522, 16
    %v2525 = vpop.permute.xlu0 %2524
    %v2527 = vadd.f32 %v2517, %v2525
    %v2528 = vtanh.pop %v2527
    %2530 = vrot.lane.b32.xlu0 %v2528, 32
    %v2531 = vpop.permute.xlu0 %2530
    %v2533 = vmul.f32 %v2512, %v2531
    %v2535 = vrot.slane %v2533, 2
    %2536 = vrot.lane.b32.xlu0 %v2535, 80
    %v2537 = vpop.permute.xlu0 %2536
    %v2538 = vsel %vm2330, %v2537, 0
    %2540 = vmatprep.subr.mxu0 0.0
    %2541 = vmatpush1.msra.mxu0 %v2328
    %2542 = vmatprep.subr.mxu0 0.0
    %2543 = vmatpush1.msra.mxu0 %v2329
    %2544 = vmatprep.subr.mxu0 0.0
    %2545 = vmatpush1.msra.mxu0 0.0
    %2546 = vmatprep.subr.mxu0 0.0
    %2547 = vmatpush1.msra.mxu0 0.0
    %2548 = vmatprep.subr.mxu0 0.0
    %2549 = vmatpush1.msra.mxu0 0.0
    %2550 = vmatprep.subr.mxu0 0.0
    %2551 = vmatpush1.msra.mxu0 0.0
    %2552 = vmatprep.subr.mxu0 0.0
    %2553 = vmatpush1.msra.mxu0 0.0
    %2554 = vmatprep.subr.mxu0 0.0
    %2555 = vmatpush1.msra.mxu0 0.0
    %2556 = vmatprep.subr.mxu0 0.0
    %2557 = vmatpush1.msra.mxu0 0.0
    %2558 = vmatprep.subr.mxu0 0.0
    %2559 = vmatpush1.msra.mxu0 0.0
    %2560 = vmatprep.subr.mxu0 0.0
    %2561 = vmatpush1.msra.mxu0 0.0
    %2562 = vmatprep.subr.mxu0 0.0
    %2563 = vmatpush1.msra.mxu0 0.0
    %2564 = vmatprep.subr.mxu0 0.0
    %2565 = vmatpush1.msra.mxu0 0.0
    %2566 = vmatprep.subr.mxu0 0.0
    %2567 = vmatpush1.msra.mxu0 0.0
    %2568 = vmatprep.subr.mxu0 0.0
    %2569 = vmatpush1.msra.mxu0 0.0
    %2570 = vmatprep.subr.mxu0 0.0
    %2571 = vmatpush1.msra.mxu0 0.0
    %2572 = vmatprep.subr.mxu0 0.0
    %2573 = vmatpush1.msra.mxu0 0.0
    %2574 = vmatprep.subr.mxu0 0.0
    %2575 = vmatpush1.msra.mxu0 0.0
    %2576 = vmatprep.subr.mxu0 0.0
    %2577 = vmatpush1.msra.mxu0 0.0
    %2578 = vmatprep.subr.mxu0 0.0
    %2579 = vmatpush1.msra.mxu0 0.0
    %2580 = vmatprep.subr.mxu0 0.0
    %2581 = vmatpush1.msra.mxu0 0.0
    %2582 = vmatprep.subr.mxu0 0.0
    %2583 = vmatpush1.msra.mxu0 0.0
    %2584 = vmatprep.subr.mxu0 0.0
    %2585 = vmatpush1.msra.mxu0 0.0
    %2586 = vmatprep.subr.mxu0 0.0
    %2587 = vmatpush1.msra.mxu0 0.0
    %2588 = vmatprep.subr.mxu0 0.0
    %2589 = vmatpush1.msra.mxu0 0.0
    %2590 = vmatprep.subr.mxu0 0.0
    %2591 = vmatpush1.msra.mxu0 0.0
    %2592 = vmatprep.subr.mxu0 0.0
    %2593 = vmatpush1.msra.mxu0 0.0
    %2594 = vmatprep.subr.mxu0 0.0
    %2595 = vmatpush1.msra.mxu0 0.0
    %2596 = vmatprep.subr.mxu0 0.0
    %2597 = vmatpush1.msra.mxu0 0.0
    %2598 = vmatprep.subr.mxu0 0.0
    %2599 = vmatpush1.msra.mxu0 0.0
    %2600 = vmatprep.subr.mxu0 0.0
    %2601 = vmatpush1.msra.mxu0 0.0
    %2602 = vmatprep.subr.mxu0 0.0
    %2603 = vmatpush1.msra.mxu0 0.0
    %2604 = vmatprep.mubr.f32.mxu0 0.0
    %2605 = vmatmul.mubr.f32.gmra.mrb[0].mxu0 %v2538
    %v2606 = vpop.f32.mrb[0].mxu0
    %v2607 = vadd.f32 0.0, %v2606
    %v2608 = vpop.f32.mrb[0].mxu0
    %2609 = vdwg.mxu0
    %v2611 = vrot.slane %v2607, 4
    %v2613 = vadd.f32 %v2325, %v2611
    %v2614 = vxor.u32 %v2613, 2147483648
    %v2615 = vmul.f32 %v2614, 1.442695
    %v2616 = vpow.pop %v2615
    %v2617 = vadd.f32 %v2616, 1.0
    %v2618 = vrcp.pop %v2617
    %v2619 = vmul.f32 1.0, %v2618
    %v2620 = vtanh.pop %v2613
    %v2622 = vrot.slane %v2527, 6
    %v2624 = vmul.f32 %v2619, %v2622
    %2626 = vrot.lane.b32.xlu0 %v2620, 96
    %v2627 = vpop.permute.xlu0 %2626
    %v2629 = vmul.f32 %v2619, %v2627
    %2631 = vrot.lane.b32.xlu0 %v2629, 16
    %v2632 = vpop.permute.xlu0 %2631
    %v2634 = vadd.f32 %v2624, %v2632
    %v2635 = vtanh.pop %v2634
    %2637 = vrot.lane.b32.xlu0 %v2635, 32
    %v2638 = vpop.permute.xlu0 %2637
    %v2640 = vmul.f32 %v2619, %v2638
    %v2642 = vrot.slane %v2640, 4
    %2643 = vrot.lane.b32.xlu0 %v2642, 80
    %v2644 = vpop.permute.xlu0 %2643
    %v2645 = vsel %vm2330, %v2644, 0
    %2647 = vmatprep.subr.mxu0 0.0
    %2648 = vmatpush1.msra.mxu0 %v2328
    %2649 = vmatprep.subr.mxu0 0.0
    %2650 = vmatpush1.msra.mxu0 %v2329
    %2651 = vmatprep.subr.mxu0 0.0
    %2652 = vmatpush1.msra.mxu0 0.0
    %2653 = vmatprep.subr.mxu0 0.0
    %2654 = vmatpush1.msra.mxu0 0.0
    %2655 = vmatprep.subr.mxu0 0.0
    %2656 = vmatpush1.msra.mxu0 0.0
    %2657 = vmatprep.subr.mxu0 0.0
    %2658 = vmatpush1.msra.mxu0 0.0
    %2659 = vmatprep.subr.mxu0 0.0
    %2660 = vmatpush1.msra.mxu0 0.0
    %2661 = vmatprep.subr.mxu0 0.0
    %2662 = vmatpush1.msra.mxu0 0.0
    %2663 = vmatprep.subr.mxu0 0.0
    %2664 = vmatpush1.msra.mxu0 0.0
    %2665 = vmatprep.subr.mxu0 0.0
    %2666 = vmatpush1.msra.mxu0 0.0
    %2667 = vmatprep.subr.mxu0 0.0
    %2668 = vmatpush1.msra.mxu0 0.0
    %2669 = vmatprep.subr.mxu0 0.0
    %2670 = vmatpush1.msra.mxu0 0.0
    %2671 = vmatprep.subr.mxu0 0.0
    %2672 = vmatpush1.msra.mxu0 0.0
    %2673 = vmatprep.subr.mxu0 0.0
    %2674 = vmatpush1.msra.mxu0 0.0
    %2675 = vmatprep.subr.mxu0 0.0
    %2676 = vmatpush1.msra.mxu0 0.0
    %2677 = vmatprep.subr.mxu0 0.0
    %2678 = vmatpush1.msra.mxu0 0.0
    %2679 = vmatprep.subr.mxu0 0.0
    %2680 = vmatpush1.msra.mxu0 0.0
    %2681 = vmatprep.subr.mxu0 0.0
    %2682 = vmatpush1.msra.mxu0 0.0
    %2683 = vmatprep.subr.mxu0 0.0
    %2684 = vmatpush1.msra.mxu0 0.0
    %2685 = vmatprep.subr.mxu0 0.0
    %2686 = vmatpush1.msra.mxu0 0.0
    %2687 = vmatprep.subr.mxu0 0.0
    %2688 = vmatpush1.msra.mxu0 0.0
    %2689 = vmatprep.subr.mxu0 0.0
    %2690 = vmatpush1.msra.mxu0 0.0
    %2691 = vmatprep.subr.mxu0 0.0
    %2692 = vmatpush1.msra.mxu0 0.0
    %2693 = vmatprep.subr.mxu0 0.0
    %2694 = vmatpush1.msra.mxu0 0.0
    %2695 = vmatprep.subr.mxu0 0.0
    %2696 = vmatpush1.msra.mxu0 0.0
    %2697 = vmatprep.subr.mxu0 0.0
    %2698 = vmatpush1.msra.mxu0 0.0
    %2699 = vmatprep.subr.mxu0 0.0
    %2700 = vmatpush1.msra.mxu0 0.0
    %2701 = vmatprep.subr.mxu0 0.0
    %2702 = vmatpush1.msra.mxu0 0.0
    %2703 = vmatprep.subr.mxu0 0.0
    %2704 = vmatpush1.msra.mxu0 0.0
    %2705 = vmatprep.subr.mxu0 0.0
    %2706 = vmatpush1.msra.mxu0 0.0
    %2707 = vmatprep.subr.mxu0 0.0
    %2708 = vmatpush1.msra.mxu0 0.0
    %2709 = vmatprep.subr.mxu0 0.0
    %2710 = vmatpush1.msra.mxu0 0.0
    %2711 = vmatprep.mubr.f32.mxu0 0.0
    %2712 = vmatmul.mubr.f32.gmra.mrb[0].mxu0 %v2645
    %v2713 = vpop.f32.mrb[0].mxu0
    %v2714 = vadd.f32 0.0, %v2713
    %v2715 = vpop.f32.mrb[0].mxu0
    %2716 = vdwg.mxu0
    %v2718 = vrot.slane %v2714, 2
    %v2720 = vadd.f32 %v2325, %v2718
    %v2721 = vxor.u32 %v2720, 2147483648
    %v2722 = vmul.f32 %v2721, 1.442695
    %v2723 = vpow.pop %v2722
    %v2724 = vadd.f32 %v2723, 1.0
    %v2725 = vrcp.pop %v2724
    %v2726 = vmul.f32 1.0, %v2725
    %v2727 = vtanh.pop %v2720
    %v2729 = vrot.slane %v2634, 6
    %v2731 = vmul.f32 %v2726, %v2729
    %2733 = vrot.lane.b32.xlu0 %v2727, 96
    %v2734 = vpop.permute.xlu0 %2733
    %v2736 = vmul.f32 %v2726, %v2734
    %2738 = vrot.lane.b32.xlu0 %v2736, 16
    %v2739 = vpop.permute.xlu0 %2738
    %v2741 = vadd.f32 %v2731, %v2739
    %v2742 = vtanh.pop %v2741
    %2744 = vrot.lane.b32.xlu0 %v2742, 32
    %v2745 = vpop.permute.xlu0 %2744
    %v2747 = vmul.f32 %v2726, %v2745
    %v2748 = vld [vmem:[#allocation16] sm:$0xff]
    %v2749 = vld [vmem:[#allocation16 + $0x8] sm:$0xff]
    %2750 = vmatprep.subr.mxu0 0.0
    %2751 = vmatpush1.msra.mxu0 %v2748
    %2752 = vmatprep.subr.mxu0 0.0
    %2753 = vmatpush1.msra.mxu0 %v2749
    %2754 = vmatprep.subr.mxu0 0.0
    %2755 = vmatpush1.msra.mxu0 0.0
    %2756 = vmatprep.subr.mxu0 0.0
    %2757 = vmatpush1.msra.mxu0 0.0
    %2758 = vmatprep.subr.mxu0 0.0
    %2759 = vmatpush1.msra.mxu0 0.0
    %2760 = vmatprep.subr.mxu0 0.0
    %2761 = vmatpush1.msra.mxu0 0.0
    %2762 = vmatprep.subr.mxu0 0.0
    %2763 = vmatpush1.msra.mxu0 0.0
    %2764 = vmatprep.subr.mxu0 0.0
    %2765 = vmatpush1.msra.mxu0 0.0
    %2766 = vmatprep.subr.mxu0 0.0
    %2767 = vmatpush1.msra.mxu0 0.0
    %2768 = vmatprep.subr.mxu0 0.0
    %2769 = vmatpush1.msra.mxu0 0.0
    %2770 = vmatprep.subr.mxu0 0.0
    %2771 = vmatpush1.msra.mxu0 0.0
    %2772 = vmatprep.subr.mxu0 0.0
    %2773 = vmatpush1.msra.mxu0 0.0
    %2774 = vmatprep.subr.mxu0 0.0
    %2775 = vmatpush1.msra.mxu0 0.0
    %2776 = vmatprep.subr.mxu0 0.0
    %2777 = vmatpush1.msra.mxu0 0.0
    %2778 = vmatprep.subr.mxu0 0.0
    %2779 = vmatpush1.msra.mxu0 0.0
    %2780 = vmatprep.subr.mxu0 0.0
    %2781 = vmatpush1.msra.mxu0 0.0
    %2782 = vmatprep.subr.mxu0 0.0
    %2783 = vmatpush1.msra.mxu0 0.0
    %2784 = vmatprep.subr.mxu0 0.0
    %2785 = vmatpush1.msra.mxu0 0.0
    %2786 = vmatprep.subr.mxu0 0.0
    %2787 = vmatpush1.msra.mxu0 0.0
    %2788 = vmatprep.subr.mxu0 0.0
    %2789 = vmatpush1.msra.mxu0 0.0
    %2790 = vmatprep.subr.mxu0 0.0
    %2791 = vmatpush1.msra.mxu0 0.0
    %2792 = vmatprep.subr.mxu0 0.0
    %2793 = vmatpush1.msra.mxu0 0.0
    %2794 = vmatprep.subr.mxu0 0.0
    %2795 = vmatpush1.msra.mxu0 0.0
    %2796 = vmatprep.subr.mxu0 0.0
    %2797 = vmatpush1.msra.mxu0 0.0
    %2798 = vmatprep.subr.mxu0 0.0
    %2799 = vmatpush1.msra.mxu0 0.0
    %2800 = vmatprep.subr.mxu0 0.0
    %2801 = vmatpush1.msra.mxu0 0.0
    %2802 = vmatprep.subr.mxu0 0.0
    %2803 = vmatpush1.msra.mxu0 0.0
    %2804 = vmatprep.subr.mxu0 0.0
    %2805 = vmatpush1.msra.mxu0 0.0
    %2806 = vmatprep.subr.mxu0 0.0
    %2807 = vmatpush1.msra.mxu0 0.0
    %2808 = vmatprep.subr.mxu0 0.0
    %2809 = vmatpush1.msra.mxu0 0.0
    %2810 = vmatprep.subr.mxu0 0.0
    %2811 = vmatpush1.msra.mxu0 0.0
    %2812 = vmatprep.subr.mxu0 0.0
    %2813 = vmatpush1.msra.mxu0 0.0
    %2814 = vmatprep.mubr.f32.mxu0 0.0
    %2815 = vmatmul.mubr.f32.gmra.mrb[0].mxu0 %v2331
    %v2816 = vpop.f32.mrb[0].mxu0
    %v2817 = vadd.f32 0.0, %v2816
    %v2818 = vpop.f32.mrb[0].mxu0
    %2819 = vdwg.mxu0
    %v2821 = vrot.slane %v2817, 2
    %2822 = vrot.lane.b32.xlu0 %v2821, 64
    %v2823 = vpop.permute.xlu0 %2822
    %v2825 = vadd.f32 %v2325, %v2823
    %v2826 = vxor.u32 %v2825, 2147483648
    %v2827 = vmul.f32 %v2826, 1.442695
    %v2828 = vpow.pop %v2827
    %v2829 = vadd.f32 %v2828, 1.0
    %v2830 = vrcp.pop %v2829
    %v2831 = vmul.f32 1.0, %v2830
    %v2832 = vtanh.pop %v2825
    %v2833 = vmul.f32 %v2831, 0.0
    %2835 = vrot.lane.b32.xlu0 %v2832, 96
    %v2836 = vpop.permute.xlu0 %2835
    %v2838 = vmul.f32 %v2831, %v2836
    %2840 = vrot.lane.b32.xlu0 %v2838, 16
    %v2841 = vpop.permute.xlu0 %2840
    %v2843 = vadd.f32 %v2833, %v2841
    %v2844 = vtanh.pop %v2843
    %2846 = vrot.lane.b32.xlu0 %v2844, 32
    %v2847 = vpop.permute.xlu0 %2846
    %v2849 = vmul.f32 %v2831, %v2847
    %v2851 = vrot.slane %v2849, 6
    %2852 = vrot.lane.b32.xlu0 %v2851, 16
    %v2853 = vpop.permute.xlu0 %2852
    %v2854 = vsel %vm2330, %v2853, 0
    %2856 = vmatprep.subr.mxu0 0.0
    %2857 = vmatpush1.msra.mxu0 %v2748
    %2858 = vmatprep.subr.mxu0 0.0
    %2859 = vmatpush1.msra.mxu0 %v2749
    %2860 = vmatprep.subr.mxu0 0.0
    %2861 = vmatpush1.msra.mxu0 0.0
    %2862 = vmatprep.subr.mxu0 0.0
    %2863 = vmatpush1.msra.mxu0 0.0
    %2864 = vmatprep.subr.mxu0 0.0
    %2865 = vmatpush1.msra.mxu0 0.0
    %2866 = vmatprep.subr.mxu0 0.0
    %2867 = vmatpush1.msra.mxu0 0.0
    %2868 = vmatprep.subr.mxu0 0.0
    %2869 = vmatpush1.msra.mxu0 0.0
    %2870 = vmatprep.subr.mxu0 0.0
    %2871 = vmatpush1.msra.mxu0 0.0
    %2872 = vmatprep.subr.mxu0 0.0
    %2873 = vmatpush1.msra.mxu0 0.0
    %2874 = vmatprep.subr.mxu0 0.0
    %2875 = vmatpush1.msra.mxu0 0.0
    %2876 = vmatprep.subr.mxu0 0.0
    %2877 = vmatpush1.msra.mxu0 0.0
    %2878 = vmatprep.subr.mxu0 0.0
    %2879 = vmatpush1.msra.mxu0 0.0
    %2880 = vmatprep.subr.mxu0 0.0
    %2881 = vmatpush1.msra.mxu0 0.0
    %2882 = vmatprep.subr.mxu0 0.0
    %2883 = vmatpush1.msra.mxu0 0.0
    %2884 = vmatprep.subr.mxu0 0.0
    %2885 = vmatpush1.msra.mxu0 0.0
    %2886 = vmatprep.subr.mxu0 0.0
    %2887 = vmatpush1.msra.mxu0 0.0
    %2888 = vmatprep.subr.mxu0 0.0
    %2889 = vmatpush1.msra.mxu0 0.0
    %2890 = vmatprep.subr.mxu0 0.0
    %2891 = vmatpush1.msra.mxu0 0.0
    %2892 = vmatprep.subr.mxu0 0.0
    %2893 = vmatpush1.msra.mxu0 0.0
    %2894 = vmatprep.subr.mxu0 0.0
    %2895 = vmatpush1.msra.mxu0 0.0
    %2896 = vmatprep.subr.mxu0 0.0
    %2897 = vmatpush1.msra.mxu0 0.0
    %2898 = vmatprep.subr.mxu0 0.0
    %2899 = vmatpush1.msra.mxu0 0.0
    %2900 = vmatprep.subr.mxu0 0.0
    %2901 = vmatpush1.msra.mxu0 0.0
    %2902 = vmatprep.subr.mxu0 0.0
    %2903 = vmatpush1.msra.mxu0 0.0
    %2904 = vmatprep.subr.mxu0 0.0
    %2905 = vmatpush1.msra.mxu0 0.0
    %2906 = vmatprep.subr.mxu0 0.0
    %2907 = vmatpush1.msra.mxu0 0.0
    %2908 = vmatprep.subr.mxu0 0.0
    %2909 = vmatpush1.msra.mxu0 0.0
    %2910 = vmatprep.subr.mxu0 0.0
    %2911 = vmatpush1.msra.mxu0 0.0
    %2912 = vmatprep.subr.mxu0 0.0
    %2913 = vmatpush1.msra.mxu0 0.0
    %2914 = vmatprep.subr.mxu0 0.0
    %2915 = vmatpush1.msra.mxu0 0.0
    %2916 = vmatprep.subr.mxu0 0.0
    %2917 = vmatpush1.msra.mxu0 0.0
    %2918 = vmatprep.subr.mxu0 0.0
    %2919 = vmatpush1.msra.mxu0 0.0
    %2920 = vmatprep.mubr.f32.mxu0 0.0
    %2921 = vmatmul.mubr.f32.gmra.mrb[0].mxu0 %v2854
    %v2922 = vpop.f32.mrb[0].mxu0
    %v2923 = vadd.f32 0.0, %v2922
    %v2924 = vpop.f32.mrb[0].mxu0
    %2925 = vdwg.mxu0
    %v2927 = vrot.slane %v2923, 4
    %2928 = vrot.lane.b32.xlu0 %v2927, 64
    %v2929 = vpop.permute.xlu0 %2928
    %v2931 = vadd.f32 %v2325, %v2929
    %v2932 = vxor.u32 %v2931, 2147483648
    %v2933 = vmul.f32 %v2932, 1.442695
    %v2934 = vpow.pop %v2933
    %v2935 = vadd.f32 %v2934, 1.0
    %v2936 = vrcp.pop %v2935
    %v2937 = vmul.f32 1.0, %v2936
    %v2938 = vtanh.pop %v2931
    %v2940 = vrot.slane %v2843, 2
    %v2942 = vmul.f32 %v2937, %v2940
    %2944 = vrot.lane.b32.xlu0 %v2938, 96
    %v2945 = vpop.permute.xlu0 %2944
    %v2947 = vmul.f32 %v2937, %v2945
    %2949 = vrot.lane.b32.xlu0 %v2947, 16
    %v2950 = vpop.permute.xlu0 %2949
    %v2952 = vadd.f32 %v2942, %v2950
    %v2953 = vtanh.pop %v2952
    %2955 = vrot.lane.b32.xlu0 %v2953, 32
    %v2956 = vpop.permute.xlu0 %2955
    %v2958 = vmul.f32 %v2937, %v2956
    %v2960 = vrot.slane %v2958, 4
    %2961 = vrot.lane.b32.xlu0 %v2960, 16
    %v2962 = vpop.permute.xlu0 %2961
    %v2963 = vsel %vm2330, %v2962, 0
    %2965 = vmatprep.subr.mxu0 0.0
    %2966 = vmatpush1.msra.mxu0 %v2748
    %2967 = vmatprep.subr.mxu0 0.0
    %2968 = vmatpush1.msra.mxu0 %v2749
    %2969 = vmatprep.subr.mxu0 0.0
    %2970 = vmatpush1.msra.mxu0 0.0
    %2971 = vmatprep.subr.mxu0 0.0
    %2972 = vmatpush1.msra.mxu0 0.0
    %2973 = vmatprep.subr.mxu0 0.0
    %2974 = vmatpush1.msra.mxu0 0.0
    %2975 = vmatprep.subr.mxu0 0.0
    %2976 = vmatpush1.msra.mxu0 0.0
    %2977 = vmatprep.subr.mxu0 0.0
    %2978 = vmatpush1.msra.mxu0 0.0
    %2979 = vmatprep.subr.mxu0 0.0
    %2980 = vmatpush1.msra.mxu0 0.0
    %2981 = vmatprep.subr.mxu0 0.0
    %2982 = vmatpush1.msra.mxu0 0.0
    %2983 = vmatprep.subr.mxu0 0.0
    %2984 = vmatpush1.msra.mxu0 0.0
    %2985 = vmatprep.subr.mxu0 0.0
    %2986 = vmatpush1.msra.mxu0 0.0
    %2987 = vmatprep.subr.mxu0 0.0
    %2988 = vmatpush1.msra.mxu0 0.0
    %2989 = vmatprep.subr.mxu0 0.0
    %2990 = vmatpush1.msra.mxu0 0.0
    %2991 = vmatprep.subr.mxu0 0.0
    %2992 = vmatpush1.msra.mxu0 0.0
    %2993 = vmatprep.subr.mxu0 0.0
    %2994 = vmatpush1.msra.mxu0 0.0
    %2995 = vmatprep.subr.mxu0 0.0
    %2996 = vmatpush1.msra.mxu0 0.0
    %2997 = vmatprep.subr.mxu0 0.0
    %2998 = vmatpush1.msra.mxu0 0.0
    %2999 = vmatprep.subr.mxu0 0.0
    %3000 = vmatpush1.msra.mxu0 0.0
    %3001 = vmatprep.subr.mxu0 0.0
    %3002 = vmatpush1.msra.mxu0 0.0
    %3003 = vmatprep.subr.mxu0 0.0
    %3004 = vmatpush1.msra.mxu0 0.0
    %3005 = vmatprep.subr.mxu0 0.0
    %3006 = vmatpush1.msra.mxu0 0.0
    %3007 = vmatprep.subr.mxu0 0.0
    %3008 = vmatpush1.msra.mxu0 0.0
    %3009 = vmatprep.subr.mxu0 0.0
    %3010 = vmatpush1.msra.mxu0 0.0
    %3011 = vmatprep.subr.mxu0 0.0
    %3012 = vmatpush1.msra.mxu0 0.0
    %3013 = vmatprep.subr.mxu0 0.0
    %3014 = vmatpush1.msra.mxu0 0.0
    %3015 = vmatprep.subr.mxu0 0.0
    %3016 = vmatpush1.msra.mxu0 0.0
    %3017 = vmatprep.subr.mxu0 0.0
    %3018 = vmatpush1.msra.mxu0 0.0
    %3019 = vmatprep.subr.mxu0 0.0
    %3020 = vmatpush1.msra.mxu0 0.0
    %3021 = vmatprep.subr.mxu0 0.0
    %3022 = vmatpush1.msra.mxu0 0.0
    %3023 = vmatprep.subr.mxu0 0.0
    %3024 = vmatpush1.msra.mxu0 0.0
    %3025 = vmatprep.subr.mxu0 0.0
    %3026 = vmatpush1.msra.mxu0 0.0
    %3027 = vmatprep.subr.mxu0 0.0
    %3028 = vmatpush1.msra.mxu0 0.0
    %3029 = vmatprep.mubr.f32.mxu0 0.0
    %3030 = vmatmul.mubr.f32.gmra.mrb[0].mxu0 %v2963
    %v3031 = vpop.f32.mrb[0].mxu0
    %v3032 = vadd.f32 0.0, %v3031
    %v3033 = vpop.f32.mrb[0].mxu0
    %3034 = vdwg.mxu0
    %v3036 = vrot.slane %v3032, 6
    %3037 = vrot.lane.b32.xlu0 %v3036, 64
    %v3038 = vpop.permute.xlu0 %3037
    %v3040 = vadd.f32 %v2325, %v3038
    %v3041 = vxor.u32 %v3040, 2147483648
    %v3042 = vmul.f32 %v3041, 1.442695
    %v3043 = vpow.pop %v3042
    %v3044 = vadd.f32 %v3043, 1.0
    %v3045 = vrcp.pop %v3044
    %v3046 = vmul.f32 1.0, %v3045
    %v3047 = vtanh.pop %v3040
    %v3049 = vrot.slane %v2952, 2
    %v3051 = vmul.f32 %v3046, %v3049
    %3053 = vrot.lane.b32.xlu0 %v3047, 96
    %v3054 = vpop.permute.xlu0 %3053
    %v3056 = vmul.f32 %v3046, %v3054
    %3058 = vrot.lane.b32.xlu0 %v3056, 16
    %v3059 = vpop.permute.xlu0 %3058
    %v3061 = vadd.f32 %v3051, %v3059
    %v3062 = vtanh.pop %v3061
    %3064 = vrot.lane.b32.xlu0 %v3062, 32
    %v3065 = vpop.permute.xlu0 %3064
    %v3067 = vmul.f32 %v3046, %v3065
    %v3069 = vrot.slane %v3067, 2
    %3070 = vrot.lane.b32.xlu0 %v3069, 16
    %v3071 = vpop.permute.xlu0 %3070
    %v3072 = vsel %vm2330, %v3071, 0
    %3074 = vmatprep.subr.mxu0 0.0
    %3075 = vmatpush1.msra.mxu0 %v2748
    %3076 = vmatprep.subr.mxu0 0.0
    %3077 = vmatpush1.msra.mxu0 %v2749
    %3078 = vmatprep.subr.mxu0 0.0
    %3079 = vmatpush1.msra.mxu0 0.0
    %3080 = vmatprep.subr.mxu0 0.0
    %3081 = vmatpush1.msra.mxu0 0.0
    %3082 = vmatprep.subr.mxu0 0.0
    %3083 = vmatpush1.msra.mxu0 0.0
    %3084 = vmatprep.subr.mxu0 0.0
    %3085 = vmatpush1.msra.mxu0 0.0
    %3086 = vmatprep.subr.mxu0 0.0
    %3087 = vmatpush1.msra.mxu0 0.0
    %3088 = vmatprep.subr.mxu0 0.0
    %3089 = vmatpush1.msra.mxu0 0.0
    %3090 = vmatprep.subr.mxu0 0.0
    %3091 = vmatpush1.msra.mxu0 0.0
    %3092 = vmatprep.subr.mxu0 0.0
    %3093 = vmatpush1.msra.mxu0 0.0
    %3094 = vmatprep.subr.mxu0 0.0
    %3095 = vmatpush1.msra.mxu0 0.0
    %3096 = vmatprep.subr.mxu0 0.0
    %3097 = vmatpush1.msra.mxu0 0.0
    %3098 = vmatprep.subr.mxu0 0.0
    %3099 = vmatpush1.msra.mxu0 0.0
    %3100 = vmatprep.subr.mxu0 0.0
    %3101 = vmatpush1.msra.mxu0 0.0
    %3102 = vmatprep.subr.mxu0 0.0
    %3103 = vmatpush1.msra.mxu0 0.0
    %3104 = vmatprep.subr.mxu0 0.0
    %3105 = vmatpush1.msra.mxu0 0.0
    %3106 = vmatprep.subr.mxu0 0.0
    %3107 = vmatpush1.msra.mxu0 0.0
    %3108 = vmatprep.subr.mxu0 0.0
    %3109 = vmatpush1.msra.mxu0 0.0
    %3110 = vmatprep.subr.mxu0 0.0
    %3111 = vmatpush1.msra.mxu0 0.0
    %3112 = vmatprep.subr.mxu0 0.0
    %3113 = vmatpush1.msra.mxu0 0.0
    %3114 = vmatprep.subr.mxu0 0.0
    %3115 = vmatpush1.msra.mxu0 0.0
    %3116 = vmatprep.subr.mxu0 0.0
    %3117 = vmatpush1.msra.mxu0 0.0
    %3118 = vmatprep.subr.mxu0 0.0
    %3119 = vmatpush1.msra.mxu0 0.0
    %3120 = vmatprep.subr.mxu0 0.0
    %3121 = vmatpush1.msra.mxu0 0.0
    %3122 = vmatprep.subr.mxu0 0.0
    %3123 = vmatpush1.msra.mxu0 0.0
    %3124 = vmatprep.subr.mxu0 0.0
    %3125 = vmatpush1.msra.mxu0 0.0
    %3126 = vmatprep.subr.mxu0 0.0
    %3127 = vmatpush1.msra.mxu0 0.0
    %3128 = vmatprep.subr.mxu0 0.0
    %3129 = vmatpush1.msra.mxu0 0.0
    %3130 = vmatprep.subr.mxu0 0.0
    %3131 = vmatpush1.msra.mxu0 0.0
    %3132 = vmatprep.subr.mxu0 0.0
    %3133 = vmatpush1.msra.mxu0 0.0
    %3134 = vmatprep.subr.mxu0 0.0
    %3135 = vmatpush1.msra.mxu0 0.0
    %3136 = vmatprep.subr.mxu0 0.0
    %3137 = vmatpush1.msra.mxu0 0.0
    %3138 = vmatprep.mubr.f32.mxu0 0.0
    %3139 = vmatmul.mubr.f32.gmra.mrb[0].mxu0 %v3072
    %v3140 = vpop.f32.mrb[0].mxu0
    %v3141 = vadd.f32 0.0, %v3140
    %v3142 = vpop.f32.mrb[0].mxu0
    %3143 = vdwg.mxu0
    %3145 = vrot.lane.b32.xlu0 %v3141, 64
    %v3146 = vpop.permute.xlu0 %3145
    %v3148 = vadd.f32 %v2325, %v3146
    %v3149 = vxor.u32 %v3148, 2147483648
    %v3150 = vmul.f32 %v3149, 1.442695
    %v3151 = vpow.pop %v3150
    %v3152 = vadd.f32 %v3151, 1.0
    %v3153 = vrcp.pop %v3152
    %v3154 = vmul.f32 1.0, %v3153
    %v3155 = vtanh.pop %v3148
    %v3157 = vrot.slane %v3061, 2
    %v3159 = vmul.f32 %v3154, %v3157
    %3161 = vrot.lane.b32.xlu0 %v3155, 96
    %v3162 = vpop.permute.xlu0 %3161
    %v3164 = vmul.f32 %v3154, %v3162
    %3166 = vrot.lane.b32.xlu0 %v3164, 16
    %v3167 = vpop.permute.xlu0 %3166
    %v3169 = vadd.f32 %v3159, %v3167
    %v3170 = vtanh.pop %v3169
    %3172 = vrot.lane.b32.xlu0 %v3170, 32
    %v3173 = vpop.permute.xlu0 %3172
    %v3175 = vmul.f32 %v3154, %v3173
    %v3176 = vld [vmem:[%s17] sm:$0xff]
    %v3177 = vld [vmem:[%s17 + $0x8] sm:$0xff]
    %v3178 = vld [vmem:[%s18] sm:$0xff]
    %v3179 = vld [vmem:[%s18 + $0x8] sm:$0xff]
    %v3180 = vld [vmem:[#allocation17] sm:$0x1]
    %3182 = vrot.lane.b32.xlu0 %v3175, 16
    %v3183 = vpop.permute.xlu0 %3182
    %v3184 = vsel %vm2330, %v3183, 0
    %3186 = vmatprep.subr.mxu0 0.0
    %3187 = vmatpush1.msra.mxu0 %v3178
    %3188 = vmatprep.subr.mxu0 0.0
    %3189 = vmatpush1.msra.mxu0 %v3179
    %3190 = vmatprep.subr.mxu0 0.0
    %3191 = vmatpush1.msra.mxu0 0.0
    %3192 = vmatprep.subr.mxu0 0.0
    %3193 = vmatpush1.msra.mxu0 0.0
    %3194 = vmatprep.subr.mxu0 0.0
    %3195 = vmatpush1.msra.mxu0 0.0
    %3196 = vmatprep.subr.mxu0 0.0
    %3197 = vmatpush1.msra.mxu0 0.0
    %3198 = vmatprep.subr.mxu0 0.0
    %3199 = vmatpush1.msra.mxu0 0.0
    %3200 = vmatprep.subr.mxu0 0.0
    %3201 = vmatpush1.msra.mxu0 0.0
    %3202 = vmatprep.subr.mxu0 0.0
    %3203 = vmatpush1.msra.mxu0 0.0
    %3204 = vmatprep.subr.mxu0 0.0
    %3205 = vmatpush1.msra.mxu0 0.0
    %3206 = vmatprep.subr.mxu0 0.0
    %3207 = vmatpush1.msra.mxu0 0.0
    %3208 = vmatprep.subr.mxu0 0.0
    %3209 = vmatpush1.msra.mxu0 0.0
    %3210 = vmatprep.subr.mxu0 0.0
    %3211 = vmatpush1.msra.mxu0 0.0
    %3212 = vmatprep.subr.mxu0 0.0
    %3213 = vmatpush1.msra.mxu0 0.0
    %3214 = vmatprep.subr.mxu0 0.0
    %3215 = vmatpush1.msra.mxu0 0.0
    %3216 = vmatprep.subr.mxu0 0.0
    %3217 = vmatpush1.msra.mxu0 0.0
    %3218 = vmatprep.subr.mxu0 0.0
    %3219 = vmatpush1.msra.mxu0 0.0
    %3220 = vmatprep.subr.mxu0 0.0
    %3221 = vmatpush1.msra.mxu0 0.0
    %3222 = vmatprep.subr.mxu0 0.0
    %3223 = vmatpush1.msra.mxu0 0.0
    %3224 = vmatprep.subr.mxu0 0.0
    %3225 = vmatpush1.msra.mxu0 0.0
    %3226 = vmatprep.subr.mxu0 0.0
    %3227 = vmatpush1.msra.mxu0 0.0
    %3228 = vmatprep.subr.mxu0 0.0
    %3229 = vmatpush1.msra.mxu0 0.0
    %3230 = vmatprep.subr.mxu0 0.0
    %3231 = vmatpush1.msra.mxu0 0.0
    %3232 = vmatprep.subr.mxu0 0.0
    %3233 = vmatpush1.msra.mxu0 0.0
    %3234 = vmatprep.subr.mxu0 0.0
    %3235 = vmatpush1.msra.mxu0 0.0
    %3236 = vmatprep.subr.mxu0 0.0
    %3237 = vmatpush1.msra.mxu0 0.0
    %3238 = vmatprep.subr.mxu0 0.0
    %3239 = vmatpush1.msra.mxu0 0.0
    %3240 = vmatprep.subr.mxu0 0.0
    %3241 = vmatpush1.msra.mxu0 0.0
    %3242 = vmatprep.subr.mxu0 0.0
    %3243 = vmatpush1.msra.mxu0 0.0
    %3244 = vmatprep.subr.mxu0 0.0
    %3245 = vmatpush1.msra.mxu0 0.0
    %3246 = vmatprep.subr.mxu0 0.0
    %3247 = vmatpush1.msra.mxu0 0.0
    %3248 = vmatprep.subr.mxu0 0.0
    %3249 = vmatpush1.msra.mxu0 0.0
    %3250 = vmatprep.mubr.f32.mxu0 0.0
    %3251 = vmatmul.mubr.f32.gmra.mrb[0].mxu0 %v3184
    %v3252 = vpop.f32.mrb[0].mxu0
    %v3253 = vadd.f32 0.0, %v3252
    %v3254 = vpop.f32.mrb[0].mxu0
    %3255 = vdwg.mxu0
    %3256 = vmatprep.subr.mxu0 0.0
    %3257 = vmatpush1.msra.mxu0 %v3176
    %3258 = vmatprep.subr.mxu0 0.0
    %3259 = vmatpush1.msra.mxu0 %v3177
    %3260 = vmatprep.subr.mxu0 0.0
    %3261 = vmatpush1.msra.mxu0 0.0
    %3262 = vmatprep.subr.mxu0 0.0
    %3263 = vmatpush1.msra.mxu0 0.0
    %3264 = vmatprep.subr.mxu0 0.0
    %3265 = vmatpush1.msra.mxu0 0.0
    %3266 = vmatprep.subr.mxu0 0.0
    %3267 = vmatpush1.msra.mxu0 0.0
    %3268 = vmatprep.subr.mxu0 0.0
    %3269 = vmatpush1.msra.mxu0 0.0
    %3270 = vmatprep.subr.mxu0 0.0
    %3271 = vmatpush1.msra.mxu0 0.0
    %3272 = vmatprep.subr.mxu0 0.0
    %3273 = vmatpush1.msra.mxu0 0.0
    %3274 = vmatprep.subr.mxu0 0.0
    %3275 = vmatpush1.msra.mxu0 0.0
    %3276 = vmatprep.subr.mxu0 0.0
    %3277 = vmatpush1.msra.mxu0 0.0
    %3278 = vmatprep.subr.mxu0 0.0
    %3279 = vmatpush1.msra.mxu0 0.0
    %3280 = vmatprep.subr.mxu0 0.0
    %3281 = vmatpush1.msra.mxu0 0.0
    %3282 = vmatprep.subr.mxu0 0.0
    %3283 = vmatpush1.msra.mxu0 0.0
    %3284 = vmatprep.subr.mxu0 0.0
    %3285 = vmatpush1.msra.mxu0 0.0
    %3286 = vmatprep.subr.mxu0 0.0
    %3287 = vmatpush1.msra.mxu0 0.0
    %3288 = vmatprep.subr.mxu0 0.0
    %3289 = vmatpush1.msra.mxu0 0.0
    %3290 = vmatprep.subr.mxu0 0.0
    %3291 = vmatpush1.msra.mxu0 0.0
    %3292 = vmatprep.subr.mxu0 0.0
    %3293 = vmatpush1.msra.mxu0 0.0
    %3294 = vmatprep.subr.mxu0 0.0
    %3295 = vmatpush1.msra.mxu0 0.0
    %3296 = vmatprep.subr.mxu0 0.0
    %3297 = vmatpush1.msra.mxu0 0.0
    %3298 = vmatprep.subr.mxu0 0.0
    %3299 = vmatpush1.msra.mxu0 0.0
    %3300 = vmatprep.subr.mxu0 0.0
    %3301 = vmatpush1.msra.mxu0 0.0
    %3302 = vmatprep.subr.mxu0 0.0
    %3303 = vmatpush1.msra.mxu0 0.0
    %3304 = vmatprep.subr.mxu0 0.0
    %3305 = vmatpush1.msra.mxu0 0.0
    %3306 = vmatprep.subr.mxu0 0.0
    %3307 = vmatpush1.msra.mxu0 0.0
    %3308 = vmatprep.subr.mxu0 0.0
    %3309 = vmatpush1.msra.mxu0 0.0
    %3310 = vmatprep.subr.mxu0 0.0
    %3311 = vmatpush1.msra.mxu0 0.0
    %3312 = vmatprep.subr.mxu0 0.0
    %3313 = vmatpush1.msra.mxu0 0.0
    %3314 = vmatprep.subr.mxu0 0.0
    %3315 = vmatpush1.msra.mxu0 0.0
    %3316 = vmatprep.subr.mxu0 0.0
    %3317 = vmatpush1.msra.mxu0 0.0
    %3318 = vmatprep.subr.mxu0 0.0
    %3319 = vmatpush1.msra.mxu0 0.0
    %3320 = vmatprep.mubr.f32.mxu0 0.0
    %3321 = vmatmul.mubr.f32.gmra.mrb[0].mxu0 %v2431
    %v3322 = vpop.f32.mrb[0].mxu0
    %v3323 = vadd.f32 %v3253, %v3322
    %v3324 = vpop.f32.mrb[0].mxu0
    %3325 = vdwg.mxu0
    %v3327 = vlaneseq
    %v3328 = vshrl.u32 %v3327, 7
    %v3329 = vsub.s32 0, %v3328
    %v3330 = vrot.slane %v3180, %v3329
    %v3332 = vadd.f32 %v3323, %v3330
    %3333 = vmatprep.subr.mxu0 0.0
    %3334 = vmatpush1.msra.mxu0 %v3178
    %3335 = vmatprep.subr.mxu0 0.0
    %3336 = vmatpush1.msra.mxu0 %v3179
    %3337 = vmatprep.subr.mxu0 0.0
    %3338 = vmatpush1.msra.mxu0 0.0
    %3339 = vmatprep.subr.mxu0 0.0
    %3340 = vmatpush1.msra.mxu0 0.0
    %3341 = vmatprep.subr.mxu0 0.0
    %3342 = vmatpush1.msra.mxu0 0.0
    %3343 = vmatprep.subr.mxu0 0.0
    %3344 = vmatpush1.msra.mxu0 0.0
    %3345 = vmatprep.subr.mxu0 0.0
    %3346 = vmatpush1.msra.mxu0 0.0
    %3347 = vmatprep.subr.mxu0 0.0
    %3348 = vmatpush1.msra.mxu0 0.0
    %3349 = vmatprep.subr.mxu0 0.0
    %3350 = vmatpush1.msra.mxu0 0.0
    %3351 = vmatprep.subr.mxu0 0.0
    %3352 = vmatpush1.msra.mxu0 0.0
    %3353 = vmatprep.subr.mxu0 0.0
    %3354 = vmatpush1.msra.mxu0 0.0
    %3355 = vmatprep.subr.mxu0 0.0
    %3356 = vmatpush1.msra.mxu0 0.0
    %3357 = vmatprep.subr.mxu0 0.0
    %3358 = vmatpush1.msra.mxu0 0.0
    %3359 = vmatprep.subr.mxu0 0.0
    %3360 = vmatpush1.msra.mxu0 0.0
    %3361 = vmatprep.subr.mxu0 0.0
    %3362 = vmatpush1.msra.mxu0 0.0
    %3363 = vmatprep.subr.mxu0 0.0
    %3364 = vmatpush1.msra.mxu0 0.0
    %3365 = vmatprep.subr.mxu0 0.0
    %3366 = vmatpush1.msra.mxu0 0.0
    %3367 = vmatprep.subr.mxu0 0.0
    %3368 = vmatpush1.msra.mxu0 0.0
    %3369 = vmatprep.subr.mxu0 0.0
    %3370 = vmatpush1.msra.mxu0 0.0
    %3371 = vmatprep.subr.mxu0 0.0
    %3372 = vmatpush1.msra.mxu0 0.0
    %3373 = vmatprep.subr.mxu0 0.0
    %3374 = vmatpush1.msra.mxu0 0.0
    %3375 = vmatprep.subr.mxu0 0.0
    %3376 = vmatpush1.msra.mxu0 0.0
    %3377 = vmatprep.subr.mxu0 0.0
    %3378 = vmatpush1.msra.mxu0 0.0
    %3379 = vmatprep.subr.mxu0 0.0
    %3380 = vmatpush1.msra.mxu0 0.0
    %3381 = vmatprep.subr.mxu0 0.0
    %3382 = vmatpush1.msra.mxu0 0.0
    %3383 = vmatprep.subr.mxu0 0.0
    %3384 = vmatpush1.msra.mxu0 0.0
    %3385 = vmatprep.subr.mxu0 0.0
    %3386 = vmatpush1.msra.mxu0 0.0
    %3387 = vmatprep.subr.mxu0 0.0
    %3388 = vmatpush1.msra.mxu0 0.0
    %3389 = vmatprep.subr.mxu0 0.0
    %3390 = vmatpush1.msra.mxu0 0.0
    %3391 = vmatprep.subr.mxu0 0.0
    %3392 = vmatpush1.msra.mxu0 0.0
    %3393 = vmatprep.subr.mxu0 0.0
    %3394 = vmatpush1.msra.mxu0 0.0
    %3395 = vmatprep.subr.mxu0 0.0
    %3396 = vmatpush1.msra.mxu0 0.0
    %3397 = vmatprep.mubr.f32.mxu0 0.0
    %3398 = vmatmul.mubr.f32.gmra.mrb[0].mxu0 %v3072
    %v3399 = vpop.f32.mrb[0].mxu0
    %v3400 = vadd.f32 0.0, %v3399
    %v3401 = vpop.f32.mrb[0].mxu0
    %3402 = vdwg.mxu0
    %3403 = vmatprep.subr.mxu0 0.0
    %3404 = vmatpush1.msra.mxu0 %v3176
    %3405 = vmatprep.subr.mxu0 0.0
    %3406 = vmatpush1.msra.mxu0 %v3177
    %3407 = vmatprep.subr.mxu0 0.0
    %3408 = vmatpush1.msra.mxu0 0.0
    %3409 = vmatprep.subr.mxu0 0.0
    %3410 = vmatpush1.msra.mxu0 0.0
    %3411 = vmatprep.subr.mxu0 0.0
    %3412 = vmatpush1.msra.mxu0 0.0
    %3413 = vmatprep.subr.mxu0 0.0
    %3414 = vmatpush1.msra.mxu0 0.0
    %3415 = vmatprep.subr.mxu0 0.0
    %3416 = vmatpush1.msra.mxu0 0.0
    %3417 = vmatprep.subr.mxu0 0.0
    %3418 = vmatpush1.msra.mxu0 0.0
    %3419 = vmatprep.subr.mxu0 0.0
    %3420 = vmatpush1.msra.mxu0 0.0
    %3421 = vmatprep.subr.mxu0 0.0
    %3422 = vmatpush1.msra.mxu0 0.0
    %3423 = vmatprep.subr.mxu0 0.0
    %3424 = vmatpush1.msra.mxu0 0.0
    %3425 = vmatprep.subr.mxu0 0.0
    %3426 = vmatpush1.msra.mxu0 0.0
    %3427 = vmatprep.subr.mxu0 0.0
    %3428 = vmatpush1.msra.mxu0 0.0
    %3429 = vmatprep.subr.mxu0 0.0
    %3430 = vmatpush1.msra.mxu0 0.0
    %3431 = vmatprep.subr.mxu0 0.0
    %3432 = vmatpush1.msra.mxu0 0.0
    %3433 = vmatprep.subr.mxu0 0.0
    %3434 = vmatpush1.msra.mxu0 0.0
    %3435 = vmatprep.subr.mxu0 0.0
    %3436 = vmatpush1.msra.mxu0 0.0
    %3437 = vmatprep.subr.mxu0 0.0
    %3438 = vmatpush1.msra.mxu0 0.0
    %3439 = vmatprep.subr.mxu0 0.0
    %3440 = vmatpush1.msra.mxu0 0.0
    %3441 = vmatprep.subr.mxu0 0.0
    %3442 = vmatpush1.msra.mxu0 0.0
    %3443 = vmatprep.subr.mxu0 0.0
    %3444 = vmatpush1.msra.mxu0 0.0
    %3445 = vmatprep.subr.mxu0 0.0
    %3446 = vmatpush1.msra.mxu0 0.0
    %3447 = vmatprep.subr.mxu0 0.0
    %3448 = vmatpush1.msra.mxu0 0.0
    %3449 = vmatprep.subr.mxu0 0.0
    %3450 = vmatpush1.msra.mxu0 0.0
    %3451 = vmatprep.subr.mxu0 0.0
    %3452 = vmatpush1.msra.mxu0 0.0
    %3453 = vmatprep.subr.mxu0 0.0
    %3454 = vmatpush1.msra.mxu0 0.0
    %3455 = vmatprep.subr.mxu0 0.0
    %3456 = vmatpush1.msra.mxu0 0.0
    %3457 = vmatprep.subr.mxu0 0.0
    %3458 = vmatpush1.msra.mxu0 0.0
    %3459 = vmatprep.subr.mxu0 0.0
    %3460 = vmatpush1.msra.mxu0 0.0
    %3461 = vmatprep.subr.mxu0 0.0
    %3462 = vmatpush1.msra.mxu0 0.0
    %3463 = vmatprep.subr.mxu0 0.0
    %3464 = vmatpush1.msra.mxu0 0.0
    %3465 = vmatprep.subr.mxu0 0.0
    %3466 = vmatpush1.msra.mxu0 0.0
    %3467 = vmatprep.mubr.f32.mxu0 0.0
    %3468 = vmatmul.mubr.f32.gmra.mrb[0].mxu0 %v2538
    %v3469 = vpop.f32.mrb[0].mxu0
    %v3470 = vadd.f32 %v3400, %v3469
    %v3471 = vpop.f32.mrb[0].mxu0
    %3472 = vdwg.mxu0
    %v3473 = vadd.f32 %v3470, %v3330
    %3474 = vmatprep.subr.mxu0 0.0
    %3475 = vmatpush1.msra.mxu0 %v3178
    %3476 = vmatprep.subr.mxu0 0.0
    %3477 = vmatpush1.msra.mxu0 %v3179
    %3478 = vmatprep.subr.mxu0 0.0
    %3479 = vmatpush1.msra.mxu0 0.0
    %3480 = vmatprep.subr.mxu0 0.0
    %3481 = vmatpush1.msra.mxu0 0.0
    %3482 = vmatprep.subr.mxu0 0.0
    %3483 = vmatpush1.msra.mxu0 0.0
    %3484 = vmatprep.subr.mxu0 0.0
    %3485 = vmatpush1.msra.mxu0 0.0
    %3486 = vmatprep.subr.mxu0 0.0
    %3487 = vmatpush1.msra.mxu0 0.0
    %3488 = vmatprep.subr.mxu0 0.0
    %3489 = vmatpush1.msra.mxu0 0.0
    %3490 = vmatprep.subr.mxu0 0.0
    %3491 = vmatpush1.msra.mxu0 0.0
    %3492 = vmatprep.subr.mxu0 0.0
    %3493 = vmatpush1.msra.mxu0 0.0
    %3494 = vmatprep.subr.mxu0 0.0
    %3495 = vmatpush1.msra.mxu0 0.0
    %3496 = vmatprep.subr.mxu0 0.0
    %3497 = vmatpush1.msra.mxu0 0.0
    %3498 = vmatprep.subr.mxu0 0.0
    %3499 = vmatpush1.msra.mxu0 0.0
    %3500 = vmatprep.subr.mxu0 0.0
    %3501 = vmatpush1.msra.mxu0 0.0
    %3502 = vmatprep.subr.mxu0 0.0
    %3503 = vmatpush1.msra.mxu0 0.0
    %3504 = vmatprep.subr.mxu0 0.0
    %3505 = vmatpush1.msra.mxu0 0.0
    %3506 = vmatprep.subr.mxu0 0.0
    %3507 = vmatpush1.msra.mxu0 0.0
    %3508 = vmatprep.subr.mxu0 0.0
    %3509 = vmatpush1.msra.mxu0 0.0
    %3510 = vmatprep.subr.mxu0 0.0
    %3511 = vmatpush1.msra.mxu0 0.0
    %3512 = vmatprep.subr.mxu0 0.0
    %3513 = vmatpush1.msra.mxu0 0.0
    %3514 = vmatprep.subr.mxu0 0.0
    %3515 = vmatpush1.msra.mxu0 0.0
    %3516 = vmatprep.subr.mxu0 0.0
    %3517 = vmatpush1.msra.mxu0 0.0
    %3518 = vmatprep.subr.mxu0 0.0
    %3519 = vmatpush1.msra.mxu0 0.0
    %3520 = vmatprep.subr.mxu0 0.0
    %3521 = vmatpush1.msra.mxu0 0.0
    %3522 = vmatprep.subr.mxu0 0.0
    %3523 = vmatpush1.msra.mxu0 0.0
    %3524 = vmatprep.subr.mxu0 0.0
    %3525 = vmatpush1.msra.mxu0 0.0
    %3526 = vmatprep.subr.mxu0 0.0
    %3527 = vmatpush1.msra.mxu0 0.0
    %3528 = vmatprep.subr.mxu0 0.0
    %3529 = vmatpush1.msra.mxu0 0.0
    %3530 = vmatprep.subr.mxu0 0.0
    %3531 = vmatpush1.msra.mxu0 0.0
    %3532 = vmatprep.subr.mxu0 0.0
    %3533 = vmatpush1.msra.mxu0 0.0
    %3534 = vmatprep.subr.mxu0 0.0
    %3535 = vmatpush1.msra.mxu0 0.0
    %3536 = vmatprep.subr.mxu0 0.0
    %3537 = vmatpush1.msra.mxu0 0.0
    %3538 = vmatprep.mubr.f32.mxu0 0.0
    %3539 = vmatmul.mubr.f32.gmra.mrb[0].mxu0 %v2963
    %v3540 = vpop.f32.mrb[0].mxu0
    %v3541 = vadd.f32 0.0, %v3540
    %v3542 = vpop.f32.mrb[0].mxu0
    %3543 = vdwg.mxu0
    %3544 = vmatprep.subr.mxu0 0.0
    %3545 = vmatpush1.msra.mxu0 %v3176
    %3546 = vmatprep.subr.mxu0 0.0
    %3547 = vmatpush1.msra.mxu0 %v3177
    %3548 = vmatprep.subr.mxu0 0.0
    %3549 = vmatpush1.msra.mxu0 0.0
    %3550 = vmatprep.subr.mxu0 0.0
    %3551 = vmatpush1.msra.mxu0 0.0
    %3552 = vmatprep.subr.mxu0 0.0
    %3553 = vmatpush1.msra.mxu0 0.0
    %3554 = vmatprep.subr.mxu0 0.0
    %3555 = vmatpush1.msra.mxu0 0.0
    %3556 = vmatprep.subr.mxu0 0.0
    %3557 = vmatpush1.msra.mxu0 0.0
    %3558 = vmatprep.subr.mxu0 0.0
    %3559 = vmatpush1.msra.mxu0 0.0
    %3560 = vmatprep.subr.mxu0 0.0
    %3561 = vmatpush1.msra.mxu0 0.0
    %3562 = vmatprep.subr.mxu0 0.0
    %3563 = vmatpush1.msra.mxu0 0.0
    %3564 = vmatprep.subr.mxu0 0.0
    %3565 = vmatpush1.msra.mxu0 0.0
    %3566 = vmatprep.subr.mxu0 0.0
    %3567 = vmatpush1.msra.mxu0 0.0
    %3568 = vmatprep.subr.mxu0 0.0
    %3569 = vmatpush1.msra.mxu0 0.0
    %3570 = vmatprep.subr.mxu0 0.0
    %3571 = vmatpush1.msra.mxu0 0.0
    %3572 = vmatprep.subr.mxu0 0.0
    %3573 = vmatpush1.msra.mxu0 0.0
    %3574 = vmatprep.subr.mxu0 0.0
    %3575 = vmatpush1.msra.mxu0 0.0
    %3576 = vmatprep.subr.mxu0 0.0
    %3577 = vmatpush1.msra.mxu0 0.0
    %3578 = vmatprep.subr.mxu0 0.0
    %3579 = vmatpush1.msra.mxu0 0.0
    %3580 = vmatprep.subr.mxu0 0.0
    %3581 = vmatpush1.msra.mxu0 0.0
    %3582 = vmatprep.subr.mxu0 0.0
    %3583 = vmatpush1.msra.mxu0 0.0
    %3584 = vmatprep.subr.mxu0 0.0
    %3585 = vmatpush1.msra.mxu0 0.0
    %3586 = vmatprep.subr.mxu0 0.0
    %3587 = vmatpush1.msra.mxu0 0.0
    %3588 = vmatprep.subr.mxu0 0.0
    %3589 = vmatpush1.msra.mxu0 0.0
    %3590 = vmatprep.subr.mxu0 0.0
    %3591 = vmatpush1.msra.mxu0 0.0
    %3592 = vmatprep.subr.mxu0 0.0
    %3593 = vmatpush1.msra.mxu0 0.0
    %3594 = vmatprep.subr.mxu0 0.0
    %3595 = vmatpush1.msra.mxu0 0.0
    %3596 = vmatprep.subr.mxu0 0.0
    %3597 = vmatpush1.msra.mxu0 0.0
    %3598 = vmatprep.subr.mxu0 0.0
    %3599 = vmatpush1.msra.mxu0 0.0
    %3600 = vmatprep.subr.mxu0 0.0
    %3601 = vmatpush1.msra.mxu0 0.0
    %3602 = vmatprep.subr.mxu0 0.0
    %3603 = vmatpush1.msra.mxu0 0.0
    %3604 = vmatprep.subr.mxu0 0.0
    %3605 = vmatpush1.msra.mxu0 0.0
    %3606 = vmatprep.subr.mxu0 0.0
    %3607 = vmatpush1.msra.mxu0 0.0
    %3608 = vmatprep.mubr.f32.mxu0 0.0
    %3609 = vmatmul.mubr.f32.gmra.mrb[0].mxu0 %v2645
    %v3610 = vpop.f32.mrb[0].mxu0
    %v3611 = vadd.f32 %v3541, %v3610
    %v3612 = vpop.f32.mrb[0].mxu0
    %3613 = vdwg.mxu0
    %v3614 = vadd.f32 %v3611, %v3330
    %3615 = vmatprep.subr.mxu0 0.0
    %3616 = vmatpush1.msra.mxu0 %v3178
    %3617 = vmatprep.subr.mxu0 0.0
    %3618 = vmatpush1.msra.mxu0 %v3179
    %3619 = vmatprep.subr.mxu0 0.0
    %3620 = vmatpush1.msra.mxu0 0.0
    %3621 = vmatprep.subr.mxu0 0.0
    %3622 = vmatpush1.msra.mxu0 0.0
    %3623 = vmatprep.subr.mxu0 0.0
    %3624 = vmatpush1.msra.mxu0 0.0
    %3625 = vmatprep.subr.mxu0 0.0
    %3626 = vmatpush1.msra.mxu0 0.0
    %3627 = vmatprep.subr.mxu0 0.0
    %3628 = vmatpush1.msra.mxu0 0.0
    %3629 = vmatprep.subr.mxu0 0.0
    %3630 = vmatpush1.msra.mxu0 0.0
    %3631 = vmatprep.subr.mxu0 0.0
    %3632 = vmatpush1.msra.mxu0 0.0
    %3633 = vmatprep.subr.mxu0 0.0
    %3634 = vmatpush1.msra.mxu0 0.0
    %3635 = vmatprep.subr.mxu0 0.0
    %3636 = vmatpush1.msra.mxu0 0.0
    %3637 = vmatprep.subr.mxu0 0.0
    %3638 = vmatpush1.msra.mxu0 0.0
    %3639 = vmatprep.subr.mxu0 0.0
    %3640 = vmatpush1.msra.mxu0 0.0
    %3641 = vmatprep.subr.mxu0 0.0
    %3642 = vmatpush1.msra.mxu0 0.0
    %3643 = vmatprep.subr.mxu0 0.0
    %3644 = vmatpush1.msra.mxu0 0.0
    %3645 = vmatprep.subr.mxu0 0.0
    %3646 = vmatpush1.msra.mxu0 0.0
    %3647 = vmatprep.subr.mxu0 0.0
    %3648 = vmatpush1.msra.mxu0 0.0
    %3649 = vmatprep.subr.mxu0 0.0
    %3650 = vmatpush1.msra.mxu0 0.0
    %3651 = vmatprep.subr.mxu0 0.0
    %3652 = vmatpush1.msra.mxu0 0.0
    %3653 = vmatprep.subr.mxu0 0.0
    %3654 = vmatpush1.msra.mxu0 0.0
    %3655 = vmatprep.subr.mxu0 0.0
    %3656 = vmatpush1.msra.mxu0 0.0
    %3657 = vmatprep.subr.mxu0 0.0
    %3658 = vmatpush1.msra.mxu0 0.0
    %3659 = vmatprep.subr.mxu0 0.0
    %3660 = vmatpush1.msra.mxu0 0.0
    %3661 = vmatprep.subr.mxu0 0.0
    %3662 = vmatpush1.msra.mxu0 0.0
    %3663 = vmatprep.subr.mxu0 0.0
    %3664 = vmatpush1.msra.mxu0 0.0
    %3665 = vmatprep.subr.mxu0 0.0
    %3666 = vmatpush1.msra.mxu0 0.0
    %3667 = vmatprep.subr.mxu0 0.0
    %3668 = vmatpush1.msra.mxu0 0.0
    %3669 = vmatprep.subr.mxu0 0.0
    %3670 = vmatpush1.msra.mxu0 0.0
    %3671 = vmatprep.subr.mxu0 0.0
    %3672 = vmatpush1.msra.mxu0 0.0
    %3673 = vmatprep.subr.mxu0 0.0
    %3674 = vmatpush1.msra.mxu0 0.0
    %3675 = vmatprep.subr.mxu0 0.0
    %3676 = vmatpush1.msra.mxu0 0.0
    %3677 = vmatprep.subr.mxu0 0.0
    %3678 = vmatpush1.msra.mxu0 0.0
    %3679 = vmatprep.mubr.f32.mxu0 0.0
    %3680 = vmatmul.mubr.f32.gmra.mrb[0].mxu0 %v2854
    %v3681 = vpop.f32.mrb[0].mxu0
    %v3682 = vadd.f32 0.0, %v3681
    %v3683 = vpop.f32.mrb[0].mxu0
    %3684 = vdwg.mxu0
    %v3686 = vrot.slane %v2747, 6
    %3687 = vrot.lane.b32.xlu0 %v3686, 80
    %v3688 = vpop.permute.xlu0 %3687
    %v3689 = vsel %vm2330, %v3688, 0
    %3691 = vmatprep.subr.mxu0 0.0
    %3692 = vmatpush1.msra.mxu0 %v3176
    %3693 = vmatprep.subr.mxu0 0.0
    %3694 = vmatpush1.msra.mxu0 %v3177
    %3695 = vmatprep.subr.mxu0 0.0
    %3696 = vmatpush1.msra.mxu0 0.0
    %3697 = vmatprep.subr.mxu0 0.0
    %3698 = vmatpush1.msra.mxu0 0.0
    %3699 = vmatprep.subr.mxu0 0.0
    %3700 = vmatpush1.msra.mxu0 0.0
    %3701 = vmatprep.subr.mxu0 0.0
    %3702 = vmatpush1.msra.mxu0 0.0
    %3703 = vmatprep.subr.mxu0 0.0
    %3704 = vmatpush1.msra.mxu0 0.0
    %3705 = vmatprep.subr.mxu0 0.0
    %3706 = vmatpush1.msra.mxu0 0.0
    %3707 = vmatprep.subr.mxu0 0.0
    %3708 = vmatpush1.msra.mxu0 0.0
    %3709 = vmatprep.subr.mxu0 0.0
    %3710 = vmatpush1.msra.mxu0 0.0
    %3711 = vmatprep.subr.mxu0 0.0
    %3712 = vmatpush1.msra.mxu0 0.0
    %3713 = vmatprep.subr.mxu0 0.0
    %3714 = vmatpush1.msra.mxu0 0.0
    %3715 = vmatprep.subr.mxu0 0.0
    %3716 = vmatpush1.msra.mxu0 0.0
    %3717 = vmatprep.subr.mxu0 0.0
    %3718 = vmatpush1.msra.mxu0 0.0
    %3719 = vmatprep.subr.mxu0 0.0
    %3720 = vmatpush1.msra.mxu0 0.0
    %3721 = vmatprep.subr.mxu0 0.0
    %3722 = vmatpush1.msra.mxu0 0.0
    %3723 = vmatprep.subr.mxu0 0.0
    %3724 = vmatpush1.msra.mxu0 0.0
    %3725 = vmatprep.subr.mxu0 0.0
    %3726 = vmatpush1.msra.mxu0 0.0
    %3727 = vmatprep.subr.mxu0 0.0
    %3728 = vmatpush1.msra.mxu0 0.0
    %3729 = vmatprep.subr.mxu0 0.0
    %3730 = vmatpush1.msra.mxu0 0.0
    %3731 = vmatprep.subr.mxu0 0.0
    %3732 = vmatpush1.msra.mxu0 0.0
    %3733 = vmatprep.subr.mxu0 0.0
    %3734 = vmatpush1.msra.mxu0 0.0
    %3735 = vmatprep.subr.mxu0 0.0
    %3736 = vmatpush1.msra.mxu0 0.0
    %3737 = vmatprep.subr.mxu0 0.0
    %3738 = vmatpush1.msra.mxu0 0.0
    %3739 = vmatprep.subr.mxu0 0.0
    %3740 = vmatpush1.msra.mxu0 0.0
    %3741 = vmatprep.subr.mxu0 0.0
    %3742 = vmatpush1.msra.mxu0 0.0
    %3743 = vmatprep.subr.mxu0 0.0
    %3744 = vmatpush1.msra.mxu0 0.0
    %3745 = vmatprep.subr.mxu0 0.0
    %3746 = vmatpush1.msra.mxu0 0.0
    %3747 = vmatprep.subr.mxu0 0.0
    %3748 = vmatpush1.msra.mxu0 0.0
    %3749 = vmatprep.subr.mxu0 0.0
    %3750 = vmatpush1.msra.mxu0 0.0
    %3751 = vmatprep.subr.mxu0 0.0
    %3752 = vmatpush1.msra.mxu0 0.0
    %3753 = vmatprep.subr.mxu0 0.0
    %3754 = vmatpush1.msra.mxu0 0.0
    %3755 = vmatprep.mubr.f32.mxu0 0.0
    %3756 = vmatmul.mubr.f32.gmra.mrb[0].mxu0 %v3689
    %v3757 = vpop.f32.mrb[0].mxu0
    %v3758 = vadd.f32 %v3682, %v3757
    %v3759 = vpop.f32.mrb[0].mxu0
    %3760 = vdwg.mxu0
    %v3761 = vadd.f32 %v3758, %v3330
    %v3762 = vld [vmem:[#allocation19] sm:$0xff]
    %v3763 = vld [vmem:[#allocation19 + $0x8] sm:$0xff]
    %3764 = vmatprep.subr.mxu0 0.0
    %3765 = vmatpush1.msra.mxu0 %v3762
    %3766 = vmatprep.subr.mxu0 0.0
    %3767 = vmatpush1.msra.mxu0 %v3763
    %3768 = vmatprep.subr.mxu0 0.0
    %3769 = vmatpush1.msra.mxu0 0.0
    %3770 = vmatprep.subr.mxu0 0.0
    %3771 = vmatpush1.msra.mxu0 0.0
    %3772 = vmatprep.subr.mxu0 0.0
    %3773 = vmatpush1.msra.mxu0 0.0
    %3774 = vmatprep.subr.mxu0 0.0
    %3775 = vmatpush1.msra.mxu0 0.0
    %3776 = vmatprep.subr.mxu0 0.0
    %3777 = vmatpush1.msra.mxu0 0.0
    %3778 = vmatprep.subr.mxu0 0.0
    %3779 = vmatpush1.msra.mxu0 0.0
    %3780 = vmatprep.subr.mxu0 0.0
    %3781 = vmatpush1.msra.mxu0 0.0
    %3782 = vmatprep.subr.mxu0 0.0
    %3783 = vmatpush1.msra.mxu0 0.0
    %3784 = vmatprep.subr.mxu0 0.0
    %3785 = vmatpush1.msra.mxu0 0.0
    %3786 = vmatprep.subr.mxu0 0.0
    %3787 = vmatpush1.msra.mxu0 0.0
    %3788 = vmatprep.subr.mxu0 0.0
    %3789 = vmatpush1.msra.mxu0 0.0
    %3790 = vmatprep.subr.mxu0 0.0
    %3791 = vmatpush1.msra.mxu0 0.0
    %3792 = vmatprep.subr.mxu0 0.0
    %3793 = vmatpush1.msra.mxu0 0.0
    %3794 = vmatprep.subr.mxu0 0.0
    %3795 = vmatpush1.msra.mxu0 0.0
    %3796 = vmatprep.subr.mxu0 0.0
    %3797 = vmatpush1.msra.mxu0 0.0
    %3798 = vmatprep.subr.mxu0 0.0
    %3799 = vmatpush1.msra.mxu0 0.0
    %3800 = vmatprep.subr.mxu0 0.0
    %3801 = vmatpush1.msra.mxu0 0.0
    %3802 = vmatprep.subr.mxu0 0.0
    %3803 = vmatpush1.msra.mxu0 0.0
    %3804 = vmatprep.subr.mxu0 0.0
    %3805 = vmatpush1.msra.mxu0 0.0
    %3806 = vmatprep.subr.mxu0 0.0
    %3807 = vmatpush1.msra.mxu0 0.0
    %3808 = vmatprep.subr.mxu0 0.0
    %3809 = vmatpush1.msra.mxu0 0.0
    %3810 = vmatprep.subr.mxu0 0.0
    %3811 = vmatpush1.msra.mxu0 0.0
    %3812 = vmatprep.subr.mxu0 0.0
    %3813 = vmatpush1.msra.mxu0 0.0
    %3814 = vmatprep.subr.mxu0 0.0
    %3815 = vmatpush1.msra.mxu0 0.0
    %3816 = vmatprep.subr.mxu0 0.0
    %3817 = vmatpush1.msra.mxu0 0.0
    %3818 = vmatprep.subr.mxu0 0.0
    %3819 = vmatpush1.msra.mxu0 0.0
    %3820 = vmatprep.subr.mxu0 0.0
    %3821 = vmatpush1.msra.mxu0 0.0
    %3822 = vmatprep.subr.mxu0 0.0
    %3823 = vmatpush1.msra.mxu0 0.0
    %3824 = vmatprep.subr.mxu0 0.0
    %3825 = vmatpush1.msra.mxu0 0.0
    %3826 = vmatprep.subr.mxu0 0.0
    %3827 = vmatpush1.msra.mxu0 0.0
    %3828 = vmatprep.mubr.f32.mxu0 0.0
    %3829 = vmatmul.mubr.f32.gmra.mrb[0].mxu0 %v2331
    %v3830 = vpop.f32.mrb[0].mxu0
    %v3831 = vadd.f32 0.0, %v3830
    %v3832 = vpop.f32.mrb[0].mxu0
    %3833 = vdwg.mxu0
    %v3834 = vadd.f32 %v3332, %v3831
    %v3835 = vxor.u32 %v3834, 2147483648
    %v3836 = vmul.f32 %v3835, 1.442695
    %v3837 = vpow.pop %v3836
    %v3838 = vadd.f32 %v3837, 1.0
    %v3839 = vrcp.pop %v3838
    %v3840 = vmul.f32 1.0, %v3839
    %v3841 = vtanh.pop %v3834
    %v3842 = vmul.f32 %v3840, 0.0
    %3844 = vrot.lane.b32.xlu0 %v3841, 96
    %v3845 = vpop.permute.xlu0 %3844
    %v3847 = vmul.f32 %v3840, %v3845
    %3849 = vrot.lane.b32.xlu0 %v3847, 16
    %v3850 = vpop.permute.xlu0 %3849
    %v3852 = vadd.f32 %v3842, %v3850
    %v3853 = vtanh.pop %v3852
    %3855 = vrot.lane.b32.xlu0 %v3853, 32
    %v3856 = vpop.permute.xlu0 %3855
    %v3858 = vmul.f32 %v3840, %v3856
    %3860 = vrot.lane.b32.xlu0 %v3858, 80
    %v3861 = vpop.permute.xlu0 %3860
    %v3862 = vsel %vm2330, %v3861, 0
    %3864 = vmatprep.subr.mxu0 0.0
    %3865 = vmatpush1.msra.mxu0 %v3762
    %3866 = vmatprep.subr.mxu0 0.0
    %3867 = vmatpush1.msra.mxu0 %v3763
    %3868 = vmatprep.subr.mxu0 0.0
    %3869 = vmatpush1.msra.mxu0 0.0
    %3870 = vmatprep.subr.mxu0 0.0
    %3871 = vmatpush1.msra.mxu0 0.0
    %3872 = vmatprep.subr.mxu0 0.0
    %3873 = vmatpush1.msra.mxu0 0.0
    %3874 = vmatprep.subr.mxu0 0.0
    %3875 = vmatpush1.msra.mxu0 0.0
    %3876 = vmatprep.subr.mxu0 0.0
    %3877 = vmatpush1.msra.mxu0 0.0
    %3878 = vmatprep.subr.mxu0 0.0
    %3879 = vmatpush1.msra.mxu0 0.0
    %3880 = vmatprep.subr.mxu0 0.0
    %3881 = vmatpush1.msra.mxu0 0.0
    %3882 = vmatprep.subr.mxu0 0.0
    %3883 = vmatpush1.msra.mxu0 0.0
    %3884 = vmatprep.subr.mxu0 0.0
    %3885 = vmatpush1.msra.mxu0 0.0
    %3886 = vmatprep.subr.mxu0 0.0
    %3887 = vmatpush1.msra.mxu0 0.0
    %3888 = vmatprep.subr.mxu0 0.0
    %3889 = vmatpush1.msra.mxu0 0.0
    %3890 = vmatprep.subr.mxu0 0.0
    %3891 = vmatpush1.msra.mxu0 0.0
    %3892 = vmatprep.subr.mxu0 0.0
    %3893 = vmatpush1.msra.mxu0 0.0
    %3894 = vmatprep.subr.mxu0 0.0
    %3895 = vmatpush1.msra.mxu0 0.0
    %3896 = vmatprep.subr.mxu0 0.0
    %3897 = vmatpush1.msra.mxu0 0.0
    %3898 = vmatprep.subr.mxu0 0.0
    %3899 = vmatpush1.msra.mxu0 0.0
    %3900 = vmatprep.subr.mxu0 0.0
    %3901 = vmatpush1.msra.mxu0 0.0
    %3902 = vmatprep.subr.mxu0 0.0
    %3903 = vmatpush1.msra.mxu0 0.0
    %3904 = vmatprep.subr.mxu0 0.0
    %3905 = vmatpush1.msra.mxu0 0.0
    %3906 = vmatprep.subr.mxu0 0.0
    %3907 = vmatpush1.msra.mxu0 0.0
    %3908 = vmatprep.subr.mxu0 0.0
    %3909 = vmatpush1.msra.mxu0 0.0
    %3910 = vmatprep.subr.mxu0 0.0
    %3911 = vmatpush1.msra.mxu0 0.0
    %3912 = vmatprep.subr.mxu0 0.0
    %3913 = vmatpush1.msra.mxu0 0.0
    %3914 = vmatprep.subr.mxu0 0.0
    %3915 = vmatpush1.msra.mxu0 0.0
    %3916 = vmatprep.subr.mxu0 0.0
    %3917 = vmatpush1.msra.mxu0 0.0
    %3918 = vmatprep.subr.mxu0 0.0
    %3919 = vmatpush1.msra.mxu0 0.0
    %3920 = vmatprep.subr.mxu0 0.0
    %3921 = vmatpush1.msra.mxu0 0.0
    %3922 = vmatprep.subr.mxu0 0.0
    %3923 = vmatpush1.msra.mxu0 0.0
    %3924 = vmatprep.subr.mxu0 0.0
    %3925 = vmatpush1.msra.mxu0 0.0
    %3926 = vmatprep.subr.mxu0 0.0
    %3927 = vmatpush1.msra.mxu0 0.0
    %3928 = vmatprep.mubr.f32.mxu0 0.0
    %3929 = vmatmul.mubr.f32.gmra.mrb[0].mxu0 %v3862
    %v3930 = vpop.f32.mrb[0].mxu0
    %v3931 = vadd.f32 0.0, %v3930
    %v3932 = vpop.f32.mrb[0].mxu0
    %3933 = vdwg.mxu0
    %v3934 = vadd.f32 %v3473, %v3931
    %v3935 = vxor.u32 %v3934, 2147483648
    %v3936 = vmul.f32 %v3935, 1.442695
    %v3937 = vpow.pop %v3936
    %v3938 = vadd.f32 %v3937, 1.0
    %v3939 = vrcp.pop %v3938
    %v3940 = vmul.f32 1.0, %v3939
    %v3941 = vtanh.pop %v3934
    %v3942 = vmul.f32 %v3940, %v3852
    %3944 = vrot.lane.b32.xlu0 %v3941, 96
    %v3945 = vpop.permute.xlu0 %3944
    %v3947 = vmul.f32 %v3940, %v3945
    %3949 = vrot.lane.b32.xlu0 %v3947, 16
    %v3950 = vpop.permute.xlu0 %3949
    %v3952 = vadd.f32 %v3942, %v3950
    %v3953 = vtanh.pop %v3952
    %3955 = vrot.lane.b32.xlu0 %v3953, 32
    %v3956 = vpop.permute.xlu0 %3955
    %v3958 = vmul.f32 %v3940, %v3956
    %3960 = vrot.lane.b32.xlu0 %v3958, 80
    %v3961 = vpop.permute.xlu0 %3960
    %v3962 = vsel %vm2330, %v3961, 0
    %3964 = vmatprep.subr.mxu0 0.0
    %3965 = vmatpush1.msra.mxu0 %v3762
    %3966 = vmatprep.subr.mxu0 0.0
    %3967 = vmatpush1.msra.mxu0 %v3763
    %3968 = vmatprep.subr.mxu0 0.0
    %3969 = vmatpush1.msra.mxu0 0.0
    %3970 = vmatprep.subr.mxu0 0.0
    %3971 = vmatpush1.msra.mxu0 0.0
    %3972 = vmatprep.subr.mxu0 0.0
    %3973 = vmatpush1.msra.mxu0 0.0
    %3974 = vmatprep.subr.mxu0 0.0
    %3975 = vmatpush1.msra.mxu0 0.0
    %3976 = vmatprep.subr.mxu0 0.0
    %3977 = vmatpush1.msra.mxu0 0.0
    %3978 = vmatprep.subr.mxu0 0.0
    %3979 = vmatpush1.msra.mxu0 0.0
    %3980 = vmatprep.subr.mxu0 0.0
    %3981 = vmatpush1.msra.mxu0 0.0
    %3982 = vmatprep.subr.mxu0 0.0
    %3983 = vmatpush1.msra.mxu0 0.0
    %3984 = vmatprep.subr.mxu0 0.0
    %3985 = vmatpush1.msra.mxu0 0.0
    %3986 = vmatprep.subr.mxu0 0.0
    %3987 = vmatpush1.msra.mxu0 0.0
    %3988 = vmatprep.subr.mxu0 0.0
    %3989 = vmatpush1.msra.mxu0 0.0
    %3990 = vmatprep.subr.mxu0 0.0
    %3991 = vmatpush1.msra.mxu0 0.0
    %3992 = vmatprep.subr.mxu0 0.0
    %3993 = vmatpush1.msra.mxu0 0.0
    %3994 = vmatprep.subr.mxu0 0.0
    %3995 = vmatpush1.msra.mxu0 0.0
    %3996 = vmatprep.subr.mxu0 0.0
    %3997 = vmatpush1.msra.mxu0 0.0
    %3998 = vmatprep.subr.mxu0 0.0
    %3999 = vmatpush1.msra.mxu0 0.0
    %4000 = vmatprep.subr.mxu0 0.0
    %4001 = vmatpush1.msra.mxu0 0.0
    %4002 = vmatprep.subr.mxu0 0.0
    %4003 = vmatpush1.msra.mxu0 0.0
    %4004 = vmatprep.subr.mxu0 0.0
    %4005 = vmatpush1.msra.mxu0 0.0
    %4006 = vmatprep.subr.mxu0 0.0
    %4007 = vmatpush1.msra.mxu0 0.0
    %4008 = vmatprep.subr.mxu0 0.0
    %4009 = vmatpush1.msra.mxu0 0.0
    %4010 = vmatprep.subr.mxu0 0.0
    %4011 = vmatpush1.msra.mxu0 0.0
    %4012 = vmatprep.subr.mxu0 0.0
    %4013 = vmatpush1.msra.mxu0 0.0
    %4014 = vmatprep.subr.mxu0 0.0
    %4015 = vmatpush1.msra.mxu0 0.0
    %4016 = vmatprep.subr.mxu0 0.0
    %4017 = vmatpush1.msra.mxu0 0.0
    %4018 = vmatprep.subr.mxu0 0.0
    %4019 = vmatpush1.msra.mxu0 0.0
    %4020 = vmatprep.subr.mxu0 0.0
    %4021 = vmatpush1.msra.mxu0 0.0
    %4022 = vmatprep.subr.mxu0 0.0
    %4023 = vmatpush1.msra.mxu0 0.0
    %4024 = vmatprep.subr.mxu0 0.0
    %4025 = vmatpush1.msra.mxu0 0.0
    %4026 = vmatprep.subr.mxu0 0.0
    %4027 = vmatpush1.msra.mxu0 0.0
    %4028 = vmatprep.mubr.f32.mxu0 0.0
    %4029 = vmatmul.mubr.f32.gmra.mrb[0].mxu0 %v3962
    %v4030 = vpop.f32.mrb[0].mxu0
    %v4031 = vadd.f32 0.0, %v4030
    %v4032 = vpop.f32.mrb[0].mxu0
    %4033 = vdwg.mxu0
    %v4034 = vadd.f32 %v3614, %v4031
    %v4035 = vxor.u32 %v4034, 2147483648
    %v4036 = vmul.f32 %v4035, 1.442695
    %v4037 = vpow.pop %v4036
    %v4038 = vadd.f32 %v4037, 1.0
    %v4039 = vrcp.pop %v4038
    %v4040 = vmul.f32 1.0, %v4039
    %v4041 = vtanh.pop %v4034
    %v4042 = vmul.f32 %v4040, %v3952
    %4044 = vrot.lane.b32.xlu0 %v4041, 96
    %v4045 = vpop.permute.xlu0 %4044
    %v4047 = vmul.f32 %v4040, %v4045
    %4049 = vrot.lane.b32.xlu0 %v4047, 16
    %v4050 = vpop.permute.xlu0 %4049
    %v4052 = vadd.f32 %v4042, %v4050
    %v4053 = vtanh.pop %v4052
    %4055 = vrot.lane.b32.xlu0 %v4053, 32
    %v4056 = vpop.permute.xlu0 %4055
    %v4058 = vmul.f32 %v4040, %v4056
    %4060 = vrot.lane.b32.xlu0 %v4058, 80
    %v4061 = vpop.permute.xlu0 %4060
    %v4062 = vsel %vm2330, %v4061, 0
    %4064 = vmatprep.subr.mxu0 0.0
    %4065 = vmatpush1.msra.mxu0 %v3762
    %4066 = vmatprep.subr.mxu0 0.0
    %4067 = vmatpush1.msra.mxu0 %v3763
    %4068 = vmatprep.subr.mxu0 0.0
    %4069 = vmatpush1.msra.mxu0 0.0
    %4070 = vmatprep.subr.mxu0 0.0
    %4071 = vmatpush1.msra.mxu0 0.0
    %4072 = vmatprep.subr.mxu0 0.0
    %4073 = vmatpush1.msra.mxu0 0.0
    %4074 = vmatprep.subr.mxu0 0.0
    %4075 = vmatpush1.msra.mxu0 0.0
    %4076 = vmatprep.subr.mxu0 0.0
    %4077 = vmatpush1.msra.mxu0 0.0
    %4078 = vmatprep.subr.mxu0 0.0
    %4079 = vmatpush1.msra.mxu0 0.0
    %4080 = vmatprep.subr.mxu0 0.0
    %4081 = vmatpush1.msra.mxu0 0.0
    %4082 = vmatprep.subr.mxu0 0.0
    %4083 = vmatpush1.msra.mxu0 0.0
    %4084 = vmatprep.subr.mxu0 0.0
    %4085 = vmatpush1.msra.mxu0 0.0
    %4086 = vmatprep.subr.mxu0 0.0
    %4087 = vmatpush1.msra.mxu0 0.0
    %4088 = vmatprep.subr.mxu0 0.0
    %4089 = vmatpush1.msra.mxu0 0.0
    %4090 = vmatprep.subr.mxu0 0.0
    %4091 = vmatpush1.msra.mxu0 0.0
    %4092 = vmatprep.subr.mxu0 0.0
    %4093 = vmatpush1.msra.mxu0 0.0
    %4094 = vmatprep.subr.mxu0 0.0
    %4095 = vmatpush1.msra.mxu0 0.0
    %4096 = vmatprep.subr.mxu0 0.0
    %4097 = vmatpush1.msra.mxu0 0.0
    %4098 = vmatprep.subr.mxu0 0.0
    %4099 = vmatpush1.msra.mxu0 0.0
    %4100 = vmatprep.subr.mxu0 0.0
    %4101 = vmatpush1.msra.mxu0 0.0
    %4102 = vmatprep.subr.mxu0 0.0
    %4103 = vmatpush1.msra.mxu0 0.0
    %4104 = vmatprep.subr.mxu0 0.0
    %4105 = vmatpush1.msra.mxu0 0.0
    %4106 = vmatprep.subr.mxu0 0.0
    %4107 = vmatpush1.msra.mxu0 0.0
    %4108 = vmatprep.subr.mxu0 0.0
    %4109 = vmatpush1.msra.mxu0 0.0
    %4110 = vmatprep.subr.mxu0 0.0
    %4111 = vmatpush1.msra.mxu0 0.0
    %4112 = vmatprep.subr.mxu0 0.0
    %4113 = vmatpush1.msra.mxu0 0.0
    %4114 = vmatprep.subr.mxu0 0.0
    %4115 = vmatpush1.msra.mxu0 0.0
    %4116 = vmatprep.subr.mxu0 0.0
    %4117 = vmatpush1.msra.mxu0 0.0
    %4118 = vmatprep.subr.mxu0 0.0
    %4119 = vmatpush1.msra.mxu0 0.0
    %4120 = vmatprep.subr.mxu0 0.0
    %4121 = vmatpush1.msra.mxu0 0.0
    %4122 = vmatprep.subr.mxu0 0.0
    %4123 = vmatpush1.msra.mxu0 0.0
    %4124 = vmatprep.subr.mxu0 0.0
    %4125 = vmatpush1.msra.mxu0 0.0
    %4126 = vmatprep.subr.mxu0 0.0
    %4127 = vmatpush1.msra.mxu0 0.0
    %4128 = vmatprep.mubr.f32.mxu0 0.0
    %4129 = vmatmul.mubr.f32.gmra.mrb[0].mxu0 %v4062
    %v4130 = vpop.f32.mrb[0].mxu0
    %v4131 = vadd.f32 0.0, %v4130
    %v4132 = vpop.f32.mrb[0].mxu0
    %4133 = vdwg.mxu0
    %v4134 = vadd.f32 %v3761, %v4131
    %v4135 = vxor.u32 %v4134, 2147483648
    %v4136 = vmul.f32 %v4135, 1.442695
    %v4137 = vpow.pop %v4136
    %v4138 = vadd.f32 %v4137, 1.0
    %v4139 = vrcp.pop %v4138
    %v4140 = vmul.f32 1.0, %v4139
    %v4141 = vtanh.pop %v4134
    %v4142 = vmul.f32 %v4140, %v4052
    %4144 = vrot.lane.b32.xlu0 %v4141, 96
    %v4145 = vpop.permute.xlu0 %4144
    %v4147 = vmul.f32 %v4140, %v4145
    %4149 = vrot.lane.b32.xlu0 %v4147, 16
    %v4150 = vpop.permute.xlu0 %4149
    %v4152 = vadd.f32 %v4142, %v4150
    %v4153 = vtanh.pop %v4152
    %4155 = vrot.lane.b32.xlu0 %v4153, 32
    %v4156 = vpop.permute.xlu0 %4155
    %v4158 = vmul.f32 %v4140, %v4156
    %v4159 = vld [vmem:[#allocation20] sm:$0xff]
    %v4160 = vld [vmem:[#allocation20 + $0x8] sm:$0xff]
    %4161 = vmatprep.subr.mxu0 0.0
    %4162 = vmatpush1.msra.mxu0 %v4159
    %4163 = vmatprep.subr.mxu0 0.0
    %4164 = vmatpush1.msra.mxu0 %v4160
    %4165 = vmatprep.subr.mxu0 0.0
    %4166 = vmatpush1.msra.mxu0 0.0
    %4167 = vmatprep.subr.mxu0 0.0
    %4168 = vmatpush1.msra.mxu0 0.0
    %4169 = vmatprep.subr.mxu0 0.0
    %4170 = vmatpush1.msra.mxu0 0.0
    %4171 = vmatprep.subr.mxu0 0.0
    %4172 = vmatpush1.msra.mxu0 0.0
    %4173 = vmatprep.subr.mxu0 0.0
    %4174 = vmatpush1.msra.mxu0 0.0
    %4175 = vmatprep.subr.mxu0 0.0
    %4176 = vmatpush1.msra.mxu0 0.0
    %4177 = vmatprep.subr.mxu0 0.0
    %4178 = vmatpush1.msra.mxu0 0.0
    %4179 = vmatprep.subr.mxu0 0.0
    %4180 = vmatpush1.msra.mxu0 0.0
    %4181 = vmatprep.subr.mxu0 0.0
    %4182 = vmatpush1.msra.mxu0 0.0
    %4183 = vmatprep.subr.mxu0 0.0
    %4184 = vmatpush1.msra.mxu0 0.0
    %4185 = vmatprep.subr.mxu0 0.0
    %4186 = vmatpush1.msra.mxu0 0.0
    %4187 = vmatprep.subr.mxu0 0.0
    %4188 = vmatpush1.msra.mxu0 0.0
    %4189 = vmatprep.subr.mxu0 0.0
    %4190 = vmatpush1.msra.mxu0 0.0
    %4191 = vmatprep.subr.mxu0 0.0
    %4192 = vmatpush1.msra.mxu0 0.0
    %4193 = vmatprep.subr.mxu0 0.0
    %4194 = vmatpush1.msra.mxu0 0.0
    %4195 = vmatprep.subr.mxu0 0.0
    %4196 = vmatpush1.msra.mxu0 0.0
    %4197 = vmatprep.subr.mxu0 0.0
    %4198 = vmatpush1.msra.mxu0 0.0
    %4199 = vmatprep.subr.mxu0 0.0
    %4200 = vmatpush1.msra.mxu0 0.0
    %4201 = vmatprep.subr.mxu0 0.0
    %4202 = vmatpush1.msra.mxu0 0.0
    %4203 = vmatprep.subr.mxu0 0.0
    %4204 = vmatpush1.msra.mxu0 0.0
    %4205 = vmatprep.subr.mxu0 0.0
    %4206 = vmatpush1.msra.mxu0 0.0
    %4207 = vmatprep.subr.mxu0 0.0
    %4208 = vmatpush1.msra.mxu0 0.0
    %4209 = vmatprep.subr.mxu0 0.0
    %4210 = vmatpush1.msra.mxu0 0.0
    %4211 = vmatprep.subr.mxu0 0.0
    %4212 = vmatpush1.msra.mxu0 0.0
    %4213 = vmatprep.subr.mxu0 0.0
    %4214 = vmatpush1.msra.mxu0 0.0
    %4215 = vmatprep.subr.mxu0 0.0
    %4216 = vmatpush1.msra.mxu0 0.0
    %4217 = vmatprep.subr.mxu0 0.0
    %4218 = vmatpush1.msra.mxu0 0.0
    %4219 = vmatprep.subr.mxu0 0.0
    %4220 = vmatpush1.msra.mxu0 0.0
    %4221 = vmatprep.subr.mxu0 0.0
    %4222 = vmatpush1.msra.mxu0 0.0
    %4223 = vmatprep.subr.mxu0 0.0
    %4224 = vmatpush1.msra.mxu0 0.0
    %4225 = vmatprep.mubr.f32.mxu0 0.0
    %4226 = vmatmul.mubr.f32.gmra.mrb[0].mxu0 %v2331
    %v4227 = vpop.f32.mrb[0].mxu0
    %v4228 = vadd.f32 0.0, %v4227
    %v4229 = vpop.f32.mrb[0].mxu0
    %4230 = vdwg.mxu0
    %4232 = vrot.lane.b32.xlu0 %v4228, 64
    %v4233 = vpop.permute.xlu0 %4232
    %v4235 = vadd.f32 %v3761, %v4233
    %v4236 = vxor.u32 %v4235, 2147483648
    %v4237 = vmul.f32 %v4236, 1.442695
    %v4238 = vpow.pop %v4237
    %v4239 = vadd.f32 %v4238, 1.0
    %v4240 = vrcp.pop %v4239
    %v4241 = vmul.f32 1.0, %v4240
    %v4242 = vtanh.pop %v4235
    %v4243 = vmul.f32 %v4241, 0.0
    %4245 = vrot.lane.b32.xlu0 %v4242, 96
    %v4246 = vpop.permute.xlu0 %4245
    %v4248 = vmul.f32 %v4241, %v4246
    %4250 = vrot.lane.b32.xlu0 %v4248, 16
    %v4251 = vpop.permute.xlu0 %4250
    %v4253 = vadd.f32 %v4243, %v4251
    %v4254 = vtanh.pop %v4253
    %4256 = vrot.lane.b32.xlu0 %v4254, 32
    %v4257 = vpop.permute.xlu0 %4256
    %v4259 = vmul.f32 %v4241, %v4257
    %4261 = vrot.lane.b32.xlu0 %v4259, 16
    %v4262 = vpop.permute.xlu0 %4261
    %v4263 = vsel %vm2330, %v4262, 0
    %4265 = vmatprep.subr.mxu0 0.0
    %4266 = vmatpush1.msra.mxu0 %v4159
    %4267 = vmatprep.subr.mxu0 0.0
    %4268 = vmatpush1.msra.mxu0 %v4160
    %4269 = vmatprep.subr.mxu0 0.0
    %4270 = vmatpush1.msra.mxu0 0.0
    %4271 = vmatprep.subr.mxu0 0.0
    %4272 = vmatpush1.msra.mxu0 0.0
    %4273 = vmatprep.subr.mxu0 0.0
    %4274 = vmatpush1.msra.mxu0 0.0
    %4275 = vmatprep.subr.mxu0 0.0
    %4276 = vmatpush1.msra.mxu0 0.0
    %4277 = vmatprep.subr.mxu0 0.0
    %4278 = vmatpush1.msra.mxu0 0.0
    %4279 = vmatprep.subr.mxu0 0.0
    %4280 = vmatpush1.msra.mxu0 0.0
    %4281 = vmatprep.subr.mxu0 0.0
    %4282 = vmatpush1.msra.mxu0 0.0
    %4283 = vmatprep.subr.mxu0 0.0
    %4284 = vmatpush1.msra.mxu0 0.0
    %4285 = vmatprep.subr.mxu0 0.0
    %4286 = vmatpush1.msra.mxu0 0.0
    %4287 = vmatprep.subr.mxu0 0.0
    %4288 = vmatpush1.msra.mxu0 0.0
    %4289 = vmatprep.subr.mxu0 0.0
    %4290 = vmatpush1.msra.mxu0 0.0
    %4291 = vmatprep.subr.mxu0 0.0
    %4292 = vmatpush1.msra.mxu0 0.0
    %4293 = vmatprep.subr.mxu0 0.0
    %4294 = vmatpush1.msra.mxu0 0.0
    %4295 = vmatprep.subr.mxu0 0.0
    %4296 = vmatpush1.msra.mxu0 0.0
    %4297 = vmatprep.subr.mxu0 0.0
    %4298 = vmatpush1.msra.mxu0 0.0
    %4299 = vmatprep.subr.mxu0 0.0
    %4300 = vmatpush1.msra.mxu0 0.0
    %4301 = vmatprep.subr.mxu0 0.0
    %4302 = vmatpush1.msra.mxu0 0.0
    %4303 = vmatprep.subr.mxu0 0.0
    %4304 = vmatpush1.msra.mxu0 0.0
    %4305 = vmatprep.subr.mxu0 0.0
    %4306 = vmatpush1.msra.mxu0 0.0
    %4307 = vmatprep.subr.mxu0 0.0
    %4308 = vmatpush1.msra.mxu0 0.0
    %4309 = vmatprep.subr.mxu0 0.0
    %4310 = vmatpush1.msra.mxu0 0.0
    %4311 = vmatprep.subr.mxu0 0.0
    %4312 = vmatpush1.msra.mxu0 0.0
    %4313 = vmatprep.subr.mxu0 0.0
    %4314 = vmatpush1.msra.mxu0 0.0
    %4315 = vmatprep.subr.mxu0 0.0
    %4316 = vmatpush1.msra.mxu0 0.0
    %4317 = vmatprep.subr.mxu0 0.0
    %4318 = vmatpush1.msra.mxu0 0.0
    %4319 = vmatprep.subr.mxu0 0.0
    %4320 = vmatpush1.msra.mxu0 0.0
    %4321 = vmatprep.subr.mxu0 0.0
    %4322 = vmatpush1.msra.mxu0 0.0
    %4323 = vmatprep.subr.mxu0 0.0
    %4324 = vmatpush1.msra.mxu0 0.0
    %4325 = vmatprep.subr.mxu0 0.0
    %4326 = vmatpush1.msra.mxu0 0.0
    %4327 = vmatprep.subr.mxu0 0.0
    %4328 = vmatpush1.msra.mxu0 0.0
    %4329 = vmatprep.mubr.f32.mxu0 0.0
    %4330 = vmatmul.mubr.f32.gmra.mrb[0].mxu0 %v4263
    %v4331 = vpop.f32.mrb[0].mxu0
    %v4332 = vadd.f32 0.0, %v4331
    %v4333 = vpop.f32.mrb[0].mxu0
    %4334 = vdwg.mxu0
    %4336 = vrot.lane.b32.xlu0 %v4332, 64
    %v4337 = vpop.permute.xlu0 %4336
    %v4339 = vadd.f32 %v3614, %v4337
    %v4340 = vxor.u32 %v4339, 2147483648
    %v4341 = vmul.f32 %v4340, 1.442695
    %v4342 = vpow.pop %v4341
    %v4343 = vadd.f32 %v4342, 1.0
    %v4344 = vrcp.pop %v4343
    %v4345 = vmul.f32 1.0, %v4344
    %v4346 = vtanh.pop %v4339
    %v4347 = vmul.f32 %v4345, %v4253
    %4349 = vrot.lane.b32.xlu0 %v4346, 96
    %v4350 = vpop.permute.xlu0 %4349
    %v4352 = vmul.f32 %v4345, %v4350
    %4354 = vrot.lane.b32.xlu0 %v4352, 16
    %v4355 = vpop.permute.xlu0 %4354
    %v4357 = vadd.f32 %v4347, %v4355
    %v4358 = vtanh.pop %v4357
    %4360 = vrot.lane.b32.xlu0 %v4358, 32
    %v4361 = vpop.permute.xlu0 %4360
    %v4363 = vmul.f32 %v4345, %v4361
    %4365 = vrot.lane.b32.xlu0 %v4363, 16
    %v4366 = vpop.permute.xlu0 %4365
    %v4367 = vsel %vm2330, %v4366, 0
    %4369 = vmatprep.subr.mxu0 0.0
    %4370 = vmatpush1.msra.mxu0 %v4159
    %4371 = vmatprep.subr.mxu0 0.0
    %4372 = vmatpush1.msra.mxu0 %v4160
    %4373 = vmatprep.subr.mxu0 0.0
    %4374 = vmatpush1.msra.mxu0 0.0
    %4375 = vmatprep.subr.mxu0 0.0
    %4376 = vmatpush1.msra.mxu0 0.0
    %4377 = vmatprep.subr.mxu0 0.0
    %4378 = vmatpush1.msra.mxu0 0.0
    %4379 = vmatprep.subr.mxu0 0.0
    %4380 = vmatpush1.msra.mxu0 0.0
    %4381 = vmatprep.subr.mxu0 0.0
    %4382 = vmatpush1.msra.mxu0 0.0
    %4383 = vmatprep.subr.mxu0 0.0
    %4384 = vmatpush1.msra.mxu0 0.0
    %4385 = vmatprep.subr.mxu0 0.0
    %4386 = vmatpush1.msra.mxu0 0.0
    %4387 = vmatprep.subr.mxu0 0.0
    %4388 = vmatpush1.msra.mxu0 0.0
    %4389 = vmatprep.subr.mxu0 0.0
    %4390 = vmatpush1.msra.mxu0 0.0
    %4391 = vmatprep.subr.mxu0 0.0
    %4392 = vmatpush1.msra.mxu0 0.0
    %4393 = vmatprep.subr.mxu0 0.0
    %4394 = vmatpush1.msra.mxu0 0.0
    %4395 = vmatprep.subr.mxu0 0.0
    %4396 = vmatpush1.msra.mxu0 0.0
    %4397 = vmatprep.subr.mxu0 0.0
    %4398 = vmatpush1.msra.mxu0 0.0
    %4399 = vmatprep.subr.mxu0 0.0
    %4400 = vmatpush1.msra.mxu0 0.0
    %4401 = vmatprep.subr.mxu0 0.0
    %4402 = vmatpush1.msra.mxu0 0.0
    %4403 = vmatprep.subr.mxu0 0.0
    %4404 = vmatpush1.msra.mxu0 0.0
    %4405 = vmatprep.subr.mxu0 0.0
    %4406 = vmatpush1.msra.mxu0 0.0
    %4407 = vmatprep.subr.mxu0 0.0
    %4408 = vmatpush1.msra.mxu0 0.0
    %4409 = vmatprep.subr.mxu0 0.0
    %4410 = vmatpush1.msra.mxu0 0.0
    %4411 = vmatprep.subr.mxu0 0.0
    %4412 = vmatpush1.msra.mxu0 0.0
    %4413 = vmatprep.subr.mxu0 0.0
    %4414 = vmatpush1.msra.mxu0 0.0
    %4415 = vmatprep.subr.mxu0 0.0
    %4416 = vmatpush1.msra.mxu0 0.0
    %4417 = vmatprep.subr.mxu0 0.0
    %4418 = vmatpush1.msra.mxu0 0.0
    %4419 = vmatprep.subr.mxu0 0.0
    %4420 = vmatpush1.msra.mxu0 0.0
    %4421 = vmatprep.subr.mxu0 0.0
    %4422 = vmatpush1.msra.mxu0 0.0
    %4423 = vmatprep.subr.mxu0 0.0
    %4424 = vmatpush1.msra.mxu0 0.0
    %4425 = vmatprep.subr.mxu0 0.0
    %4426 = vmatpush1.msra.mxu0 0.0
    %4427 = vmatprep.subr.mxu0 0.0
    %4428 = vmatpush1.msra.mxu0 0.0
    %4429 = vmatprep.subr.mxu0 0.0
    %4430 = vmatpush1.msra.mxu0 0.0
    %4431 = vmatprep.subr.mxu0 0.0
    %4432 = vmatpush1.msra.mxu0 0.0
    %4433 = vmatprep.mubr.f32.mxu0 0.0
    %4434 = vmatmul.mubr.f32.gmra.mrb[0].mxu0 %v4367
    %v4435 = vpop.f32.mrb[0].mxu0
    %v4436 = vadd.f32 0.0, %v4435
    %v4437 = vpop.f32.mrb[0].mxu0
    %4438 = vdwg.mxu0
    %4440 = vrot.lane.b32.xlu0 %v4436, 64
    %v4441 = vpop.permute.xlu0 %4440
    %v4443 = vadd.f32 %v3473, %v4441
    %v4444 = vxor.u32 %v4443, 2147483648
    %v4445 = vmul.f32 %v4444, 1.442695
    %v4446 = vpow.pop %v4445
    %v4447 = vadd.f32 %v4446, 1.0
    %v4448 = vrcp.pop %v4447
    %v4449 = vmul.f32 1.0, %v4448
    %v4450 = vtanh.pop %v4443
    %v4451 = vmul.f32 %v4449, %v4357
    %4453 = vrot.lane.b32.xlu0 %v4450, 96
    %v4454 = vpop.permute.xlu0 %4453
    %v4456 = vmul.f32 %v4449, %v4454
    %4458 = vrot.lane.b32.xlu0 %v4456, 16
    %v4459 = vpop.permute.xlu0 %4458
    %v4461 = vadd.f32 %v4451, %v4459
    %v4462 = vtanh.pop %v4461
    %4464 = vrot.lane.b32.xlu0 %v4462, 32
    %v4465 = vpop.permute.xlu0 %4464
    %v4467 = vmul.f32 %v4449, %v4465
    %4469 = vrot.lane.b32.xlu0 %v4467, 16
    %v4470 = vpop.permute.xlu0 %4469
    %v4471 = vsel %vm2330, %v4470, 0
    %4473 = vmatprep.subr.mxu0 0.0
    %4474 = vmatpush1.msra.mxu0 %v4159
    %4475 = vmatprep.subr.mxu0 0.0
    %4476 = vmatpush1.msra.mxu0 %v4160
    %4477 = vmatprep.subr.mxu0 0.0
    %4478 = vmatpush1.msra.mxu0 0.0
    %4479 = vmatprep.subr.mxu0 0.0
    %4480 = vmatpush1.msra.mxu0 0.0
    %4481 = vmatprep.subr.mxu0 0.0
    %4482 = vmatpush1.msra.mxu0 0.0
    %4483 = vmatprep.subr.mxu0 0.0
    %4484 = vmatpush1.msra.mxu0 0.0
    %4485 = vmatprep.subr.mxu0 0.0
    %4486 = vmatpush1.msra.mxu0 0.0
    %4487 = vmatprep.subr.mxu0 0.0
    %4488 = vmatpush1.msra.mxu0 0.0
    %4489 = vmatprep.subr.mxu0 0.0
    %4490 = vmatpush1.msra.mxu0 0.0
    %4491 = vmatprep.subr.mxu0 0.0
    %4492 = vmatpush1.msra.mxu0 0.0
    %4493 = vmatprep.subr.mxu0 0.0
    %4494 = vmatpush1.msra.mxu0 0.0
    %4495 = vmatprep.subr.mxu0 0.0
    %4496 = vmatpush1.msra.mxu0 0.0
    %4497 = vmatprep.subr.mxu0 0.0
    %4498 = vmatpush1.msra.mxu0 0.0
    %4499 = vmatprep.subr.mxu0 0.0
    %4500 = vmatpush1.msra.mxu0 0.0
    %4501 = vmatprep.subr.mxu0 0.0
    %4502 = vmatpush1.msra.mxu0 0.0
    %4503 = vmatprep.subr.mxu0 0.0
    %4504 = vmatpush1.msra.mxu0 0.0
    %4505 = vmatprep.subr.mxu0 0.0
    %4506 = vmatpush1.msra.mxu0 0.0
    %4507 = vmatprep.subr.mxu0 0.0
    %4508 = vmatpush1.msra.mxu0 0.0
    %4509 = vmatprep.subr.mxu0 0.0
    %4510 = vmatpush1.msra.mxu0 0.0
    %4511 = vmatprep.subr.mxu0 0.0
    %4512 = vmatpush1.msra.mxu0 0.0
    %4513 = vmatprep.subr.mxu0 0.0
    %4514 = vmatpush1.msra.mxu0 0.0
    %4515 = vmatprep.subr.mxu0 0.0
    %4516 = vmatpush1.msra.mxu0 0.0
    %4517 = vmatprep.subr.mxu0 0.0
    %4518 = vmatpush1.msra.mxu0 0.0
    %4519 = vmatprep.subr.mxu0 0.0
    %4520 = vmatpush1.msra.mxu0 0.0
    %4521 = vmatprep.subr.mxu0 0.0
    %4522 = vmatpush1.msra.mxu0 0.0
    %4523 = vmatprep.subr.mxu0 0.0
    %4524 = vmatpush1.msra.mxu0 0.0
    %4525 = vmatprep.subr.mxu0 0.0
    %4526 = vmatpush1.msra.mxu0 0.0
    %4527 = vmatprep.subr.mxu0 0.0
    %4528 = vmatpush1.msra.mxu0 0.0
    %4529 = vmatprep.subr.mxu0 0.0
    %4530 = vmatpush1.msra.mxu0 0.0
    %4531 = vmatprep.subr.mxu0 0.0
    %4532 = vmatpush1.msra.mxu0 0.0
    %4533 = vmatprep.subr.mxu0 0.0
    %4534 = vmatpush1.msra.mxu0 0.0
    %4535 = vmatprep.subr.mxu0 0.0
    %4536 = vmatpush1.msra.mxu0 0.0
    %4537 = vmatprep.mubr.f32.mxu0 0.0
    %4538 = vmatmul.mubr.f32.gmra.mrb[0].mxu0 %v4471
    %v4539 = vpop.f32.mrb[0].mxu0
    %v4540 = vadd.f32 0.0, %v4539
    %v4541 = vpop.f32.mrb[0].mxu0
    %4542 = vdwg.mxu0
    %4544 = vrot.lane.b32.xlu0 %v4540, 64
    %v4545 = vpop.permute.xlu0 %4544
    %v4547 = vadd.f32 %v3332, %v4545
    %v4548 = vxor.u32 %v4547, 2147483648
    %v4549 = vmul.f32 %v4548, 1.442695
    %v4550 = vpow.pop %v4549
    %v4551 = vadd.f32 %v4550, 1.0
    %v4552 = vrcp.pop %v4551
    %v4553 = vmul.f32 1.0, %v4552
    %v4554 = vtanh.pop %v4547
    %v4555 = vmul.f32 %v4553, %v4461
    %4557 = vrot.lane.b32.xlu0 %v4554, 96
    %v4558 = vpop.permute.xlu0 %4557
    %v4560 = vmul.f32 %v4553, %v4558
    %4562 = vrot.lane.b32.xlu0 %v4560, 16
    %v4563 = vpop.permute.xlu0 %4562
    %v4565 = vadd.f32 %v4555, %v4563
    %v4566 = vtanh.pop %v4565
    %4568 = vrot.lane.b32.xlu0 %v4566, 32
    %v4569 = vpop.permute.xlu0 %4568
    %v4571 = vmul.f32 %v4553, %v4569
    %v4572 = vld [vmem:[#allocation22] sm:$0xff]
    %v4573 = vld [vmem:[#allocation22 + $0x8] sm:$0xff]
    %s4574 = scalar_lea.vmem [#allocation22], 16
    %v4575 = vld [vmem:[%s4574] sm:$0xff]
    %v4576 = vld [vmem:[%s4574 + $0x8] sm:$0xff]
    %4578 = vrot.lane.b32.xlu0 %v4571, 16
    %v4579 = vpop.permute.xlu0 %4578
    %v4580 = vsel %vm2330, %v4579, 0
    %4582 = vmatprep.subr.mxu0 0.0
    %4583 = vmatpush1.msra.mxu0 %v4575
    %4584 = vmatprep.subr.mxu0 0.0
    %4585 = vmatpush1.msra.mxu0 %v4576
    %4586 = vmatprep.subr.mxu0 0.0
    %4587 = vmatpush1.msra.mxu0 0.0
    %4588 = vmatprep.subr.mxu0 0.0
    %4589 = vmatpush1.msra.mxu0 0.0
    %4590 = vmatprep.subr.mxu0 0.0
    %4591 = vmatpush1.msra.mxu0 0.0
    %4592 = vmatprep.subr.mxu0 0.0
    %4593 = vmatpush1.msra.mxu0 0.0
    %4594 = vmatprep.subr.mxu0 0.0
    %4595 = vmatpush1.msra.mxu0 0.0
    %4596 = vmatprep.subr.mxu0 0.0
    %4597 = vmatpush1.msra.mxu0 0.0
    %4598 = vmatprep.subr.mxu0 0.0
    %4599 = vmatpush1.msra.mxu0 0.0
    %4600 = vmatprep.subr.mxu0 0.0
    %4601 = vmatpush1.msra.mxu0 0.0
    %4602 = vmatprep.subr.mxu0 0.0
    %4603 = vmatpush1.msra.mxu0 0.0
    %4604 = vmatprep.subr.mxu0 0.0
    %4605 = vmatpush1.msra.mxu0 0.0
    %4606 = vmatprep.subr.mxu0 0.0
    %4607 = vmatpush1.msra.mxu0 0.0
    %4608 = vmatprep.subr.mxu0 0.0
    %4609 = vmatpush1.msra.mxu0 0.0
    %4610 = vmatprep.subr.mxu0 0.0
    %4611 = vmatpush1.msra.mxu0 0.0
    %4612 = vmatprep.subr.mxu0 0.0
    %4613 = vmatpush1.msra.mxu0 0.0
    %4614 = vmatprep.subr.mxu0 0.0
    %4615 = vmatpush1.msra.mxu0 0.0
    %4616 = vmatprep.subr.mxu0 0.0
    %4617 = vmatpush1.msra.mxu0 0.0
    %4618 = vmatprep.subr.mxu0 0.0
    %4619 = vmatpush1.msra.mxu0 0.0
    %4620 = vmatprep.subr.mxu0 0.0
    %4621 = vmatpush1.msra.mxu0 0.0
    %4622 = vmatprep.subr.mxu0 0.0
    %4623 = vmatpush1.msra.mxu0 0.0
    %4624 = vmatprep.subr.mxu0 0.0
    %4625 = vmatpush1.msra.mxu0 0.0
    %4626 = vmatprep.subr.mxu0 0.0
    %4627 = vmatpush1.msra.mxu0 0.0
    %4628 = vmatprep.subr.mxu0 0.0
    %4629 = vmatpush1.msra.mxu0 0.0
    %4630 = vmatprep.subr.mxu0 0.0
    %4631 = vmatpush1.msra.mxu0 0.0
    %4632 = vmatprep.subr.mxu0 0.0
    %4633 = vmatpush1.msra.mxu0 0.0
    %4634 = vmatprep.subr.mxu0 0.0
    %4635 = vmatpush1.msra.mxu0 0.0
    %4636 = vmatprep.subr.mxu0 0.0
    %4637 = vmatpush1.msra.mxu0 0.0
    %4638 = vmatprep.subr.mxu0 0.0
    %4639 = vmatpush1.msra.mxu0 0.0
    %4640 = vmatprep.subr.mxu0 0.0
    %4641 = vmatpush1.msra.mxu0 0.0
    %4642 = vmatprep.subr.mxu0 0.0
    %4643 = vmatpush1.msra.mxu0 0.0
    %4644 = vmatprep.subr.mxu0 0.0
    %4645 = vmatpush1.msra.mxu0 0.0
    %4646 = vmatprep.mubr.f32.mxu0 0.0
    %4647 = vmatmul.mubr.f32.gmra.mrb[0].mxu0 %v4580
    %v4648 = vpop.f32.mrb[0].mxu0
    %v4649 = vadd.f32 0.0, %v4648
    %v4650 = vpop.f32.mrb[0].mxu0
    %4651 = vdwg.mxu0
    %4652 = vmatprep.subr.mxu0 0.0
    %4653 = vmatpush1.msra.mxu0 %v4572
    %4654 = vmatprep.subr.mxu0 0.0
    %4655 = vmatpush1.msra.mxu0 %v4573
    %4656 = vmatprep.subr.mxu0 0.0
    %4657 = vmatpush1.msra.mxu0 0.0
    %4658 = vmatprep.subr.mxu0 0.0
    %4659 = vmatpush1.msra.mxu0 0.0
    %4660 = vmatprep.subr.mxu0 0.0
    %4661 = vmatpush1.msra.mxu0 0.0
    %4662 = vmatprep.subr.mxu0 0.0
    %4663 = vmatpush1.msra.mxu0 0.0
    %4664 = vmatprep.subr.mxu0 0.0
    %4665 = vmatpush1.msra.mxu0 0.0
    %4666 = vmatprep.subr.mxu0 0.0
    %4667 = vmatpush1.msra.mxu0 0.0
    %4668 = vmatprep.subr.mxu0 0.0
    %4669 = vmatpush1.msra.mxu0 0.0
    %4670 = vmatprep.subr.mxu0 0.0
    %4671 = vmatpush1.msra.mxu0 0.0
    %4672 = vmatprep.subr.mxu0 0.0
    %4673 = vmatpush1.msra.mxu0 0.0
    %4674 = vmatprep.subr.mxu0 0.0
    %4675 = vmatpush1.msra.mxu0 0.0
    %4676 = vmatprep.subr.mxu0 0.0
    %4677 = vmatpush1.msra.mxu0 0.0
    %4678 = vmatprep.subr.mxu0 0.0
    %4679 = vmatpush1.msra.mxu0 0.0
    %4680 = vmatprep.subr.mxu0 0.0
    %4681 = vmatpush1.msra.mxu0 0.0
    %4682 = vmatprep.subr.mxu0 0.0
    %4683 = vmatpush1.msra.mxu0 0.0
    %4684 = vmatprep.subr.mxu0 0.0
    %4685 = vmatpush1.msra.mxu0 0.0
    %4686 = vmatprep.subr.mxu0 0.0
    %4687 = vmatpush1.msra.mxu0 0.0
    %4688 = vmatprep.subr.mxu0 0.0
    %4689 = vmatpush1.msra.mxu0 0.0
    %4690 = vmatprep.subr.mxu0 0.0
    %4691 = vmatpush1.msra.mxu0 0.0
    %4692 = vmatprep.subr.mxu0 0.0
    %4693 = vmatpush1.msra.mxu0 0.0
    %4694 = vmatprep.subr.mxu0 0.0
    %4695 = vmatpush1.msra.mxu0 0.0
    %4696 = vmatprep.subr.mxu0 0.0
    %4697 = vmatpush1.msra.mxu0 0.0
    %4698 = vmatprep.subr.mxu0 0.0
    %4699 = vmatpush1.msra.mxu0 0.0
    %4700 = vmatprep.subr.mxu0 0.0
    %4701 = vmatpush1.msra.mxu0 0.0
    %4702 = vmatprep.subr.mxu0 0.0
    %4703 = vmatpush1.msra.mxu0 0.0
    %4704 = vmatprep.subr.mxu0 0.0
    %4705 = vmatpush1.msra.mxu0 0.0
    %4706 = vmatprep.subr.mxu0 0.0
    %4707 = vmatpush1.msra.mxu0 0.0
    %4708 = vmatprep.subr.mxu0 0.0
    %4709 = vmatpush1.msra.mxu0 0.0
    %4710 = vmatprep.subr.mxu0 0.0
    %4711 = vmatpush1.msra.mxu0 0.0
    %4712 = vmatprep.subr.mxu0 0.0
    %4713 = vmatpush1.msra.mxu0 0.0
    %4714 = vmatprep.subr.mxu0 0.0
    %4715 = vmatpush1.msra.mxu0 0.0
    %4716 = vmatprep.mubr.f32.mxu0 0.0
    %4717 = vmatmul.mubr.f32.gmra.mrb[0].mxu0 %v3862
    %v4718 = vpop.f32.mrb[0].mxu0
    %v4719 = vadd.f32 %v4649, %v4718
    %v4720 = vpop.f32.mrb[0].mxu0
    %4721 = vdwg.mxu0
    %s4722 = scalar_lea.vmem [#allocation22], 32
    %v4723 = vld [vmem:[%s4722] sm:$0xff]
    %v4724 = vld [vmem:[%s4722 + $0x8] sm:$0xff]
    %4725 = vmatprep.subr.mxu0 0.0
    %4726 = vmatpush1.msra.mxu0 %v4723
    %4727 = vmatprep.subr.mxu0 0.0
    %4728 = vmatpush1.msra.mxu0 %v4724
    %4729 = vmatprep.subr.mxu0 0.0
    %4730 = vmatpush1.msra.mxu0 0.0
    %4731 = vmatprep.subr.mxu0 0.0
    %4732 = vmatpush1.msra.mxu0 0.0
    %4733 = vmatprep.subr.mxu0 0.0
    %4734 = vmatpush1.msra.mxu0 0.0
    %4735 = vmatprep.subr.mxu0 0.0
    %4736 = vmatpush1.msra.mxu0 0.0
    %4737 = vmatprep.subr.mxu0 0.0
    %4738 = vmatpush1.msra.mxu0 0.0
    %4739 = vmatprep.subr.mxu0 0.0
    %4740 = vmatpush1.msra.mxu0 0.0
    %4741 = vmatprep.subr.mxu0 0.0
    %4742 = vmatpush1.msra.mxu0 0.0
    %4743 = vmatprep.subr.mxu0 0.0
    %4744 = vmatpush1.msra.mxu0 0.0
    %4745 = vmatprep.subr.mxu0 0.0
    %4746 = vmatpush1.msra.mxu0 0.0
    %4747 = vmatprep.subr.mxu0 0.0
    %4748 = vmatpush1.msra.mxu0 0.0
    %4749 = vmatprep.subr.mxu0 0.0
    %4750 = vmatpush1.msra.mxu0 0.0
    %4751 = vmatprep.subr.mxu0 0.0
    %4752 = vmatpush1.msra.mxu0 0.0
    %4753 = vmatprep.subr.mxu0 0.0
    %4754 = vmatpush1.msra.mxu0 0.0
    %4755 = vmatprep.subr.mxu0 0.0
    %4756 = vmatpush1.msra.mxu0 0.0
    %4757 = vmatprep.subr.mxu0 0.0
    %4758 = vmatpush1.msra.mxu0 0.0
    %4759 = vmatprep.subr.mxu0 0.0
    %4760 = vmatpush1.msra.mxu0 0.0
    %4761 = vmatprep.subr.mxu0 0.0
    %4762 = vmatpush1.msra.mxu0 0.0
    %4763 = vmatprep.subr.mxu0 0.0
    %4764 = vmatpush1.msra.mxu0 0.0
    %4765 = vmatprep.subr.mxu0 0.0
    %4766 = vmatpush1.msra.mxu0 0.0
    %4767 = vmatprep.subr.mxu0 0.0
    %4768 = vmatpush1.msra.mxu0 0.0
    %4769 = vmatprep.subr.mxu0 0.0
    %4770 = vmatpush1.msra.mxu0 0.0
    %4771 = vmatprep.subr.mxu0 0.0
    %4772 = vmatpush1.msra.mxu0 0.0
    %4773 = vmatprep.subr.mxu0 0.0
    %4774 = vmatpush1.msra.mxu0 0.0
    %4775 = vmatprep.subr.mxu0 0.0
    %4776 = vmatpush1.msra.mxu0 0.0
    %4777 = vmatprep.subr.mxu0 0.0
    %4778 = vmatpush1.msra.mxu0 0.0
    %4779 = vmatprep.subr.mxu0 0.0
    %4780 = vmatpush1.msra.mxu0 0.0
    %4781 = vmatprep.subr.mxu0 0.0
    %4782 = vmatpush1.msra.mxu0 0.0
    %4783 = vmatprep.subr.mxu0 0.0
    %4784 = vmatpush1.msra.mxu0 0.0
    %4785 = vmatprep.subr.mxu0 0.0
    %4786 = vmatpush1.msra.mxu0 0.0
    %4787 = vmatprep.subr.mxu0 0.0
    %4788 = vmatpush1.msra.mxu0 0.0
    %4789 = vmatprep.mubr.f32.mxu0 0.0
    %4790 = vmatmul.mubr.f32.gmra.mrb[0].mxu0 %v3962
    %v4791 = vpop.f32.mrb[0].mxu0
    %v4792 = vadd.f32 0.0, %v4791
    %v4793 = vpop.f32.mrb[0].mxu0
    %4794 = vdwg.mxu0
    %v4795 = vadd.f32 %v4719, %v4792
    %s4796 = scalar_lea.vmem [#allocation22], 48
    %v4797 = vld [vmem:[%s4796] sm:$0xff]
    %v4798 = vld [vmem:[%s4796 + $0x8] sm:$0xff]
    %4799 = vmatprep.subr.mxu0 0.0
    %4800 = vmatpush1.msra.mxu0 %v4797
    %4801 = vmatprep.subr.mxu0 0.0
    %4802 = vmatpush1.msra.mxu0 %v4798
    %4803 = vmatprep.subr.mxu0 0.0
    %4804 = vmatpush1.msra.mxu0 0.0
    %4805 = vmatprep.subr.mxu0 0.0
    %4806 = vmatpush1.msra.mxu0 0.0
    %4807 = vmatprep.subr.mxu0 0.0
    %4808 = vmatpush1.msra.mxu0 0.0
    %4809 = vmatprep.subr.mxu0 0.0
    %4810 = vmatpush1.msra.mxu0 0.0
    %4811 = vmatprep.subr.mxu0 0.0
    %4812 = vmatpush1.msra.mxu0 0.0
    %4813 = vmatprep.subr.mxu0 0.0
    %4814 = vmatpush1.msra.mxu0 0.0
    %4815 = vmatprep.subr.mxu0 0.0
    %4816 = vmatpush1.msra.mxu0 0.0
    %4817 = vmatprep.subr.mxu0 0.0
    %4818 = vmatpush1.msra.mxu0 0.0
    %4819 = vmatprep.subr.mxu0 0.0
    %4820 = vmatpush1.msra.mxu0 0.0
    %4821 = vmatprep.subr.mxu0 0.0
    %4822 = vmatpush1.msra.mxu0 0.0
    %4823 = vmatprep.subr.mxu0 0.0
    %4824 = vmatpush1.msra.mxu0 0.0
    %4825 = vmatprep.subr.mxu0 0.0
    %4826 = vmatpush1.msra.mxu0 0.0
    %4827 = vmatprep.subr.mxu0 0.0
    %4828 = vmatpush1.msra.mxu0 0.0
    %4829 = vmatprep.subr.mxu0 0.0
    %4830 = vmatpush1.msra.mxu0 0.0
    %4831 = vmatprep.subr.mxu0 0.0
    %4832 = vmatpush1.msra.mxu0 0.0
    %4833 = vmatprep.subr.mxu0 0.0
    %4834 = vmatpush1.msra.mxu0 0.0
    %4835 = vmatprep.subr.mxu0 0.0
    %4836 = vmatpush1.msra.mxu0 0.0
    %4837 = vmatprep.subr.mxu0 0.0
    %4838 = vmatpush1.msra.mxu0 0.0
    %4839 = vmatprep.subr.mxu0 0.0
    %4840 = vmatpush1.msra.mxu0 0.0
    %4841 = vmatprep.subr.mxu0 0.0
    %4842 = vmatpush1.msra.mxu0 0.0
    %4843 = vmatprep.subr.mxu0 0.0
    %4844 = vmatpush1.msra.mxu0 0.0
    %4845 = vmatprep.subr.mxu0 0.0
    %4846 = vmatpush1.msra.mxu0 0.0
    %4847 = vmatprep.subr.mxu0 0.0
    %4848 = vmatpush1.msra.mxu0 0.0
    %4849 = vmatprep.subr.mxu0 0.0
    %4850 = vmatpush1.msra.mxu0 0.0
    %4851 = vmatprep.subr.mxu0 0.0
    %4852 = vmatpush1.msra.mxu0 0.0
    %4853 = vmatprep.subr.mxu0 0.0
    %4854 = vmatpush1.msra.mxu0 0.0
    %4855 = vmatprep.subr.mxu0 0.0
    %4856 = vmatpush1.msra.mxu0 0.0
    %4857 = vmatprep.subr.mxu0 0.0
    %4858 = vmatpush1.msra.mxu0 0.0
    %4859 = vmatprep.subr.mxu0 0.0
    %4860 = vmatpush1.msra.mxu0 0.0
    %4861 = vmatprep.subr.mxu0 0.0
    %4862 = vmatpush1.msra.mxu0 0.0
    %4863 = vmatprep.mubr.f32.mxu0 0.0
    %4864 = vmatmul.mubr.f32.gmra.mrb[0].mxu0 %v4471
    %v4865 = vpop.f32.mrb[0].mxu0
    %v4866 = vadd.f32 0.0, %v4865
    %v4867 = vpop.f32.mrb[0].mxu0
    %4868 = vdwg.mxu0
    %v4869 = vadd.f32 %v4795, %v4866
    %s4870 = scalar_lea.vmem [#allocation22], 64
    %v4871 = vld [vmem:[%s4870] sm:$0xff]
    %v4872 = vld [vmem:[%s4870 + $0x8] sm:$0xff]
    %4873 = vmatprep.subr.mxu0 0.0
    %4874 = vmatpush1.msra.mxu0 %v4871
    %4875 = vmatprep.subr.mxu0 0.0
    %4876 = vmatpush1.msra.mxu0 %v4872
    %4877 = vmatprep.subr.mxu0 0.0
    %4878 = vmatpush1.msra.mxu0 0.0
    %4879 = vmatprep.subr.mxu0 0.0
    %4880 = vmatpush1.msra.mxu0 0.0
    %4881 = vmatprep.subr.mxu0 0.0
    %4882 = vmatpush1.msra.mxu0 0.0
    %4883 = vmatprep.subr.mxu0 0.0
    %4884 = vmatpush1.msra.mxu0 0.0
    %4885 = vmatprep.subr.mxu0 0.0
    %4886 = vmatpush1.msra.mxu0 0.0
    %4887 = vmatprep.subr.mxu0 0.0
    %4888 = vmatpush1.msra.mxu0 0.0
    %4889 = vmatprep.subr.mxu0 0.0
    %4890 = vmatpush1.msra.mxu0 0.0
    %4891 = vmatprep.subr.mxu0 0.0
    %4892 = vmatpush1.msra.mxu0 0.0
    %4893 = vmatprep.subr.mxu0 0.0
    %4894 = vmatpush1.msra.mxu0 0.0
    %4895 = vmatprep.subr.mxu0 0.0
    %4896 = vmatpush1.msra.mxu0 0.0
    %4897 = vmatprep.subr.mxu0 0.0
    %4898 = vmatpush1.msra.mxu0 0.0
    %4899 = vmatprep.subr.mxu0 0.0
    %4900 = vmatpush1.msra.mxu0 0.0
    %4901 = vmatprep.subr.mxu0 0.0
    %4902 = vmatpush1.msra.mxu0 0.0
    %4903 = vmatprep.subr.mxu0 0.0
    %4904 = vmatpush1.msra.mxu0 0.0
    %4905 = vmatprep.subr.mxu0 0.0
    %4906 = vmatpush1.msra.mxu0 0.0
    %4907 = vmatprep.subr.mxu0 0.0
    %4908 = vmatpush1.msra.mxu0 0.0
    %4909 = vmatprep.subr.mxu0 0.0
    %4910 = vmatpush1.msra.mxu0 0.0
    %4911 = vmatprep.subr.mxu0 0.0
    %4912 = vmatpush1.msra.mxu0 0.0
    %4913 = vmatprep.subr.mxu0 0.0
    %4914 = vmatpush1.msra.mxu0 0.0
    %4915 = vmatprep.subr.mxu0 0.0
    %4916 = vmatpush1.msra.mxu0 0.0
    %4917 = vmatprep.subr.mxu0 0.0
    %4918 = vmatpush1.msra.mxu0 0.0
    %4919 = vmatprep.subr.mxu0 0.0
    %4920 = vmatpush1.msra.mxu0 0.0
    %4921 = vmatprep.subr.mxu0 0.0
    %4922 = vmatpush1.msra.mxu0 0.0
    %4923 = vmatprep.subr.mxu0 0.0
    %4924 = vmatpush1.msra.mxu0 0.0
    %4925 = vmatprep.subr.mxu0 0.0
    %4926 = vmatpush1.msra.mxu0 0.0
    %4927 = vmatprep.subr.mxu0 0.0
    %4928 = vmatpush1.msra.mxu0 0.0
    %4929 = vmatprep.subr.mxu0 0.0
    %4930 = vmatpush1.msra.mxu0 0.0
    %4931 = vmatprep.subr.mxu0 0.0
    %4932 = vmatpush1.msra.mxu0 0.0
    %4933 = vmatprep.subr.mxu0 0.0
    %4934 = vmatpush1.msra.mxu0 0.0
    %4935 = vmatprep.subr.mxu0 0.0
    %4936 = vmatpush1.msra.mxu0 0.0
    %4937 = vmatprep.mubr.f32.mxu0 0.0
    %4938 = vmatmul.mubr.f32.gmra.mrb[0].mxu0 %v4062
    %v4939 = vpop.f32.mrb[0].mxu0
    %v4940 = vadd.f32 0.0, %v4939
    %v4941 = vpop.f32.mrb[0].mxu0
    %4942 = vdwg.mxu0
    %v4943 = vadd.f32 %v4869, %v4940
    %s4944 = scalar_lea.vmem [#allocation22], 80
    %v4945 = vld [vmem:[%s4944] sm:$0xff]
    %v4946 = vld [vmem:[%s4944 + $0x8] sm:$0xff]
    %4947 = vmatprep.subr.mxu0 0.0
    %4948 = vmatpush1.msra.mxu0 %v4945
    %4949 = vmatprep.subr.mxu0 0.0
    %4950 = vmatpush1.msra.mxu0 %v4946
    %4951 = vmatprep.subr.mxu0 0.0
    %4952 = vmatpush1.msra.mxu0 0.0
    %4953 = vmatprep.subr.mxu0 0.0
    %4954 = vmatpush1.msra.mxu0 0.0
    %4955 = vmatprep.subr.mxu0 0.0
    %4956 = vmatpush1.msra.mxu0 0.0
    %4957 = vmatprep.subr.mxu0 0.0
    %4958 = vmatpush1.msra.mxu0 0.0
    %4959 = vmatprep.subr.mxu0 0.0
    %4960 = vmatpush1.msra.mxu0 0.0
    %4961 = vmatprep.subr.mxu0 0.0
    %4962 = vmatpush1.msra.mxu0 0.0
    %4963 = vmatprep.subr.mxu0 0.0
    %4964 = vmatpush1.msra.mxu0 0.0
    %4965 = vmatprep.subr.mxu0 0.0
    %4966 = vmatpush1.msra.mxu0 0.0
    %4967 = vmatprep.subr.mxu0 0.0
    %4968 = vmatpush1.msra.mxu0 0.0
    %4969 = vmatprep.subr.mxu0 0.0
    %4970 = vmatpush1.msra.mxu0 0.0
    %4971 = vmatprep.subr.mxu0 0.0
    %4972 = vmatpush1.msra.mxu0 0.0
    %4973 = vmatprep.subr.mxu0 0.0
    %4974 = vmatpush1.msra.mxu0 0.0
    %4975 = vmatprep.subr.mxu0 0.0
    %4976 = vmatpush1.msra.mxu0 0.0
    %4977 = vmatprep.subr.mxu0 0.0
    %4978 = vmatpush1.msra.mxu0 0.0
    %4979 = vmatprep.subr.mxu0 0.0
    %4980 = vmatpush1.msra.mxu0 0.0
    %4981 = vmatprep.subr.mxu0 0.0
    %4982 = vmatpush1.msra.mxu0 0.0
    %4983 = vmatprep.subr.mxu0 0.0
    %4984 = vmatpush1.msra.mxu0 0.0
    %4985 = vmatprep.subr.mxu0 0.0
    %4986 = vmatpush1.msra.mxu0 0.0
    %4987 = vmatprep.subr.mxu0 0.0
    %4988 = vmatpush1.msra.mxu0 0.0
    %4989 = vmatprep.subr.mxu0 0.0
    %4990 = vmatpush1.msra.mxu0 0.0
    %4991 = vmatprep.subr.mxu0 0.0
    %4992 = vmatpush1.msra.mxu0 0.0
    %4993 = vmatprep.subr.mxu0 0.0
    %4994 = vmatpush1.msra.mxu0 0.0
    %4995 = vmatprep.subr.mxu0 0.0
    %4996 = vmatpush1.msra.mxu0 0.0
    %4997 = vmatprep.subr.mxu0 0.0
    %4998 = vmatpush1.msra.mxu0 0.0
    %4999 = vmatprep.subr.mxu0 0.0
    %5000 = vmatpush1.msra.mxu0 0.0
    %5001 = vmatprep.subr.mxu0 0.0
    %5002 = vmatpush1.msra.mxu0 0.0
    %5003 = vmatprep.subr.mxu0 0.0
    %5004 = vmatpush1.msra.mxu0 0.0
    %5005 = vmatprep.subr.mxu0 0.0
    %5006 = vmatpush1.msra.mxu0 0.0
    %5007 = vmatprep.subr.mxu0 0.0
    %5008 = vmatpush1.msra.mxu0 0.0
    %5009 = vmatprep.subr.mxu0 0.0
    %5010 = vmatpush1.msra.mxu0 0.0
    %5011 = vmatprep.mubr.f32.mxu0 0.0
    %5012 = vmatmul.mubr.f32.gmra.mrb[0].mxu0 %v4367
    %v5013 = vpop.f32.mrb[0].mxu0
    %v5014 = vadd.f32 0.0, %v5013
    %v5015 = vpop.f32.mrb[0].mxu0
    %5016 = vdwg.mxu0
    %v5017 = vadd.f32 %v4943, %v5014
    %s5018 = scalar_lea.vmem [#allocation22], 96
    %v5019 = vld [vmem:[%s5018] sm:$0xff]
    %v5020 = vld [vmem:[%s5018 + $0x8] sm:$0xff]
    %5022 = vrot.lane.b32.xlu0 %v4158, 80
    %v5023 = vpop.permute.xlu0 %5022
    %v5024 = vsel %vm2330, %v5023, 0
    %5026 = vmatprep.subr.mxu0 0.0
    %5027 = vmatpush1.msra.mxu0 %v5019
    %5028 = vmatprep.subr.mxu0 0.0
    %5029 = vmatpush1.msra.mxu0 %v5020
    %5030 = vmatprep.subr.mxu0 0.0
    %5031 = vmatpush1.msra.mxu0 0.0
    %5032 = vmatprep.subr.mxu0 0.0
    %5033 = vmatpush1.msra.mxu0 0.0
    %5034 = vmatprep.subr.mxu0 0.0
    %5035 = vmatpush1.msra.mxu0 0.0
    %5036 = vmatprep.subr.mxu0 0.0
    %5037 = vmatpush1.msra.mxu0 0.0
    %5038 = vmatprep.subr.mxu0 0.0
    %5039 = vmatpush1.msra.mxu0 0.0
    %5040 = vmatprep.subr.mxu0 0.0
    %5041 = vmatpush1.msra.mxu0 0.0
    %5042 = vmatprep.subr.mxu0 0.0
    %5043 = vmatpush1.msra.mxu0 0.0
    %5044 = vmatprep.subr.mxu0 0.0
    %5045 = vmatpush1.msra.mxu0 0.0
    %5046 = vmatprep.subr.mxu0 0.0
    %5047 = vmatpush1.msra.mxu0 0.0
    %5048 = vmatprep.subr.mxu0 0.0
    %5049 = vmatpush1.msra.mxu0 0.0
    %5050 = vmatprep.subr.mxu0 0.0
    %5051 = vmatpush1.msra.mxu0 0.0
    %5052 = vmatprep.subr.mxu0 0.0
    %5053 = vmatpush1.msra.mxu0 0.0
    %5054 = vmatprep.subr.mxu0 0.0
    %5055 = vmatpush1.msra.mxu0 0.0
    %5056 = vmatprep.subr.mxu0 0.0
    %5057 = vmatpush1.msra.mxu0 0.0
    %5058 = vmatprep.subr.mxu0 0.0
    %5059 = vmatpush1.msra.mxu0 0.0
    %5060 = vmatprep.subr.mxu0 0.0
    %5061 = vmatpush1.msra.mxu0 0.0
    %5062 = vmatprep.subr.mxu0 0.0
    %5063 = vmatpush1.msra.mxu0 0.0
    %5064 = vmatprep.subr.mxu0 0.0
    %5065 = vmatpush1.msra.mxu0 0.0
    %5066 = vmatprep.subr.mxu0 0.0
    %5067 = vmatpush1.msra.mxu0 0.0
    %5068 = vmatprep.subr.mxu0 0.0
    %5069 = vmatpush1.msra.mxu0 0.0
    %5070 = vmatprep.subr.mxu0 0.0
    %5071 = vmatpush1.msra.mxu0 0.0
    %5072 = vmatprep.subr.mxu0 0.0
    %5073 = vmatpush1.msra.mxu0 0.0
    %5074 = vmatprep.subr.mxu0 0.0
    %5075 = vmatpush1.msra.mxu0 0.0
    %5076 = vmatprep.subr.mxu0 0.0
    %5077 = vmatpush1.msra.mxu0 0.0
    %5078 = vmatprep.subr.mxu0 0.0
    %5079 = vmatpush1.msra.mxu0 0.0
    %5080 = vmatprep.subr.mxu0 0.0
    %5081 = vmatpush1.msra.mxu0 0.0
    %5082 = vmatprep.subr.mxu0 0.0
    %5083 = vmatpush1.msra.mxu0 0.0
    %5084 = vmatprep.subr.mxu0 0.0
    %5085 = vmatpush1.msra.mxu0 0.0
    %5086 = vmatprep.subr.mxu0 0.0
    %5087 = vmatpush1.msra.mxu0 0.0
    %5088 = vmatprep.subr.mxu0 0.0
    %5089 = vmatpush1.msra.mxu0 0.0
    %5090 = vmatprep.mubr.f32.mxu0 0.0
    %5091 = vmatmul.mubr.f32.gmra.mrb[0].mxu0 %v5024
    %v5092 = vpop.f32.mrb[0].mxu0
    %v5093 = vadd.f32 0.0, %v5092
    %v5094 = vpop.f32.mrb[0].mxu0
    %5095 = vdwg.mxu0
    %v5096 = vadd.f32 %v5017, %v5093
    %s5097 = scalar_lea.vmem [#allocation22], 112
    %v5098 = vld [vmem:[%s5097] sm:$0xff]
    %v5099 = vld [vmem:[%s5097 + $0x8] sm:$0xff]
    %5100 = vmatprep.subr.mxu0 0.0
    %5101 = vmatpush1.msra.mxu0 %v5098
    %5102 = vmatprep.subr.mxu0 0.0
    %5103 = vmatpush1.msra.mxu0 %v5099
    %5104 = vmatprep.subr.mxu0 0.0
    %5105 = vmatpush1.msra.mxu0 0.0
    %5106 = vmatprep.subr.mxu0 0.0
    %5107 = vmatpush1.msra.mxu0 0.0
    %5108 = vmatprep.subr.mxu0 0.0
    %5109 = vmatpush1.msra.mxu0 0.0
    %5110 = vmatprep.subr.mxu0 0.0
    %5111 = vmatpush1.msra.mxu0 0.0
    %5112 = vmatprep.subr.mxu0 0.0
    %5113 = vmatpush1.msra.mxu0 0.0
    %5114 = vmatprep.subr.mxu0 0.0
    %5115 = vmatpush1.msra.mxu0 0.0
    %5116 = vmatprep.subr.mxu0 0.0
    %5117 = vmatpush1.msra.mxu0 0.0
    %5118 = vmatprep.subr.mxu0 0.0
    %5119 = vmatpush1.msra.mxu0 0.0
    %5120 = vmatprep.subr.mxu0 0.0
    %5121 = vmatpush1.msra.mxu0 0.0
    %5122 = vmatprep.subr.mxu0 0.0
    %5123 = vmatpush1.msra.mxu0 0.0
    %5124 = vmatprep.subr.mxu0 0.0
    %5125 = vmatpush1.msra.mxu0 0.0
    %5126 = vmatprep.subr.mxu0 0.0
    %5127 = vmatpush1.msra.mxu0 0.0
    %5128 = vmatprep.subr.mxu0 0.0
    %5129 = vmatpush1.msra.mxu0 0.0
    %5130 = vmatprep.subr.mxu0 0.0
    %5131 = vmatpush1.msra.mxu0 0.0
    %5132 = vmatprep.subr.mxu0 0.0
    %5133 = vmatpush1.msra.mxu0 0.0
    %5134 = vmatprep.subr.mxu0 0.0
    %5135 = vmatpush1.msra.mxu0 0.0
    %5136 = vmatprep.subr.mxu0 0.0
    %5137 = vmatpush1.msra.mxu0 0.0
    %5138 = vmatprep.subr.mxu0 0.0
    %5139 = vmatpush1.msra.mxu0 0.0
    %5140 = vmatprep.subr.mxu0 0.0
    %5141 = vmatpush1.msra.mxu0 0.0
    %5142 = vmatprep.subr.mxu0 0.0
    %5143 = vmatpush1.msra.mxu0 0.0
    %5144 = vmatprep.subr.mxu0 0.0
    %5145 = vmatpush1.msra.mxu0 0.0
    %5146 = vmatprep.subr.mxu0 0.0
    %5147 = vmatpush1.msra.mxu0 0.0
    %5148 = vmatprep.subr.mxu0 0.0
    %5149 = vmatpush1.msra.mxu0 0.0
    %5150 = vmatprep.subr.mxu0 0.0
    %5151 = vmatpush1.msra.mxu0 0.0
    %5152 = vmatprep.subr.mxu0 0.0
    %5153 = vmatpush1.msra.mxu0 0.0
    %5154 = vmatprep.subr.mxu0 0.0
    %5155 = vmatpush1.msra.mxu0 0.0
    %5156 = vmatprep.subr.mxu0 0.0
    %5157 = vmatpush1.msra.mxu0 0.0
    %5158 = vmatprep.subr.mxu0 0.0
    %5159 = vmatpush1.msra.mxu0 0.0
    %5160 = vmatprep.subr.mxu0 0.0
    %5161 = vmatpush1.msra.mxu0 0.0
    %5162 = vmatprep.subr.mxu0 0.0
    %5163 = vmatpush1.msra.mxu0 0.0
    %5164 = vmatprep.mubr.f32.mxu0 0.0
    %5165 = vmatmul.mubr.f32.gmra.mrb[0].mxu0 %v4263
    %v5166 = vpop.f32.mrb[0].mxu0
    %v5167 = vadd.f32 0.0, %v5166
    %v5168 = vpop.f32.mrb[0].mxu0
    %5169 = vdwg.mxu0
    %v5170 = vadd.f32 %v5096, %v5167
    %v5171 = vld [vmem:[#allocation23] sm:$0x1]
    %v5173 = vlaneseq
    %v5174 = vshrl.u32 %v5173, 7
    %v5175 = vsub.s32 0, %v5174
    %v5176 = vrot.slane %v5171, %v5175
    %v5178 = vadd.f32 %v5170, %v5176
    %v5179 = vmax.f32 %v5178, 0.0
    %v5180 = vld [vmem:[%s24] sm:$0xff]
    %v5181 = vld [vmem:[%s24 + $0x8] sm:$0xff]
    %v5182 = vld [vmem:[%s24 + $0x10] sm:$0xff]
    %v5183 = vld [vmem:[%s24 + $0x18] sm:$0xff]
    %v5184 = vld [vmem:[%s24 + $0x20] sm:$0xff]
    %v5185 = vld [vmem:[%s24 + $0x28] sm:$0xff]
    %v5186 = vld [vmem:[%s24 + $0x30] sm:$0xff]
    %v5187 = vld [vmem:[%s24 + $0x38] sm:$0xff]
    %v5188 = vld [vmem:[%s24 + $0x40] sm:$0xff]
    %v5189 = vld [vmem:[%s24 + $0x48] sm:$0xff]
    %v5190 = vld [vmem:[%s24 + $0x50] sm:$0xff]
    %v5191 = vld [vmem:[%s24 + $0x58] sm:$0xff]
    %v5192 = vld [vmem:[%s24 + $0x60] sm:$0xff]
    %v5193 = vld [vmem:[%s24 + $0x68] sm:$0xff]
    %v5194 = vld [vmem:[%s24 + $0x70] sm:$0xff]
    %v5195 = vld [vmem:[%s24 + $0x78] sm:$0xff]
    %v5196 = vld [vmem:[#allocation25] sm:$0x1]
    %v5198 = vlaneseq
    %v5199 = vshrl.u32 %v5198, 7
    %v5200 = vsub.s32 0, %v5199
    %v5201 = vrot.slane %v5196, %v5200
    %5203 = vmatprep.subr.mxu0 0.0
    %5204 = vmatpush1.msra.mxu0 %v5180
    %5205 = vmatprep.subr.mxu0 0.0
    %5206 = vmatpush1.msra.mxu0 %v5181
    %5207 = vmatprep.subr.mxu0 0.0
    %5208 = vmatpush1.msra.mxu0 %v5182
    %5209 = vmatprep.subr.mxu0 0.0
    %5210 = vmatpush1.msra.mxu0 %v5183
    %5211 = vmatprep.subr.mxu0 0.0
    %5212 = vmatpush1.msra.mxu0 %v5184
    %5213 = vmatprep.subr.mxu0 0.0
    %5214 = vmatpush1.msra.mxu0 %v5185
    %5215 = vmatprep.subr.mxu0 0.0
    %5216 = vmatpush1.msra.mxu0 %v5186
    %5217 = vmatprep.subr.mxu0 0.0
    %5218 = vmatpush1.msra.mxu0 %v5187
    %5219 = vmatprep.subr.mxu0 0.0
    %5220 = vmatpush1.msra.mxu0 %v5188
    %5221 = vmatprep.subr.mxu0 0.0
    %5222 = vmatpush1.msra.mxu0 %v5189
    %5223 = vmatprep.subr.mxu0 0.0
    %5224 = vmatpush1.msra.mxu0 %v5190
    %5225 = vmatprep.subr.mxu0 0.0
    %5226 = vmatpush1.msra.mxu0 %v5191
    %5227 = vmatprep.subr.mxu0 0.0
    %5228 = vmatpush1.msra.mxu0 %v5192
    %5229 = vmatprep.subr.mxu0 0.0
    %5230 = vmatpush1.msra.mxu0 %v5193
    %5231 = vmatprep.subr.mxu0 0.0
    %5232 = vmatpush1.msra.mxu0 %v5194
    %5233 = vmatprep.subr.mxu0 0.0
    %5234 = vmatpush1.msra.mxu0 %v5195
    %5235 = vmatprep.subr.mxu0 0.0
    %5236 = vmatpush1.msra.mxu0 0.0
    %5237 = vmatprep.subr.mxu0 0.0
    %5238 = vmatpush1.msra.mxu0 0.0
    %5239 = vmatprep.subr.mxu0 0.0
    %5240 = vmatpush1.msra.mxu0 0.0
    %5241 = vmatprep.subr.mxu0 0.0
    %5242 = vmatpush1.msra.mxu0 0.0
    %5243 = vmatprep.subr.mxu0 0.0
    %5244 = vmatpush1.msra.mxu0 0.0
    %5245 = vmatprep.subr.mxu0 0.0
    %5246 = vmatpush1.msra.mxu0 0.0
    %5247 = vmatprep.subr.mxu0 0.0
    %5248 = vmatpush1.msra.mxu0 0.0
    %5249 = vmatprep.subr.mxu0 0.0
    %5250 = vmatpush1.msra.mxu0 0.0
    %5251 = vmatprep.subr.mxu0 0.0
    %5252 = vmatpush1.msra.mxu0 0.0
    %5253 = vmatprep.subr.mxu0 0.0
    %5254 = vmatpush1.msra.mxu0 0.0
    %5255 = vmatprep.subr.mxu0 0.0
    %5256 = vmatpush1.msra.mxu0 0.0
    %5257 = vmatprep.subr.mxu0 0.0
    %5258 = vmatpush1.msra.mxu0 0.0
    %5259 = vmatprep.subr.mxu0 0.0
    %5260 = vmatpush1.msra.mxu0 0.0
    %5261 = vmatprep.subr.mxu0 0.0
    %5262 = vmatpush1.msra.mxu0 0.0
    %5263 = vmatprep.subr.mxu0 0.0
    %5264 = vmatpush1.msra.mxu0 0.0
    %5265 = vmatprep.subr.mxu0 0.0
    %5266 = vmatpush1.msra.mxu0 0.0
    %5267 = vmatprep.mubr.f32.mxu0 0.0
    %5268 = vmatmul.mubr.f32.gmra.mrb[0].mxu0 %v5179
    %v5269 = vpop.f32.mrb[0].mxu0
    %v5270 = vadd.f32 %v5201, %v5269
    %v5271 = vpop.f32.mrb[0].mxu0
    %5272 = vdwg.mxu0
    %v5273 = vmul.f32 %v5270, %v5270
    %vm5274 = vcmask 123904
    %v5275 = vsel %vm5274, %v5273, 0.0
    %5276 = vadd.xlane.f32.xlu0 %v5275
    %v5277 = vpop.xlane.xlu0 %5276
    %v5278 = vrsqrt.pop %v5277
    %v5279 = vmul.f32 %v5277, %v5278
    %vm5280 = vcmp.eq.f32.partialorder %v5277, inf
    %v5281 = vsel %vm5280, %v5277, %v5279
    %vm5282 = vcmp.eq.f32.partialorder %v5277, 0.0
    %v5283 = vand.u32 %v5277, 2147483648
    %v5284 = vsel %vm5282, %v5283, %v5281
    %v5285 = vmax.f32 %v5284, 1e-12
    %v5286 = vrcp.pop %v5285
    %v5287 = vmul.f32 %v5270, %v5286
    %5288 = vst.msk [vmem:[#allocation26] sm:$0x3] %vm5274, %v5287
    // Predicated region
    $region166: #{forward.1} parent=1 // pred_check
      _
    $region167: #{forward.1} parent=1 // pred_check_branch
      %5290 = sbr.rel (0) target = $region169
    $region168: #{forward.1} parent=1 // pred_region
      %s5292 = ssub.s32 32, 32
      %5293 = vsyncadd [#allocation4], %s5292
      %s5295 = sshll.u32 [#allocation26], 4
      %s5296 = int_to_ptr.vmem [resolvable:$true] %s5295
      %5298 = dma.vmem_to_hbm [thread:$0]  %s5296, 32, %s26, [#allocation4]
    $region169: #{forward.1} parent=1 // pred_fallthru
      _
    // Predicated region
    $region170: #{forward.1} parent=1 // pred_check
      _
    $region171: #{forward.1} parent=1 // pred_check_branch
      %5300 = sbr.rel (0) target = $region173
    $region172: #{forward.1} parent=1 // pred_region
      %5301 = dma.done [#allocation4], 32
    $region173: #{forward.1} parent=1 // pred_fallthru
      _
    %5302 = vsyncpa [#allocation3], 1
    %5303 = vsyncpa [#allocation6], 1
    %5304 = vsyncpa [#allocation9], 1
    %5305 = vsyncpa [#allocation12], 1
    %5306 = vsyncpa [#allocation15], 1
    %5307 = vsyncpa [#allocation18], 1
    %5308 = vsyncpa [#allocation21], 1
    %5309 = vsyncpa [#allocation24], 1
    %5310 = vsyncpa [#allocation4], 1

</llo_original>
